<compile_context>
chip_gen: v5e
topology: v5e:2x2
jax: 0.10.0
libtpu: 0.0.40
codegen_flags: <defaults>
</compile_context>

<pallas_src>
import functools

import jax
import jax.numpy as jnp
from jax import lax
from jax.experimental import pallas as pl
from jax.experimental.pallas import tpu as pltpu

NEG_BIG = -1e30  # finite stand-in for -inf inside kernels


def _full_spec(shape):
    nd = len(shape)
    return pl.BlockSpec(shape, lambda i, nd=nd: (0,) * nd)


# --------------------------------------------------------------------------- fused kernel
def _xgat_forward_kernel(adj_dst_ref, adj_src_ref, pair_ref,
                         ent_emb_ref, rel_emb_ref,
                         ent_cnt_ref, rel_cnt_ref,
                         t_rel_ref, attn_ref,
                         loss_ref,
                         *, depth, gamma):
    f32 = jnp.float32
    n = ent_cnt_ref.shape[0]          # node_size
    e_cnt = t_rel_ref.shape[0]        # triple_size (edges)
    dim = rel_emb_ref.shape[1]        # node_hid == rel_hid
    p2 = pair_ref.shape[0]            # 2 * num_pairs
    p_cnt = p2 // 2
    pad_w = 128                       # lane-aligned pad width (2*depth <= 128)

    # ---- avg(adj, emb): sparse row-softmax of the edge-count matrix, then @ emb -------
    # f32 operands everywhere -> Mosaic lowers to the exact multi-pass f32 MXU path
    # (no implicit bf16 truncation of gathered rows / softmax weights).
    def sparse_avg(cnt, emb):
        present = cnt > 0.0
        masked = jnp.where(present, cnt, NEG_BIG)
        m = jnp.max(masked, axis=1, keepdims=True)
        m = jnp.where(m < -1e29, 0.0, m)                     # rows with no entries
        ex = jnp.where(present, jnp.exp(cnt - m), 0.0)
        denom = jnp.maximum(jnp.sum(ex, axis=1, keepdims=True), 1e-30)
        return jnp.dot(ex / denom, emb, preferred_element_type=f32)       # [n, dim]

    ent_feat = sparse_avg(ent_cnt_ref[...], ent_emb_ref[...])
    rel_feat = sparse_avg(rel_cnt_ref[...], rel_emb_ref[...])

    # ---- layer-invariant quantities: computed ONCE, reused by both encoders ------------
    tri = jnp.dot(t_rel_ref[...], rel_emb_ref[...],
                  preferred_element_type=f32)                # sparse.mm(tri_rel, rel_emb)
    tri = tri / jnp.maximum(
        jnp.sqrt(jnp.sum(tri * tri, axis=1, keepdims=True)), 1e-12)   # F.normalize(dim=1)

    dst = adj_dst_ref[...]                                   # [1, E] int32 == adj[0]
    src = adj_src_ref[...]                                   # [E, 1] int32 == adj[1]
    dst_mask_f = (lax.broadcasted_iota(jnp.int32, (n, e_cnt), 0) == dst).astype(f32)
    gather = (lax.broadcasted_iota(jnp.int32, (e_cnt, n), 1) == src).astype(f32)  # [E,N]

    # Attention scores per (encoder, layer): VPU broadcast-multiply + lane reduce
    # (no degenerate MXU push); exp over E edges only, not the [N, E] broadcast.
    # (Global-max shift; softmax is invariant and |att| is O(1) so no over/underflow.)
    exp_cols = []
    for k in range(2 * depth):
        a_row = attn_ref[k:k + 1, :]                         # [1, D]
        att = jnp.sum(tri * a_row, axis=1, keepdims=True)    # [E, 1]  == tri @ attn_k
        gmax = jnp.max(att, axis=0, keepdims=True)           # [1, 1]
        exp_cols.append(jnp.exp(att - gmax))                 # [E, 1]

    # Per-destination softmax denominators for ALL 2*depth scores at once
    # (layer-invariant).  Scores are packed in lanes 0..2*depth-1 of a 128-wide slab so
    # the segment-sum is one ordinary lane-aligned matmul.
    lane_e = lax.broadcasted_iota(jnp.int32, (e_cnt, pad_w), 1)
    exp_pad = jnp.zeros((e_cnt, pad_w), f32)
    for k in range(2 * depth):
        exp_pad = exp_pad + jnp.where(lane_e == k, exp_cols[k], 0.0)
    denom_pad = jnp.dot(dst_mask_f, exp_pad, preferred_element_type=f32)   # [N, 128]
    lane_n = lax.broadcasted_iota(jnp.int32, (n, pad_w), 1)
    inv_denoms = []
    for k in range(2 * depth):
        d_k = jnp.sum(jnp.where(lane_n == k, denom_pad, 0.0),
                      axis=1, keepdims=True)                 # [N, 1]
        inv_denoms.append(1.0 / jnp.maximum(d_k, 1e-30))     # empty rows -> output 0

    # ---- both GraphAttention encoders, batched per layer -------------------------------
    # e/r features ride side-by-side so the gather and aggregation matmuls have a
    # 2*D = 256 wide RHS (fills the 256-wide MXU on v6e/v7x, halves the matmul count).
    feats_e = jnp.tanh(ent_feat)                             # self.activation(features)
    feats_r = jnp.tanh(rel_feat)
    outs_e = [feats_e]
    outs_r = [feats_r]
    for l in range(depth):
        feats_cat = jnp.concatenate([feats_e, feats_r], axis=1)           # [N, 2D]
        # features[adj[1]] : exact one-hot row gather (f32 matmul, no bf16 truncation).
        # TODO(synk): replace with jnp.take / scalar-prefetched DMA gather at production
        # N (O(E*D) instead of O(E*N*D)); the one-hot matmul is kept as the
        # guaranteed-lowering path at demo sizes.
        neighs = jnp.dot(gather, feats_cat, preferred_element_type=f32)   # [E, 2D]
        ne = neighs[:, :dim]
        nr = neighs[:, dim:]
        he = jnp.sum(ne * tri, axis=1, keepdims=True)
        hr = jnp.sum(nr * tri, axis=1, keepdims=True)
        ne = ne - 2.0 * he * tri                             # Householder reflection
        nr = nr - 2.0 * hr * tri
        # softmax numerators fold in as a per-edge column scale (VPU);
        # the per-destination denominator divides out after the aggregation.
        scaled = jnp.concatenate([ne * exp_cols[l], nr * exp_cols[depth + l]], axis=1)
        # scatter_sum(neighs * att, index=adj[0]) == dst_mask @ scaled  (shared 0/1 LHS).
        # TODO(synk): segment-sum over destination-sorted edges at production sizes.
        agg = jnp.dot(dst_mask_f, scaled, preferred_element_type=f32)     # [N, 2D]
        feats_e = jnp.tanh(agg[:, :dim] * inv_denoms[l])
        feats_r = jnp.tanh(agg[:, dim:] * inv_denoms[depth + l])
        outs_e.append(feats_e)
        outs_r.append(feats_r)

    emb = jnp.concatenate(outs_e + outs_r, axis=1)           # cat(out_ent, out_rel)

    # ---- align loss: pair gathers / masks built in-kernel from int32 pair indices ------
    pidx = pair_ref[...]                                     # [2P, 1]: l indices then r
    oh2 = (lax.broadcasted_iota(jnp.int32, (p2, n), 1) == pidx).astype(f32)   # [2P, N]
    lr = jnp.dot(oh2, emb, preferred_element_type=f32)       # exact f32 row gather [2P,F]
    l_emb = lr[:p_cnt, :]
    r_emb = lr[p_cnt:, :]
    pos = jnp.sum(jnp.square(l_emb - r_emb), axis=-1, keepdims=True)          # [P, 1]
    # mask == 1 - onehot(l) - onehot(r); for a pair with l == r the column value is -1,
    # which is exactly what the PyTorch reference computes.
    mask = 1.0 - oh2[:p_cnt, :] - oh2[p_cnt:, :]                              # [P, N]

    lr_sq = jnp.sum(jnp.square(lr), axis=1, keepdims=True)                    # [2P, 1]
    emb_sq = jnp.sum(jnp.square(emb), axis=1)[None, :]                        # [1, N]
    # f32 NT matmul (no bf16 cross-term error).  The 2P-row LHS under-fills the MXU but
    # is accepted at demo size (pad P to >=128 only at production pair counts).
    neg = lr_sq + emb_sq - 2.0 * lax.dot_general(
        lr, emb, (((1,), (1,)), ((), ())), preferred_element_type=f32)        # [2P, N]

    loss = (jnp.tile(pos, (2, 1)) - neg + gamma) * jnp.tile(mask, (2, 1))
    mean = jnp.mean(loss, axis=-1, keepdims=True)
    std = jnp.sqrt(jnp.mean(jnp.square(loss - mean), axis=-1, keepdims=True))
    loss = (loss - mean) / jnp.maximum(std, 1e-12)           # eps guard: std==0 -> no NaN
    x = 20.0 * loss + 8.0                                    # lamb, tau
    mx = jnp.max(x, axis=-1, keepdims=True)
    lse = mx + jnp.log(jnp.sum(jnp.exp(x - mx), axis=-1, keepdims=True))      # [2P, 1]
    # mean over pairs of (l_lse + r_lse) == sum of all 2P rows / P
    loss_ref[...] = jnp.sum(lse, axis=0, keepdims=True) / p_cnt


# --------------------------------------------------------------------------- wrapper
def xgat_forward(pair_idx, adj_dst, adj_src, ent_emb, rel_emb,
                 ent_cnt, rel_cnt, t_rel, attn_all, *, depth, gamma):
    n, d = ent_emb.shape
    r = rel_emb.shape[0]
    e = t_rel.shape[0]
    p2 = pair_idx.shape[0]
    kern = functools.partial(_xgat_forward_kernel, depth=depth, gamma=float(gamma))
    loss = pl.pallas_call(
        kern,
        grid=(1,),
        in_specs=[_full_spec((1, e)), _full_spec((e, 1)), _full_spec((p2, 1)),
                  _full_spec((n, d)), _full_spec((r, d)),
                  _full_spec((n, n)), _full_spec((n, r)),
                  _full_spec((e, r)), _full_spec((2 * depth, d))],
        out_specs=_full_spec((1, 1)),
        out_shape=jax.ShapeDtypeStruct((1, 1), jnp.float32),
        # TODO(synk): at production sizes add a destination-row grid axis marked
        # "parallel" (v7x has 2 TensorCores) and re-derive the VMEM budget for 64 MiB.
        compiler_params=pltpu.CompilerParams(
            dimension_semantics=("arbitrary",),
            vmem_limit_bytes=32 * 1024 * 1024),   # < 64 MiB physical on v7x
    )(adj_dst, adj_src, pair_idx, ent_emb, rel_emb, ent_cnt, rel_cnt, t_rel, attn_all)
    return loss[0, 0]


def xavier_uniform(key, shape):
    fan_out, fan_in = shape[0], shape[1]
    bound = (6.0 / (fan_in + fan_out)) ** 0.5
    return jax.random.uniform(key, shape, jnp.float32, -bound, bound)


# --------------------------------------------------------------------------- main
if __name__ == "__main__":
    N = 128      # node_size == new_node_size
    R = 32       # rel_size
    E = 256      # triple_size (number of adjacency edges)
    D = 128      # node_hid == rel_hid  (multiple of 128 -> lane-dense feature slabs)
    DEPTH = 2
    P = 16       # training pairs
    GAMMA = 3

    key = jax.random.PRNGKey(0)
    keys = jax.random.split(key, 14)

    # parameters (deterministic xavier-uniform init)
    ent_emb = xavier_uniform(keys[0], (N, D))
    rel_emb = xavier_uniform(keys[1], (R, D))
    e_attn = [xavier_uniform(keys[2 + l], (D, 1)) for l in range(DEPTH)]
    r_attn = [xavier_uniform(keys[2 + DEPTH + l], (D, 1)) for l in range(DEPTH)]
    # attention kernels packed as lane-dense rows: [2*DEPTH, D] (e kernels then r kernels)
    attn_all = jnp.concatenate([k.T for k in (e_attn + r_attn)], axis=0)

    # adjacency: E unique (head, tail) pairs, sorted => coalesced order == edge order
    flat = jnp.sort(jax.random.permutation(keys[6], N * N)[:E])
    adj0 = (flat // N).astype(jnp.int32)                     # adj[0] : destination rows
    adj1 = (flat % N).astype(jnp.int32)                      # adj[1] : neighbour columns
    adj_dst = adj0.reshape(1, E)                             # lane-major
    adj_src = adj1.reshape(E, 1)

    # r_index / r_val -> dense [triple_size, rel_size] (duplicates summed, as coalesce does)
    rel_of_triple = jax.random.randint(keys[7], (E,), 0, R)
    r_val = jax.random.uniform(keys[8], (E,), jnp.float32, 0.5, 1.5)
    t_rel = jnp.zeros((E, R), jnp.float32).at[jnp.arange(E), rel_of_triple].add(r_val)

    # ent_matrix / rel_matrix sparse patterns -> dense count matrices (coalesced values)
    ke, kr = 4 * N, 3 * N
    ent_rows = jax.random.randint(keys[9], (ke,), 0, N)
    ent_cols = jax.random.randint(keys[10], (ke,), 0, N)
    ent_cnt = jnp.zeros((N, N), jnp.float32).at[ent_rows, ent_cols].add(1.0)
    rel_rows = jax.random.randint(keys[11], (kr,), 0, N)
    rel_cols = jax.random.randint(keys[12], (kr,), 0, R)
    rel_cnt = jnp.zeros((N, R), jnp.float32).at[rel_rows, rel_cols].add(1.0)

    # training pairs packed as [l_0..l_{P-1}, r_0..r_{P-1}] int32 column vector
    train_pairs = jax.random.randint(keys[13], (P, 2), 0, N)
    pair_idx = jnp.concatenate([train_pairs[:, 0], train_pairs[:, 1]],
                               axis=0).reshape(2 * P, 1).astype(jnp.int32)

    loss = xgat_forward(pair_idx, adj_dst, adj_src, ent_emb, rel_emb,
                        ent_cnt, rel_cnt, t_rel, attn_all, depth=DEPTH, gamma=GAMMA)
    jax.block_until_ready(loss)
    assert jnp.isfinite(loss)
    print("KERNEL_OK")
</pallas_src>

<mosaic_0001>
module attributes {stable_mosaic.version = 11 : i64} {
  func.func @_xgat_forward_kernel(%arg0: i32, %arg1: memref<1x256xi32, #tpu.memory_space<vmem>>, %arg2: memref<256x1xi32, #tpu.memory_space<vmem>>, %arg3: memref<32x1xi32, #tpu.memory_space<vmem>>, %arg4: memref<128x128xf32, #tpu.memory_space<vmem>>, %arg5: memref<32x128xf32, #tpu.memory_space<vmem>>, %arg6: memref<128x128xf32, #tpu.memory_space<vmem>>, %arg7: memref<128x32xf32, #tpu.memory_space<vmem>>, %arg8: memref<256x32xf32, #tpu.memory_space<vmem>>, %arg9: memref<4x128xf32, #tpu.memory_space<vmem>>, %arg10: memref<1x1xf32, #tpu.memory_space<vmem>>) attributes {dimension_semantics = [#tpu.dimension_semantics<arbitrary>], iteration_bounds = array<i64: 1>, scalar_prefetch = 0 : i64, scratch_operands = 0 : i64, tpu.core_type = #tpu.core_type<tc>, window_params = [{pipeline_mode = #tpu.pipeline_mode<synchronous>, transform_indices = @transform_0, window_bounds = array<i64: 1, 256>}, {pipeline_mode = #tpu.pipeline_mode<synchronous>, transform_indices = @transform_1, window_bounds = array<i64: 256, 1>}, {pipeline_mode = #tpu.pipeline_mode<synchronous>, transform_indices = @transform_2, window_bounds = array<i64: 32, 1>}, {pipeline_mode = #tpu.pipeline_mode<synchronous>, transform_indices = @transform_3, window_bounds = array<i64: 128, 128>}, {pipeline_mode = #tpu.pipeline_mode<synchronous>, transform_indices = @transform_4, window_bounds = array<i64: 32, 128>}, {pipeline_mode = #tpu.pipeline_mode<synchronous>, transform_indices = @transform_5, window_bounds = array<i64: 128, 128>}, {pipeline_mode = #tpu.pipeline_mode<synchronous>, transform_indices = @transform_6, window_bounds = array<i64: 128, 32>}, {pipeline_mode = #tpu.pipeline_mode<synchronous>, transform_indices = @transform_7, window_bounds = array<i64: 256, 32>}, {pipeline_mode = #tpu.pipeline_mode<synchronous>, transform_indices = @transform_8, window_bounds = array<i64: 4, 128>}, {pipeline_mode = #tpu.pipeline_mode<synchronous>, transform_indices = @transform_9, window_bounds = array<i64: 1, 1>}]} {
    %c0 = arith.constant 0 : index
    %c0_0 = arith.constant 0 : index
    %0 = vector.load %arg6[%c0, %c0_0] : memref<128x128xf32, #tpu.memory_space<vmem>>, vector<128x128xf32>
    %c0_1 = arith.constant 0 : index
    %c0_2 = arith.constant 0 : index
    %1 = vector.load %arg4[%c0_1, %c0_2] : memref<128x128xf32, #tpu.memory_space<vmem>>, vector<128x128xf32>
    %cst = arith.constant 0.000000e+00 : f32
    %2 = vector.broadcast %cst : f32 to vector<128x128xf32>
    %3 = arith.cmpf ogt, %0, %2 : vector<128x128xf32>
    %cst_3 = arith.constant -1.000000e+30 : f32
    %4 = vector.broadcast %cst_3 : f32 to vector<128x128xf32>
    %5 = arith.select %3, %0, %4 : vector<128x128xi1>, vector<128x128xf32>
    %cst_4 = arith.constant dense<0xFF800000> : vector<128xf32>
    %6 = vector.multi_reduction <maximumf>, %5, %cst_4 [1] : vector<128x128xf32> to vector<128xf32>
    %7 = vector.shape_cast %6 : vector<128xf32> to vector<128x1xf32>
    %cst_5 = arith.constant -1.000000e+29 : f32
    %8 = vector.broadcast %cst_5 : f32 to vector<128x1xf32>
    %9 = arith.cmpf olt, %7, %8 : vector<128x1xf32>
    %cst_6 = arith.constant 0.000000e+00 : f32
    %10 = vector.broadcast %cst_6 : f32 to vector<128x1xf32>
    %11 = arith.select %9, %10, %7 : vector<128x1xi1>, vector<128x1xf32>
    %12 = vector.broadcast %11 : vector<128x1xf32> to vector<128x128xf32>
    %13 = arith.subf %0, %12 : vector<128x128xf32>
    %14 = math.exp %13 : vector<128x128xf32>
    %cst_7 = arith.constant 0.000000e+00 : f32
    %15 = vector.broadcast %cst_7 : f32 to vector<128x128xf32>
    %16 = arith.select %3, %14, %15 : vector<128x128xi1>, vector<128x128xf32>
    %cst_8 = arith.constant dense<0.000000e+00> : vector<128xf32>
    %17 = vector.multi_reduction <add>, %16, %cst_8 [1] : vector<128x128xf32> to vector<128xf32>
    %18 = vector.shape_cast %17 : vector<128xf32> to vector<128x1xf32>
    %cst_9 = arith.constant 1.000000e-30 : f32
    %19 = vector.broadcast %cst_9 : f32 to vector<128x1xf32>
    %20 = arith.maximumf %18, %19 : vector<128x1xf32>
    %21 = vector.broadcast %20 : vector<128x1xf32> to vector<128x128xf32>
    %22 = arith.divf %16, %21 : vector<128x128xf32>
    %cst_10 = arith.constant dense<0.000000e+00> : vector<128x128xf32>
    %23 = tpu.matmul %22, %1, %cst_10 {dimension_numbers = #tpu.dot_dimension_numbers<[1], [0], [0], [1], [0, 0, 1, 1], [], []>} : vector<128x128xf32>, vector<128x128xf32>, vector<128x128xf32> -> vector<128x128xf32>
    %c0_11 = arith.constant 0 : index
    %c0_12 = arith.constant 0 : index
    %24 = vector.load %arg7[%c0_11, %c0_12] : memref<128x32xf32, #tpu.memory_space<vmem>>, vector<128x32xf32>
    %c0_13 = arith.constant 0 : index
    %c0_14 = arith.constant 0 : index
    %25 = vector.load %arg5[%c0_13, %c0_14] : memref<32x128xf32, #tpu.memory_space<vmem>>, vector<32x128xf32>
    %cst_15 = arith.constant 0.000000e+00 : f32
    %26 = vector.broadcast %cst_15 : f32 to vector<128x32xf32>
    %27 = arith.cmpf ogt, %24, %26 : vector<128x32xf32>
    %cst_16 = arith.constant -1.000000e+30 : f32
    %28 = vector.broadcast %cst_16 : f32 to vector<128x32xf32>
    %29 = arith.select %27, %24, %28 : vector<128x32xi1>, vector<128x32xf32>
    %cst_17 = arith.constant dense<0xFF800000> : vector<128xf32>
    %30 = vector.multi_reduction <maximumf>, %29, %cst_17 [1] : vector<128x32xf32> to vector<128xf32>
    %31 = vector.shape_cast %30 : vector<128xf32> to vector<128x1xf32>
    %cst_18 = arith.constant -1.000000e+29 : f32
    %32 = vector.broadcast %cst_18 : f32 to vector<128x1xf32>
    %33 = arith.cmpf olt, %31, %32 : vector<128x1xf32>
    %cst_19 = arith.constant 0.000000e+00 : f32
    %34 = vector.broadcast %cst_19 : f32 to vector<128x1xf32>
    %35 = arith.select %33, %34, %31 : vector<128x1xi1>, vector<128x1xf32>
    %36 = vector.broadcast %35 : vector<128x1xf32> to vector<128x32xf32>
    %37 = arith.subf %24, %36 : vector<128x32xf32>
    %38 = math.exp %37 : vector<128x32xf32>
    %cst_20 = arith.constant 0.000000e+00 : f32
    %39 = vector.broadcast %cst_20 : f32 to vector<128x32xf32>
    %40 = arith.select %27, %38, %39 : vector<128x32xi1>, vector<128x32xf32>
    %cst_21 = arith.constant dense<0.000000e+00> : vector<128xf32>
    %41 = vector.multi_reduction <add>, %40, %cst_21 [1] : vector<128x32xf32> to vector<128xf32>
    %42 = vector.shape_cast %41 : vector<128xf32> to vector<128x1xf32>
    %cst_22 = arith.constant 1.000000e-30 : f32
    %43 = vector.broadcast %cst_22 : f32 to vector<128x1xf32>
    %44 = arith.maximumf %42, %43 : vector<128x1xf32>
    %45 = vector.broadcast %44 : vector<128x1xf32> to vector<128x32xf32>
    %46 = arith.divf %40, %45 : vector<128x32xf32>
    %cst_23 = arith.constant dense<0.000000e+00> : vector<128x128xf32>
    %47 = tpu.matmul %46, %25, %cst_23 {dimension_numbers = #tpu.dot_dimension_numbers<[1], [0], [0], [1], [0, 0, 1, 1], [], []>} : vector<128x32xf32>, vector<32x128xf32>, vector<128x128xf32> -> vector<128x128xf32>
    %c0_24 = arith.constant 0 : index
    %c0_25 = arith.constant 0 : index
    %48 = vector.load %arg8[%c0_24, %c0_25] : memref<256x32xf32, #tpu.memory_space<vmem>>, vector<256x32xf32>
    %c0_26 = arith.constant 0 : index
    %c0_27 = arith.constant 0 : index
    %49 = vector.load %arg5[%c0_26, %c0_27] : memref<32x128xf32, #tpu.memory_space<vmem>>, vector<32x128xf32>
    %cst_28 = arith.constant dense<0.000000e+00> : vector<256x128xf32>
    %50 = tpu.matmul %48, %49, %cst_28 {dimension_numbers = #tpu.dot_dimension_numbers<[1], [0], [0], [1], [0, 0, 1, 1], [], []>} : vector<256x32xf32>, vector<32x128xf32>, vector<256x128xf32> -> vector<256x128xf32>
    %51 = arith.mulf %50, %50 : vector<256x128xf32>
    %cst_29 = arith.constant dense<0.000000e+00> : vector<256xf32>
    %52 = vector.multi_reduction <add>, %51, %cst_29 [1] : vector<256x128xf32> to vector<256xf32>
    %53 = vector.shape_cast %52 : vector<256xf32> to vector<256x1xf32>
    %54 = math.sqrt %53 : vector<256x1xf32>
    %cst_30 = arith.constant 9.99999996E-13 : f32
    %55 = vector.broadcast %cst_30 : f32 to vector<256x1xf32>
    %56 = arith.maximumf %54, %55 : vector<256x1xf32>
    %57 = vector.broadcast %56 : vector<256x1xf32> to vector<256x128xf32>
    %58 = arith.divf %50, %57 : vector<256x128xf32>
    %c0_31 = arith.constant 0 : index
    %c0_32 = arith.constant 0 : index
    %59 = vector.load %arg1[%c0_31, %c0_32] : memref<1x256xi32, #tpu.memory_space<vmem>>, vector<1x256xi32>
    %c0_33 = arith.constant 0 : index
    %c0_34 = arith.constant 0 : index
    %60 = vector.load %arg2[%c0_33, %c0_34] : memref<256x1xi32, #tpu.memory_space<vmem>>, vector<256x1xi32>
    %61 = tpu.iota {dimensions = array<i32: 0>} : vector<128x256xi32>
    %62 = vector.broadcast %59 : vector<1x256xi32> to vector<128x256xi32>
    %63 = arith.cmpi eq, %61, %62 : vector<128x256xi32>
    %64 = arith.extui %63 : vector<128x256xi1> to vector<128x256xi32>
    %65 = arith.sitofp %64 : vector<128x256xi32> to vector<128x256xf32>
    %66 = tpu.iota {dimensions = array<i32: 1>} : vector<256x128xi32>
    %67 = vector.broadcast %60 : vector<256x1xi32> to vector<256x128xi32>
    %68 = arith.cmpi eq, %66, %67 : vector<256x128xi32>
    %69 = arith.extui %68 : vector<256x128xi1> to vector<256x128xi32>
    %70 = arith.sitofp %69 : vector<256x128xi32> to vector<256x128xf32>
    %c0_35 = arith.constant 0 : index
    %c0_36 = arith.constant 0 : index
    %71 = vector.load %arg9[%c0_35, %c0_36] : memref<4x128xf32, #tpu.memory_space<vmem>>, vector<1x128xf32>
    %72 = vector.broadcast %71 : vector<1x128xf32> to vector<256x128xf32>
    %73 = arith.mulf %58, %72 : vector<256x128xf32>
    %cst_37 = arith.constant dense<0.000000e+00> : vector<256xf32>
    %74 = vector.multi_reduction <add>, %73, %cst_37 [1] : vector<256x128xf32> to vector<256xf32>
    %75 = vector.shape_cast %74 : vector<256xf32> to vector<256x1xf32>
    %cst_38 = arith.constant dense<0xFF800000> : vector<1xf32>
    %76 = vector.multi_reduction <maximumf>, %75, %cst_38 [0] : vector<256x1xf32> to vector<1xf32>
    %77 = vector.shape_cast %76 : vector<1xf32> to vector<1x1xf32>
    %78 = vector.broadcast %77 : vector<1x1xf32> to vector<256x1xf32>
    %79 = arith.subf %75, %78 : vector<256x1xf32>
    %80 = math.exp %79 : vector<256x1xf32>
    %c1 = arith.constant 1 : index
    %c0_39 = arith.constant 0 : index
    %81 = vector.load %arg9[%c1, %c0_39] : memref<4x128xf32, #tpu.memory_space<vmem>>, vector<1x128xf32>
    %82 = vector.broadcast %81 : vector<1x128xf32> to vector<256x128xf32>
    %83 = arith.mulf %58, %82 : vector<256x128xf32>
    %cst_40 = arith.constant dense<0.000000e+00> : vector<256xf32>
    %84 = vector.multi_reduction <add>, %83, %cst_40 [1] : vector<256x128xf32> to vector<256xf32>
    %85 = vector.shape_cast %84 : vector<256xf32> to vector<256x1xf32>
    %cst_41 = arith.constant dense<0xFF800000> : vector<1xf32>
    %86 = vector.multi_reduction <maximumf>, %85, %cst_41 [0] : vector<256x1xf32> to vector<1xf32>
    %87 = vector.shape_cast %86 : vector<1xf32> to vector<1x1xf32>
    %88 = vector.broadcast %87 : vector<1x1xf32> to vector<256x1xf32>
    %89 = arith.subf %85, %88 : vector<256x1xf32>
    %90 = math.exp %89 : vector<256x1xf32>
    %c2 = arith.constant 2 : index
    %c0_42 = arith.constant 0 : index
    %91 = vector.load %arg9[%c2, %c0_42] : memref<4x128xf32, #tpu.memory_space<vmem>>, vector<1x128xf32>
    %92 = vector.broadcast %91 : vector<1x128xf32> to vector<256x128xf32>
    %93 = arith.mulf %58, %92 : vector<256x128xf32>
    %cst_43 = arith.constant dense<0.000000e+00> : vector<256xf32>
    %94 = vector.multi_reduction <add>, %93, %cst_43 [1] : vector<256x128xf32> to vector<256xf32>
    %95 = vector.shape_cast %94 : vector<256xf32> to vector<256x1xf32>
    %cst_44 = arith.constant dense<0xFF800000> : vector<1xf32>
    %96 = vector.multi_reduction <maximumf>, %95, %cst_44 [0] : vector<256x1xf32> to vector<1xf32>
    %97 = vector.shape_cast %96 : vector<1xf32> to vector<1x1xf32>
    %98 = vector.broadcast %97 : vector<1x1xf32> to vector<256x1xf32>
    %99 = arith.subf %95, %98 : vector<256x1xf32>
    %100 = math.exp %99 : vector<256x1xf32>
    %c3 = arith.constant 3 : index
    %c0_45 = arith.constant 0 : index
    %101 = vector.load %arg9[%c3, %c0_45] : memref<4x128xf32, #tpu.memory_space<vmem>>, vector<1x128xf32>
    %102 = vector.broadcast %101 : vector<1x128xf32> to vector<256x128xf32>
    %103 = arith.mulf %58, %102 : vector<256x128xf32>
    %cst_46 = arith.constant dense<0.000000e+00> : vector<256xf32>
    %104 = vector.multi_reduction <add>, %103, %cst_46 [1] : vector<256x128xf32> to vector<256xf32>
    %105 = vector.shape_cast %104 : vector<256xf32> to vector<256x1xf32>
    %cst_47 = arith.constant dense<0xFF800000> : vector<1xf32>
    %106 = vector.multi_reduction <maximumf>, %105, %cst_47 [0] : vector<256x1xf32> to vector<1xf32>
    %107 = vector.shape_cast %106 : vector<1xf32> to vector<1x1xf32>
    %108 = vector.broadcast %107 : vector<1x1xf32> to vector<256x1xf32>
    %109 = arith.subf %105, %108 : vector<256x1xf32>
    %110 = math.exp %109 : vector<256x1xf32>
    %111 = tpu.iota {dimensions = array<i32: 1>} : vector<256x128xi32>
    %cst_48 = arith.constant 0.000000e+00 : f32
    %112 = vector.broadcast %cst_48 : f32 to vector<256x128xf32>
    %c0_i32 = arith.constant 0 : i32
    %113 = vector.broadcast %c0_i32 : i32 to vector<256x128xi32>
    %114 = arith.cmpi eq, %111, %113 : vector<256x128xi32>
    %cst_49 = arith.constant 0.000000e+00 : f32
    %115 = vector.shape_cast %80 : vector<256x1xf32> to vector<256x1xf32>
    %116 = vector.broadcast %115 : vector<256x1xf32> to vector<256x128xf32>
    %117 = vector.broadcast %cst_49 : f32 to vector<256x128xf32>
    %118 = arith.select %114, %116, %117 : vector<256x128xi1>, vector<256x128xf32>
    %119 = arith.addf %112, %118 : vector<256x128xf32>
    %c1_i32 = arith.constant 1 : i32
    %120 = vector.broadcast %c1_i32 : i32 to vector<256x128xi32>
    %121 = arith.cmpi eq, %111, %120 : vector<256x128xi32>
    %cst_50 = arith.constant 0.000000e+00 : f32
    %122 = vector.shape_cast %90 : vector<256x1xf32> to vector<256x1xf32>
    %123 = vector.broadcast %122 : vector<256x1xf32> to vector<256x128xf32>
    %124 = vector.broadcast %cst_50 : f32 to vector<256x128xf32>
    %125 = arith.select %121, %123, %124 : vector<256x128xi1>, vector<256x128xf32>
    %126 = arith.addf %119, %125 : vector<256x128xf32>
    %c2_i32 = arith.constant 2 : i32
    %127 = vector.broadcast %c2_i32 : i32 to vector<256x128xi32>
    %128 = arith.cmpi eq, %111, %127 : vector<256x128xi32>
    %cst_51 = arith.constant 0.000000e+00 : f32
    %129 = vector.shape_cast %100 : vector<256x1xf32> to vector<256x1xf32>
    %130 = vector.broadcast %129 : vector<256x1xf32> to vector<256x128xf32>
    %131 = vector.broadcast %cst_51 : f32 to vector<256x128xf32>
    %132 = arith.select %128, %130, %131 : vector<256x128xi1>, vector<256x128xf32>
    %133 = arith.addf %126, %132 : vector<256x128xf32>
    %c3_i32 = arith.constant 3 : i32
    %134 = vector.broadcast %c3_i32 : i32 to vector<256x128xi32>
    %135 = arith.cmpi eq, %111, %134 : vector<256x128xi32>
    %cst_52 = arith.constant 0.000000e+00 : f32
    %136 = vector.shape_cast %110 : vector<256x1xf32> to vector<256x1xf32>
    %137 = vector.broadcast %136 : vector<256x1xf32> to vector<256x128xf32>
    %138 = vector.broadcast %cst_52 : f32 to vector<256x128xf32>
    %139 = arith.select %135, %137, %138 : vector<256x128xi1>, vector<256x128xf32>
    %140 = arith.addf %133, %139 : vector<256x128xf32>
    %cst_53 = arith.constant dense<0.000000e+00> : vector<128x128xf32>
    %141 = tpu.matmul %65, %140, %cst_53 {dimension_numbers = #tpu.dot_dimension_numbers<[1], [0], [0], [1], [0, 0, 1, 1], [], []>} : vector<128x256xf32>, vector<256x128xf32>, vector<128x128xf32> -> vector<128x128xf32>
    %142 = tpu.iota {dimensions = array<i32: 1>} : vector<128x128xi32>
    %c0_i32_54 = arith.constant 0 : i32
    %143 = vector.broadcast %c0_i32_54 : i32 to vector<128x128xi32>
    %144 = arith.cmpi eq, %142, %143 : vector<128x128xi32>
    %cst_55 = arith.constant 0.000000e+00 : f32
    %145 = vector.broadcast %cst_55 : f32 to vector<128x128xf32>
    %146 = arith.select %144, %141, %145 : vector<128x128xi1>, vector<128x128xf32>
    %cst_56 = arith.constant dense<0.000000e+00> : vector<128xf32>
    %147 = vector.multi_reduction <add>, %146, %cst_56 [1] : vector<128x128xf32> to vector<128xf32>
    %148 = vector.shape_cast %147 : vector<128xf32> to vector<128x1xf32>
    %cst_57 = arith.constant 1.000000e-30 : f32
    %149 = vector.broadcast %cst_57 : f32 to vector<128x1xf32>
    %150 = arith.maximumf %148, %149 : vector<128x1xf32>
    %cst_58 = arith.constant 1.000000e+00 : f32
    %151 = vector.broadcast %cst_58 : f32 to vector<128x1xf32>
    %152 = arith.divf %151, %150 : vector<128x1xf32>
    %c1_i32_59 = arith.constant 1 : i32
    %153 = vector.broadcast %c1_i32_59 : i32 to vector<128x128xi32>
    %154 = arith.cmpi eq, %142, %153 : vector<128x128xi32>
    %cst_60 = arith.constant 0.000000e+00 : f32
    %155 = vector.broadcast %cst_60 : f32 to vector<128x128xf32>
    %156 = arith.select %154, %141, %155 : vector<128x128xi1>, vector<128x128xf32>
    %cst_61 = arith.constant dense<0.000000e+00> : vector<128xf32>
    %157 = vector.multi_reduction <add>, %156, %cst_61 [1] : vector<128x128xf32> to vector<128xf32>
    %158 = vector.shape_cast %157 : vector<128xf32> to vector<128x1xf32>
    %cst_62 = arith.constant 1.000000e-30 : f32
    %159 = vector.broadcast %cst_62 : f32 to vector<128x1xf32>
    %160 = arith.maximumf %158, %159 : vector<128x1xf32>
    %cst_63 = arith.constant 1.000000e+00 : f32
    %161 = vector.broadcast %cst_63 : f32 to vector<128x1xf32>
    %162 = arith.divf %161, %160 : vector<128x1xf32>
    %c2_i32_64 = arith.constant 2 : i32
    %163 = vector.broadcast %c2_i32_64 : i32 to vector<128x128xi32>
    %164 = arith.cmpi eq, %142, %163 : vector<128x128xi32>
    %cst_65 = arith.constant 0.000000e+00 : f32
    %165 = vector.broadcast %cst_65 : f32 to vector<128x128xf32>
    %166 = arith.select %164, %141, %165 : vector<128x128xi1>, vector<128x128xf32>
    %cst_66 = arith.constant dense<0.000000e+00> : vector<128xf32>
    %167 = vector.multi_reduction <add>, %166, %cst_66 [1] : vector<128x128xf32> to vector<128xf32>
    %168 = vector.shape_cast %167 : vector<128xf32> to vector<128x1xf32>
    %cst_67 = arith.constant 1.000000e-30 : f32
    %169 = vector.broadcast %cst_67 : f32 to vector<128x1xf32>
    %170 = arith.maximumf %168, %169 : vector<128x1xf32>
    %cst_68 = arith.constant 1.000000e+00 : f32
    %171 = vector.broadcast %cst_68 : f32 to vector<128x1xf32>
    %172 = arith.divf %171, %170 : vector<128x1xf32>
    %c3_i32_69 = arith.constant 3 : i32
    %173 = vector.broadcast %c3_i32_69 : i32 to vector<128x128xi32>
    %174 = arith.cmpi eq, %142, %173 : vector<128x128xi32>
    %cst_70 = arith.constant 0.000000e+00 : f32
    %175 = vector.broadcast %cst_70 : f32 to vector<128x128xf32>
    %176 = arith.select %174, %141, %175 : vector<128x128xi1>, vector<128x128xf32>
    %cst_71 = arith.constant dense<0.000000e+00> : vector<128xf32>
    %177 = vector.multi_reduction <add>, %176, %cst_71 [1] : vector<128x128xf32> to vector<128xf32>
    %178 = vector.shape_cast %177 : vector<128xf32> to vector<128x1xf32>
    %cst_72 = arith.constant 1.000000e-30 : f32
    %179 = vector.broadcast %cst_72 : f32 to vector<128x1xf32>
    %180 = arith.maximumf %178, %179 : vector<128x1xf32>
    %cst_73 = arith.constant 1.000000e+00 : f32
    %181 = vector.broadcast %cst_73 : f32 to vector<128x1xf32>
    %182 = arith.divf %181, %180 : vector<128x1xf32>
    %183 = math.tanh %23 : vector<128x128xf32>
    %184 = math.tanh %47 : vector<128x128xf32>
    %185 = tpu.concatenate %183, %184 in 1 : vector<128x128xf32>, vector<128x128xf32> -> vector<128x256xf32>
    %cst_74 = arith.constant dense<0.000000e+00> : vector<256x256xf32>
    %186 = tpu.matmul %70, %185, %cst_74 {dimension_numbers = #tpu.dot_dimension_numbers<[1], [0], [0], [1], [0, 0, 1, 1], [], []>} : vector<256x128xf32>, vector<128x256xf32>, vector<256x256xf32> -> vector<256x256xf32>
    %187 = vector.extract_strided_slice %186 {offsets = [0, 0], sizes = [256, 128], strides = [1, 1]} : vector<256x256xf32> to vector<256x128xf32>
    %188 = vector.extract_strided_slice %186 {offsets = [0, 128], sizes = [256, 128], strides = [1, 1]} : vector<256x256xf32> to vector<256x128xf32>
    %189 = arith.mulf %187, %58 : vector<256x128xf32>
    %cst_75 = arith.constant dense<0.000000e+00> : vector<256xf32>
    %190 = vector.multi_reduction <add>, %189, %cst_75 [1] : vector<256x128xf32> to vector<256xf32>
    %191 = vector.shape_cast %190 : vector<256xf32> to vector<256x1xf32>
    %192 = arith.mulf %188, %58 : vector<256x128xf32>
    %cst_76 = arith.constant dense<0.000000e+00> : vector<256xf32>
    %193 = vector.multi_reduction <add>, %192, %cst_76 [1] : vector<256x128xf32> to vector<256xf32>
    %194 = vector.shape_cast %193 : vector<256xf32> to vector<256x1xf32>
    %cst_77 = arith.constant 2.000000e+00 : f32
    %195 = vector.broadcast %cst_77 : f32 to vector<256x1xf32>
    %196 = arith.mulf %195, %191 : vector<256x1xf32>
    %197 = vector.broadcast %196 : vector<256x1xf32> to vector<256x128xf32>
    %198 = arith.mulf %197, %58 : vector<256x128xf32>
    %199 = arith.subf %187, %198 : vector<256x128xf32>
    %cst_78 = arith.constant 2.000000e+00 : f32
    %200 = vector.broadcast %cst_78 : f32 to vector<256x1xf32>
    %201 = arith.mulf %200, %194 : vector<256x1xf32>
    %202 = vector.broadcast %201 : vector<256x1xf32> to vector<256x128xf32>
    %203 = arith.mulf %202, %58 : vector<256x128xf32>
    %204 = arith.subf %188, %203 : vector<256x128xf32>
    %205 = vector.broadcast %80 : vector<256x1xf32> to vector<256x128xf32>
    %206 = arith.mulf %199, %205 : vector<256x128xf32>
    %207 = vector.broadcast %100 : vector<256x1xf32> to vector<256x128xf32>
    %208 = arith.mulf %204, %207 : vector<256x128xf32>
    %209 = tpu.concatenate %206, %208 in 1 : vector<256x128xf32>, vector<256x128xf32> -> vector<256x256xf32>
    %cst_79 = arith.constant dense<0.000000e+00> : vector<128x256xf32>
    %210 = tpu.matmul %65, %209, %cst_79 {dimension_numbers = #tpu.dot_dimension_numbers<[1], [0], [0], [1], [0, 0, 1, 1], [], []>} : vector<128x256xf32>, vector<256x256xf32>, vector<128x256xf32> -> vector<128x256xf32>
    %211 = vector.extract_strided_slice %210 {offsets = [0, 0], sizes = [128, 128], strides = [1, 1]} : vector<128x256xf32> to vector<128x128xf32>
    %212 = vector.broadcast %152 : vector<128x1xf32> to vector<128x128xf32>
    %213 = arith.mulf %211, %212 : vector<128x128xf32>
    %214 = math.tanh %213 : vector<128x128xf32>
    %215 = vector.extract_strided_slice %210 {offsets = [0, 128], sizes = [128, 128], strides = [1, 1]} : vector<128x256xf32> to vector<128x128xf32>
    %216 = vector.broadcast %172 : vector<128x1xf32> to vector<128x128xf32>
    %217 = arith.mulf %215, %216 : vector<128x128xf32>
    %218 = math.tanh %217 : vector<128x128xf32>
    %219 = tpu.concatenate %214, %218 in 1 : vector<128x128xf32>, vector<128x128xf32> -> vector<128x256xf32>
    %cst_80 = arith.constant dense<0.000000e+00> : vector<256x256xf32>
    %220 = tpu.matmul %70, %219, %cst_80 {dimension_numbers = #tpu.dot_dimension_numbers<[1], [0], [0], [1], [0, 0, 1, 1], [], []>} : vector<256x128xf32>, vector<128x256xf32>, vector<256x256xf32> -> vector<256x256xf32>
    %221 = vector.extract_strided_slice %220 {offsets = [0, 0], sizes = [256, 128], strides = [1, 1]} : vector<256x256xf32> to vector<256x128xf32>
    %222 = vector.extract_strided_slice %220 {offsets = [0, 128], sizes = [256, 128], strides = [1, 1]} : vector<256x256xf32> to vector<256x128xf32>
    %223 = arith.mulf %221, %58 : vector<256x128xf32>
    %cst_81 = arith.constant dense<0.000000e+00> : vector<256xf32>
    %224 = vector.multi_reduction <add>, %223, %cst_81 [1] : vector<256x128xf32> to vector<256xf32>
    %225 = vector.shape_cast %224 : vector<256xf32> to vector<256x1xf32>
    %226 = arith.mulf %222, %58 : vector<256x128xf32>
    %cst_82 = arith.constant dense<0.000000e+00> : vector<256xf32>
    %227 = vector.multi_reduction <add>, %226, %cst_82 [1] : vector<256x128xf32> to vector<256xf32>
    %228 = vector.shape_cast %227 : vector<256xf32> to vector<256x1xf32>
    %cst_83 = arith.constant 2.000000e+00 : f32
    %229 = vector.broadcast %cst_83 : f32 to vector<256x1xf32>
    %230 = arith.mulf %229, %225 : vector<256x1xf32>
    %231 = vector.broadcast %230 : vector<256x1xf32> to vector<256x128xf32>
    %232 = arith.mulf %231, %58 : vector<256x128xf32>
    %233 = arith.subf %221, %232 : vector<256x128xf32>
    %cst_84 = arith.constant 2.000000e+00 : f32
    %234 = vector.broadcast %cst_84 : f32 to vector<256x1xf32>
    %235 = arith.mulf %234, %228 : vector<256x1xf32>
    %236 = vector.broadcast %235 : vector<256x1xf32> to vector<256x128xf32>
    %237 = arith.mulf %236, %58 : vector<256x128xf32>
    %238 = arith.subf %222, %237 : vector<256x128xf32>
    %239 = vector.broadcast %90 : vector<256x1xf32> to vector<256x128xf32>
    %240 = arith.mulf %233, %239 : vector<256x128xf32>
    %241 = vector.broadcast %110 : vector<256x1xf32> to vector<256x128xf32>
    %242 = arith.mulf %238, %241 : vector<256x128xf32>
    %243 = tpu.concatenate %240, %242 in 1 : vector<256x128xf32>, vector<256x128xf32> -> vector<256x256xf32>
    %cst_85 = arith.constant dense<0.000000e+00> : vector<128x256xf32>
    %244 = tpu.matmul %65, %243, %cst_85 {dimension_numbers = #tpu.dot_dimension_numbers<[1], [0], [0], [1], [0, 0, 1, 1], [], []>} : vector<128x256xf32>, vector<256x256xf32>, vector<128x256xf32> -> vector<128x256xf32>
    %245 = vector.extract_strided_slice %244 {offsets = [0, 0], sizes = [128, 128], strides = [1, 1]} : vector<128x256xf32> to vector<128x128xf32>
    %246 = vector.broadcast %162 : vector<128x1xf32> to vector<128x128xf32>
    %247 = arith.mulf %245, %246 : vector<128x128xf32>
    %248 = math.tanh %247 : vector<128x128xf32>
    %249 = vector.extract_strided_slice %244 {offsets = [0, 128], sizes = [128, 128], strides = [1, 1]} : vector<128x256xf32> to vector<128x128xf32>
    %250 = vector.broadcast %182 : vector<128x1xf32> to vector<128x128xf32>
    %251 = arith.mulf %249, %250 : vector<128x128xf32>
    %252 = math.tanh %251 : vector<128x128xf32>
    %253 = tpu.concatenate %183, %214, %248, %184, %218, %252 in 1 : vector<128x128xf32>, vector<128x128xf32>, vector<128x128xf32>, vector<128x128xf32>, vector<128x128xf32>, vector<128x128xf32> -> vector<128x768xf32>
    %c0_86 = arith.constant 0 : index
    %c0_87 = arith.constant 0 : index
    %254 = vector.load %arg3[%c0_86, %c0_87] : memref<32x1xi32, #tpu.memory_space<vmem>>, vector<32x1xi32>
    %255 = tpu.iota {dimensions = array<i32: 1>} : vector<32x128xi32>
    %256 = vector.broadcast %254 : vector<32x1xi32> to vector<32x128xi32>
    %257 = arith.cmpi eq, %255, %256 : vector<32x128xi32>
    %258 = arith.extui %257 : vector<32x128xi1> to vector<32x128xi32>
    %259 = arith.sitofp %258 : vector<32x128xi32> to vector<32x128xf32>
    %cst_88 = arith.constant dense<0.000000e+00> : vector<32x768xf32>
    %260 = tpu.matmul %259, %253, %cst_88 {dimension_numbers = #tpu.dot_dimension_numbers<[1], [0], [0], [1], [0, 0, 1, 1], [], []>} : vector<32x128xf32>, vector<128x768xf32>, vector<32x768xf32> -> vector<32x768xf32>
    %261 = vector.extract_strided_slice %260 {offsets = [0, 0], sizes = [16, 768], strides = [1, 1]} : vector<32x768xf32> to vector<16x768xf32>
    %262 = vector.extract_strided_slice %260 {offsets = [16, 0], sizes = [16, 768], strides = [1, 1]} : vector<32x768xf32> to vector<16x768xf32>
    %263 = arith.subf %261, %262 : vector<16x768xf32>
    %264 = arith.mulf %263, %263 : vector<16x768xf32>
    %cst_89 = arith.constant dense<0.000000e+00> : vector<16xf32>
    %265 = vector.multi_reduction <add>, %264, %cst_89 [1] : vector<16x768xf32> to vector<16xf32>
    %266 = vector.shape_cast %265 : vector<16xf32> to vector<16x1xf32>
    %267 = vector.extract_strided_slice %259 {offsets = [0, 0], sizes = [16, 128], strides = [1, 1]} : vector<32x128xf32> to vector<16x128xf32>
    %cst_90 = arith.constant 1.000000e+00 : f32
    %268 = vector.broadcast %cst_90 : f32 to vector<16x128xf32>
    %269 = arith.subf %268, %267 : vector<16x128xf32>
    %270 = vector.extract_strided_slice %259 {offsets = [16, 0], sizes = [16, 128], strides = [1, 1]} : vector<32x128xf32> to vector<16x128xf32>
    %271 = arith.subf %269, %270 : vector<16x128xf32>
    %272 = arith.mulf %260, %260 : vector<32x768xf32>
    %cst_91 = arith.constant dense<0.000000e+00> : vector<32xf32>
    %273 = vector.multi_reduction <add>, %272, %cst_91 [1] : vector<32x768xf32> to vector<32xf32>
    %274 = vector.shape_cast %273 : vector<32xf32> to vector<32x1xf32>
    %275 = arith.mulf %253, %253 : vector<128x768xf32>
    %cst_92 = arith.constant dense<0.000000e+00> : vector<128xf32>
    %276 = vector.multi_reduction <add>, %275, %cst_92 [1] : vector<128x768xf32> to vector<128xf32>
    %277 = vector.shape_cast %276 : vector<128xf32> to vector<1x128xf32>
    %278 = vector.broadcast %274 : vector<32x1xf32> to vector<32x128xf32>
    %279 = vector.broadcast %277 : vector<1x128xf32> to vector<32x128xf32>
    %280 = arith.addf %278, %279 : vector<32x128xf32>
    %cst_93 = arith.constant dense<0.000000e+00> : vector<32x128xf32>
    %281 = tpu.matmul %260, %253, %cst_93 {dimension_numbers = #tpu.dot_dimension_numbers<[1], [1], [0], [0], [0, 0, 1, 0], [], []>} : vector<32x768xf32>, vector<128x768xf32>, vector<32x128xf32> -> vector<32x128xf32>
    %cst_94 = arith.constant 2.000000e+00 : f32
    %282 = vector.broadcast %cst_94 : f32 to vector<32x128xf32>
    %283 = arith.mulf %282, %281 : vector<32x128xf32>
    %284 = arith.subf %280, %283 : vector<32x128xf32>
    %285 = tpu.concatenate %266, %266 in 0 : vector<16x1xf32>, vector<16x1xf32> -> vector<32x1xf32>
    %286 = vector.broadcast %285 : vector<32x1xf32> to vector<32x128xf32>
    %287 = arith.subf %286, %284 : vector<32x128xf32>
    %cst_95 = arith.constant 3.000000e+00 : f32
    %288 = vector.broadcast %cst_95 : f32 to vector<32x128xf32>
    %289 = arith.addf %287, %288 : vector<32x128xf32>
    %290 = tpu.concatenate %271, %271 in 0 : vector<16x128xf32>, vector<16x128xf32> -> vector<32x128xf32>
    %291 = arith.mulf %289, %290 : vector<32x128xf32>
    %cst_96 = arith.constant dense<0.000000e+00> : vector<32xf32>
    %292 = vector.multi_reduction <add>, %291, %cst_96 [1] : vector<32x128xf32> to vector<32xf32>
    %293 = vector.shape_cast %292 : vector<32xf32> to vector<32x1xf32>
    %cst_97 = arith.constant 1.280000e+02 : f32
    %294 = vector.broadcast %cst_97 : f32 to vector<32x1xf32>
    %295 = arith.divf %293, %294 : vector<32x1xf32>
    %296 = vector.broadcast %295 : vector<32x1xf32> to vector<32x128xf32>
    %297 = arith.subf %291, %296 : vector<32x128xf32>
    %298 = arith.mulf %297, %297 : vector<32x128xf32>
    %cst_98 = arith.constant dense<0.000000e+00> : vector<32xf32>
    %299 = vector.multi_reduction <add>, %298, %cst_98 [1] : vector<32x128xf32> to vector<32xf32>
    %300 = vector.shape_cast %299 : vector<32xf32> to vector<32x1xf32>
    %cst_99 = arith.constant 1.280000e+02 : f32
    %301 = vector.broadcast %cst_99 : f32 to vector<32x1xf32>
    %302 = arith.divf %300, %301 : vector<32x1xf32>
    %303 = math.sqrt %302 : vector<32x1xf32>
    %304 = vector.broadcast %295 : vector<32x1xf32> to vector<32x128xf32>
    %305 = arith.subf %291, %304 : vector<32x128xf32>
    %cst_100 = arith.constant 9.99999996E-13 : f32
    %306 = vector.broadcast %cst_100 : f32 to vector<32x1xf32>
    %307 = arith.maximumf %303, %306 : vector<32x1xf32>
    %308 = vector.broadcast %307 : vector<32x1xf32> to vector<32x128xf32>
    %309 = arith.divf %305, %308 : vector<32x128xf32>
    %cst_101 = arith.constant 2.000000e+01 : f32
    %310 = vector.broadcast %cst_101 : f32 to vector<32x128xf32>
    %311 = arith.mulf %310, %309 : vector<32x128xf32>
    %cst_102 = arith.constant 8.000000e+00 : f32
    %312 = vector.broadcast %cst_102 : f32 to vector<32x128xf32>
    %313 = arith.addf %311, %312 : vector<32x128xf32>
    %cst_103 = arith.constant dense<0xFF800000> : vector<32xf32>
    %314 = vector.multi_reduction <maximumf>, %313, %cst_103 [1] : vector<32x128xf32> to vector<32xf32>
    %315 = vector.shape_cast %314 : vector<32xf32> to vector<32x1xf32>
    %316 = vector.broadcast %315 : vector<32x1xf32> to vector<32x128xf32>
    %317 = arith.subf %313, %316 : vector<32x128xf32>
    %318 = math.exp %317 : vector<32x128xf32>
    %cst_104 = arith.constant dense<0.000000e+00> : vector<32xf32>
    %319 = vector.multi_reduction <add>, %318, %cst_104 [1] : vector<32x128xf32> to vector<32xf32>
    %320 = vector.shape_cast %319 : vector<32xf32> to vector<32x1xf32>
    %321 = math.log %320 : vector<32x1xf32>
    %322 = arith.addf %315, %321 : vector<32x1xf32>
    %cst_105 = arith.constant dense<0.000000e+00> : vector<1xf32>
    %323 = vector.multi_reduction <add>, %322, %cst_105 [0] : vector<32x1xf32> to vector<1xf32>
    %324 = vector.shape_cast %323 : vector<1xf32> to vector<1x1xf32>
    %cst_106 = arith.constant 1.600000e+01 : f32
    %325 = vector.broadcast %cst_106 : f32 to vector<1x1xf32>
    %326 = arith.divf %324, %325 : vector<1x1xf32>
    %c0_107 = arith.constant 0 : index
    %c0_108 = arith.constant 0 : index
    %327 = vector.load %arg10[%c0_107, %c0_108] : memref<1x1xf32, #tpu.memory_space<vmem>>, vector<1x1xf32>
    tpu.vector_store %arg10[%c0_107, %c0_108], %326 {strides = array<i32>} : memref<1x1xf32, #tpu.memory_space<vmem>>, vector<1x1xf32>,
    return
  }
  func.func @transform_0(%arg0: i32) -> (i32, i32) {
    %c0_i32 = arith.constant 0 : i32
    %c0_i32_0 = arith.constant 0 : i32
    %c0_i32_1 = arith.constant 0 : i32
    return %c0_i32, %c0_i32_0 : i32, i32
  }
  func.func @transform_1(%arg0: i32) -> (i32, i32) {
    %c0_i32 = arith.constant 0 : i32
    %c0_i32_0 = arith.constant 0 : i32
    %c0_i32_1 = arith.constant 0 : i32
    return %c0_i32, %c0_i32_0 : i32, i32
  }
  func.func @transform_2(%arg0: i32) -> (i32, i32) {
    %c0_i32 = arith.constant 0 : i32
    %c0_i32_0 = arith.constant 0 : i32
    %c0_i32_1 = arith.constant 0 : i32
    return %c0_i32, %c0_i32_0 : i32, i32
  }
  func.func @transform_3(%arg0: i32) -> (i32, i32) {
    %c0_i32 = arith.constant 0 : i32
    %c0_i32_0 = arith.constant 0 : i32
    %c0_i32_1 = arith.constant 0 : i32
    return %c0_i32, %c0_i32_0 : i32, i32
  }
  func.func @transform_4(%arg0: i32) -> (i32, i32) {
    %c0_i32 = arith.constant 0 : i32
    %c0_i32_0 = arith.constant 0 : i32
    %c0_i32_1 = arith.constant 0 : i32
    return %c0_i32, %c0_i32_0 : i32, i32
  }
  func.func @transform_5(%arg0: i32) -> (i32, i32) {
    %c0_i32 = arith.constant 0 : i32
    %c0_i32_0 = arith.constant 0 : i32
    %c0_i32_1 = arith.constant 0 : i32
    return %c0_i32, %c0_i32_0 : i32, i32
  }
  func.func @transform_6(%arg0: i32) -> (i32, i32) {
    %c0_i32 = arith.constant 0 : i32
    %c0_i32_0 = arith.constant 0 : i32
    %c0_i32_1 = arith.constant 0 : i32
    return %c0_i32, %c0_i32_0 : i32, i32
  }
  func.func @transform_7(%arg0: i32) -> (i32, i32) {
    %c0_i32 = arith.constant 0 : i32
    %c0_i32_0 = arith.constant 0 : i32
    %c0_i32_1 = arith.constant 0 : i32
    return %c0_i32, %c0_i32_0 : i32, i32
  }
  func.func @transform_8(%arg0: i32) -> (i32, i32) {
    %c0_i32 = arith.constant 0 : i32
    %c0_i32_0 = arith.constant 0 : i32
    %c0_i32_1 = arith.constant 0 : i32
    return %c0_i32, %c0_i32_0 : i32, i32
  }
  func.func @transform_9(%arg0: i32) -> (i32, i32) {
    %c0_i32 = arith.constant 0 : i32
    %c0_i32_0 = arith.constant 0 : i32
    %c0_i32_1 = arith.constant 0 : i32
    return %c0_i32, %c0_i32_0 : i32, i32
  }
}

</mosaic_0001>

<llo_original>
// kernel: tpu_custom_call.1
$region0: #{tpu_custom_call.1}
  #allocation0 [shape = 'u32[]', space=smem, size = 0x4, offset = 0x4, fixed_abs, tag = 'smem constant byte address 0x4 - core index']
  #allocation1 [shape = 'u32[72,128]{1,0:T(1,128)}', space=vmem, size = 0x9000, scoped, tag = 'internal scratch']
  %s0 = inlined_call_operand.vmem [shape: s32[1,256], index: 0, kind: input, shape index: {}]
  %s1 = inlined_call_operand.vmem [shape: s32[256,1], index: 1, kind: input, shape index: {}]
  %s2 = inlined_call_operand.vmem [shape: s32[32,1], index: 2, kind: input, shape index: {}]
  %s3 = inlined_call_operand.vmem [shape: f32[128,128], index: 3, kind: input, shape index: {}]
  %s4 = inlined_call_operand.vmem [shape: f32[32,128], index: 4, kind: input, shape index: {}]
  %s5 = inlined_call_operand.vmem [shape: f32[128,128], index: 5, kind: input, shape index: {}]
  %s6 = inlined_call_operand.vmem [shape: f32[128,32], index: 6, kind: input, shape index: {}]
  %s7 = inlined_call_operand.vmem [shape: f32[256,32], index: 7, kind: input, shape index: {}]
  %s8 = inlined_call_operand.vmem [shape: f32[4,128], index: 8, kind: input, shape index: {}]
  %s9 = inlined_call_operand.hbm [shape: f32[1,1], index: 9, kind: output, shape index: {}]
  %s10 = sld [smem:[#allocation0]]
  $region46: #{tpu_custom_call.1} parent=0
    _
  %s12 = ssub.s32 1, %s10
  %s13 = scalar_select 0, %s12, %s10
  $region1: #{tpu_custom_call.1} parent=0
    #allocation2 [shape = 'u8[512]{0}', space=vmem, size = 0x400, scoped, tag = 'output window, operand 0, single buffered']
    #allocation3 [shape = 's32[1]{0}', space=sflag, size = 0x4, scoped, tag = 'scoped memory for tpu_custom_call.1']
    %14 = vsyncpa [#allocation3], 0
    // Predicated region
    $region2: #{tpu_custom_call.1} parent=1 // pred_check
      _
    $region3: #{tpu_custom_call.1} parent=1 // pred_check_branch
      %16 = sbr.rel (0) target = $region5
    $region4: #{tpu_custom_call.1} parent=1 // pred_region
      _
    $region5: #{tpu_custom_call.1} parent=1 // pred_fallthru
      _
    // Predicated region
    $region6: #{tpu_custom_call.1} parent=1 // pred_check
      _
    $region7: #{tpu_custom_call.1} parent=1 // pred_check_branch
      %18 = sbr.rel (0) target = $region9
    $region8: #{tpu_custom_call.1} parent=1 // pred_region
      _
    $region9: #{tpu_custom_call.1} parent=1 // pred_fallthru
      _
    // Predicated region
    $region10: #{tpu_custom_call.1} parent=1 // pred_check
      _
    $region11: #{tpu_custom_call.1} parent=1 // pred_check_branch
      %20 = sbr.rel (0) target = $region13
    $region12: #{tpu_custom_call.1} parent=1 // pred_region
      _
    $region13: #{tpu_custom_call.1} parent=1 // pred_fallthru
      _
    // Predicated region
    $region14: #{tpu_custom_call.1} parent=1 // pred_check
      _
    $region15: #{tpu_custom_call.1} parent=1 // pred_check_branch
      %22 = sbr.rel (0) target = $region17
    $region16: #{tpu_custom_call.1} parent=1 // pred_region
      _
    $region17: #{tpu_custom_call.1} parent=1 // pred_fallthru
      _
    // Predicated region
    $region18: #{tpu_custom_call.1} parent=1 // pred_check
      _
    $region19: #{tpu_custom_call.1} parent=1 // pred_check_branch
      %24 = sbr.rel (0) target = $region21
    $region20: #{tpu_custom_call.1} parent=1 // pred_region
      _
    $region21: #{tpu_custom_call.1} parent=1 // pred_fallthru
      _
    // Predicated region
    $region22: #{tpu_custom_call.1} parent=1 // pred_check
      _
    $region23: #{tpu_custom_call.1} parent=1 // pred_check_branch
      %26 = sbr.rel (0) target = $region25
    $region24: #{tpu_custom_call.1} parent=1 // pred_region
      _
    $region25: #{tpu_custom_call.1} parent=1 // pred_fallthru
      _
    // Predicated region
    $region26: #{tpu_custom_call.1} parent=1 // pred_check
      _
    $region27: #{tpu_custom_call.1} parent=1 // pred_check_branch
      %28 = sbr.rel (0) target = $region29
    $region28: #{tpu_custom_call.1} parent=1 // pred_region
      _
    $region29: #{tpu_custom_call.1} parent=1 // pred_fallthru
      _
    // Predicated region
    $region30: #{tpu_custom_call.1} parent=1 // pred_check
      _
    $region31: #{tpu_custom_call.1} parent=1 // pred_check_branch
      %30 = sbr.rel (0) target = $region33
    $region32: #{tpu_custom_call.1} parent=1 // pred_region
      _
    $region33: #{tpu_custom_call.1} parent=1 // pred_fallthru
      _
    // Predicated region
    $region34: #{tpu_custom_call.1} parent=1 // pred_check
      _
    $region35: #{tpu_custom_call.1} parent=1 // pred_check_branch
      %32 = sbr.rel (0) target = $region37
    $region36: #{tpu_custom_call.1} parent=1 // pred_region
      _
    $region37: #{tpu_custom_call.1} parent=1 // pred_fallthru
      _
    %v33 = vld [vmem:[%s5] sm:$0xff]
    %v34 = vld [vmem:[%s5 + $0x8] sm:$0xff]
    %v35 = vld [vmem:[%s5 + $0x10] sm:$0xff]
    %v36 = vld [vmem:[%s5 + $0x18] sm:$0xff]
    %v37 = vld [vmem:[%s5 + $0x20] sm:$0xff]
    %v38 = vld [vmem:[%s5 + $0x28] sm:$0xff]
    %v39 = vld [vmem:[%s5 + $0x30] sm:$0xff]
    %v40 = vld [vmem:[%s5 + $0x38] sm:$0xff]
    %v41 = vld [vmem:[%s5 + $0x40] sm:$0xff]
    %v42 = vld [vmem:[%s5 + $0x48] sm:$0xff]
    %v43 = vld [vmem:[%s5 + $0x50] sm:$0xff]
    %v44 = vld [vmem:[%s5 + $0x58] sm:$0xff]
    %v45 = vld [vmem:[%s5 + $0x60] sm:$0xff]
    %v46 = vld [vmem:[%s5 + $0x68] sm:$0xff]
    %v47 = vld [vmem:[%s5 + $0x70] sm:$0xff]
    %v48 = vld [vmem:[%s5 + $0x78] sm:$0xff]
    %v49 = vld [vmem:[%s3] sm:$0xff]
    %v50 = vld [vmem:[%s3 + $0x8] sm:$0xff]
    %v51 = vld [vmem:[%s3 + $0x10] sm:$0xff]
    %v52 = vld [vmem:[%s3 + $0x18] sm:$0xff]
    %v53 = vld [vmem:[%s3 + $0x20] sm:$0xff]
    %v54 = vld [vmem:[%s3 + $0x28] sm:$0xff]
    %v55 = vld [vmem:[%s3 + $0x30] sm:$0xff]
    %v56 = vld [vmem:[%s3 + $0x38] sm:$0xff]
    %v57 = vld [vmem:[%s3 + $0x40] sm:$0xff]
    %v58 = vld [vmem:[%s3 + $0x48] sm:$0xff]
    %v59 = vld [vmem:[%s3 + $0x50] sm:$0xff]
    %v60 = vld [vmem:[%s3 + $0x58] sm:$0xff]
    %v61 = vld [vmem:[%s3 + $0x60] sm:$0xff]
    %v62 = vld [vmem:[%s3 + $0x68] sm:$0xff]
    %v63 = vld [vmem:[%s3 + $0x70] sm:$0xff]
    %v64 = vld [vmem:[%s3 + $0x78] sm:$0xff]
    %vm65 = vcmp.gt.f32.partialorder %v33, 0.0
    %vm66 = vcmp.gt.f32.partialorder %v34, 0.0
    %vm67 = vcmp.gt.f32.partialorder %v35, 0.0
    %vm68 = vcmp.gt.f32.partialorder %v36, 0.0
    %vm69 = vcmp.gt.f32.partialorder %v37, 0.0
    %vm70 = vcmp.gt.f32.partialorder %v38, 0.0
    %vm71 = vcmp.gt.f32.partialorder %v39, 0.0
    %vm72 = vcmp.gt.f32.partialorder %v40, 0.0
    %vm73 = vcmp.gt.f32.partialorder %v41, 0.0
    %vm74 = vcmp.gt.f32.partialorder %v42, 0.0
    %vm75 = vcmp.gt.f32.partialorder %v43, 0.0
    %vm76 = vcmp.gt.f32.partialorder %v44, 0.0
    %vm77 = vcmp.gt.f32.partialorder %v45, 0.0
    %vm78 = vcmp.gt.f32.partialorder %v46, 0.0
    %vm79 = vcmp.gt.f32.partialorder %v47, 0.0
    %vm80 = vcmp.gt.f32.partialorder %v48, 0.0
    %v81 = vsel %vm65, %v33, -1e+30
    %v82 = vsel %vm66, %v34, -1e+30
    %v83 = vsel %vm67, %v35, -1e+30
    %v84 = vsel %vm68, %v36, -1e+30
    %v85 = vsel %vm69, %v37, -1e+30
    %v86 = vsel %vm70, %v38, -1e+30
    %v87 = vsel %vm71, %v39, -1e+30
    %v88 = vsel %vm72, %v40, -1e+30
    %v89 = vsel %vm73, %v41, -1e+30
    %v90 = vsel %vm74, %v42, -1e+30
    %v91 = vsel %vm75, %v43, -1e+30
    %v92 = vsel %vm76, %v44, -1e+30
    %v93 = vsel %vm77, %v45, -1e+30
    %v94 = vsel %vm78, %v46, -1e+30
    %v95 = vsel %vm79, %v47, -1e+30
    %v96 = vsel %vm80, %v48, -1e+30
    %97 = vmax.xlane.f32.xlu0 %v81
    %v98 = vpop.xlane.xlu0 %97
    %99 = vmax.xlane.f32.xlu0 %v82
    %v100 = vpop.xlane.xlu0 %99
    %101 = vmax.xlane.f32.xlu0 %v83
    %v102 = vpop.xlane.xlu0 %101
    %103 = vmax.xlane.f32.xlu0 %v84
    %v104 = vpop.xlane.xlu0 %103
    %105 = vmax.xlane.f32.xlu0 %v85
    %v106 = vpop.xlane.xlu0 %105
    %107 = vmax.xlane.f32.xlu0 %v86
    %v108 = vpop.xlane.xlu0 %107
    %109 = vmax.xlane.f32.xlu0 %v87
    %v110 = vpop.xlane.xlu0 %109
    %111 = vmax.xlane.f32.xlu0 %v88
    %v112 = vpop.xlane.xlu0 %111
    %113 = vmax.xlane.f32.xlu0 %v89
    %v114 = vpop.xlane.xlu0 %113
    %115 = vmax.xlane.f32.xlu0 %v90
    %v116 = vpop.xlane.xlu0 %115
    %117 = vmax.xlane.f32.xlu0 %v91
    %v118 = vpop.xlane.xlu0 %117
    %119 = vmax.xlane.f32.xlu0 %v92
    %v120 = vpop.xlane.xlu0 %119
    %121 = vmax.xlane.f32.xlu0 %v93
    %v122 = vpop.xlane.xlu0 %121
    %123 = vmax.xlane.f32.xlu0 %v94
    %v124 = vpop.xlane.xlu0 %123
    %125 = vmax.xlane.f32.xlu0 %v95
    %v126 = vpop.xlane.xlu0 %125
    %127 = vmax.xlane.f32.xlu0 %v96
    %v128 = vpop.xlane.xlu0 %127
    %vm129 = vcmp.lt.f32.partialorder %v98, -1e+29
    %vm130 = vcmp.lt.f32.partialorder %v100, -1e+29
    %vm131 = vcmp.lt.f32.partialorder %v102, -1e+29
    %vm132 = vcmp.lt.f32.partialorder %v104, -1e+29
    %vm133 = vcmp.lt.f32.partialorder %v106, -1e+29
    %vm134 = vcmp.lt.f32.partialorder %v108, -1e+29
    %vm135 = vcmp.lt.f32.partialorder %v110, -1e+29
    %vm136 = vcmp.lt.f32.partialorder %v112, -1e+29
    %vm137 = vcmp.lt.f32.partialorder %v114, -1e+29
    %vm138 = vcmp.lt.f32.partialorder %v116, -1e+29
    %vm139 = vcmp.lt.f32.partialorder %v118, -1e+29
    %vm140 = vcmp.lt.f32.partialorder %v120, -1e+29
    %vm141 = vcmp.lt.f32.partialorder %v122, -1e+29
    %vm142 = vcmp.lt.f32.partialorder %v124, -1e+29
    %vm143 = vcmp.lt.f32.partialorder %v126, -1e+29
    %vm144 = vcmp.lt.f32.partialorder %v128, -1e+29
    %v145 = vsel %vm129, 0.0, %v98
    %v146 = vsel %vm130, 0.0, %v100
    %v147 = vsel %vm131, 0.0, %v102
    %v148 = vsel %vm132, 0.0, %v104
    %v149 = vsel %vm133, 0.0, %v106
    %v150 = vsel %vm134, 0.0, %v108
    %v151 = vsel %vm135, 0.0, %v110
    %v152 = vsel %vm136, 0.0, %v112
    %v153 = vsel %vm137, 0.0, %v114
    %v154 = vsel %vm138, 0.0, %v116
    %v155 = vsel %vm139, 0.0, %v118
    %v156 = vsel %vm140, 0.0, %v120
    %v157 = vsel %vm141, 0.0, %v122
    %v158 = vsel %vm142, 0.0, %v124
    %v159 = vsel %vm143, 0.0, %v126
    %v160 = vsel %vm144, 0.0, %v128
    %v161 = vsub.f32 %v33, %v145
    %v162 = vsub.f32 %v34, %v146
    %v163 = vsub.f32 %v35, %v147
    %v164 = vsub.f32 %v36, %v148
    %v165 = vsub.f32 %v37, %v149
    %v166 = vsub.f32 %v38, %v150
    %v167 = vsub.f32 %v39, %v151
    %v168 = vsub.f32 %v40, %v152
    %v169 = vsub.f32 %v41, %v153
    %v170 = vsub.f32 %v42, %v154
    %v171 = vsub.f32 %v43, %v155
    %v172 = vsub.f32 %v44, %v156
    %v173 = vsub.f32 %v45, %v157
    %v174 = vsub.f32 %v46, %v158
    %v175 = vsub.f32 %v47, %v159
    %v176 = vsub.f32 %v48, %v160
    %v177 = vmul.f32 %v161, 1.442695
    %v178 = vpow.pop %v177
    %v179 = vmul.f32 %v162, 1.442695
    %v180 = vpow.pop %v179
    %v181 = vmul.f32 %v163, 1.442695
    %v182 = vpow.pop %v181
    %v183 = vmul.f32 %v164, 1.442695
    %v184 = vpow.pop %v183
    %v185 = vmul.f32 %v165, 1.442695
    %v186 = vpow.pop %v185
    %v187 = vmul.f32 %v166, 1.442695
    %v188 = vpow.pop %v187
    %v189 = vmul.f32 %v167, 1.442695
    %v190 = vpow.pop %v189
    %v191 = vmul.f32 %v168, 1.442695
    %v192 = vpow.pop %v191
    %v193 = vmul.f32 %v169, 1.442695
    %v194 = vpow.pop %v193
    %v195 = vmul.f32 %v170, 1.442695
    %v196 = vpow.pop %v195
    %v197 = vmul.f32 %v171, 1.442695
    %v198 = vpow.pop %v197
    %v199 = vmul.f32 %v172, 1.442695
    %v200 = vpow.pop %v199
    %v201 = vmul.f32 %v173, 1.442695
    %v202 = vpow.pop %v201
    %v203 = vmul.f32 %v174, 1.442695
    %v204 = vpow.pop %v203
    %v205 = vmul.f32 %v175, 1.442695
    %v206 = vpow.pop %v205
    %v207 = vmul.f32 %v176, 1.442695
    %v208 = vpow.pop %v207
    %v209 = vsel %vm65, %v178, 0.0
    %v210 = vsel %vm66, %v180, 0.0
    %v211 = vsel %vm67, %v182, 0.0
    %v212 = vsel %vm68, %v184, 0.0
    %v213 = vsel %vm69, %v186, 0.0
    %v214 = vsel %vm70, %v188, 0.0
    %v215 = vsel %vm71, %v190, 0.0
    %v216 = vsel %vm72, %v192, 0.0
    %v217 = vsel %vm73, %v194, 0.0
    %v218 = vsel %vm74, %v196, 0.0
    %v219 = vsel %vm75, %v198, 0.0
    %v220 = vsel %vm76, %v200, 0.0
    %v221 = vsel %vm77, %v202, 0.0
    %v222 = vsel %vm78, %v204, 0.0
    %v223 = vsel %vm79, %v206, 0.0
    %v224 = vsel %vm80, %v208, 0.0
    %225 = vadd.xlane.f32.xlu0 %v209
    %v226 = vpop.xlane.xlu0 %225
    %227 = vadd.xlane.f32.xlu0 %v210
    %v228 = vpop.xlane.xlu0 %227
    %229 = vadd.xlane.f32.xlu0 %v211
    %v230 = vpop.xlane.xlu0 %229
    %231 = vadd.xlane.f32.xlu0 %v212
    %v232 = vpop.xlane.xlu0 %231
    %233 = vadd.xlane.f32.xlu0 %v213
    %v234 = vpop.xlane.xlu0 %233
    %235 = vadd.xlane.f32.xlu0 %v214
    %v236 = vpop.xlane.xlu0 %235
    %237 = vadd.xlane.f32.xlu0 %v215
    %v238 = vpop.xlane.xlu0 %237
    %239 = vadd.xlane.f32.xlu0 %v216
    %v240 = vpop.xlane.xlu0 %239
    %241 = vadd.xlane.f32.xlu0 %v217
    %v242 = vpop.xlane.xlu0 %241
    %243 = vadd.xlane.f32.xlu0 %v218
    %v244 = vpop.xlane.xlu0 %243
    %245 = vadd.xlane.f32.xlu0 %v219
    %v246 = vpop.xlane.xlu0 %245
    %247 = vadd.xlane.f32.xlu0 %v220
    %v248 = vpop.xlane.xlu0 %247
    %249 = vadd.xlane.f32.xlu0 %v221
    %v250 = vpop.xlane.xlu0 %249
    %251 = vadd.xlane.f32.xlu0 %v222
    %v252 = vpop.xlane.xlu0 %251
    %253 = vadd.xlane.f32.xlu0 %v223
    %v254 = vpop.xlane.xlu0 %253
    %255 = vadd.xlane.f32.xlu0 %v224
    %v256 = vpop.xlane.xlu0 %255
    %v257 = vmax.f32 %v226, 1e-30
    %v258 = vmax.f32 %v228, 1e-30
    %v259 = vmax.f32 %v230, 1e-30
    %v260 = vmax.f32 %v232, 1e-30
    %v261 = vmax.f32 %v234, 1e-30
    %v262 = vmax.f32 %v236, 1e-30
    %v263 = vmax.f32 %v238, 1e-30
    %v264 = vmax.f32 %v240, 1e-30
    %v265 = vmax.f32 %v242, 1e-30
    %v266 = vmax.f32 %v244, 1e-30
    %v267 = vmax.f32 %v246, 1e-30
    %v268 = vmax.f32 %v248, 1e-30
    %v269 = vmax.f32 %v250, 1e-30
    %v270 = vmax.f32 %v252, 1e-30
    %v271 = vmax.f32 %v254, 1e-30
    %v272 = vmax.f32 %v256, 1e-30
    %v273 = vrcp.pop %v257
    %v274 = vmul.f32 %v257, %v273
    %v275 = vsub.f32 1.0, %v274
    %v276 = vmul.f32 %v273, %v275
    %v277 = vadd.f32 %v273, %v276
    %vm278 = vweird.f32 %v257
    %vm279 = vweird.f32 %v273
    %vm280 = vmor %vm278, %vm279
    %v281 = vsel %vm280, %v273, %v277
    %v282 = vand.u32 2147483647, %v257
    %vm283 = vcmp.eq.f32.partialorder %v282, 8.507059e+37
    %v284 = vand.u32 %v257, 2147483648
    %v285 = vor.u32 1.1754944e-38, %v284
    %v286 = vsel %vm283, %v285, %v281
    %v287 = vmul.f32 %v209, %v286
    %v288 = vrcp.pop %v258
    %v289 = vmul.f32 %v258, %v288
    %v290 = vsub.f32 1.0, %v289
    %v291 = vmul.f32 %v288, %v290
    %v292 = vadd.f32 %v288, %v291
    %vm293 = vweird.f32 %v258
    %vm294 = vweird.f32 %v288
    %vm295 = vmor %vm293, %vm294
    %v296 = vsel %vm295, %v288, %v292
    %v297 = vand.u32 2147483647, %v258
    %vm298 = vcmp.eq.f32.partialorder %v297, 8.507059e+37
    %v299 = vand.u32 %v258, 2147483648
    %v300 = vor.u32 1.1754944e-38, %v299
    %v301 = vsel %vm298, %v300, %v296
    %v302 = vmul.f32 %v210, %v301
    %v303 = vrcp.pop %v259
    %v304 = vmul.f32 %v259, %v303
    %v305 = vsub.f32 1.0, %v304
    %v306 = vmul.f32 %v303, %v305
    %v307 = vadd.f32 %v303, %v306
    %vm308 = vweird.f32 %v259
    %vm309 = vweird.f32 %v303
    %vm310 = vmor %vm308, %vm309
    %v311 = vsel %vm310, %v303, %v307
    %v312 = vand.u32 2147483647, %v259
    %vm313 = vcmp.eq.f32.partialorder %v312, 8.507059e+37
    %v314 = vand.u32 %v259, 2147483648
    %v315 = vor.u32 1.1754944e-38, %v314
    %v316 = vsel %vm313, %v315, %v311
    %v317 = vmul.f32 %v211, %v316
    %v318 = vrcp.pop %v260
    %v319 = vmul.f32 %v260, %v318
    %v320 = vsub.f32 1.0, %v319
    %v321 = vmul.f32 %v318, %v320
    %v322 = vadd.f32 %v318, %v321
    %vm323 = vweird.f32 %v260
    %vm324 = vweird.f32 %v318
    %vm325 = vmor %vm323, %vm324
    %v326 = vsel %vm325, %v318, %v322
    %v327 = vand.u32 2147483647, %v260
    %vm328 = vcmp.eq.f32.partialorder %v327, 8.507059e+37
    %v329 = vand.u32 %v260, 2147483648
    %v330 = vor.u32 1.1754944e-38, %v329
    %v331 = vsel %vm328, %v330, %v326
    %v332 = vmul.f32 %v212, %v331
    %v333 = vrcp.pop %v261
    %v334 = vmul.f32 %v261, %v333
    %v335 = vsub.f32 1.0, %v334
    %v336 = vmul.f32 %v333, %v335
    %v337 = vadd.f32 %v333, %v336
    %vm338 = vweird.f32 %v261
    %vm339 = vweird.f32 %v333
    %vm340 = vmor %vm338, %vm339
    %v341 = vsel %vm340, %v333, %v337
    %v342 = vand.u32 2147483647, %v261
    %vm343 = vcmp.eq.f32.partialorder %v342, 8.507059e+37
    %v344 = vand.u32 %v261, 2147483648
    %v345 = vor.u32 1.1754944e-38, %v344
    %v346 = vsel %vm343, %v345, %v341
    %v347 = vmul.f32 %v213, %v346
    %v348 = vrcp.pop %v262
    %v349 = vmul.f32 %v262, %v348
    %v350 = vsub.f32 1.0, %v349
    %v351 = vmul.f32 %v348, %v350
    %v352 = vadd.f32 %v348, %v351
    %vm353 = vweird.f32 %v262
    %vm354 = vweird.f32 %v348
    %vm355 = vmor %vm353, %vm354
    %v356 = vsel %vm355, %v348, %v352
    %v357 = vand.u32 2147483647, %v262
    %vm358 = vcmp.eq.f32.partialorder %v357, 8.507059e+37
    %v359 = vand.u32 %v262, 2147483648
    %v360 = vor.u32 1.1754944e-38, %v359
    %v361 = vsel %vm358, %v360, %v356
    %v362 = vmul.f32 %v214, %v361
    %v363 = vrcp.pop %v263
    %v364 = vmul.f32 %v263, %v363
    %v365 = vsub.f32 1.0, %v364
    %v366 = vmul.f32 %v363, %v365
    %v367 = vadd.f32 %v363, %v366
    %vm368 = vweird.f32 %v263
    %vm369 = vweird.f32 %v363
    %vm370 = vmor %vm368, %vm369
    %v371 = vsel %vm370, %v363, %v367
    %v372 = vand.u32 2147483647, %v263
    %vm373 = vcmp.eq.f32.partialorder %v372, 8.507059e+37
    %v374 = vand.u32 %v263, 2147483648
    %v375 = vor.u32 1.1754944e-38, %v374
    %v376 = vsel %vm373, %v375, %v371
    %v377 = vmul.f32 %v215, %v376
    %v378 = vrcp.pop %v264
    %v379 = vmul.f32 %v264, %v378
    %v380 = vsub.f32 1.0, %v379
    %v381 = vmul.f32 %v378, %v380
    %v382 = vadd.f32 %v378, %v381
    %vm383 = vweird.f32 %v264
    %vm384 = vweird.f32 %v378
    %vm385 = vmor %vm383, %vm384
    %v386 = vsel %vm385, %v378, %v382
    %v387 = vand.u32 2147483647, %v264
    %vm388 = vcmp.eq.f32.partialorder %v387, 8.507059e+37
    %v389 = vand.u32 %v264, 2147483648
    %v390 = vor.u32 1.1754944e-38, %v389
    %v391 = vsel %vm388, %v390, %v386
    %v392 = vmul.f32 %v216, %v391
    %v393 = vrcp.pop %v265
    %v394 = vmul.f32 %v265, %v393
    %v395 = vsub.f32 1.0, %v394
    %v396 = vmul.f32 %v393, %v395
    %v397 = vadd.f32 %v393, %v396
    %vm398 = vweird.f32 %v265
    %vm399 = vweird.f32 %v393
    %vm400 = vmor %vm398, %vm399
    %v401 = vsel %vm400, %v393, %v397
    %v402 = vand.u32 2147483647, %v265
    %vm403 = vcmp.eq.f32.partialorder %v402, 8.507059e+37
    %v404 = vand.u32 %v265, 2147483648
    %v405 = vor.u32 1.1754944e-38, %v404
    %v406 = vsel %vm403, %v405, %v401
    %v407 = vmul.f32 %v217, %v406
    %v408 = vrcp.pop %v266
    %v409 = vmul.f32 %v266, %v408
    %v410 = vsub.f32 1.0, %v409
    %v411 = vmul.f32 %v408, %v410
    %v412 = vadd.f32 %v408, %v411
    %vm413 = vweird.f32 %v266
    %vm414 = vweird.f32 %v408
    %vm415 = vmor %vm413, %vm414
    %v416 = vsel %vm415, %v408, %v412
    %v417 = vand.u32 2147483647, %v266
    %vm418 = vcmp.eq.f32.partialorder %v417, 8.507059e+37
    %v419 = vand.u32 %v266, 2147483648
    %v420 = vor.u32 1.1754944e-38, %v419
    %v421 = vsel %vm418, %v420, %v416
    %v422 = vmul.f32 %v218, %v421
    %v423 = vrcp.pop %v267
    %v424 = vmul.f32 %v267, %v423
    %v425 = vsub.f32 1.0, %v424
    %v426 = vmul.f32 %v423, %v425
    %v427 = vadd.f32 %v423, %v426
    %vm428 = vweird.f32 %v267
    %vm429 = vweird.f32 %v423
    %vm430 = vmor %vm428, %vm429
    %v431 = vsel %vm430, %v423, %v427
    %v432 = vand.u32 2147483647, %v267
    %vm433 = vcmp.eq.f32.partialorder %v432, 8.507059e+37
    %v434 = vand.u32 %v267, 2147483648
    %v435 = vor.u32 1.1754944e-38, %v434
    %v436 = vsel %vm433, %v435, %v431
    %v437 = vmul.f32 %v219, %v436
    %v438 = vrcp.pop %v268
    %v439 = vmul.f32 %v268, %v438
    %v440 = vsub.f32 1.0, %v439
    %v441 = vmul.f32 %v438, %v440
    %v442 = vadd.f32 %v438, %v441
    %vm443 = vweird.f32 %v268
    %vm444 = vweird.f32 %v438
    %vm445 = vmor %vm443, %vm444
    %v446 = vsel %vm445, %v438, %v442
    %v447 = vand.u32 2147483647, %v268
    %vm448 = vcmp.eq.f32.partialorder %v447, 8.507059e+37
    %v449 = vand.u32 %v268, 2147483648
    %v450 = vor.u32 1.1754944e-38, %v449
    %v451 = vsel %vm448, %v450, %v446
    %v452 = vmul.f32 %v220, %v451
    %v453 = vrcp.pop %v269
    %v454 = vmul.f32 %v269, %v453
    %v455 = vsub.f32 1.0, %v454
    %v456 = vmul.f32 %v453, %v455
    %v457 = vadd.f32 %v453, %v456
    %vm458 = vweird.f32 %v269
    %vm459 = vweird.f32 %v453
    %vm460 = vmor %vm458, %vm459
    %v461 = vsel %vm460, %v453, %v457
    %v462 = vand.u32 2147483647, %v269
    %vm463 = vcmp.eq.f32.partialorder %v462, 8.507059e+37
    %v464 = vand.u32 %v269, 2147483648
    %v465 = vor.u32 1.1754944e-38, %v464
    %v466 = vsel %vm463, %v465, %v461
    %v467 = vmul.f32 %v221, %v466
    %v468 = vrcp.pop %v270
    %v469 = vmul.f32 %v270, %v468
    %v470 = vsub.f32 1.0, %v469
    %v471 = vmul.f32 %v468, %v470
    %v472 = vadd.f32 %v468, %v471
    %vm473 = vweird.f32 %v270
    %vm474 = vweird.f32 %v468
    %vm475 = vmor %vm473, %vm474
    %v476 = vsel %vm475, %v468, %v472
    %v477 = vand.u32 2147483647, %v270
    %vm478 = vcmp.eq.f32.partialorder %v477, 8.507059e+37
    %v479 = vand.u32 %v270, 2147483648
    %v480 = vor.u32 1.1754944e-38, %v479
    %v481 = vsel %vm478, %v480, %v476
    %v482 = vmul.f32 %v222, %v481
    %v483 = vrcp.pop %v271
    %v484 = vmul.f32 %v271, %v483
    %v485 = vsub.f32 1.0, %v484
    %v486 = vmul.f32 %v483, %v485
    %v487 = vadd.f32 %v483, %v486
    %vm488 = vweird.f32 %v271
    %vm489 = vweird.f32 %v483
    %vm490 = vmor %vm488, %vm489
    %v491 = vsel %vm490, %v483, %v487
    %v492 = vand.u32 2147483647, %v271
    %vm493 = vcmp.eq.f32.partialorder %v492, 8.507059e+37
    %v494 = vand.u32 %v271, 2147483648
    %v495 = vor.u32 1.1754944e-38, %v494
    %v496 = vsel %vm493, %v495, %v491
    %v497 = vmul.f32 %v223, %v496
    %v498 = vrcp.pop %v272
    %v499 = vmul.f32 %v272, %v498
    %v500 = vsub.f32 1.0, %v499
    %v501 = vmul.f32 %v498, %v500
    %v502 = vadd.f32 %v498, %v501
    %vm503 = vweird.f32 %v272
    %vm504 = vweird.f32 %v498
    %vm505 = vmor %vm503, %vm504
    %v506 = vsel %vm505, %v498, %v502
    %v507 = vand.u32 2147483647, %v272
    %vm508 = vcmp.eq.f32.partialorder %v507, 8.507059e+37
    %v509 = vand.u32 %v272, 2147483648
    %v510 = vor.u32 1.1754944e-38, %v509
    %v511 = vsel %vm508, %v510, %v506
    %v512 = vmul.f32 %v224, %v511
    %513 = vmatpush.msra.mxu0 %v64
    %514 = vmatpush.msra.mxu0 %v63
    %515 = vmatpush.msra.mxu0 %v62
    %516 = vmatpush.msra.mxu0 %v61
    %517 = vmatpush.msra.mxu0 %v60
    %518 = vmatpush.msra.mxu0 %v59
    %519 = vmatpush.msra.mxu0 %v58
    %520 = vmatpush.msra.mxu0 %v57
    %521 = vmatpush.msra.mxu0 %v56
    %522 = vmatpush.msra.mxu0 %v55
    %523 = vmatpush.msra.mxu0 %v54
    %524 = vmatpush.msra.mxu0 %v53
    %525 = vmatpush.msra.mxu0 %v52
    %526 = vmatpush.msra.mxu0 %v51
    %527 = vmatpush.msra.mxu0 %v50
    %528 = vmatpush.msra.mxu0 %v49
    %529 = vmatmul.f32.gmra.mxu0 %v287
    %v530 = vpop.f32.mrf.mxu0
    %v531 = vadd.f32 0.0, %v530
    %532 = vmatmul.f32.gmra.mxu0 %v302
    %v533 = vpop.f32.mrf.mxu0
    %v534 = vadd.f32 0.0, %v533
    %535 = vmatmul.f32.gmra.mxu0 %v317
    %v536 = vpop.f32.mrf.mxu0
    %v537 = vadd.f32 0.0, %v536
    %538 = vmatmul.f32.gmra.mxu0 %v332
    %v539 = vpop.f32.mrf.mxu0
    %v540 = vadd.f32 0.0, %v539
    %541 = vmatmul.f32.gmra.mxu0 %v347
    %v542 = vpop.f32.mrf.mxu0
    %v543 = vadd.f32 0.0, %v542
    %544 = vmatmul.f32.gmra.mxu0 %v362
    %v545 = vpop.f32.mrf.mxu0
    %v546 = vadd.f32 0.0, %v545
    %547 = vmatmul.f32.gmra.mxu0 %v377
    %v548 = vpop.f32.mrf.mxu0
    %v549 = vadd.f32 0.0, %v548
    %550 = vmatmul.f32.gmra.mxu0 %v392
    %v551 = vpop.f32.mrf.mxu0
    %v552 = vadd.f32 0.0, %v551
    %553 = vmatmul.f32.gmra.mxu0 %v407
    %v554 = vpop.f32.mrf.mxu0
    %v555 = vadd.f32 0.0, %v554
    %556 = vmatmul.f32.gmra.mxu0 %v422
    %v557 = vpop.f32.mrf.mxu0
    %v558 = vadd.f32 0.0, %v557
    %559 = vmatmul.f32.gmra.mxu0 %v437
    %v560 = vpop.f32.mrf.mxu0
    %v561 = vadd.f32 0.0, %v560
    %562 = vmatmul.f32.gmra.mxu0 %v452
    %v563 = vpop.f32.mrf.mxu0
    %v564 = vadd.f32 0.0, %v563
    %565 = vmatmul.f32.gmra.mxu0 %v467
    %v566 = vpop.f32.mrf.mxu0
    %v567 = vadd.f32 0.0, %v566
    %568 = vmatmul.f32.gmra.mxu0 %v482
    %v569 = vpop.f32.mrf.mxu0
    %v570 = vadd.f32 0.0, %v569
    %571 = vmatmul.f32.gmra.mxu0 %v497
    %v572 = vpop.f32.mrf.mxu0
    %v573 = vadd.f32 0.0, %v572
    %574 = vmatmul.f32.gmra.mxu0 %v512
    %v575 = vpop.f32.mrf.mxu0
    %v576 = vadd.f32 0.0, %v575
    %577 = vdwg.mxu0
    %v578 = vld [vmem:[%s6] sm:$0xff]
    %v579 = vld [vmem:[%s6 + $0x8] sm:$0xff]
    %v580 = vld [vmem:[%s6 + $0x10] sm:$0xff]
    %v581 = vld [vmem:[%s6 + $0x18] sm:$0xff]
    %v582 = vld [vmem:[%s6 + $0x20] sm:$0xff]
    %v583 = vld [vmem:[%s6 + $0x28] sm:$0xff]
    %v584 = vld [vmem:[%s6 + $0x30] sm:$0xff]
    %v585 = vld [vmem:[%s6 + $0x38] sm:$0xff]
    %v586 = vld [vmem:[%s6 + $0x40] sm:$0xff]
    %v587 = vld [vmem:[%s6 + $0x48] sm:$0xff]
    %v588 = vld [vmem:[%s6 + $0x50] sm:$0xff]
    %v589 = vld [vmem:[%s6 + $0x58] sm:$0xff]
    %v590 = vld [vmem:[%s6 + $0x60] sm:$0xff]
    %v591 = vld [vmem:[%s6 + $0x68] sm:$0xff]
    %v592 = vld [vmem:[%s6 + $0x70] sm:$0xff]
    %v593 = vld [vmem:[%s6 + $0x78] sm:$0xff]
    %v594 = vld [vmem:[%s4] sm:$0xff]
    %v595 = vld [vmem:[%s4 + $0x8] sm:$0xff]
    %v596 = vld [vmem:[%s4 + $0x10] sm:$0xff]
    %v597 = vld [vmem:[%s4 + $0x18] sm:$0xff]
    %vm598 = vcmp.gt.f32.partialorder %v578, 0.0
    %vm599 = vcmp.gt.f32.partialorder %v579, 0.0
    %vm600 = vcmp.gt.f32.partialorder %v580, 0.0
    %vm601 = vcmp.gt.f32.partialorder %v581, 0.0
    %vm602 = vcmp.gt.f32.partialorder %v582, 0.0
    %vm603 = vcmp.gt.f32.partialorder %v583, 0.0
    %vm604 = vcmp.gt.f32.partialorder %v584, 0.0
    %vm605 = vcmp.gt.f32.partialorder %v585, 0.0
    %vm606 = vcmp.gt.f32.partialorder %v586, 0.0
    %vm607 = vcmp.gt.f32.partialorder %v587, 0.0
    %vm608 = vcmp.gt.f32.partialorder %v588, 0.0
    %vm609 = vcmp.gt.f32.partialorder %v589, 0.0
    %vm610 = vcmp.gt.f32.partialorder %v590, 0.0
    %vm611 = vcmp.gt.f32.partialorder %v591, 0.0
    %vm612 = vcmp.gt.f32.partialorder %v592, 0.0
    %vm613 = vcmp.gt.f32.partialorder %v593, 0.0
    %v614 = vsel %vm598, %v578, -1e+30
    %v615 = vsel %vm599, %v579, -1e+30
    %v616 = vsel %vm600, %v580, -1e+30
    %v617 = vsel %vm601, %v581, -1e+30
    %v618 = vsel %vm602, %v582, -1e+30
    %v619 = vsel %vm603, %v583, -1e+30
    %v620 = vsel %vm604, %v584, -1e+30
    %v621 = vsel %vm605, %v585, -1e+30
    %v622 = vsel %vm606, %v586, -1e+30
    %v623 = vsel %vm607, %v587, -1e+30
    %v624 = vsel %vm608, %v588, -1e+30
    %v625 = vsel %vm609, %v589, -1e+30
    %v626 = vsel %vm610, %v590, -1e+30
    %v627 = vsel %vm611, %v591, -1e+30
    %v628 = vsel %vm612, %v592, -1e+30
    %v629 = vsel %vm613, %v593, -1e+30
    %vm630 = vcmask 261120
    %v631 = vsel %vm630, %v614, -inf
    %632 = vmax.xlane.f32.xlu0 %v631
    %v633 = vpop.xlane.xlu0 %632
    %v634 = vsel %vm630, %v615, -inf
    %635 = vmax.xlane.f32.xlu0 %v634
    %v636 = vpop.xlane.xlu0 %635
    %v637 = vsel %vm630, %v616, -inf
    %638 = vmax.xlane.f32.xlu0 %v637
    %v639 = vpop.xlane.xlu0 %638
    %v640 = vsel %vm630, %v617, -inf
    %641 = vmax.xlane.f32.xlu0 %v640
    %v642 = vpop.xlane.xlu0 %641
    %v643 = vsel %vm630, %v618, -inf
    %644 = vmax.xlane.f32.xlu0 %v643
    %v645 = vpop.xlane.xlu0 %644
    %v646 = vsel %vm630, %v619, -inf
    %647 = vmax.xlane.f32.xlu0 %v646
    %v648 = vpop.xlane.xlu0 %647
    %v649 = vsel %vm630, %v620, -inf
    %650 = vmax.xlane.f32.xlu0 %v649
    %v651 = vpop.xlane.xlu0 %650
    %v652 = vsel %vm630, %v621, -inf
    %653 = vmax.xlane.f32.xlu0 %v652
    %v654 = vpop.xlane.xlu0 %653
    %v655 = vsel %vm630, %v622, -inf
    %656 = vmax.xlane.f32.xlu0 %v655
    %v657 = vpop.xlane.xlu0 %656
    %v658 = vsel %vm630, %v623, -inf
    %659 = vmax.xlane.f32.xlu0 %v658
    %v660 = vpop.xlane.xlu0 %659
    %v661 = vsel %vm630, %v624, -inf
    %662 = vmax.xlane.f32.xlu0 %v661
    %v663 = vpop.xlane.xlu0 %662
    %v664 = vsel %vm630, %v625, -inf
    %665 = vmax.xlane.f32.xlu0 %v664
    %v666 = vpop.xlane.xlu0 %665
    %v667 = vsel %vm630, %v626, -inf
    %668 = vmax.xlane.f32.xlu0 %v667
    %v669 = vpop.xlane.xlu0 %668
    %v670 = vsel %vm630, %v627, -inf
    %671 = vmax.xlane.f32.xlu0 %v670
    %v672 = vpop.xlane.xlu0 %671
    %v673 = vsel %vm630, %v628, -inf
    %674 = vmax.xlane.f32.xlu0 %v673
    %v675 = vpop.xlane.xlu0 %674
    %v676 = vsel %vm630, %v629, -inf
    %677 = vmax.xlane.f32.xlu0 %v676
    %v678 = vpop.xlane.xlu0 %677
    %vm679 = vcmp.lt.f32.partialorder %v633, -1e+29
    %vm680 = vcmp.lt.f32.partialorder %v636, -1e+29
    %vm681 = vcmp.lt.f32.partialorder %v639, -1e+29
    %vm682 = vcmp.lt.f32.partialorder %v642, -1e+29
    %vm683 = vcmp.lt.f32.partialorder %v645, -1e+29
    %vm684 = vcmp.lt.f32.partialorder %v648, -1e+29
    %vm685 = vcmp.lt.f32.partialorder %v651, -1e+29
    %vm686 = vcmp.lt.f32.partialorder %v654, -1e+29
    %vm687 = vcmp.lt.f32.partialorder %v657, -1e+29
    %vm688 = vcmp.lt.f32.partialorder %v660, -1e+29
    %vm689 = vcmp.lt.f32.partialorder %v663, -1e+29
    %vm690 = vcmp.lt.f32.partialorder %v666, -1e+29
    %vm691 = vcmp.lt.f32.partialorder %v669, -1e+29
    %vm692 = vcmp.lt.f32.partialorder %v672, -1e+29
    %vm693 = vcmp.lt.f32.partialorder %v675, -1e+29
    %vm694 = vcmp.lt.f32.partialorder %v678, -1e+29
    %v695 = vsel %vm679, 0.0, %v633
    %v696 = vsel %vm680, 0.0, %v636
    %v697 = vsel %vm681, 0.0, %v639
    %v698 = vsel %vm682, 0.0, %v642
    %v699 = vsel %vm683, 0.0, %v645
    %v700 = vsel %vm684, 0.0, %v648
    %v701 = vsel %vm685, 0.0, %v651
    %v702 = vsel %vm686, 0.0, %v654
    %v703 = vsel %vm687, 0.0, %v657
    %v704 = vsel %vm688, 0.0, %v660
    %v705 = vsel %vm689, 0.0, %v663
    %v706 = vsel %vm690, 0.0, %v666
    %v707 = vsel %vm691, 0.0, %v669
    %v708 = vsel %vm692, 0.0, %v672
    %v709 = vsel %vm693, 0.0, %v675
    %v710 = vsel %vm694, 0.0, %v678
    %v711 = vsub.f32 %v578, %v695
    %v712 = vsub.f32 %v579, %v696
    %v713 = vsub.f32 %v580, %v697
    %v714 = vsub.f32 %v581, %v698
    %v715 = vsub.f32 %v582, %v699
    %v716 = vsub.f32 %v583, %v700
    %v717 = vsub.f32 %v584, %v701
    %v718 = vsub.f32 %v585, %v702
    %v719 = vsub.f32 %v586, %v703
    %v720 = vsub.f32 %v587, %v704
    %v721 = vsub.f32 %v588, %v705
    %v722 = vsub.f32 %v589, %v706
    %v723 = vsub.f32 %v590, %v707
    %v724 = vsub.f32 %v591, %v708
    %v725 = vsub.f32 %v592, %v709
    %v726 = vsub.f32 %v593, %v710
    %v727 = vmul.f32 %v711, 1.442695
    %v728 = vpow.pop %v727
    %v729 = vmul.f32 %v712, 1.442695
    %v730 = vpow.pop %v729
    %v731 = vmul.f32 %v713, 1.442695
    %v732 = vpow.pop %v731
    %v733 = vmul.f32 %v714, 1.442695
    %v734 = vpow.pop %v733
    %v735 = vmul.f32 %v715, 1.442695
    %v736 = vpow.pop %v735
    %v737 = vmul.f32 %v716, 1.442695
    %v738 = vpow.pop %v737
    %v739 = vmul.f32 %v717, 1.442695
    %v740 = vpow.pop %v739
    %v741 = vmul.f32 %v718, 1.442695
    %v742 = vpow.pop %v741
    %v743 = vmul.f32 %v719, 1.442695
    %v744 = vpow.pop %v743
    %v745 = vmul.f32 %v720, 1.442695
    %v746 = vpow.pop %v745
    %v747 = vmul.f32 %v721, 1.442695
    %v748 = vpow.pop %v747
    %v749 = vmul.f32 %v722, 1.442695
    %v750 = vpow.pop %v749
    %v751 = vmul.f32 %v723, 1.442695
    %v752 = vpow.pop %v751
    %v753 = vmul.f32 %v724, 1.442695
    %v754 = vpow.pop %v753
    %v755 = vmul.f32 %v725, 1.442695
    %v756 = vpow.pop %v755
    %v757 = vmul.f32 %v726, 1.442695
    %v758 = vpow.pop %v757
    %v759 = vsel %vm598, %v728, 0.0
    %v760 = vsel %vm599, %v730, 0.0
    %v761 = vsel %vm600, %v732, 0.0
    %v762 = vsel %vm601, %v734, 0.0
    %v763 = vsel %vm602, %v736, 0.0
    %v764 = vsel %vm603, %v738, 0.0
    %v765 = vsel %vm604, %v740, 0.0
    %v766 = vsel %vm605, %v742, 0.0
    %v767 = vsel %vm606, %v744, 0.0
    %v768 = vsel %vm607, %v746, 0.0
    %v769 = vsel %vm608, %v748, 0.0
    %v770 = vsel %vm609, %v750, 0.0
    %v771 = vsel %vm610, %v752, 0.0
    %v772 = vsel %vm611, %v754, 0.0
    %v773 = vsel %vm612, %v756, 0.0
    %v774 = vsel %vm613, %v758, 0.0
    %v775 = vsel %vm630, %v759, 0.0
    %776 = vadd.xlane.f32.xlu0 %v775
    %v777 = vpop.xlane.xlu0 %776
    %v778 = vsel %vm630, %v760, 0.0
    %779 = vadd.xlane.f32.xlu0 %v778
    %v780 = vpop.xlane.xlu0 %779
    %v781 = vsel %vm630, %v761, 0.0
    %782 = vadd.xlane.f32.xlu0 %v781
    %v783 = vpop.xlane.xlu0 %782
    %v784 = vsel %vm630, %v762, 0.0
    %785 = vadd.xlane.f32.xlu0 %v784
    %v786 = vpop.xlane.xlu0 %785
    %v787 = vsel %vm630, %v763, 0.0
    %788 = vadd.xlane.f32.xlu0 %v787
    %v789 = vpop.xlane.xlu0 %788
    %v790 = vsel %vm630, %v764, 0.0
    %791 = vadd.xlane.f32.xlu0 %v790
    %v792 = vpop.xlane.xlu0 %791
    %v793 = vsel %vm630, %v765, 0.0
    %794 = vadd.xlane.f32.xlu0 %v793
    %v795 = vpop.xlane.xlu0 %794
    %v796 = vsel %vm630, %v766, 0.0
    %797 = vadd.xlane.f32.xlu0 %v796
    %v798 = vpop.xlane.xlu0 %797
    %v799 = vsel %vm630, %v767, 0.0
    %800 = vadd.xlane.f32.xlu0 %v799
    %v801 = vpop.xlane.xlu0 %800
    %v802 = vsel %vm630, %v768, 0.0
    %803 = vadd.xlane.f32.xlu0 %v802
    %v804 = vpop.xlane.xlu0 %803
    %v805 = vsel %vm630, %v769, 0.0
    %806 = vadd.xlane.f32.xlu0 %v805
    %v807 = vpop.xlane.xlu0 %806
    %v808 = vsel %vm630, %v770, 0.0
    %809 = vadd.xlane.f32.xlu0 %v808
    %v810 = vpop.xlane.xlu0 %809
    %v811 = vsel %vm630, %v771, 0.0
    %812 = vadd.xlane.f32.xlu0 %v811
    %v813 = vpop.xlane.xlu0 %812
    %v814 = vsel %vm630, %v772, 0.0
    %815 = vadd.xlane.f32.xlu0 %v814
    %v816 = vpop.xlane.xlu0 %815
    %v817 = vsel %vm630, %v773, 0.0
    %818 = vadd.xlane.f32.xlu0 %v817
    %v819 = vpop.xlane.xlu0 %818
    %v820 = vsel %vm630, %v774, 0.0
    %821 = vadd.xlane.f32.xlu0 %v820
    %v822 = vpop.xlane.xlu0 %821
    %v823 = vmax.f32 %v777, 1e-30
    %v824 = vmax.f32 %v780, 1e-30
    %v825 = vmax.f32 %v783, 1e-30
    %v826 = vmax.f32 %v786, 1e-30
    %v827 = vmax.f32 %v789, 1e-30
    %v828 = vmax.f32 %v792, 1e-30
    %v829 = vmax.f32 %v795, 1e-30
    %v830 = vmax.f32 %v798, 1e-30
    %v831 = vmax.f32 %v801, 1e-30
    %v832 = vmax.f32 %v804, 1e-30
    %v833 = vmax.f32 %v807, 1e-30
    %v834 = vmax.f32 %v810, 1e-30
    %v835 = vmax.f32 %v813, 1e-30
    %v836 = vmax.f32 %v816, 1e-30
    %v837 = vmax.f32 %v819, 1e-30
    %v838 = vmax.f32 %v822, 1e-30
    %v839 = vrcp.pop %v823
    %v840 = vmul.f32 %v823, %v839
    %v841 = vsub.f32 1.0, %v840
    %v842 = vmul.f32 %v839, %v841
    %v843 = vadd.f32 %v839, %v842
    %vm844 = vweird.f32 %v823
    %vm845 = vweird.f32 %v839
    %vm846 = vmor %vm844, %vm845
    %v847 = vsel %vm846, %v839, %v843
    %v848 = vand.u32 2147483647, %v823
    %vm849 = vcmp.eq.f32.partialorder %v848, 8.507059e+37
    %v850 = vand.u32 %v823, 2147483648
    %v851 = vor.u32 1.1754944e-38, %v850
    %v852 = vsel %vm849, %v851, %v847
    %v853 = vmul.f32 %v759, %v852
    %v854 = vrcp.pop %v824
    %v855 = vmul.f32 %v824, %v854
    %v856 = vsub.f32 1.0, %v855
    %v857 = vmul.f32 %v854, %v856
    %v858 = vadd.f32 %v854, %v857
    %vm859 = vweird.f32 %v824
    %vm860 = vweird.f32 %v854
    %vm861 = vmor %vm859, %vm860
    %v862 = vsel %vm861, %v854, %v858
    %v863 = vand.u32 2147483647, %v824
    %vm864 = vcmp.eq.f32.partialorder %v863, 8.507059e+37
    %v865 = vand.u32 %v824, 2147483648
    %v866 = vor.u32 1.1754944e-38, %v865
    %v867 = vsel %vm864, %v866, %v862
    %v868 = vmul.f32 %v760, %v867
    %v869 = vrcp.pop %v825
    %v870 = vmul.f32 %v825, %v869
    %v871 = vsub.f32 1.0, %v870
    %v872 = vmul.f32 %v869, %v871
    %v873 = vadd.f32 %v869, %v872
    %vm874 = vweird.f32 %v825
    %vm875 = vweird.f32 %v869
    %vm876 = vmor %vm874, %vm875
    %v877 = vsel %vm876, %v869, %v873
    %v878 = vand.u32 2147483647, %v825
    %vm879 = vcmp.eq.f32.partialorder %v878, 8.507059e+37
    %v880 = vand.u32 %v825, 2147483648
    %v881 = vor.u32 1.1754944e-38, %v880
    %v882 = vsel %vm879, %v881, %v877
    %v883 = vmul.f32 %v761, %v882
    %v884 = vrcp.pop %v826
    %v885 = vmul.f32 %v826, %v884
    %v886 = vsub.f32 1.0, %v885
    %v887 = vmul.f32 %v884, %v886
    %v888 = vadd.f32 %v884, %v887
    %vm889 = vweird.f32 %v826
    %vm890 = vweird.f32 %v884
    %vm891 = vmor %vm889, %vm890
    %v892 = vsel %vm891, %v884, %v888
    %v893 = vand.u32 2147483647, %v826
    %vm894 = vcmp.eq.f32.partialorder %v893, 8.507059e+37
    %v895 = vand.u32 %v826, 2147483648
    %v896 = vor.u32 1.1754944e-38, %v895
    %v897 = vsel %vm894, %v896, %v892
    %v898 = vmul.f32 %v762, %v897
    %v899 = vrcp.pop %v827
    %v900 = vmul.f32 %v827, %v899
    %v901 = vsub.f32 1.0, %v900
    %v902 = vmul.f32 %v899, %v901
    %v903 = vadd.f32 %v899, %v902
    %vm904 = vweird.f32 %v827
    %vm905 = vweird.f32 %v899
    %vm906 = vmor %vm904, %vm905
    %v907 = vsel %vm906, %v899, %v903
    %v908 = vand.u32 2147483647, %v827
    %vm909 = vcmp.eq.f32.partialorder %v908, 8.507059e+37
    %v910 = vand.u32 %v827, 2147483648
    %v911 = vor.u32 1.1754944e-38, %v910
    %v912 = vsel %vm909, %v911, %v907
    %v913 = vmul.f32 %v763, %v912
    %v914 = vrcp.pop %v828
    %v915 = vmul.f32 %v828, %v914
    %v916 = vsub.f32 1.0, %v915
    %v917 = vmul.f32 %v914, %v916
    %v918 = vadd.f32 %v914, %v917
    %vm919 = vweird.f32 %v828
    %vm920 = vweird.f32 %v914
    %vm921 = vmor %vm919, %vm920
    %v922 = vsel %vm921, %v914, %v918
    %v923 = vand.u32 2147483647, %v828
    %vm924 = vcmp.eq.f32.partialorder %v923, 8.507059e+37
    %v925 = vand.u32 %v828, 2147483648
    %v926 = vor.u32 1.1754944e-38, %v925
    %v927 = vsel %vm924, %v926, %v922
    %v928 = vmul.f32 %v764, %v927
    %v929 = vrcp.pop %v829
    %v930 = vmul.f32 %v829, %v929
    %v931 = vsub.f32 1.0, %v930
    %v932 = vmul.f32 %v929, %v931
    %v933 = vadd.f32 %v929, %v932
    %vm934 = vweird.f32 %v829
    %vm935 = vweird.f32 %v929
    %vm936 = vmor %vm934, %vm935
    %v937 = vsel %vm936, %v929, %v933
    %v938 = vand.u32 2147483647, %v829
    %vm939 = vcmp.eq.f32.partialorder %v938, 8.507059e+37
    %v940 = vand.u32 %v829, 2147483648
    %v941 = vor.u32 1.1754944e-38, %v940
    %v942 = vsel %vm939, %v941, %v937
    %v943 = vmul.f32 %v765, %v942
    %v944 = vrcp.pop %v830
    %v945 = vmul.f32 %v830, %v944
    %v946 = vsub.f32 1.0, %v945
    %v947 = vmul.f32 %v944, %v946
    %v948 = vadd.f32 %v944, %v947
    %vm949 = vweird.f32 %v830
    %vm950 = vweird.f32 %v944
    %vm951 = vmor %vm949, %vm950
    %v952 = vsel %vm951, %v944, %v948
    %v953 = vand.u32 2147483647, %v830
    %vm954 = vcmp.eq.f32.partialorder %v953, 8.507059e+37
    %v955 = vand.u32 %v830, 2147483648
    %v956 = vor.u32 1.1754944e-38, %v955
    %v957 = vsel %vm954, %v956, %v952
    %v958 = vmul.f32 %v766, %v957
    %v959 = vrcp.pop %v831
    %v960 = vmul.f32 %v831, %v959
    %v961 = vsub.f32 1.0, %v960
    %v962 = vmul.f32 %v959, %v961
    %v963 = vadd.f32 %v959, %v962
    %vm964 = vweird.f32 %v831
    %vm965 = vweird.f32 %v959
    %vm966 = vmor %vm964, %vm965
    %v967 = vsel %vm966, %v959, %v963
    %v968 = vand.u32 2147483647, %v831
    %vm969 = vcmp.eq.f32.partialorder %v968, 8.507059e+37
    %v970 = vand.u32 %v831, 2147483648
    %v971 = vor.u32 1.1754944e-38, %v970
    %v972 = vsel %vm969, %v971, %v967
    %v973 = vmul.f32 %v767, %v972
    %v974 = vrcp.pop %v832
    %v975 = vmul.f32 %v832, %v974
    %v976 = vsub.f32 1.0, %v975
    %v977 = vmul.f32 %v974, %v976
    %v978 = vadd.f32 %v974, %v977
    %vm979 = vweird.f32 %v832
    %vm980 = vweird.f32 %v974
    %vm981 = vmor %vm979, %vm980
    %v982 = vsel %vm981, %v974, %v978
    %v983 = vand.u32 2147483647, %v832
    %vm984 = vcmp.eq.f32.partialorder %v983, 8.507059e+37
    %v985 = vand.u32 %v832, 2147483648
    %v986 = vor.u32 1.1754944e-38, %v985
    %v987 = vsel %vm984, %v986, %v982
    %v988 = vmul.f32 %v768, %v987
    %v989 = vrcp.pop %v833
    %v990 = vmul.f32 %v833, %v989
    %v991 = vsub.f32 1.0, %v990
    %v992 = vmul.f32 %v989, %v991
    %v993 = vadd.f32 %v989, %v992
    %vm994 = vweird.f32 %v833
    %vm995 = vweird.f32 %v989
    %vm996 = vmor %vm994, %vm995
    %v997 = vsel %vm996, %v989, %v993
    %v998 = vand.u32 2147483647, %v833
    %vm999 = vcmp.eq.f32.partialorder %v998, 8.507059e+37
    %v1000 = vand.u32 %v833, 2147483648
    %v1001 = vor.u32 1.1754944e-38, %v1000
    %v1002 = vsel %vm999, %v1001, %v997
    %v1003 = vmul.f32 %v769, %v1002
    %v1004 = vrcp.pop %v834
    %v1005 = vmul.f32 %v834, %v1004
    %v1006 = vsub.f32 1.0, %v1005
    %v1007 = vmul.f32 %v1004, %v1006
    %v1008 = vadd.f32 %v1004, %v1007
    %vm1009 = vweird.f32 %v834
    %vm1010 = vweird.f32 %v1004
    %vm1011 = vmor %vm1009, %vm1010
    %v1012 = vsel %vm1011, %v1004, %v1008
    %v1013 = vand.u32 2147483647, %v834
    %vm1014 = vcmp.eq.f32.partialorder %v1013, 8.507059e+37
    %v1015 = vand.u32 %v834, 2147483648
    %v1016 = vor.u32 1.1754944e-38, %v1015
    %v1017 = vsel %vm1014, %v1016, %v1012
    %v1018 = vmul.f32 %v770, %v1017
    %v1019 = vrcp.pop %v835
    %v1020 = vmul.f32 %v835, %v1019
    %v1021 = vsub.f32 1.0, %v1020
    %v1022 = vmul.f32 %v1019, %v1021
    %v1023 = vadd.f32 %v1019, %v1022
    %vm1024 = vweird.f32 %v835
    %vm1025 = vweird.f32 %v1019
    %vm1026 = vmor %vm1024, %vm1025
    %v1027 = vsel %vm1026, %v1019, %v1023
    %v1028 = vand.u32 2147483647, %v835
    %vm1029 = vcmp.eq.f32.partialorder %v1028, 8.507059e+37
    %v1030 = vand.u32 %v835, 2147483648
    %v1031 = vor.u32 1.1754944e-38, %v1030
    %v1032 = vsel %vm1029, %v1031, %v1027
    %v1033 = vmul.f32 %v771, %v1032
    %v1034 = vrcp.pop %v836
    %v1035 = vmul.f32 %v836, %v1034
    %v1036 = vsub.f32 1.0, %v1035
    %v1037 = vmul.f32 %v1034, %v1036
    %v1038 = vadd.f32 %v1034, %v1037
    %vm1039 = vweird.f32 %v836
    %vm1040 = vweird.f32 %v1034
    %vm1041 = vmor %vm1039, %vm1040
    %v1042 = vsel %vm1041, %v1034, %v1038
    %v1043 = vand.u32 2147483647, %v836
    %vm1044 = vcmp.eq.f32.partialorder %v1043, 8.507059e+37
    %v1045 = vand.u32 %v836, 2147483648
    %v1046 = vor.u32 1.1754944e-38, %v1045
    %v1047 = vsel %vm1044, %v1046, %v1042
    %v1048 = vmul.f32 %v772, %v1047
    %v1049 = vrcp.pop %v837
    %v1050 = vmul.f32 %v837, %v1049
    %v1051 = vsub.f32 1.0, %v1050
    %v1052 = vmul.f32 %v1049, %v1051
    %v1053 = vadd.f32 %v1049, %v1052
    %vm1054 = vweird.f32 %v837
    %vm1055 = vweird.f32 %v1049
    %vm1056 = vmor %vm1054, %vm1055
    %v1057 = vsel %vm1056, %v1049, %v1053
    %v1058 = vand.u32 2147483647, %v837
    %vm1059 = vcmp.eq.f32.partialorder %v1058, 8.507059e+37
    %v1060 = vand.u32 %v837, 2147483648
    %v1061 = vor.u32 1.1754944e-38, %v1060
    %v1062 = vsel %vm1059, %v1061, %v1057
    %v1063 = vmul.f32 %v773, %v1062
    %v1064 = vrcp.pop %v838
    %v1065 = vmul.f32 %v838, %v1064
    %v1066 = vsub.f32 1.0, %v1065
    %v1067 = vmul.f32 %v1064, %v1066
    %v1068 = vadd.f32 %v1064, %v1067
    %vm1069 = vweird.f32 %v838
    %vm1070 = vweird.f32 %v1064
    %vm1071 = vmor %vm1069, %vm1070
    %v1072 = vsel %vm1071, %v1064, %v1068
    %v1073 = vand.u32 2147483647, %v838
    %vm1074 = vcmp.eq.f32.partialorder %v1073, 8.507059e+37
    %v1075 = vand.u32 %v838, 2147483648
    %v1076 = vor.u32 1.1754944e-38, %v1075
    %v1077 = vsel %vm1074, %v1076, %v1072
    %v1078 = vmul.f32 %v774, %v1077
    %v1080 = vsel %vm630, %v853, 0
    %v1083 = vsel %vm630, %v868, 0
    %v1086 = vsel %vm630, %v883, 0
    %v1089 = vsel %vm630, %v898, 0
    %v1092 = vsel %vm630, %v913, 0
    %v1095 = vsel %vm630, %v928, 0
    %v1098 = vsel %vm630, %v943, 0
    %v1101 = vsel %vm630, %v958, 0
    %v1104 = vsel %vm630, %v973, 0
    %v1107 = vsel %vm630, %v988, 0
    %v1110 = vsel %vm630, %v1003, 0
    %v1113 = vsel %vm630, %v1018, 0
    %v1116 = vsel %vm630, %v1033, 0
    %v1119 = vsel %vm630, %v1048, 0
    %v1122 = vsel %vm630, %v1063, 0
    %v1125 = vsel %vm630, %v1078, 0
    %1127 = vmatpush.msra.mxu0 0.0
    %1128 = vmatpush.msra.mxu0 0.0
    %1129 = vmatpush.msra.mxu0 0.0
    %1130 = vmatpush.msra.mxu0 0.0
    %1131 = vmatpush.msra.mxu0 0.0
    %1132 = vmatpush.msra.mxu0 0.0
    %1133 = vmatpush.msra.mxu0 0.0
    %1134 = vmatpush.msra.mxu0 0.0
    %1135 = vmatpush.msra.mxu0 0.0
    %1136 = vmatpush.msra.mxu0 0.0
    %1137 = vmatpush.msra.mxu0 0.0
    %1138 = vmatpush.msra.mxu0 0.0
    %1139 = vmatpush.msra.mxu0 %v597
    %1140 = vmatpush.msra.mxu0 %v596
    %1141 = vmatpush.msra.mxu0 %v595
    %1142 = vmatpush.msra.mxu0 %v594
    %1143 = vmatmul.f32.gmra.mxu0 %v1080
    %v1144 = vpop.f32.mrf.mxu0
    %v1145 = vadd.f32 0.0, %v1144
    %1146 = vmatmul.f32.gmra.mxu0 %v1083
    %v1147 = vpop.f32.mrf.mxu0
    %v1148 = vadd.f32 0.0, %v1147
    %1149 = vmatmul.f32.gmra.mxu0 %v1086
    %v1150 = vpop.f32.mrf.mxu0
    %v1151 = vadd.f32 0.0, %v1150
    %1152 = vmatmul.f32.gmra.mxu0 %v1089
    %v1153 = vpop.f32.mrf.mxu0
    %v1154 = vadd.f32 0.0, %v1153
    %1155 = vmatmul.f32.gmra.mxu0 %v1092
    %v1156 = vpop.f32.mrf.mxu0
    %v1157 = vadd.f32 0.0, %v1156
    %1158 = vmatmul.f32.gmra.mxu0 %v1095
    %v1159 = vpop.f32.mrf.mxu0
    %v1160 = vadd.f32 0.0, %v1159
    %1161 = vmatmul.f32.gmra.mxu0 %v1098
    %v1162 = vpop.f32.mrf.mxu0
    %v1163 = vadd.f32 0.0, %v1162
    %1164 = vmatmul.f32.gmra.mxu0 %v1101
    %v1165 = vpop.f32.mrf.mxu0
    %v1166 = vadd.f32 0.0, %v1165
    %1167 = vmatmul.f32.gmra.mxu0 %v1104
    %v1168 = vpop.f32.mrf.mxu0
    %v1169 = vadd.f32 0.0, %v1168
    %1170 = vmatmul.f32.gmra.mxu0 %v1107
    %v1171 = vpop.f32.mrf.mxu0
    %v1172 = vadd.f32 0.0, %v1171
    %1173 = vmatmul.f32.gmra.mxu0 %v1110
    %v1174 = vpop.f32.mrf.mxu0
    %v1175 = vadd.f32 0.0, %v1174
    %1176 = vmatmul.f32.gmra.mxu0 %v1113
    %v1177 = vpop.f32.mrf.mxu0
    %v1178 = vadd.f32 0.0, %v1177
    %1179 = vmatmul.f32.gmra.mxu0 %v1116
    %v1180 = vpop.f32.mrf.mxu0
    %v1181 = vadd.f32 0.0, %v1180
    %1182 = vmatmul.f32.gmra.mxu0 %v1119
    %v1183 = vpop.f32.mrf.mxu0
    %v1184 = vadd.f32 0.0, %v1183
    %1185 = vmatmul.f32.gmra.mxu0 %v1122
    %v1186 = vpop.f32.mrf.mxu0
    %v1187 = vadd.f32 0.0, %v1186
    %1188 = vmatmul.f32.gmra.mxu0 %v1125
    %v1189 = vpop.f32.mrf.mxu0
    %v1190 = vadd.f32 0.0, %v1189
    %1191 = vdwg.mxu0
    %v1192 = vld [vmem:[%s7] sm:$0xff]
    %v1193 = vld [vmem:[%s7 + $0x8] sm:$0xff]
    %v1194 = vld [vmem:[%s7 + $0x10] sm:$0xff]
    %v1195 = vld [vmem:[%s7 + $0x18] sm:$0xff]
    %v1196 = vld [vmem:[%s7 + $0x20] sm:$0xff]
    %v1197 = vld [vmem:[%s7 + $0x28] sm:$0xff]
    %v1198 = vld [vmem:[%s7 + $0x30] sm:$0xff]
    %v1199 = vld [vmem:[%s7 + $0x38] sm:$0xff]
    %v1200 = vld [vmem:[%s7 + $0x40] sm:$0xff]
    %v1201 = vld [vmem:[%s7 + $0x48] sm:$0xff]
    %v1202 = vld [vmem:[%s7 + $0x50] sm:$0xff]
    %v1203 = vld [vmem:[%s7 + $0x58] sm:$0xff]
    %v1204 = vld [vmem:[%s7 + $0x60] sm:$0xff]
    %v1205 = vld [vmem:[%s7 + $0x68] sm:$0xff]
    %v1206 = vld [vmem:[%s7 + $0x70] sm:$0xff]
    %v1207 = vld [vmem:[%s7 + $0x78] sm:$0xff]
    %v1208 = vld [vmem:[%s7 + $0x80] sm:$0xff]
    %v1209 = vld [vmem:[%s7 + $0x88] sm:$0xff]
    %v1210 = vld [vmem:[%s7 + $0x90] sm:$0xff]
    %v1211 = vld [vmem:[%s7 + $0x98] sm:$0xff]
    %v1212 = vld [vmem:[%s7 + $0xa0] sm:$0xff]
    %v1213 = vld [vmem:[%s7 + $0xa8] sm:$0xff]
    %v1214 = vld [vmem:[%s7 + $0xb0] sm:$0xff]
    %v1215 = vld [vmem:[%s7 + $0xb8] sm:$0xff]
    %v1216 = vld [vmem:[%s7 + $0xc0] sm:$0xff]
    %v1217 = vld [vmem:[%s7 + $0xc8] sm:$0xff]
    %v1218 = vld [vmem:[%s7 + $0xd0] sm:$0xff]
    %v1219 = vld [vmem:[%s7 + $0xd8] sm:$0xff]
    %v1220 = vld [vmem:[%s7 + $0xe0] sm:$0xff]
    %v1221 = vld [vmem:[%s7 + $0xe8] sm:$0xff]
    %v1222 = vld [vmem:[%s7 + $0xf0] sm:$0xff]
    %v1223 = vld [vmem:[%s7 + $0xf8] sm:$0xff]
    %v1225 = vsel %vm630, %v1192, 0
    %v1228 = vsel %vm630, %v1193, 0
    %v1231 = vsel %vm630, %v1194, 0
    %v1234 = vsel %vm630, %v1195, 0
    %v1237 = vsel %vm630, %v1196, 0
    %v1240 = vsel %vm630, %v1197, 0
    %v1243 = vsel %vm630, %v1198, 0
    %v1246 = vsel %vm630, %v1199, 0
    %v1249 = vsel %vm630, %v1200, 0
    %v1252 = vsel %vm630, %v1201, 0
    %v1255 = vsel %vm630, %v1202, 0
    %v1258 = vsel %vm630, %v1203, 0
    %v1261 = vsel %vm630, %v1204, 0
    %v1264 = vsel %vm630, %v1205, 0
    %v1267 = vsel %vm630, %v1206, 0
    %v1270 = vsel %vm630, %v1207, 0
    %v1273 = vsel %vm630, %v1208, 0
    %v1276 = vsel %vm630, %v1209, 0
    %v1279 = vsel %vm630, %v1210, 0
    %v1282 = vsel %vm630, %v1211, 0
    %v1285 = vsel %vm630, %v1212, 0
    %v1288 = vsel %vm630, %v1213, 0
    %v1291 = vsel %vm630, %v1214, 0
    %v1294 = vsel %vm630, %v1215, 0
    %v1297 = vsel %vm630, %v1216, 0
    %v1300 = vsel %vm630, %v1217, 0
    %v1303 = vsel %vm630, %v1218, 0
    %v1306 = vsel %vm630, %v1219, 0
    %v1309 = vsel %vm630, %v1220, 0
    %v1312 = vsel %vm630, %v1221, 0
    %v1315 = vsel %vm630, %v1222, 0
    %v1318 = vsel %vm630, %v1223, 0
    %1320 = vmatpush.msra.mxu0 0.0
    %1321 = vmatpush.msra.mxu0 0.0
    %1322 = vmatpush.msra.mxu0 0.0
    %1323 = vmatpush.msra.mxu0 0.0
    %1324 = vmatpush.msra.mxu0 0.0
    %1325 = vmatpush.msra.mxu0 0.0
    %1326 = vmatpush.msra.mxu0 0.0
    %1327 = vmatpush.msra.mxu0 0.0
    %1328 = vmatpush.msra.mxu0 0.0
    %1329 = vmatpush.msra.mxu0 0.0
    %1330 = vmatpush.msra.mxu0 0.0
    %1331 = vmatpush.msra.mxu0 0.0
    %1332 = vmatpush.msra.mxu0 %v597
    %1333 = vmatpush.msra.mxu0 %v596
    %1334 = vmatpush.msra.mxu0 %v595
    %1335 = vmatpush.msra.mxu0 %v594
    %1336 = vmatmul.f32.gmra.mxu0 %v1225
    %v1337 = vpop.f32.mrf.mxu0
    %v1338 = vadd.f32 0.0, %v1337
    %1339 = vmatmul.f32.gmra.mxu0 %v1228
    %v1340 = vpop.f32.mrf.mxu0
    %v1341 = vadd.f32 0.0, %v1340
    %1342 = vmatmul.f32.gmra.mxu0 %v1231
    %v1343 = vpop.f32.mrf.mxu0
    %v1344 = vadd.f32 0.0, %v1343
    %1345 = vmatmul.f32.gmra.mxu0 %v1234
    %v1346 = vpop.f32.mrf.mxu0
    %v1347 = vadd.f32 0.0, %v1346
    %1348 = vmatmul.f32.gmra.mxu0 %v1237
    %v1349 = vpop.f32.mrf.mxu0
    %v1350 = vadd.f32 0.0, %v1349
    %1351 = vmatmul.f32.gmra.mxu0 %v1240
    %v1352 = vpop.f32.mrf.mxu0
    %v1353 = vadd.f32 0.0, %v1352
    %1354 = vmatmul.f32.gmra.mxu0 %v1243
    %v1355 = vpop.f32.mrf.mxu0
    %v1356 = vadd.f32 0.0, %v1355
    %1357 = vmatmul.f32.gmra.mxu0 %v1246
    %v1358 = vpop.f32.mrf.mxu0
    %v1359 = vadd.f32 0.0, %v1358
    %1360 = vmatmul.f32.gmra.mxu0 %v1249
    %v1361 = vpop.f32.mrf.mxu0
    %v1362 = vadd.f32 0.0, %v1361
    %1363 = vmatmul.f32.gmra.mxu0 %v1252
    %v1364 = vpop.f32.mrf.mxu0
    %v1365 = vadd.f32 0.0, %v1364
    %1366 = vmatmul.f32.gmra.mxu0 %v1255
    %v1367 = vpop.f32.mrf.mxu0
    %v1368 = vadd.f32 0.0, %v1367
    %1369 = vmatmul.f32.gmra.mxu0 %v1258
    %v1370 = vpop.f32.mrf.mxu0
    %v1371 = vadd.f32 0.0, %v1370
    %1372 = vmatmul.f32.gmra.mxu0 %v1261
    %v1373 = vpop.f32.mrf.mxu0
    %v1374 = vadd.f32 0.0, %v1373
    %1375 = vmatmul.f32.gmra.mxu0 %v1264
    %v1376 = vpop.f32.mrf.mxu0
    %v1377 = vadd.f32 0.0, %v1376
    %1378 = vmatmul.f32.gmra.mxu0 %v1267
    %v1379 = vpop.f32.mrf.mxu0
    %v1380 = vadd.f32 0.0, %v1379
    %1381 = vmatmul.f32.gmra.mxu0 %v1270
    %v1382 = vpop.f32.mrf.mxu0
    %v1383 = vadd.f32 0.0, %v1382
    %1384 = vmatmul.f32.gmra.mxu0 %v1273
    %v1385 = vpop.f32.mrf.mxu0
    %v1386 = vadd.f32 0.0, %v1385
    %1387 = vmatmul.f32.gmra.mxu0 %v1276
    %v1388 = vpop.f32.mrf.mxu0
    %v1389 = vadd.f32 0.0, %v1388
    %1390 = vmatmul.f32.gmra.mxu0 %v1279
    %v1391 = vpop.f32.mrf.mxu0
    %v1392 = vadd.f32 0.0, %v1391
    %1393 = vmatmul.f32.gmra.mxu0 %v1282
    %v1394 = vpop.f32.mrf.mxu0
    %v1395 = vadd.f32 0.0, %v1394
    %1396 = vmatmul.f32.gmra.mxu0 %v1285
    %v1397 = vpop.f32.mrf.mxu0
    %v1398 = vadd.f32 0.0, %v1397
    %1399 = vmatmul.f32.gmra.mxu0 %v1288
    %v1400 = vpop.f32.mrf.mxu0
    %v1401 = vadd.f32 0.0, %v1400
    %1402 = vmatmul.f32.gmra.mxu0 %v1291
    %v1403 = vpop.f32.mrf.mxu0
    %v1404 = vadd.f32 0.0, %v1403
    %1405 = vmatmul.f32.gmra.mxu0 %v1294
    %v1406 = vpop.f32.mrf.mxu0
    %v1407 = vadd.f32 0.0, %v1406
    %1408 = vmatmul.f32.gmra.mxu0 %v1297
    %v1409 = vpop.f32.mrf.mxu0
    %v1410 = vadd.f32 0.0, %v1409
    %1411 = vmatmul.f32.gmra.mxu0 %v1300
    %v1412 = vpop.f32.mrf.mxu0
    %v1413 = vadd.f32 0.0, %v1412
    %1414 = vmatmul.f32.gmra.mxu0 %v1303
    %v1415 = vpop.f32.mrf.mxu0
    %v1416 = vadd.f32 0.0, %v1415
    %1417 = vmatmul.f32.gmra.mxu0 %v1306
    %v1418 = vpop.f32.mrf.mxu0
    %v1419 = vadd.f32 0.0, %v1418
    %1420 = vmatmul.f32.gmra.mxu0 %v1309
    %v1421 = vpop.f32.mrf.mxu0
    %v1422 = vadd.f32 0.0, %v1421
    %1423 = vmatmul.f32.gmra.mxu0 %v1312
    %v1424 = vpop.f32.mrf.mxu0
    %v1425 = vadd.f32 0.0, %v1424
    %1426 = vmatmul.f32.gmra.mxu0 %v1315
    %v1427 = vpop.f32.mrf.mxu0
    %v1428 = vadd.f32 0.0, %v1427
    %1429 = vmatmul.f32.gmra.mxu0 %v1318
    %v1430 = vpop.f32.mrf.mxu0
    %v1431 = vadd.f32 0.0, %v1430
    %1432 = vdwg.mxu0
    %v1433 = vmul.f32 %v1338, %v1338
    %v1434 = vmul.f32 %v1341, %v1341
    %v1435 = vmul.f32 %v1344, %v1344
    %v1436 = vmul.f32 %v1347, %v1347
    %v1437 = vmul.f32 %v1350, %v1350
    %v1438 = vmul.f32 %v1353, %v1353
    %v1439 = vmul.f32 %v1356, %v1356
    %v1440 = vmul.f32 %v1359, %v1359
    %v1441 = vmul.f32 %v1362, %v1362
    %v1442 = vmul.f32 %v1365, %v1365
    %v1443 = vmul.f32 %v1368, %v1368
    %v1444 = vmul.f32 %v1371, %v1371
    %v1445 = vmul.f32 %v1374, %v1374
    %v1446 = vmul.f32 %v1377, %v1377
    %v1447 = vmul.f32 %v1380, %v1380
    %v1448 = vmul.f32 %v1383, %v1383
    %v1449 = vmul.f32 %v1386, %v1386
    %v1450 = vmul.f32 %v1389, %v1389
    %v1451 = vmul.f32 %v1392, %v1392
    %v1452 = vmul.f32 %v1395, %v1395
    %v1453 = vmul.f32 %v1398, %v1398
    %v1454 = vmul.f32 %v1401, %v1401
    %v1455 = vmul.f32 %v1404, %v1404
    %v1456 = vmul.f32 %v1407, %v1407
    %v1457 = vmul.f32 %v1410, %v1410
    %v1458 = vmul.f32 %v1413, %v1413
    %v1459 = vmul.f32 %v1416, %v1416
    %v1460 = vmul.f32 %v1419, %v1419
    %v1461 = vmul.f32 %v1422, %v1422
    %v1462 = vmul.f32 %v1425, %v1425
    %v1463 = vmul.f32 %v1428, %v1428
    %v1464 = vmul.f32 %v1431, %v1431
    %1465 = vadd.xlane.f32.xlu0 %v1433
    %v1466 = vpop.xlane.xlu0 %1465
    %1467 = vadd.xlane.f32.xlu0 %v1434
    %v1468 = vpop.xlane.xlu0 %1467
    %1469 = vadd.xlane.f32.xlu0 %v1435
    %v1470 = vpop.xlane.xlu0 %1469
    %1471 = vadd.xlane.f32.xlu0 %v1436
    %v1472 = vpop.xlane.xlu0 %1471
    %1473 = vadd.xlane.f32.xlu0 %v1437
    %v1474 = vpop.xlane.xlu0 %1473
    %1475 = vadd.xlane.f32.xlu0 %v1438
    %v1476 = vpop.xlane.xlu0 %1475
    %1477 = vadd.xlane.f32.xlu0 %v1439
    %v1478 = vpop.xlane.xlu0 %1477
    %1479 = vadd.xlane.f32.xlu0 %v1440
    %v1480 = vpop.xlane.xlu0 %1479
    %1481 = vadd.xlane.f32.xlu0 %v1441
    %v1482 = vpop.xlane.xlu0 %1481
    %1483 = vadd.xlane.f32.xlu0 %v1442
    %v1484 = vpop.xlane.xlu0 %1483
    %1485 = vadd.xlane.f32.xlu0 %v1443
    %v1486 = vpop.xlane.xlu0 %1485
    %1487 = vadd.xlane.f32.xlu0 %v1444
    %v1488 = vpop.xlane.xlu0 %1487
    %1489 = vadd.xlane.f32.xlu0 %v1445
    %v1490 = vpop.xlane.xlu0 %1489
    %1491 = vadd.xlane.f32.xlu0 %v1446
    %v1492 = vpop.xlane.xlu0 %1491
    %1493 = vadd.xlane.f32.xlu0 %v1447
    %v1494 = vpop.xlane.xlu0 %1493
    %1495 = vadd.xlane.f32.xlu0 %v1448
    %v1496 = vpop.xlane.xlu0 %1495
    %1497 = vadd.xlane.f32.xlu0 %v1449
    %v1498 = vpop.xlane.xlu0 %1497
    %1499 = vadd.xlane.f32.xlu0 %v1450
    %v1500 = vpop.xlane.xlu0 %1499
    %1501 = vadd.xlane.f32.xlu0 %v1451
    %v1502 = vpop.xlane.xlu0 %1501
    %1503 = vadd.xlane.f32.xlu0 %v1452
    %v1504 = vpop.xlane.xlu0 %1503
    %1505 = vadd.xlane.f32.xlu0 %v1453
    %v1506 = vpop.xlane.xlu0 %1505
    %1507 = vadd.xlane.f32.xlu0 %v1454
    %v1508 = vpop.xlane.xlu0 %1507
    %1509 = vadd.xlane.f32.xlu0 %v1455
    %v1510 = vpop.xlane.xlu0 %1509
    %1511 = vadd.xlane.f32.xlu0 %v1456
    %v1512 = vpop.xlane.xlu0 %1511
    %1513 = vadd.xlane.f32.xlu0 %v1457
    %v1514 = vpop.xlane.xlu0 %1513
    %1515 = vadd.xlane.f32.xlu0 %v1458
    %v1516 = vpop.xlane.xlu0 %1515
    %1517 = vadd.xlane.f32.xlu0 %v1459
    %v1518 = vpop.xlane.xlu0 %1517
    %1519 = vadd.xlane.f32.xlu0 %v1460
    %v1520 = vpop.xlane.xlu0 %1519
    %1521 = vadd.xlane.f32.xlu0 %v1461
    %v1522 = vpop.xlane.xlu0 %1521
    %1523 = vadd.xlane.f32.xlu0 %v1462
    %v1524 = vpop.xlane.xlu0 %1523
    %1525 = vadd.xlane.f32.xlu0 %v1463
    %v1526 = vpop.xlane.xlu0 %1525
    %1527 = vadd.xlane.f32.xlu0 %v1464
    %v1528 = vpop.xlane.xlu0 %1527
    %v1529 = vrsqrt.pop %v1466
    %v1530 = vmul.f32 %v1529, %v1466
    %v1531 = vmul.f32 %v1530, %v1529
    %v1532 = vmul.f32 0.5, %v1531
    %v1533 = vsub.f32 1.5, %v1532
    %v1534 = vmul.f32 %v1529, %v1533
    %v1535 = vmul.f32 %v1466, %v1534
    %vm1536 = vcmp.eq.f32.partialorder %v1466, inf
    %v1537 = vsel %vm1536, %v1466, %v1535
    %vm1538 = vcmp.eq.f32.partialorder %v1466, 0.0
    %v1539 = vand.u32 %v1466, 2147483648
    %v1540 = vsel %vm1538, %v1539, %v1537
    %v1541 = vrsqrt.pop %v1468
    %v1542 = vmul.f32 %v1541, %v1468
    %v1543 = vmul.f32 %v1542, %v1541
    %v1544 = vmul.f32 0.5, %v1543
    %v1545 = vsub.f32 1.5, %v1544
    %v1546 = vmul.f32 %v1541, %v1545
    %v1547 = vmul.f32 %v1468, %v1546
    %vm1548 = vcmp.eq.f32.partialorder %v1468, inf
    %v1549 = vsel %vm1548, %v1468, %v1547
    %vm1550 = vcmp.eq.f32.partialorder %v1468, 0.0
    %v1551 = vand.u32 %v1468, 2147483648
    %v1552 = vsel %vm1550, %v1551, %v1549
    %v1553 = vrsqrt.pop %v1470
    %v1554 = vmul.f32 %v1553, %v1470
    %v1555 = vmul.f32 %v1554, %v1553
    %v1556 = vmul.f32 0.5, %v1555
    %v1557 = vsub.f32 1.5, %v1556
    %v1558 = vmul.f32 %v1553, %v1557
    %v1559 = vmul.f32 %v1470, %v1558
    %vm1560 = vcmp.eq.f32.partialorder %v1470, inf
    %v1561 = vsel %vm1560, %v1470, %v1559
    %vm1562 = vcmp.eq.f32.partialorder %v1470, 0.0
    %v1563 = vand.u32 %v1470, 2147483648
    %v1564 = vsel %vm1562, %v1563, %v1561
    %v1565 = vrsqrt.pop %v1472
    %v1566 = vmul.f32 %v1565, %v1472
    %v1567 = vmul.f32 %v1566, %v1565
    %v1568 = vmul.f32 0.5, %v1567
    %v1569 = vsub.f32 1.5, %v1568
    %v1570 = vmul.f32 %v1565, %v1569
    %v1571 = vmul.f32 %v1472, %v1570
    %vm1572 = vcmp.eq.f32.partialorder %v1472, inf
    %v1573 = vsel %vm1572, %v1472, %v1571
    %vm1574 = vcmp.eq.f32.partialorder %v1472, 0.0
    %v1575 = vand.u32 %v1472, 2147483648
    %v1576 = vsel %vm1574, %v1575, %v1573
    %v1577 = vrsqrt.pop %v1474
    %v1578 = vmul.f32 %v1577, %v1474
    %v1579 = vmul.f32 %v1578, %v1577
    %v1580 = vmul.f32 0.5, %v1579
    %v1581 = vsub.f32 1.5, %v1580
    %v1582 = vmul.f32 %v1577, %v1581
    %v1583 = vmul.f32 %v1474, %v1582
    %vm1584 = vcmp.eq.f32.partialorder %v1474, inf
    %v1585 = vsel %vm1584, %v1474, %v1583
    %vm1586 = vcmp.eq.f32.partialorder %v1474, 0.0
    %v1587 = vand.u32 %v1474, 2147483648
    %v1588 = vsel %vm1586, %v1587, %v1585
    %v1589 = vrsqrt.pop %v1476
    %v1590 = vmul.f32 %v1589, %v1476
    %v1591 = vmul.f32 %v1590, %v1589
    %v1592 = vmul.f32 0.5, %v1591
    %v1593 = vsub.f32 1.5, %v1592
    %v1594 = vmul.f32 %v1589, %v1593
    %v1595 = vmul.f32 %v1476, %v1594
    %vm1596 = vcmp.eq.f32.partialorder %v1476, inf
    %v1597 = vsel %vm1596, %v1476, %v1595
    %vm1598 = vcmp.eq.f32.partialorder %v1476, 0.0
    %v1599 = vand.u32 %v1476, 2147483648
    %v1600 = vsel %vm1598, %v1599, %v1597
    %v1601 = vrsqrt.pop %v1478
    %v1602 = vmul.f32 %v1601, %v1478
    %v1603 = vmul.f32 %v1602, %v1601
    %v1604 = vmul.f32 0.5, %v1603
    %v1605 = vsub.f32 1.5, %v1604
    %v1606 = vmul.f32 %v1601, %v1605
    %v1607 = vmul.f32 %v1478, %v1606
    %vm1608 = vcmp.eq.f32.partialorder %v1478, inf
    %v1609 = vsel %vm1608, %v1478, %v1607
    %vm1610 = vcmp.eq.f32.partialorder %v1478, 0.0
    %v1611 = vand.u32 %v1478, 2147483648
    %v1612 = vsel %vm1610, %v1611, %v1609
    %v1613 = vrsqrt.pop %v1480
    %v1614 = vmul.f32 %v1613, %v1480
    %v1615 = vmul.f32 %v1614, %v1613
    %v1616 = vmul.f32 0.5, %v1615
    %v1617 = vsub.f32 1.5, %v1616
    %v1618 = vmul.f32 %v1613, %v1617
    %v1619 = vmul.f32 %v1480, %v1618
    %vm1620 = vcmp.eq.f32.partialorder %v1480, inf
    %v1621 = vsel %vm1620, %v1480, %v1619
    %vm1622 = vcmp.eq.f32.partialorder %v1480, 0.0
    %v1623 = vand.u32 %v1480, 2147483648
    %v1624 = vsel %vm1622, %v1623, %v1621
    %v1625 = vrsqrt.pop %v1482
    %v1626 = vmul.f32 %v1625, %v1482
    %v1627 = vmul.f32 %v1626, %v1625
    %v1628 = vmul.f32 0.5, %v1627
    %v1629 = vsub.f32 1.5, %v1628
    %v1630 = vmul.f32 %v1625, %v1629
    %v1631 = vmul.f32 %v1482, %v1630
    %vm1632 = vcmp.eq.f32.partialorder %v1482, inf
    %v1633 = vsel %vm1632, %v1482, %v1631
    %vm1634 = vcmp.eq.f32.partialorder %v1482, 0.0
    %v1635 = vand.u32 %v1482, 2147483648
    %v1636 = vsel %vm1634, %v1635, %v1633
    %v1637 = vrsqrt.pop %v1484
    %v1638 = vmul.f32 %v1637, %v1484
    %v1639 = vmul.f32 %v1638, %v1637
    %v1640 = vmul.f32 0.5, %v1639
    %v1641 = vsub.f32 1.5, %v1640
    %v1642 = vmul.f32 %v1637, %v1641
    %v1643 = vmul.f32 %v1484, %v1642
    %vm1644 = vcmp.eq.f32.partialorder %v1484, inf
    %v1645 = vsel %vm1644, %v1484, %v1643
    %vm1646 = vcmp.eq.f32.partialorder %v1484, 0.0
    %v1647 = vand.u32 %v1484, 2147483648
    %v1648 = vsel %vm1646, %v1647, %v1645
    %v1649 = vrsqrt.pop %v1486
    %v1650 = vmul.f32 %v1649, %v1486
    %v1651 = vmul.f32 %v1650, %v1649
    %v1652 = vmul.f32 0.5, %v1651
    %v1653 = vsub.f32 1.5, %v1652
    %v1654 = vmul.f32 %v1649, %v1653
    %v1655 = vmul.f32 %v1486, %v1654
    %vm1656 = vcmp.eq.f32.partialorder %v1486, inf
    %v1657 = vsel %vm1656, %v1486, %v1655
    %vm1658 = vcmp.eq.f32.partialorder %v1486, 0.0
    %v1659 = vand.u32 %v1486, 2147483648
    %v1660 = vsel %vm1658, %v1659, %v1657
    %v1661 = vrsqrt.pop %v1488
    %v1662 = vmul.f32 %v1661, %v1488
    %v1663 = vmul.f32 %v1662, %v1661
    %v1664 = vmul.f32 0.5, %v1663
    %v1665 = vsub.f32 1.5, %v1664
    %v1666 = vmul.f32 %v1661, %v1665
    %v1667 = vmul.f32 %v1488, %v1666
    %vm1668 = vcmp.eq.f32.partialorder %v1488, inf
    %v1669 = vsel %vm1668, %v1488, %v1667
    %vm1670 = vcmp.eq.f32.partialorder %v1488, 0.0
    %v1671 = vand.u32 %v1488, 2147483648
    %v1672 = vsel %vm1670, %v1671, %v1669
    %v1673 = vrsqrt.pop %v1490
    %v1674 = vmul.f32 %v1673, %v1490
    %v1675 = vmul.f32 %v1674, %v1673
    %v1676 = vmul.f32 0.5, %v1675
    %v1677 = vsub.f32 1.5, %v1676
    %v1678 = vmul.f32 %v1673, %v1677
    %v1679 = vmul.f32 %v1490, %v1678
    %vm1680 = vcmp.eq.f32.partialorder %v1490, inf
    %v1681 = vsel %vm1680, %v1490, %v1679
    %vm1682 = vcmp.eq.f32.partialorder %v1490, 0.0
    %v1683 = vand.u32 %v1490, 2147483648
    %v1684 = vsel %vm1682, %v1683, %v1681
    %v1685 = vrsqrt.pop %v1492
    %v1686 = vmul.f32 %v1685, %v1492
    %v1687 = vmul.f32 %v1686, %v1685
    %v1688 = vmul.f32 0.5, %v1687
    %v1689 = vsub.f32 1.5, %v1688
    %v1690 = vmul.f32 %v1685, %v1689
    %v1691 = vmul.f32 %v1492, %v1690
    %vm1692 = vcmp.eq.f32.partialorder %v1492, inf
    %v1693 = vsel %vm1692, %v1492, %v1691
    %vm1694 = vcmp.eq.f32.partialorder %v1492, 0.0
    %v1695 = vand.u32 %v1492, 2147483648
    %v1696 = vsel %vm1694, %v1695, %v1693
    %v1697 = vrsqrt.pop %v1494
    %v1698 = vmul.f32 %v1697, %v1494
    %v1699 = vmul.f32 %v1698, %v1697
    %v1700 = vmul.f32 0.5, %v1699
    %v1701 = vsub.f32 1.5, %v1700
    %v1702 = vmul.f32 %v1697, %v1701
    %v1703 = vmul.f32 %v1494, %v1702
    %vm1704 = vcmp.eq.f32.partialorder %v1494, inf
    %v1705 = vsel %vm1704, %v1494, %v1703
    %vm1706 = vcmp.eq.f32.partialorder %v1494, 0.0
    %v1707 = vand.u32 %v1494, 2147483648
    %v1708 = vsel %vm1706, %v1707, %v1705
    %v1709 = vrsqrt.pop %v1496
    %v1710 = vmul.f32 %v1709, %v1496
    %v1711 = vmul.f32 %v1710, %v1709
    %v1712 = vmul.f32 0.5, %v1711
    %v1713 = vsub.f32 1.5, %v1712
    %v1714 = vmul.f32 %v1709, %v1713
    %v1715 = vmul.f32 %v1496, %v1714
    %vm1716 = vcmp.eq.f32.partialorder %v1496, inf
    %v1717 = vsel %vm1716, %v1496, %v1715
    %vm1718 = vcmp.eq.f32.partialorder %v1496, 0.0
    %v1719 = vand.u32 %v1496, 2147483648
    %v1720 = vsel %vm1718, %v1719, %v1717
    %v1721 = vrsqrt.pop %v1498
    %v1722 = vmul.f32 %v1721, %v1498
    %v1723 = vmul.f32 %v1722, %v1721
    %v1724 = vmul.f32 0.5, %v1723
    %v1725 = vsub.f32 1.5, %v1724
    %v1726 = vmul.f32 %v1721, %v1725
    %v1727 = vmul.f32 %v1498, %v1726
    %vm1728 = vcmp.eq.f32.partialorder %v1498, inf
    %v1729 = vsel %vm1728, %v1498, %v1727
    %vm1730 = vcmp.eq.f32.partialorder %v1498, 0.0
    %v1731 = vand.u32 %v1498, 2147483648
    %v1732 = vsel %vm1730, %v1731, %v1729
    %v1733 = vrsqrt.pop %v1500
    %v1734 = vmul.f32 %v1733, %v1500
    %v1735 = vmul.f32 %v1734, %v1733
    %v1736 = vmul.f32 0.5, %v1735
    %v1737 = vsub.f32 1.5, %v1736
    %v1738 = vmul.f32 %v1733, %v1737
    %v1739 = vmul.f32 %v1500, %v1738
    %vm1740 = vcmp.eq.f32.partialorder %v1500, inf
    %v1741 = vsel %vm1740, %v1500, %v1739
    %vm1742 = vcmp.eq.f32.partialorder %v1500, 0.0
    %v1743 = vand.u32 %v1500, 2147483648
    %v1744 = vsel %vm1742, %v1743, %v1741
    %v1745 = vrsqrt.pop %v1502
    %v1746 = vmul.f32 %v1745, %v1502
    %v1747 = vmul.f32 %v1746, %v1745
    %v1748 = vmul.f32 0.5, %v1747
    %v1749 = vsub.f32 1.5, %v1748
    %v1750 = vmul.f32 %v1745, %v1749
    %v1751 = vmul.f32 %v1502, %v1750
    %vm1752 = vcmp.eq.f32.partialorder %v1502, inf
    %v1753 = vsel %vm1752, %v1502, %v1751
    %vm1754 = vcmp.eq.f32.partialorder %v1502, 0.0
    %v1755 = vand.u32 %v1502, 2147483648
    %v1756 = vsel %vm1754, %v1755, %v1753
    %v1757 = vrsqrt.pop %v1504
    %v1758 = vmul.f32 %v1757, %v1504
    %v1759 = vmul.f32 %v1758, %v1757
    %v1760 = vmul.f32 0.5, %v1759
    %v1761 = vsub.f32 1.5, %v1760
    %v1762 = vmul.f32 %v1757, %v1761
    %v1763 = vmul.f32 %v1504, %v1762
    %vm1764 = vcmp.eq.f32.partialorder %v1504, inf
    %v1765 = vsel %vm1764, %v1504, %v1763
    %vm1766 = vcmp.eq.f32.partialorder %v1504, 0.0
    %v1767 = vand.u32 %v1504, 2147483648
    %v1768 = vsel %vm1766, %v1767, %v1765
    %v1769 = vrsqrt.pop %v1506
    %v1770 = vmul.f32 %v1769, %v1506
    %v1771 = vmul.f32 %v1770, %v1769
    %v1772 = vmul.f32 0.5, %v1771
    %v1773 = vsub.f32 1.5, %v1772
    %v1774 = vmul.f32 %v1769, %v1773
    %v1775 = vmul.f32 %v1506, %v1774
    %vm1776 = vcmp.eq.f32.partialorder %v1506, inf
    %v1777 = vsel %vm1776, %v1506, %v1775
    %vm1778 = vcmp.eq.f32.partialorder %v1506, 0.0
    %v1779 = vand.u32 %v1506, 2147483648
    %v1780 = vsel %vm1778, %v1779, %v1777
    %v1781 = vrsqrt.pop %v1508
    %v1782 = vmul.f32 %v1781, %v1508
    %v1783 = vmul.f32 %v1782, %v1781
    %v1784 = vmul.f32 0.5, %v1783
    %v1785 = vsub.f32 1.5, %v1784
    %v1786 = vmul.f32 %v1781, %v1785
    %v1787 = vmul.f32 %v1508, %v1786
    %vm1788 = vcmp.eq.f32.partialorder %v1508, inf
    %v1789 = vsel %vm1788, %v1508, %v1787
    %vm1790 = vcmp.eq.f32.partialorder %v1508, 0.0
    %v1791 = vand.u32 %v1508, 2147483648
    %v1792 = vsel %vm1790, %v1791, %v1789
    %v1793 = vrsqrt.pop %v1510
    %v1794 = vmul.f32 %v1793, %v1510
    %v1795 = vmul.f32 %v1794, %v1793
    %v1796 = vmul.f32 0.5, %v1795
    %v1797 = vsub.f32 1.5, %v1796
    %v1798 = vmul.f32 %v1793, %v1797
    %v1799 = vmul.f32 %v1510, %v1798
    %vm1800 = vcmp.eq.f32.partialorder %v1510, inf
    %v1801 = vsel %vm1800, %v1510, %v1799
    %vm1802 = vcmp.eq.f32.partialorder %v1510, 0.0
    %v1803 = vand.u32 %v1510, 2147483648
    %v1804 = vsel %vm1802, %v1803, %v1801
    %v1805 = vrsqrt.pop %v1512
    %v1806 = vmul.f32 %v1805, %v1512
    %v1807 = vmul.f32 %v1806, %v1805
    %v1808 = vmul.f32 0.5, %v1807
    %v1809 = vsub.f32 1.5, %v1808
    %v1810 = vmul.f32 %v1805, %v1809
    %v1811 = vmul.f32 %v1512, %v1810
    %vm1812 = vcmp.eq.f32.partialorder %v1512, inf
    %v1813 = vsel %vm1812, %v1512, %v1811
    %vm1814 = vcmp.eq.f32.partialorder %v1512, 0.0
    %v1815 = vand.u32 %v1512, 2147483648
    %v1816 = vsel %vm1814, %v1815, %v1813
    %v1817 = vrsqrt.pop %v1514
    %v1818 = vmul.f32 %v1817, %v1514
    %v1819 = vmul.f32 %v1818, %v1817
    %v1820 = vmul.f32 0.5, %v1819
    %v1821 = vsub.f32 1.5, %v1820
    %v1822 = vmul.f32 %v1817, %v1821
    %v1823 = vmul.f32 %v1514, %v1822
    %vm1824 = vcmp.eq.f32.partialorder %v1514, inf
    %v1825 = vsel %vm1824, %v1514, %v1823
    %vm1826 = vcmp.eq.f32.partialorder %v1514, 0.0
    %v1827 = vand.u32 %v1514, 2147483648
    %v1828 = vsel %vm1826, %v1827, %v1825
    %v1829 = vrsqrt.pop %v1516
    %v1830 = vmul.f32 %v1829, %v1516
    %v1831 = vmul.f32 %v1830, %v1829
    %v1832 = vmul.f32 0.5, %v1831
    %v1833 = vsub.f32 1.5, %v1832
    %v1834 = vmul.f32 %v1829, %v1833
    %v1835 = vmul.f32 %v1516, %v1834
    %vm1836 = vcmp.eq.f32.partialorder %v1516, inf
    %v1837 = vsel %vm1836, %v1516, %v1835
    %vm1838 = vcmp.eq.f32.partialorder %v1516, 0.0
    %v1839 = vand.u32 %v1516, 2147483648
    %v1840 = vsel %vm1838, %v1839, %v1837
    %v1841 = vrsqrt.pop %v1518
    %v1842 = vmul.f32 %v1841, %v1518
    %v1843 = vmul.f32 %v1842, %v1841
    %v1844 = vmul.f32 0.5, %v1843
    %v1845 = vsub.f32 1.5, %v1844
    %v1846 = vmul.f32 %v1841, %v1845
    %v1847 = vmul.f32 %v1518, %v1846
    %vm1848 = vcmp.eq.f32.partialorder %v1518, inf
    %v1849 = vsel %vm1848, %v1518, %v1847
    %vm1850 = vcmp.eq.f32.partialorder %v1518, 0.0
    %v1851 = vand.u32 %v1518, 2147483648
    %v1852 = vsel %vm1850, %v1851, %v1849
    %v1853 = vrsqrt.pop %v1520
    %v1854 = vmul.f32 %v1853, %v1520
    %v1855 = vmul.f32 %v1854, %v1853
    %v1856 = vmul.f32 0.5, %v1855
    %v1857 = vsub.f32 1.5, %v1856
    %v1858 = vmul.f32 %v1853, %v1857
    %v1859 = vmul.f32 %v1520, %v1858
    %vm1860 = vcmp.eq.f32.partialorder %v1520, inf
    %v1861 = vsel %vm1860, %v1520, %v1859
    %vm1862 = vcmp.eq.f32.partialorder %v1520, 0.0
    %v1863 = vand.u32 %v1520, 2147483648
    %v1864 = vsel %vm1862, %v1863, %v1861
    %v1865 = vrsqrt.pop %v1522
    %v1866 = vmul.f32 %v1865, %v1522
    %v1867 = vmul.f32 %v1866, %v1865
    %v1868 = vmul.f32 0.5, %v1867
    %v1869 = vsub.f32 1.5, %v1868
    %v1870 = vmul.f32 %v1865, %v1869
    %v1871 = vmul.f32 %v1522, %v1870
    %vm1872 = vcmp.eq.f32.partialorder %v1522, inf
    %v1873 = vsel %vm1872, %v1522, %v1871
    %vm1874 = vcmp.eq.f32.partialorder %v1522, 0.0
    %v1875 = vand.u32 %v1522, 2147483648
    %v1876 = vsel %vm1874, %v1875, %v1873
    %v1877 = vrsqrt.pop %v1524
    %v1878 = vmul.f32 %v1877, %v1524
    %v1879 = vmul.f32 %v1878, %v1877
    %v1880 = vmul.f32 0.5, %v1879
    %v1881 = vsub.f32 1.5, %v1880
    %v1882 = vmul.f32 %v1877, %v1881
    %v1883 = vmul.f32 %v1524, %v1882
    %vm1884 = vcmp.eq.f32.partialorder %v1524, inf
    %v1885 = vsel %vm1884, %v1524, %v1883
    %vm1886 = vcmp.eq.f32.partialorder %v1524, 0.0
    %v1887 = vand.u32 %v1524, 2147483648
    %v1888 = vsel %vm1886, %v1887, %v1885
    %v1889 = vrsqrt.pop %v1526
    %v1890 = vmul.f32 %v1889, %v1526
    %v1891 = vmul.f32 %v1890, %v1889
    %v1892 = vmul.f32 0.5, %v1891
    %v1893 = vsub.f32 1.5, %v1892
    %v1894 = vmul.f32 %v1889, %v1893
    %v1895 = vmul.f32 %v1526, %v1894
    %vm1896 = vcmp.eq.f32.partialorder %v1526, inf
    %v1897 = vsel %vm1896, %v1526, %v1895
    %vm1898 = vcmp.eq.f32.partialorder %v1526, 0.0
    %v1899 = vand.u32 %v1526, 2147483648
    %v1900 = vsel %vm1898, %v1899, %v1897
    %v1901 = vrsqrt.pop %v1528
    %v1902 = vmul.f32 %v1901, %v1528
    %v1903 = vmul.f32 %v1902, %v1901
    %v1904 = vmul.f32 0.5, %v1903
    %v1905 = vsub.f32 1.5, %v1904
    %v1906 = vmul.f32 %v1901, %v1905
    %v1907 = vmul.f32 %v1528, %v1906
    %vm1908 = vcmp.eq.f32.partialorder %v1528, inf
    %v1909 = vsel %vm1908, %v1528, %v1907
    %vm1910 = vcmp.eq.f32.partialorder %v1528, 0.0
    %v1911 = vand.u32 %v1528, 2147483648
    %v1912 = vsel %vm1910, %v1911, %v1909
    %v1913 = vmax.f32 %v1540, 1e-12
    %v1914 = vmax.f32 %v1552, 1e-12
    %v1915 = vmax.f32 %v1564, 1e-12
    %v1916 = vmax.f32 %v1576, 1e-12
    %v1917 = vmax.f32 %v1588, 1e-12
    %v1918 = vmax.f32 %v1600, 1e-12
    %v1919 = vmax.f32 %v1612, 1e-12
    %v1920 = vmax.f32 %v1624, 1e-12
    %v1921 = vmax.f32 %v1636, 1e-12
    %v1922 = vmax.f32 %v1648, 1e-12
    %v1923 = vmax.f32 %v1660, 1e-12
    %v1924 = vmax.f32 %v1672, 1e-12
    %v1925 = vmax.f32 %v1684, 1e-12
    %v1926 = vmax.f32 %v1696, 1e-12
    %v1927 = vmax.f32 %v1708, 1e-12
    %v1928 = vmax.f32 %v1720, 1e-12
    %v1929 = vmax.f32 %v1732, 1e-12
    %v1930 = vmax.f32 %v1744, 1e-12
    %v1931 = vmax.f32 %v1756, 1e-12
    %v1932 = vmax.f32 %v1768, 1e-12
    %v1933 = vmax.f32 %v1780, 1e-12
    %v1934 = vmax.f32 %v1792, 1e-12
    %v1935 = vmax.f32 %v1804, 1e-12
    %v1936 = vmax.f32 %v1816, 1e-12
    %v1937 = vmax.f32 %v1828, 1e-12
    %v1938 = vmax.f32 %v1840, 1e-12
    %v1939 = vmax.f32 %v1852, 1e-12
    %v1940 = vmax.f32 %v1864, 1e-12
    %v1941 = vmax.f32 %v1876, 1e-12
    %v1942 = vmax.f32 %v1888, 1e-12
    %v1943 = vmax.f32 %v1900, 1e-12
    %v1944 = vmax.f32 %v1912, 1e-12
    %v1945 = vrcp.pop %v1913
    %v1946 = vmul.f32 %v1913, %v1945
    %v1947 = vsub.f32 1.0, %v1946
    %v1948 = vmul.f32 %v1945, %v1947
    %v1949 = vadd.f32 %v1945, %v1948
    %vm1950 = vweird.f32 %v1913
    %vm1951 = vweird.f32 %v1945
    %vm1952 = vmor %vm1950, %vm1951
    %v1953 = vsel %vm1952, %v1945, %v1949
    %v1954 = vand.u32 2147483647, %v1913
    %vm1955 = vcmp.eq.f32.partialorder %v1954, 8.507059e+37
    %v1956 = vand.u32 %v1913, 2147483648
    %v1957 = vor.u32 1.1754944e-38, %v1956
    %v1958 = vsel %vm1955, %v1957, %v1953
    %v1959 = vmul.f32 %v1338, %v1958
    %v1960 = vrcp.pop %v1914
    %v1961 = vmul.f32 %v1914, %v1960
    %v1962 = vsub.f32 1.0, %v1961
    %v1963 = vmul.f32 %v1960, %v1962
    %v1964 = vadd.f32 %v1960, %v1963
    %vm1965 = vweird.f32 %v1914
    %vm1966 = vweird.f32 %v1960
    %vm1967 = vmor %vm1965, %vm1966
    %v1968 = vsel %vm1967, %v1960, %v1964
    %v1969 = vand.u32 2147483647, %v1914
    %vm1970 = vcmp.eq.f32.partialorder %v1969, 8.507059e+37
    %v1971 = vand.u32 %v1914, 2147483648
    %v1972 = vor.u32 1.1754944e-38, %v1971
    %v1973 = vsel %vm1970, %v1972, %v1968
    %v1974 = vmul.f32 %v1341, %v1973
    %v1975 = vrcp.pop %v1915
    %v1976 = vmul.f32 %v1915, %v1975
    %v1977 = vsub.f32 1.0, %v1976
    %v1978 = vmul.f32 %v1975, %v1977
    %v1979 = vadd.f32 %v1975, %v1978
    %vm1980 = vweird.f32 %v1915
    %vm1981 = vweird.f32 %v1975
    %vm1982 = vmor %vm1980, %vm1981
    %v1983 = vsel %vm1982, %v1975, %v1979
    %v1984 = vand.u32 2147483647, %v1915
    %vm1985 = vcmp.eq.f32.partialorder %v1984, 8.507059e+37
    %v1986 = vand.u32 %v1915, 2147483648
    %v1987 = vor.u32 1.1754944e-38, %v1986
    %v1988 = vsel %vm1985, %v1987, %v1983
    %v1989 = vmul.f32 %v1344, %v1988
    %v1990 = vrcp.pop %v1916
    %v1991 = vmul.f32 %v1916, %v1990
    %v1992 = vsub.f32 1.0, %v1991
    %v1993 = vmul.f32 %v1990, %v1992
    %v1994 = vadd.f32 %v1990, %v1993
    %vm1995 = vweird.f32 %v1916
    %vm1996 = vweird.f32 %v1990
    %vm1997 = vmor %vm1995, %vm1996
    %v1998 = vsel %vm1997, %v1990, %v1994
    %v1999 = vand.u32 2147483647, %v1916
    %vm2000 = vcmp.eq.f32.partialorder %v1999, 8.507059e+37
    %v2001 = vand.u32 %v1916, 2147483648
    %v2002 = vor.u32 1.1754944e-38, %v2001
    %v2003 = vsel %vm2000, %v2002, %v1998
    %v2004 = vmul.f32 %v1347, %v2003
    %v2005 = vrcp.pop %v1917
    %v2006 = vmul.f32 %v1917, %v2005
    %v2007 = vsub.f32 1.0, %v2006
    %v2008 = vmul.f32 %v2005, %v2007
    %v2009 = vadd.f32 %v2005, %v2008
    %vm2010 = vweird.f32 %v1917
    %vm2011 = vweird.f32 %v2005
    %vm2012 = vmor %vm2010, %vm2011
    %v2013 = vsel %vm2012, %v2005, %v2009
    %v2014 = vand.u32 2147483647, %v1917
    %vm2015 = vcmp.eq.f32.partialorder %v2014, 8.507059e+37
    %v2016 = vand.u32 %v1917, 2147483648
    %v2017 = vor.u32 1.1754944e-38, %v2016
    %v2018 = vsel %vm2015, %v2017, %v2013
    %v2019 = vmul.f32 %v1350, %v2018
    %v2020 = vrcp.pop %v1918
    %v2021 = vmul.f32 %v1918, %v2020
    %v2022 = vsub.f32 1.0, %v2021
    %v2023 = vmul.f32 %v2020, %v2022
    %v2024 = vadd.f32 %v2020, %v2023
    %vm2025 = vweird.f32 %v1918
    %vm2026 = vweird.f32 %v2020
    %vm2027 = vmor %vm2025, %vm2026
    %v2028 = vsel %vm2027, %v2020, %v2024
    %v2029 = vand.u32 2147483647, %v1918
    %vm2030 = vcmp.eq.f32.partialorder %v2029, 8.507059e+37
    %v2031 = vand.u32 %v1918, 2147483648
    %v2032 = vor.u32 1.1754944e-38, %v2031
    %v2033 = vsel %vm2030, %v2032, %v2028
    %v2034 = vmul.f32 %v1353, %v2033
    %v2035 = vrcp.pop %v1919
    %v2036 = vmul.f32 %v1919, %v2035
    %v2037 = vsub.f32 1.0, %v2036
    %v2038 = vmul.f32 %v2035, %v2037
    %v2039 = vadd.f32 %v2035, %v2038
    %vm2040 = vweird.f32 %v1919
    %vm2041 = vweird.f32 %v2035
    %vm2042 = vmor %vm2040, %vm2041
    %v2043 = vsel %vm2042, %v2035, %v2039
    %v2044 = vand.u32 2147483647, %v1919
    %vm2045 = vcmp.eq.f32.partialorder %v2044, 8.507059e+37
    %v2046 = vand.u32 %v1919, 2147483648
    %v2047 = vor.u32 1.1754944e-38, %v2046
    %v2048 = vsel %vm2045, %v2047, %v2043
    %v2049 = vmul.f32 %v1356, %v2048
    %v2050 = vrcp.pop %v1920
    %v2051 = vmul.f32 %v1920, %v2050
    %v2052 = vsub.f32 1.0, %v2051
    %v2053 = vmul.f32 %v2050, %v2052
    %v2054 = vadd.f32 %v2050, %v2053
    %vm2055 = vweird.f32 %v1920
    %vm2056 = vweird.f32 %v2050
    %vm2057 = vmor %vm2055, %vm2056
    %v2058 = vsel %vm2057, %v2050, %v2054
    %v2059 = vand.u32 2147483647, %v1920
    %vm2060 = vcmp.eq.f32.partialorder %v2059, 8.507059e+37
    %v2061 = vand.u32 %v1920, 2147483648
    %v2062 = vor.u32 1.1754944e-38, %v2061
    %v2063 = vsel %vm2060, %v2062, %v2058
    %v2064 = vmul.f32 %v1359, %v2063
    %v2065 = vrcp.pop %v1921
    %v2066 = vmul.f32 %v1921, %v2065
    %v2067 = vsub.f32 1.0, %v2066
    %v2068 = vmul.f32 %v2065, %v2067
    %v2069 = vadd.f32 %v2065, %v2068
    %vm2070 = vweird.f32 %v1921
    %vm2071 = vweird.f32 %v2065
    %vm2072 = vmor %vm2070, %vm2071
    %v2073 = vsel %vm2072, %v2065, %v2069
    %v2074 = vand.u32 2147483647, %v1921
    %vm2075 = vcmp.eq.f32.partialorder %v2074, 8.507059e+37
    %v2076 = vand.u32 %v1921, 2147483648
    %v2077 = vor.u32 1.1754944e-38, %v2076
    %v2078 = vsel %vm2075, %v2077, %v2073
    %v2079 = vmul.f32 %v1362, %v2078
    %v2080 = vrcp.pop %v1922
    %v2081 = vmul.f32 %v1922, %v2080
    %v2082 = vsub.f32 1.0, %v2081
    %v2083 = vmul.f32 %v2080, %v2082
    %v2084 = vadd.f32 %v2080, %v2083
    %vm2085 = vweird.f32 %v1922
    %vm2086 = vweird.f32 %v2080
    %vm2087 = vmor %vm2085, %vm2086
    %v2088 = vsel %vm2087, %v2080, %v2084
    %v2089 = vand.u32 2147483647, %v1922
    %vm2090 = vcmp.eq.f32.partialorder %v2089, 8.507059e+37
    %v2091 = vand.u32 %v1922, 2147483648
    %v2092 = vor.u32 1.1754944e-38, %v2091
    %v2093 = vsel %vm2090, %v2092, %v2088
    %v2094 = vmul.f32 %v1365, %v2093
    %v2095 = vrcp.pop %v1923
    %v2096 = vmul.f32 %v1923, %v2095
    %v2097 = vsub.f32 1.0, %v2096
    %v2098 = vmul.f32 %v2095, %v2097
    %v2099 = vadd.f32 %v2095, %v2098
    %vm2100 = vweird.f32 %v1923
    %vm2101 = vweird.f32 %v2095
    %vm2102 = vmor %vm2100, %vm2101
    %v2103 = vsel %vm2102, %v2095, %v2099
    %v2104 = vand.u32 2147483647, %v1923
    %vm2105 = vcmp.eq.f32.partialorder %v2104, 8.507059e+37
    %v2106 = vand.u32 %v1923, 2147483648
    %v2107 = vor.u32 1.1754944e-38, %v2106
    %v2108 = vsel %vm2105, %v2107, %v2103
    %v2109 = vmul.f32 %v1368, %v2108
    %v2110 = vrcp.pop %v1924
    %v2111 = vmul.f32 %v1924, %v2110
    %v2112 = vsub.f32 1.0, %v2111
    %v2113 = vmul.f32 %v2110, %v2112
    %v2114 = vadd.f32 %v2110, %v2113
    %vm2115 = vweird.f32 %v1924
    %vm2116 = vweird.f32 %v2110
    %vm2117 = vmor %vm2115, %vm2116
    %v2118 = vsel %vm2117, %v2110, %v2114
    %v2119 = vand.u32 2147483647, %v1924
    %vm2120 = vcmp.eq.f32.partialorder %v2119, 8.507059e+37
    %v2121 = vand.u32 %v1924, 2147483648
    %v2122 = vor.u32 1.1754944e-38, %v2121
    %v2123 = vsel %vm2120, %v2122, %v2118
    %v2124 = vmul.f32 %v1371, %v2123
    %v2125 = vrcp.pop %v1925
    %v2126 = vmul.f32 %v1925, %v2125
    %v2127 = vsub.f32 1.0, %v2126
    %v2128 = vmul.f32 %v2125, %v2127
    %v2129 = vadd.f32 %v2125, %v2128
    %vm2130 = vweird.f32 %v1925
    %vm2131 = vweird.f32 %v2125
    %vm2132 = vmor %vm2130, %vm2131
    %v2133 = vsel %vm2132, %v2125, %v2129
    %v2134 = vand.u32 2147483647, %v1925
    %vm2135 = vcmp.eq.f32.partialorder %v2134, 8.507059e+37
    %v2136 = vand.u32 %v1925, 2147483648
    %v2137 = vor.u32 1.1754944e-38, %v2136
    %v2138 = vsel %vm2135, %v2137, %v2133
    %v2139 = vmul.f32 %v1374, %v2138
    %v2140 = vrcp.pop %v1926
    %v2141 = vmul.f32 %v1926, %v2140
    %v2142 = vsub.f32 1.0, %v2141
    %v2143 = vmul.f32 %v2140, %v2142
    %v2144 = vadd.f32 %v2140, %v2143
    %vm2145 = vweird.f32 %v1926
    %vm2146 = vweird.f32 %v2140
    %vm2147 = vmor %vm2145, %vm2146
    %v2148 = vsel %vm2147, %v2140, %v2144
    %v2149 = vand.u32 2147483647, %v1926
    %vm2150 = vcmp.eq.f32.partialorder %v2149, 8.507059e+37
    %v2151 = vand.u32 %v1926, 2147483648
    %v2152 = vor.u32 1.1754944e-38, %v2151
    %v2153 = vsel %vm2150, %v2152, %v2148
    %v2154 = vmul.f32 %v1377, %v2153
    %v2155 = vrcp.pop %v1927
    %v2156 = vmul.f32 %v1927, %v2155
    %v2157 = vsub.f32 1.0, %v2156
    %v2158 = vmul.f32 %v2155, %v2157
    %v2159 = vadd.f32 %v2155, %v2158
    %vm2160 = vweird.f32 %v1927
    %vm2161 = vweird.f32 %v2155
    %vm2162 = vmor %vm2160, %vm2161
    %v2163 = vsel %vm2162, %v2155, %v2159
    %v2164 = vand.u32 2147483647, %v1927
    %vm2165 = vcmp.eq.f32.partialorder %v2164, 8.507059e+37
    %v2166 = vand.u32 %v1927, 2147483648
    %v2167 = vor.u32 1.1754944e-38, %v2166
    %v2168 = vsel %vm2165, %v2167, %v2163
    %v2169 = vmul.f32 %v1380, %v2168
    %v2170 = vrcp.pop %v1928
    %v2171 = vmul.f32 %v1928, %v2170
    %v2172 = vsub.f32 1.0, %v2171
    %v2173 = vmul.f32 %v2170, %v2172
    %v2174 = vadd.f32 %v2170, %v2173
    %vm2175 = vweird.f32 %v1928
    %vm2176 = vweird.f32 %v2170
    %vm2177 = vmor %vm2175, %vm2176
    %v2178 = vsel %vm2177, %v2170, %v2174
    %v2179 = vand.u32 2147483647, %v1928
    %vm2180 = vcmp.eq.f32.partialorder %v2179, 8.507059e+37
    %v2181 = vand.u32 %v1928, 2147483648
    %v2182 = vor.u32 1.1754944e-38, %v2181
    %v2183 = vsel %vm2180, %v2182, %v2178
    %v2184 = vmul.f32 %v1383, %v2183
    %v2185 = vrcp.pop %v1929
    %v2186 = vmul.f32 %v1929, %v2185
    %v2187 = vsub.f32 1.0, %v2186
    %v2188 = vmul.f32 %v2185, %v2187
    %v2189 = vadd.f32 %v2185, %v2188
    %vm2190 = vweird.f32 %v1929
    %vm2191 = vweird.f32 %v2185
    %vm2192 = vmor %vm2190, %vm2191
    %v2193 = vsel %vm2192, %v2185, %v2189
    %v2194 = vand.u32 2147483647, %v1929
    %vm2195 = vcmp.eq.f32.partialorder %v2194, 8.507059e+37
    %v2196 = vand.u32 %v1929, 2147483648
    %v2197 = vor.u32 1.1754944e-38, %v2196
    %v2198 = vsel %vm2195, %v2197, %v2193
    %v2199 = vmul.f32 %v1386, %v2198
    %v2200 = vrcp.pop %v1930
    %v2201 = vmul.f32 %v1930, %v2200
    %v2202 = vsub.f32 1.0, %v2201
    %v2203 = vmul.f32 %v2200, %v2202
    %v2204 = vadd.f32 %v2200, %v2203
    %vm2205 = vweird.f32 %v1930
    %vm2206 = vweird.f32 %v2200
    %vm2207 = vmor %vm2205, %vm2206
    %v2208 = vsel %vm2207, %v2200, %v2204
    %v2209 = vand.u32 2147483647, %v1930
    %vm2210 = vcmp.eq.f32.partialorder %v2209, 8.507059e+37
    %v2211 = vand.u32 %v1930, 2147483648
    %v2212 = vor.u32 1.1754944e-38, %v2211
    %v2213 = vsel %vm2210, %v2212, %v2208
    %v2214 = vmul.f32 %v1389, %v2213
    %v2215 = vrcp.pop %v1931
    %v2216 = vmul.f32 %v1931, %v2215
    %v2217 = vsub.f32 1.0, %v2216
    %v2218 = vmul.f32 %v2215, %v2217
    %v2219 = vadd.f32 %v2215, %v2218
    %vm2220 = vweird.f32 %v1931
    %vm2221 = vweird.f32 %v2215
    %vm2222 = vmor %vm2220, %vm2221
    %v2223 = vsel %vm2222, %v2215, %v2219
    %v2224 = vand.u32 2147483647, %v1931
    %vm2225 = vcmp.eq.f32.partialorder %v2224, 8.507059e+37
    %v2226 = vand.u32 %v1931, 2147483648
    %v2227 = vor.u32 1.1754944e-38, %v2226
    %v2228 = vsel %vm2225, %v2227, %v2223
    %v2229 = vmul.f32 %v1392, %v2228
    %v2230 = vrcp.pop %v1932
    %v2231 = vmul.f32 %v1932, %v2230
    %v2232 = vsub.f32 1.0, %v2231
    %v2233 = vmul.f32 %v2230, %v2232
    %v2234 = vadd.f32 %v2230, %v2233
    %vm2235 = vweird.f32 %v1932
    %vm2236 = vweird.f32 %v2230
    %vm2237 = vmor %vm2235, %vm2236
    %v2238 = vsel %vm2237, %v2230, %v2234
    %v2239 = vand.u32 2147483647, %v1932
    %vm2240 = vcmp.eq.f32.partialorder %v2239, 8.507059e+37
    %v2241 = vand.u32 %v1932, 2147483648
    %v2242 = vor.u32 1.1754944e-38, %v2241
    %v2243 = vsel %vm2240, %v2242, %v2238
    %v2244 = vmul.f32 %v1395, %v2243
    %v2245 = vrcp.pop %v1933
    %v2246 = vmul.f32 %v1933, %v2245
    %v2247 = vsub.f32 1.0, %v2246
    %v2248 = vmul.f32 %v2245, %v2247
    %v2249 = vadd.f32 %v2245, %v2248
    %vm2250 = vweird.f32 %v1933
    %vm2251 = vweird.f32 %v2245
    %vm2252 = vmor %vm2250, %vm2251
    %v2253 = vsel %vm2252, %v2245, %v2249
    %v2254 = vand.u32 2147483647, %v1933
    %vm2255 = vcmp.eq.f32.partialorder %v2254, 8.507059e+37
    %v2256 = vand.u32 %v1933, 2147483648
    %v2257 = vor.u32 1.1754944e-38, %v2256
    %v2258 = vsel %vm2255, %v2257, %v2253
    %v2259 = vmul.f32 %v1398, %v2258
    %v2260 = vrcp.pop %v1934
    %v2261 = vmul.f32 %v1934, %v2260
    %v2262 = vsub.f32 1.0, %v2261
    %v2263 = vmul.f32 %v2260, %v2262
    %v2264 = vadd.f32 %v2260, %v2263
    %vm2265 = vweird.f32 %v1934
    %vm2266 = vweird.f32 %v2260
    %vm2267 = vmor %vm2265, %vm2266
    %v2268 = vsel %vm2267, %v2260, %v2264
    %v2269 = vand.u32 2147483647, %v1934
    %vm2270 = vcmp.eq.f32.partialorder %v2269, 8.507059e+37
    %v2271 = vand.u32 %v1934, 2147483648
    %v2272 = vor.u32 1.1754944e-38, %v2271
    %v2273 = vsel %vm2270, %v2272, %v2268
    %v2274 = vmul.f32 %v1401, %v2273
    %v2275 = vrcp.pop %v1935
    %v2276 = vmul.f32 %v1935, %v2275
    %v2277 = vsub.f32 1.0, %v2276
    %v2278 = vmul.f32 %v2275, %v2277
    %v2279 = vadd.f32 %v2275, %v2278
    %vm2280 = vweird.f32 %v1935
    %vm2281 = vweird.f32 %v2275
    %vm2282 = vmor %vm2280, %vm2281
    %v2283 = vsel %vm2282, %v2275, %v2279
    %v2284 = vand.u32 2147483647, %v1935
    %vm2285 = vcmp.eq.f32.partialorder %v2284, 8.507059e+37
    %v2286 = vand.u32 %v1935, 2147483648
    %v2287 = vor.u32 1.1754944e-38, %v2286
    %v2288 = vsel %vm2285, %v2287, %v2283
    %v2289 = vmul.f32 %v1404, %v2288
    %v2290 = vrcp.pop %v1936
    %v2291 = vmul.f32 %v1936, %v2290
    %v2292 = vsub.f32 1.0, %v2291
    %v2293 = vmul.f32 %v2290, %v2292
    %v2294 = vadd.f32 %v2290, %v2293
    %vm2295 = vweird.f32 %v1936
    %vm2296 = vweird.f32 %v2290
    %vm2297 = vmor %vm2295, %vm2296
    %v2298 = vsel %vm2297, %v2290, %v2294
    %v2299 = vand.u32 2147483647, %v1936
    %vm2300 = vcmp.eq.f32.partialorder %v2299, 8.507059e+37
    %v2301 = vand.u32 %v1936, 2147483648
    %v2302 = vor.u32 1.1754944e-38, %v2301
    %v2303 = vsel %vm2300, %v2302, %v2298
    %v2304 = vmul.f32 %v1407, %v2303
    %v2305 = vrcp.pop %v1937
    %v2306 = vmul.f32 %v1937, %v2305
    %v2307 = vsub.f32 1.0, %v2306
    %v2308 = vmul.f32 %v2305, %v2307
    %v2309 = vadd.f32 %v2305, %v2308
    %vm2310 = vweird.f32 %v1937
    %vm2311 = vweird.f32 %v2305
    %vm2312 = vmor %vm2310, %vm2311
    %v2313 = vsel %vm2312, %v2305, %v2309
    %v2314 = vand.u32 2147483647, %v1937
    %vm2315 = vcmp.eq.f32.partialorder %v2314, 8.507059e+37
    %v2316 = vand.u32 %v1937, 2147483648
    %v2317 = vor.u32 1.1754944e-38, %v2316
    %v2318 = vsel %vm2315, %v2317, %v2313
    %v2319 = vmul.f32 %v1410, %v2318
    %v2320 = vrcp.pop %v1938
    %v2321 = vmul.f32 %v1938, %v2320
    %v2322 = vsub.f32 1.0, %v2321
    %v2323 = vmul.f32 %v2320, %v2322
    %v2324 = vadd.f32 %v2320, %v2323
    %vm2325 = vweird.f32 %v1938
    %vm2326 = vweird.f32 %v2320
    %vm2327 = vmor %vm2325, %vm2326
    %v2328 = vsel %vm2327, %v2320, %v2324
    %v2329 = vand.u32 2147483647, %v1938
    %vm2330 = vcmp.eq.f32.partialorder %v2329, 8.507059e+37
    %v2331 = vand.u32 %v1938, 2147483648
    %v2332 = vor.u32 1.1754944e-38, %v2331
    %v2333 = vsel %vm2330, %v2332, %v2328
    %v2334 = vmul.f32 %v1413, %v2333
    %v2335 = vrcp.pop %v1939
    %v2336 = vmul.f32 %v1939, %v2335
    %v2337 = vsub.f32 1.0, %v2336
    %v2338 = vmul.f32 %v2335, %v2337
    %v2339 = vadd.f32 %v2335, %v2338
    %vm2340 = vweird.f32 %v1939
    %vm2341 = vweird.f32 %v2335
    %vm2342 = vmor %vm2340, %vm2341
    %v2343 = vsel %vm2342, %v2335, %v2339
    %v2344 = vand.u32 2147483647, %v1939
    %vm2345 = vcmp.eq.f32.partialorder %v2344, 8.507059e+37
    %v2346 = vand.u32 %v1939, 2147483648
    %v2347 = vor.u32 1.1754944e-38, %v2346
    %v2348 = vsel %vm2345, %v2347, %v2343
    %v2349 = vmul.f32 %v1416, %v2348
    %v2350 = vrcp.pop %v1940
    %v2351 = vmul.f32 %v1940, %v2350
    %v2352 = vsub.f32 1.0, %v2351
    %v2353 = vmul.f32 %v2350, %v2352
    %v2354 = vadd.f32 %v2350, %v2353
    %vm2355 = vweird.f32 %v1940
    %vm2356 = vweird.f32 %v2350
    %vm2357 = vmor %vm2355, %vm2356
    %v2358 = vsel %vm2357, %v2350, %v2354
    %v2359 = vand.u32 2147483647, %v1940
    %vm2360 = vcmp.eq.f32.partialorder %v2359, 8.507059e+37
    %v2361 = vand.u32 %v1940, 2147483648
    %v2362 = vor.u32 1.1754944e-38, %v2361
    %v2363 = vsel %vm2360, %v2362, %v2358
    %v2364 = vmul.f32 %v1419, %v2363
    %v2365 = vrcp.pop %v1941
    %v2366 = vmul.f32 %v1941, %v2365
    %v2367 = vsub.f32 1.0, %v2366
    %v2368 = vmul.f32 %v2365, %v2367
    %v2369 = vadd.f32 %v2365, %v2368
    %vm2370 = vweird.f32 %v1941
    %vm2371 = vweird.f32 %v2365
    %vm2372 = vmor %vm2370, %vm2371
    %v2373 = vsel %vm2372, %v2365, %v2369
    %v2374 = vand.u32 2147483647, %v1941
    %vm2375 = vcmp.eq.f32.partialorder %v2374, 8.507059e+37
    %v2376 = vand.u32 %v1941, 2147483648
    %v2377 = vor.u32 1.1754944e-38, %v2376
    %v2378 = vsel %vm2375, %v2377, %v2373
    %v2379 = vmul.f32 %v1422, %v2378
    %v2380 = vrcp.pop %v1942
    %v2381 = vmul.f32 %v1942, %v2380
    %v2382 = vsub.f32 1.0, %v2381
    %v2383 = vmul.f32 %v2380, %v2382
    %v2384 = vadd.f32 %v2380, %v2383
    %vm2385 = vweird.f32 %v1942
    %vm2386 = vweird.f32 %v2380
    %vm2387 = vmor %vm2385, %vm2386
    %v2388 = vsel %vm2387, %v2380, %v2384
    %v2389 = vand.u32 2147483647, %v1942
    %vm2390 = vcmp.eq.f32.partialorder %v2389, 8.507059e+37
    %v2391 = vand.u32 %v1942, 2147483648
    %v2392 = vor.u32 1.1754944e-38, %v2391
    %v2393 = vsel %vm2390, %v2392, %v2388
    %v2394 = vmul.f32 %v1425, %v2393
    %v2395 = vrcp.pop %v1943
    %v2396 = vmul.f32 %v1943, %v2395
    %v2397 = vsub.f32 1.0, %v2396
    %v2398 = vmul.f32 %v2395, %v2397
    %v2399 = vadd.f32 %v2395, %v2398
    %vm2400 = vweird.f32 %v1943
    %vm2401 = vweird.f32 %v2395
    %vm2402 = vmor %vm2400, %vm2401
    %v2403 = vsel %vm2402, %v2395, %v2399
    %v2404 = vand.u32 2147483647, %v1943
    %vm2405 = vcmp.eq.f32.partialorder %v2404, 8.507059e+37
    %v2406 = vand.u32 %v1943, 2147483648
    %v2407 = vor.u32 1.1754944e-38, %v2406
    %v2408 = vsel %vm2405, %v2407, %v2403
    %v2409 = vmul.f32 %v1428, %v2408
    %v2410 = vrcp.pop %v1944
    %v2411 = vmul.f32 %v1944, %v2410
    %v2412 = vsub.f32 1.0, %v2411
    %v2413 = vmul.f32 %v2410, %v2412
    %v2414 = vadd.f32 %v2410, %v2413
    %vm2415 = vweird.f32 %v1944
    %vm2416 = vweird.f32 %v2410
    %vm2417 = vmor %vm2415, %vm2416
    %v2418 = vsel %vm2417, %v2410, %v2414
    %v2419 = vand.u32 2147483647, %v1944
    %vm2420 = vcmp.eq.f32.partialorder %v2419, 8.507059e+37
    %v2421 = vand.u32 %v1944, 2147483648
    %v2422 = vor.u32 1.1754944e-38, %v2421
    %v2423 = vsel %vm2420, %v2422, %v2418
    %v2424 = vmul.f32 %v1431, %v2423
    %v2425 = vld [vmem:[%s0] sm:$0x3]
    %v2426 = vld [vmem:[%s1] sm:$0xff]
    %v2427 = vld [vmem:[%s1 + $0x8] sm:$0xff]
    %v2428 = vld [vmem:[%s1 + $0x10] sm:$0xff]
    %v2429 = vld [vmem:[%s1 + $0x18] sm:$0xff]
    %v2430 = vld [vmem:[%s1 + $0x20] sm:$0xff]
    %v2431 = vld [vmem:[%s1 + $0x28] sm:$0xff]
    %v2432 = vld [vmem:[%s1 + $0x30] sm:$0xff]
    %v2433 = vld [vmem:[%s1 + $0x38] sm:$0xff]
    %v2434 = vld [vmem:[%s1 + $0x40] sm:$0xff]
    %v2435 = vld [vmem:[%s1 + $0x48] sm:$0xff]
    %v2436 = vld [vmem:[%s1 + $0x50] sm:$0xff]
    %v2437 = vld [vmem:[%s1 + $0x58] sm:$0xff]
    %v2438 = vld [vmem:[%s1 + $0x60] sm:$0xff]
    %v2439 = vld [vmem:[%s1 + $0x68] sm:$0xff]
    %v2440 = vld [vmem:[%s1 + $0x70] sm:$0xff]
    %v2441 = vld [vmem:[%s1 + $0x78] sm:$0xff]
    %v2442 = vld [vmem:[%s1 + $0x80] sm:$0xff]
    %v2443 = vld [vmem:[%s1 + $0x88] sm:$0xff]
    %v2444 = vld [vmem:[%s1 + $0x90] sm:$0xff]
    %v2445 = vld [vmem:[%s1 + $0x98] sm:$0xff]
    %v2446 = vld [vmem:[%s1 + $0xa0] sm:$0xff]
    %v2447 = vld [vmem:[%s1 + $0xa8] sm:$0xff]
    %v2448 = vld [vmem:[%s1 + $0xb0] sm:$0xff]
    %v2449 = vld [vmem:[%s1 + $0xb8] sm:$0xff]
    %v2450 = vld [vmem:[%s1 + $0xc0] sm:$0xff]
    %v2451 = vld [vmem:[%s1 + $0xc8] sm:$0xff]
    %v2452 = vld [vmem:[%s1 + $0xd0] sm:$0xff]
    %v2453 = vld [vmem:[%s1 + $0xd8] sm:$0xff]
    %v2454 = vld [vmem:[%s1 + $0xe0] sm:$0xff]
    %v2455 = vld [vmem:[%s1 + $0xe8] sm:$0xff]
    %v2456 = vld [vmem:[%s1 + $0xf0] sm:$0xff]
    %v2457 = vld [vmem:[%s1 + $0xf8] sm:$0xff]
    %v2458 = vlaneseq
    %v2459 = vshrl.u32 %v2458, 7
    %v2460 = vadd.s32 %v2459, 8
    %v2461 = vadd.s32 %v2459, 16
    %v2462 = vadd.s32 %v2459, 24
    %v2463 = vadd.s32 %v2459, 32
    %v2464 = vadd.s32 %v2459, 40
    %v2465 = vadd.s32 %v2459, 48
    %v2466 = vadd.s32 %v2459, 56
    %v2467 = vadd.s32 %v2459, 64
    %v2468 = vadd.s32 %v2459, 72
    %v2469 = vadd.s32 %v2459, 80
    %v2470 = vadd.s32 %v2459, 88
    %v2471 = vadd.s32 %v2459, 96
    %v2472 = vadd.s32 %v2459, 104
    %v2473 = vadd.s32 %v2459, 112
    %v2474 = vadd.s32 %v2459, 120
    %v2475 = vperm.slane %v2425, 0
    %v2476 = vperm.slane %v2425, 1
    %vm2477 = vcmp.eq.s32.totalorder %v2459, %v2475
    %vm2478 = vcmp.eq.s32.totalorder %v2459, %v2476
    %vm2479 = vcmp.eq.s32.totalorder %v2460, %v2475
    %vm2480 = vcmp.eq.s32.totalorder %v2460, %v2476
    %vm2481 = vcmp.eq.s32.totalorder %v2461, %v2475
    %vm2482 = vcmp.eq.s32.totalorder %v2461, %v2476
    %vm2483 = vcmp.eq.s32.totalorder %v2462, %v2475
    %vm2484 = vcmp.eq.s32.totalorder %v2462, %v2476
    %vm2485 = vcmp.eq.s32.totalorder %v2463, %v2475
    %vm2486 = vcmp.eq.s32.totalorder %v2463, %v2476
    %vm2487 = vcmp.eq.s32.totalorder %v2464, %v2475
    %vm2488 = vcmp.eq.s32.totalorder %v2464, %v2476
    %vm2489 = vcmp.eq.s32.totalorder %v2465, %v2475
    %vm2490 = vcmp.eq.s32.totalorder %v2465, %v2476
    %vm2491 = vcmp.eq.s32.totalorder %v2466, %v2475
    %vm2492 = vcmp.eq.s32.totalorder %v2466, %v2476
    %vm2493 = vcmp.eq.s32.totalorder %v2467, %v2475
    %vm2494 = vcmp.eq.s32.totalorder %v2467, %v2476
    %vm2495 = vcmp.eq.s32.totalorder %v2468, %v2475
    %vm2496 = vcmp.eq.s32.totalorder %v2468, %v2476
    %vm2497 = vcmp.eq.s32.totalorder %v2469, %v2475
    %vm2498 = vcmp.eq.s32.totalorder %v2469, %v2476
    %vm2499 = vcmp.eq.s32.totalorder %v2470, %v2475
    %vm2500 = vcmp.eq.s32.totalorder %v2470, %v2476
    %vm2501 = vcmp.eq.s32.totalorder %v2471, %v2475
    %vm2502 = vcmp.eq.s32.totalorder %v2471, %v2476
    %vm2503 = vcmp.eq.s32.totalorder %v2472, %v2475
    %vm2504 = vcmp.eq.s32.totalorder %v2472, %v2476
    %vm2505 = vcmp.eq.s32.totalorder %v2473, %v2475
    %vm2506 = vcmp.eq.s32.totalorder %v2473, %v2476
    %vm2507 = vcmp.eq.s32.totalorder %v2474, %v2475
    %vm2508 = vcmp.eq.s32.totalorder %v2474, %v2476
    %v2509 = vsel %vm2477, 1, 0
    %v2510 = vsel %vm2478, 1, 0
    %v2511 = vsel %vm2479, 1, 0
    %v2512 = vsel %vm2480, 1, 0
    %v2513 = vsel %vm2481, 1, 0
    %v2514 = vsel %vm2482, 1, 0
    %v2515 = vsel %vm2483, 1, 0
    %v2516 = vsel %vm2484, 1, 0
    %v2517 = vsel %vm2485, 1, 0
    %v2518 = vsel %vm2486, 1, 0
    %v2519 = vsel %vm2487, 1, 0
    %v2520 = vsel %vm2488, 1, 0
    %v2521 = vsel %vm2489, 1, 0
    %v2522 = vsel %vm2490, 1, 0
    %v2523 = vsel %vm2491, 1, 0
    %v2524 = vsel %vm2492, 1, 0
    %v2525 = vsel %vm2493, 1, 0
    %v2526 = vsel %vm2494, 1, 0
    %v2527 = vsel %vm2495, 1, 0
    %v2528 = vsel %vm2496, 1, 0
    %v2529 = vsel %vm2497, 1, 0
    %v2530 = vsel %vm2498, 1, 0
    %v2531 = vsel %vm2499, 1, 0
    %v2532 = vsel %vm2500, 1, 0
    %v2533 = vsel %vm2501, 1, 0
    %v2534 = vsel %vm2502, 1, 0
    %v2535 = vsel %vm2503, 1, 0
    %v2536 = vsel %vm2504, 1, 0
    %v2537 = vsel %vm2505, 1, 0
    %v2538 = vsel %vm2506, 1, 0
    %v2539 = vsel %vm2507, 1, 0
    %v2540 = vsel %vm2508, 1, 0
    %v2541 = vcvt.s32.f32 %v2509
    %v2542 = vcvt.s32.f32 %v2510
    %v2543 = vcvt.s32.f32 %v2511
    %v2544 = vcvt.s32.f32 %v2512
    %v2545 = vcvt.s32.f32 %v2513
    %v2546 = vcvt.s32.f32 %v2514
    %v2547 = vcvt.s32.f32 %v2515
    %v2548 = vcvt.s32.f32 %v2516
    %v2549 = vcvt.s32.f32 %v2517
    %v2550 = vcvt.s32.f32 %v2518
    %v2551 = vcvt.s32.f32 %v2519
    %v2552 = vcvt.s32.f32 %v2520
    %v2553 = vcvt.s32.f32 %v2521
    %v2554 = vcvt.s32.f32 %v2522
    %v2555 = vcvt.s32.f32 %v2523
    %v2556 = vcvt.s32.f32 %v2524
    %v2557 = vcvt.s32.f32 %v2525
    %v2558 = vcvt.s32.f32 %v2526
    %v2559 = vcvt.s32.f32 %v2527
    %v2560 = vcvt.s32.f32 %v2528
    %v2561 = vcvt.s32.f32 %v2529
    %v2562 = vcvt.s32.f32 %v2530
    %v2563 = vcvt.s32.f32 %v2531
    %v2564 = vcvt.s32.f32 %v2532
    %v2565 = vcvt.s32.f32 %v2533
    %v2566 = vcvt.s32.f32 %v2534
    %v2567 = vcvt.s32.f32 %v2535
    %v2568 = vcvt.s32.f32 %v2536
    %v2569 = vcvt.s32.f32 %v2537
    %v2570 = vcvt.s32.f32 %v2538
    %v2571 = vcvt.s32.f32 %v2539
    %v2572 = vcvt.s32.f32 %v2540
    %v2573 = vlaneseq
    %v2574 = vand.u32 %v2573, 127
    %2575 = vset.pattern.permute.xlu0 0
    %2576 = vperm.xlu0 %2575, %v2426
    %v2577 = vpop.permute.xlu0 %2576
    %2578 = vset.pattern.permute.xlu0 0
    %2579 = vperm.xlu0 %2578, %v2427
    %v2580 = vpop.permute.xlu0 %2579
    %2581 = vset.pattern.permute.xlu0 0
    %2582 = vperm.xlu0 %2581, %v2428
    %v2583 = vpop.permute.xlu0 %2582
    %2584 = vset.pattern.permute.xlu0 0
    %2585 = vperm.xlu0 %2584, %v2429
    %v2586 = vpop.permute.xlu0 %2585
    %2587 = vset.pattern.permute.xlu0 0
    %2588 = vperm.xlu0 %2587, %v2430
    %v2589 = vpop.permute.xlu0 %2588
    %2590 = vset.pattern.permute.xlu0 0
    %2591 = vperm.xlu0 %2590, %v2431
    %v2592 = vpop.permute.xlu0 %2591
    %2593 = vset.pattern.permute.xlu0 0
    %2594 = vperm.xlu0 %2593, %v2432
    %v2595 = vpop.permute.xlu0 %2594
    %2596 = vset.pattern.permute.xlu0 0
    %2597 = vperm.xlu0 %2596, %v2433
    %v2598 = vpop.permute.xlu0 %2597
    %2599 = vset.pattern.permute.xlu0 0
    %2600 = vperm.xlu0 %2599, %v2434
    %v2601 = vpop.permute.xlu0 %2600
    %2602 = vset.pattern.permute.xlu0 0
    %2603 = vperm.xlu0 %2602, %v2435
    %v2604 = vpop.permute.xlu0 %2603
    %2605 = vset.pattern.permute.xlu0 0
    %2606 = vperm.xlu0 %2605, %v2436
    %v2607 = vpop.permute.xlu0 %2606
    %2608 = vset.pattern.permute.xlu0 0
    %2609 = vperm.xlu0 %2608, %v2437
    %v2610 = vpop.permute.xlu0 %2609
    %2611 = vset.pattern.permute.xlu0 0
    %2612 = vperm.xlu0 %2611, %v2438
    %v2613 = vpop.permute.xlu0 %2612
    %2614 = vset.pattern.permute.xlu0 0
    %2615 = vperm.xlu0 %2614, %v2439
    %v2616 = vpop.permute.xlu0 %2615
    %2617 = vset.pattern.permute.xlu0 0
    %2618 = vperm.xlu0 %2617, %v2440
    %v2619 = vpop.permute.xlu0 %2618
    %2620 = vset.pattern.permute.xlu0 0
    %2621 = vperm.xlu0 %2620, %v2441
    %v2622 = vpop.permute.xlu0 %2621
    %2623 = vset.pattern.permute.xlu0 0
    %2624 = vperm.xlu0 %2623, %v2442
    %v2625 = vpop.permute.xlu0 %2624
    %2626 = vset.pattern.permute.xlu0 0
    %2627 = vperm.xlu0 %2626, %v2443
    %v2628 = vpop.permute.xlu0 %2627
    %2629 = vset.pattern.permute.xlu0 0
    %2630 = vperm.xlu0 %2629, %v2444
    %v2631 = vpop.permute.xlu0 %2630
    %2632 = vset.pattern.permute.xlu0 0
    %2633 = vperm.xlu0 %2632, %v2445
    %v2634 = vpop.permute.xlu0 %2633
    %2635 = vset.pattern.permute.xlu0 0
    %2636 = vperm.xlu0 %2635, %v2446
    %v2637 = vpop.permute.xlu0 %2636
    %2638 = vset.pattern.permute.xlu0 0
    %2639 = vperm.xlu0 %2638, %v2447
    %v2640 = vpop.permute.xlu0 %2639
    %2641 = vset.pattern.permute.xlu0 0
    %2642 = vperm.xlu0 %2641, %v2448
    %v2643 = vpop.permute.xlu0 %2642
    %2644 = vset.pattern.permute.xlu0 0
    %2645 = vperm.xlu0 %2644, %v2449
    %v2646 = vpop.permute.xlu0 %2645
    %2647 = vset.pattern.permute.xlu0 0
    %2648 = vperm.xlu0 %2647, %v2450
    %v2649 = vpop.permute.xlu0 %2648
    %2650 = vset.pattern.permute.xlu0 0
    %2651 = vperm.xlu0 %2650, %v2451
    %v2652 = vpop.permute.xlu0 %2651
    %2653 = vset.pattern.permute.xlu0 0
    %2654 = vperm.xlu0 %2653, %v2452
    %v2655 = vpop.permute.xlu0 %2654
    %2656 = vset.pattern.permute.xlu0 0
    %2657 = vperm.xlu0 %2656, %v2453
    %v2658 = vpop.permute.xlu0 %2657
    %2659 = vset.pattern.permute.xlu0 0
    %2660 = vperm.xlu0 %2659, %v2454
    %v2661 = vpop.permute.xlu0 %2660
    %2662 = vset.pattern.permute.xlu0 0
    %2663 = vperm.xlu0 %2662, %v2455
    %v2664 = vpop.permute.xlu0 %2663
    %2665 = vset.pattern.permute.xlu0 0
    %2666 = vperm.xlu0 %2665, %v2456
    %v2667 = vpop.permute.xlu0 %2666
    %2668 = vset.pattern.permute.xlu0 0
    %2669 = vperm.xlu0 %2668, %v2457
    %v2670 = vpop.permute.xlu0 %2669
    %vm2671 = vcmp.eq.s32.totalorder %v2574, %v2577
    %vm2672 = vcmp.eq.s32.totalorder %v2574, %v2580
    %vm2673 = vcmp.eq.s32.totalorder %v2574, %v2583
    %vm2674 = vcmp.eq.s32.totalorder %v2574, %v2586
    %vm2675 = vcmp.eq.s32.totalorder %v2574, %v2589
    %vm2676 = vcmp.eq.s32.totalorder %v2574, %v2592
    %vm2677 = vcmp.eq.s32.totalorder %v2574, %v2595
    %vm2678 = vcmp.eq.s32.totalorder %v2574, %v2598
    %vm2679 = vcmp.eq.s32.totalorder %v2574, %v2601
    %vm2680 = vcmp.eq.s32.totalorder %v2574, %v2604
    %vm2681 = vcmp.eq.s32.totalorder %v2574, %v2607
    %vm2682 = vcmp.eq.s32.totalorder %v2574, %v2610
    %vm2683 = vcmp.eq.s32.totalorder %v2574, %v2613
    %vm2684 = vcmp.eq.s32.totalorder %v2574, %v2616
    %vm2685 = vcmp.eq.s32.totalorder %v2574, %v2619
    %vm2686 = vcmp.eq.s32.totalorder %v2574, %v2622
    %vm2687 = vcmp.eq.s32.totalorder %v2574, %v2625
    %vm2688 = vcmp.eq.s32.totalorder %v2574, %v2628
    %vm2689 = vcmp.eq.s32.totalorder %v2574, %v2631
    %vm2690 = vcmp.eq.s32.totalorder %v2574, %v2634
    %vm2691 = vcmp.eq.s32.totalorder %v2574, %v2637
    %vm2692 = vcmp.eq.s32.totalorder %v2574, %v2640
    %vm2693 = vcmp.eq.s32.totalorder %v2574, %v2643
    %vm2694 = vcmp.eq.s32.totalorder %v2574, %v2646
    %vm2695 = vcmp.eq.s32.totalorder %v2574, %v2649
    %vm2696 = vcmp.eq.s32.totalorder %v2574, %v2652
    %vm2697 = vcmp.eq.s32.totalorder %v2574, %v2655
    %vm2698 = vcmp.eq.s32.totalorder %v2574, %v2658
    %vm2699 = vcmp.eq.s32.totalorder %v2574, %v2661
    %vm2700 = vcmp.eq.s32.totalorder %v2574, %v2664
    %vm2701 = vcmp.eq.s32.totalorder %v2574, %v2667
    %vm2702 = vcmp.eq.s32.totalorder %v2574, %v2670
    %v2703 = vsel %vm2671, 1, 0
    %v2704 = vsel %vm2672, 1, 0
    %v2705 = vsel %vm2673, 1, 0
    %v2706 = vsel %vm2674, 1, 0
    %v2707 = vsel %vm2675, 1, 0
    %v2708 = vsel %vm2676, 1, 0
    %v2709 = vsel %vm2677, 1, 0
    %v2710 = vsel %vm2678, 1, 0
    %v2711 = vsel %vm2679, 1, 0
    %v2712 = vsel %vm2680, 1, 0
    %v2713 = vsel %vm2681, 1, 0
    %v2714 = vsel %vm2682, 1, 0
    %v2715 = vsel %vm2683, 1, 0
    %v2716 = vsel %vm2684, 1, 0
    %v2717 = vsel %vm2685, 1, 0
    %v2718 = vsel %vm2686, 1, 0
    %v2719 = vsel %vm2687, 1, 0
    %v2720 = vsel %vm2688, 1, 0
    %v2721 = vsel %vm2689, 1, 0
    %v2722 = vsel %vm2690, 1, 0
    %v2723 = vsel %vm2691, 1, 0
    %v2724 = vsel %vm2692, 1, 0
    %v2725 = vsel %vm2693, 1, 0
    %v2726 = vsel %vm2694, 1, 0
    %v2727 = vsel %vm2695, 1, 0
    %v2728 = vsel %vm2696, 1, 0
    %v2729 = vsel %vm2697, 1, 0
    %v2730 = vsel %vm2698, 1, 0
    %v2731 = vsel %vm2699, 1, 0
    %v2732 = vsel %vm2700, 1, 0
    %v2733 = vsel %vm2701, 1, 0
    %v2734 = vsel %vm2702, 1, 0
    %v2735 = vcvt.s32.f32 %v2703
    %v2736 = vcvt.s32.f32 %v2704
    %v2737 = vcvt.s32.f32 %v2705
    %v2738 = vcvt.s32.f32 %v2706
    %v2739 = vcvt.s32.f32 %v2707
    %v2740 = vcvt.s32.f32 %v2708
    %v2741 = vcvt.s32.f32 %v2709
    %v2742 = vcvt.s32.f32 %v2710
    %v2743 = vcvt.s32.f32 %v2711
    %v2744 = vcvt.s32.f32 %v2712
    %v2745 = vcvt.s32.f32 %v2713
    %v2746 = vcvt.s32.f32 %v2714
    %v2747 = vcvt.s32.f32 %v2715
    %v2748 = vcvt.s32.f32 %v2716
    %v2749 = vcvt.s32.f32 %v2717
    %v2750 = vcvt.s32.f32 %v2718
    %v2751 = vcvt.s32.f32 %v2719
    %v2752 = vcvt.s32.f32 %v2720
    %v2753 = vcvt.s32.f32 %v2721
    %v2754 = vcvt.s32.f32 %v2722
    %v2755 = vcvt.s32.f32 %v2723
    %v2756 = vcvt.s32.f32 %v2724
    %v2757 = vcvt.s32.f32 %v2725
    %v2758 = vcvt.s32.f32 %v2726
    %v2759 = vcvt.s32.f32 %v2727
    %v2760 = vcvt.s32.f32 %v2728
    %v2761 = vcvt.s32.f32 %v2729
    %v2762 = vcvt.s32.f32 %v2730
    %v2763 = vcvt.s32.f32 %v2731
    %v2764 = vcvt.s32.f32 %v2732
    %v2765 = vcvt.s32.f32 %v2733
    %v2766 = vcvt.s32.f32 %v2734
    %v2767 = vld [vmem:[%s8] sm:$0x1]
    %v2768 = vperm.slane %v2767, 0
    %v2769 = vmul.f32 %v1959, %v2768
    %v2770 = vmul.f32 %v1974, %v2768
    %v2771 = vmul.f32 %v1989, %v2768
    %v2772 = vmul.f32 %v2004, %v2768
    %v2773 = vmul.f32 %v2019, %v2768
    %v2774 = vmul.f32 %v2034, %v2768
    %v2775 = vmul.f32 %v2049, %v2768
    %v2776 = vmul.f32 %v2064, %v2768
    %v2777 = vmul.f32 %v2079, %v2768
    %v2778 = vmul.f32 %v2094, %v2768
    %v2779 = vmul.f32 %v2109, %v2768
    %v2780 = vmul.f32 %v2124, %v2768
    %v2781 = vmul.f32 %v2139, %v2768
    %v2782 = vmul.f32 %v2154, %v2768
    %v2783 = vmul.f32 %v2169, %v2768
    %v2784 = vmul.f32 %v2184, %v2768
    %v2785 = vmul.f32 %v2199, %v2768
    %v2786 = vmul.f32 %v2214, %v2768
    %v2787 = vmul.f32 %v2229, %v2768
    %v2788 = vmul.f32 %v2244, %v2768
    %v2789 = vmul.f32 %v2259, %v2768
    %v2790 = vmul.f32 %v2274, %v2768
    %v2791 = vmul.f32 %v2289, %v2768
    %v2792 = vmul.f32 %v2304, %v2768
    %v2793 = vmul.f32 %v2319, %v2768
    %v2794 = vmul.f32 %v2334, %v2768
    %v2795 = vmul.f32 %v2349, %v2768
    %v2796 = vmul.f32 %v2364, %v2768
    %v2797 = vmul.f32 %v2379, %v2768
    %v2798 = vmul.f32 %v2394, %v2768
    %v2799 = vmul.f32 %v2409, %v2768
    %v2800 = vmul.f32 %v2424, %v2768
    %2801 = vadd.xlane.f32.xlu0 %v2769
    %v2802 = vpop.xlane.xlu0 %2801
    %2803 = vadd.xlane.f32.xlu0 %v2770
    %v2804 = vpop.xlane.xlu0 %2803
    %2805 = vadd.xlane.f32.xlu0 %v2771
    %v2806 = vpop.xlane.xlu0 %2805
    %2807 = vadd.xlane.f32.xlu0 %v2772
    %v2808 = vpop.xlane.xlu0 %2807
    %2809 = vadd.xlane.f32.xlu0 %v2773
    %v2810 = vpop.xlane.xlu0 %2809
    %2811 = vadd.xlane.f32.xlu0 %v2774
    %v2812 = vpop.xlane.xlu0 %2811
    %2813 = vadd.xlane.f32.xlu0 %v2775
    %v2814 = vpop.xlane.xlu0 %2813
    %2815 = vadd.xlane.f32.xlu0 %v2776
    %v2816 = vpop.xlane.xlu0 %2815
    %2817 = vadd.xlane.f32.xlu0 %v2777
    %v2818 = vpop.xlane.xlu0 %2817
    %2819 = vadd.xlane.f32.xlu0 %v2778
    %v2820 = vpop.xlane.xlu0 %2819
    %2821 = vadd.xlane.f32.xlu0 %v2779
    %v2822 = vpop.xlane.xlu0 %2821
    %2823 = vadd.xlane.f32.xlu0 %v2780
    %v2824 = vpop.xlane.xlu0 %2823
    %2825 = vadd.xlane.f32.xlu0 %v2781
    %v2826 = vpop.xlane.xlu0 %2825
    %2827 = vadd.xlane.f32.xlu0 %v2782
    %v2828 = vpop.xlane.xlu0 %2827
    %2829 = vadd.xlane.f32.xlu0 %v2783
    %v2830 = vpop.xlane.xlu0 %2829
    %2831 = vadd.xlane.f32.xlu0 %v2784
    %v2832 = vpop.xlane.xlu0 %2831
    %2833 = vadd.xlane.f32.xlu0 %v2785
    %v2834 = vpop.xlane.xlu0 %2833
    %2835 = vadd.xlane.f32.xlu0 %v2786
    %v2836 = vpop.xlane.xlu0 %2835
    %2837 = vadd.xlane.f32.xlu0 %v2787
    %v2838 = vpop.xlane.xlu0 %2837
    %2839 = vadd.xlane.f32.xlu0 %v2788
    %v2840 = vpop.xlane.xlu0 %2839
    %2841 = vadd.xlane.f32.xlu0 %v2789
    %v2842 = vpop.xlane.xlu0 %2841
    %2843 = vadd.xlane.f32.xlu0 %v2790
    %v2844 = vpop.xlane.xlu0 %2843
    %2845 = vadd.xlane.f32.xlu0 %v2791
    %v2846 = vpop.xlane.xlu0 %2845
    %2847 = vadd.xlane.f32.xlu0 %v2792
    %v2848 = vpop.xlane.xlu0 %2847
    %2849 = vadd.xlane.f32.xlu0 %v2793
    %v2850 = vpop.xlane.xlu0 %2849
    %2851 = vadd.xlane.f32.xlu0 %v2794
    %v2852 = vpop.xlane.xlu0 %2851
    %2853 = vadd.xlane.f32.xlu0 %v2795
    %v2854 = vpop.xlane.xlu0 %2853
    %2855 = vadd.xlane.f32.xlu0 %v2796
    %v2856 = vpop.xlane.xlu0 %2855
    %2857 = vadd.xlane.f32.xlu0 %v2797
    %v2858 = vpop.xlane.xlu0 %2857
    %2859 = vadd.xlane.f32.xlu0 %v2798
    %v2860 = vpop.xlane.xlu0 %2859
    %2861 = vadd.xlane.f32.xlu0 %v2799
    %v2862 = vpop.xlane.xlu0 %2861
    %2863 = vadd.xlane.f32.xlu0 %v2800
    %v2864 = vpop.xlane.xlu0 %2863
    %v2865 = vmax.f32 %v2802, %v2810
    %v2866 = vmax.f32 %v2804, %v2812
    %v2867 = vmax.f32 %v2806, %v2814
    %v2868 = vmax.f32 %v2808, %v2816
    %v2869 = vmax.f32 %v2865, %v2818
    %v2870 = vmax.f32 %v2866, %v2820
    %v2871 = vmax.f32 %v2867, %v2822
    %v2872 = vmax.f32 %v2868, %v2824
    %v2873 = vmax.f32 %v2869, %v2826
    %v2874 = vmax.f32 %v2870, %v2828
    %v2875 = vmax.f32 %v2871, %v2830
    %v2876 = vmax.f32 %v2872, %v2832
    %v2877 = vmax.f32 %v2873, %v2834
    %v2878 = vmax.f32 %v2874, %v2836
    %v2879 = vmax.f32 %v2875, %v2838
    %v2880 = vmax.f32 %v2876, %v2840
    %v2881 = vmax.f32 %v2877, %v2842
    %v2882 = vmax.f32 %v2878, %v2844
    %v2883 = vmax.f32 %v2879, %v2846
    %v2884 = vmax.f32 %v2880, %v2848
    %v2885 = vmax.f32 %v2881, %v2850
    %v2886 = vmax.f32 %v2882, %v2852
    %v2887 = vmax.f32 %v2883, %v2854
    %v2888 = vmax.f32 %v2884, %v2856
    %v2889 = vmax.f32 %v2885, %v2858
    %v2890 = vmax.f32 %v2886, %v2860
    %v2891 = vmax.f32 %v2887, %v2862
    %v2892 = vmax.f32 %v2888, %v2864
    %v2893 = vmax.f32 %v2889, %v2890
    %v2894 = vmax.f32 %v2891, %v2892
    %v2895 = vmax.f32 %v2893, %v2894
    %v2896 = vrot.slane %v2895, 4
    %v2897 = vmax.f32 %v2895, %v2896
    %v2898 = vrot.slane %v2897, 2
    %v2899 = vmax.f32 %v2897, %v2898
    %v2900 = vrot.slane %v2899, 1
    %v2901 = vmax.f32 %v2899, %v2900
    %v2902 = vsub.f32 %v2802, %v2901
    %v2903 = vsub.f32 %v2804, %v2901
    %v2904 = vsub.f32 %v2806, %v2901
    %v2905 = vsub.f32 %v2808, %v2901
    %v2906 = vsub.f32 %v2810, %v2901
    %v2907 = vsub.f32 %v2812, %v2901
    %v2908 = vsub.f32 %v2814, %v2901
    %v2909 = vsub.f32 %v2816, %v2901
    %v2910 = vsub.f32 %v2818, %v2901
    %v2911 = vsub.f32 %v2820, %v2901
    %v2912 = vsub.f32 %v2822, %v2901
    %v2913 = vsub.f32 %v2824, %v2901
    %v2914 = vsub.f32 %v2826, %v2901
    %v2915 = vsub.f32 %v2828, %v2901
    %v2916 = vsub.f32 %v2830, %v2901
    %v2917 = vsub.f32 %v2832, %v2901
    %v2918 = vsub.f32 %v2834, %v2901
    %v2919 = vsub.f32 %v2836, %v2901
    %v2920 = vsub.f32 %v2838, %v2901
    %v2921 = vsub.f32 %v2840, %v2901
    %v2922 = vsub.f32 %v2842, %v2901
    %v2923 = vsub.f32 %v2844, %v2901
    %v2924 = vsub.f32 %v2846, %v2901
    %v2925 = vsub.f32 %v2848, %v2901
    %v2926 = vsub.f32 %v2850, %v2901
    %v2927 = vsub.f32 %v2852, %v2901
    %v2928 = vsub.f32 %v2854, %v2901
    %v2929 = vsub.f32 %v2856, %v2901
    %v2930 = vsub.f32 %v2858, %v2901
    %v2931 = vsub.f32 %v2860, %v2901
    %v2932 = vsub.f32 %v2862, %v2901
    %v2933 = vsub.f32 %v2864, %v2901
    %v2934 = vmul.f32 %v2902, 1.442695
    %v2935 = vpow.pop %v2934
    %v2936 = vmul.f32 %v2903, 1.442695
    %v2937 = vpow.pop %v2936
    %v2938 = vmul.f32 %v2904, 1.442695
    %v2939 = vpow.pop %v2938
    %v2940 = vmul.f32 %v2905, 1.442695
    %v2941 = vpow.pop %v2940
    %v2942 = vmul.f32 %v2906, 1.442695
    %v2943 = vpow.pop %v2942
    %v2944 = vmul.f32 %v2907, 1.442695
    %v2945 = vpow.pop %v2944
    %v2946 = vmul.f32 %v2908, 1.442695
    %v2947 = vpow.pop %v2946
    %v2948 = vmul.f32 %v2909, 1.442695
    %v2949 = vpow.pop %v2948
    %v2950 = vmul.f32 %v2910, 1.442695
    %v2951 = vpow.pop %v2950
    %v2952 = vmul.f32 %v2911, 1.442695
    %v2953 = vpow.pop %v2952
    %v2954 = vmul.f32 %v2912, 1.442695
    %v2955 = vpow.pop %v2954
    %v2956 = vmul.f32 %v2913, 1.442695
    %v2957 = vpow.pop %v2956
    %v2958 = vmul.f32 %v2914, 1.442695
    %v2959 = vpow.pop %v2958
    %v2960 = vmul.f32 %v2915, 1.442695
    %v2961 = vpow.pop %v2960
    %v2962 = vmul.f32 %v2916, 1.442695
    %v2963 = vpow.pop %v2962
    %v2964 = vmul.f32 %v2917, 1.442695
    %v2965 = vpow.pop %v2964
    %v2966 = vmul.f32 %v2918, 1.442695
    %v2967 = vpow.pop %v2966
    %v2968 = vmul.f32 %v2919, 1.442695
    %v2969 = vpow.pop %v2968
    %v2970 = vmul.f32 %v2920, 1.442695
    %v2971 = vpow.pop %v2970
    %v2972 = vmul.f32 %v2921, 1.442695
    %v2973 = vpow.pop %v2972
    %v2974 = vmul.f32 %v2922, 1.442695
    %v2975 = vpow.pop %v2974
    %v2976 = vmul.f32 %v2923, 1.442695
    %v2977 = vpow.pop %v2976
    %v2978 = vmul.f32 %v2924, 1.442695
    %v2979 = vpow.pop %v2978
    %v2980 = vmul.f32 %v2925, 1.442695
    %v2981 = vpow.pop %v2980
    %v2982 = vmul.f32 %v2926, 1.442695
    %v2983 = vpow.pop %v2982
    %v2984 = vmul.f32 %v2927, 1.442695
    %v2985 = vpow.pop %v2984
    %v2986 = vmul.f32 %v2928, 1.442695
    %v2987 = vpow.pop %v2986
    %v2988 = vmul.f32 %v2929, 1.442695
    %v2989 = vpow.pop %v2988
    %v2990 = vmul.f32 %v2930, 1.442695
    %v2991 = vpow.pop %v2990
    %v2992 = vmul.f32 %v2931, 1.442695
    %v2993 = vpow.pop %v2992
    %v2994 = vmul.f32 %v2932, 1.442695
    %v2995 = vpow.pop %v2994
    %v2996 = vmul.f32 %v2933, 1.442695
    %v2997 = vpow.pop %v2996
    %v2998 = vld [vmem:[%s8 + $0x1] sm:$0x1]
    %v2999 = vperm.slane %v2998, 0
    %v3000 = vmul.f32 %v1959, %v2999
    %v3001 = vmul.f32 %v1974, %v2999
    %v3002 = vmul.f32 %v1989, %v2999
    %v3003 = vmul.f32 %v2004, %v2999
    %v3004 = vmul.f32 %v2019, %v2999
    %v3005 = vmul.f32 %v2034, %v2999
    %v3006 = vmul.f32 %v2049, %v2999
    %v3007 = vmul.f32 %v2064, %v2999
    %v3008 = vmul.f32 %v2079, %v2999
    %v3009 = vmul.f32 %v2094, %v2999
    %v3010 = vmul.f32 %v2109, %v2999
    %v3011 = vmul.f32 %v2124, %v2999
    %v3012 = vmul.f32 %v2139, %v2999
    %v3013 = vmul.f32 %v2154, %v2999
    %v3014 = vmul.f32 %v2169, %v2999
    %v3015 = vmul.f32 %v2184, %v2999
    %v3016 = vmul.f32 %v2199, %v2999
    %v3017 = vmul.f32 %v2214, %v2999
    %v3018 = vmul.f32 %v2229, %v2999
    %v3019 = vmul.f32 %v2244, %v2999
    %v3020 = vmul.f32 %v2259, %v2999
    %v3021 = vmul.f32 %v2274, %v2999
    %v3022 = vmul.f32 %v2289, %v2999
    %v3023 = vmul.f32 %v2304, %v2999
    %v3024 = vmul.f32 %v2319, %v2999
    %v3025 = vmul.f32 %v2334, %v2999
    %v3026 = vmul.f32 %v2349, %v2999
    %v3027 = vmul.f32 %v2364, %v2999
    %v3028 = vmul.f32 %v2379, %v2999
    %v3029 = vmul.f32 %v2394, %v2999
    %v3030 = vmul.f32 %v2409, %v2999
    %v3031 = vmul.f32 %v2424, %v2999
    %3032 = vadd.xlane.f32.xlu0 %v3000
    %v3033 = vpop.xlane.xlu0 %3032
    %3034 = vadd.xlane.f32.xlu0 %v3001
    %v3035 = vpop.xlane.xlu0 %3034
    %3036 = vadd.xlane.f32.xlu0 %v3002
    %v3037 = vpop.xlane.xlu0 %3036
    %3038 = vadd.xlane.f32.xlu0 %v3003
    %v3039 = vpop.xlane.xlu0 %3038
    %3040 = vadd.xlane.f32.xlu0 %v3004
    %v3041 = vpop.xlane.xlu0 %3040
    %3042 = vadd.xlane.f32.xlu0 %v3005
    %v3043 = vpop.xlane.xlu0 %3042
    %3044 = vadd.xlane.f32.xlu0 %v3006
    %v3045 = vpop.xlane.xlu0 %3044
    %3046 = vadd.xlane.f32.xlu0 %v3007
    %v3047 = vpop.xlane.xlu0 %3046
    %3048 = vadd.xlane.f32.xlu0 %v3008
    %v3049 = vpop.xlane.xlu0 %3048
    %3050 = vadd.xlane.f32.xlu0 %v3009
    %v3051 = vpop.xlane.xlu0 %3050
    %3052 = vadd.xlane.f32.xlu0 %v3010
    %v3053 = vpop.xlane.xlu0 %3052
    %3054 = vadd.xlane.f32.xlu0 %v3011
    %v3055 = vpop.xlane.xlu0 %3054
    %3056 = vadd.xlane.f32.xlu0 %v3012
    %v3057 = vpop.xlane.xlu0 %3056
    %3058 = vadd.xlane.f32.xlu0 %v3013
    %v3059 = vpop.xlane.xlu0 %3058
    %3060 = vadd.xlane.f32.xlu0 %v3014
    %v3061 = vpop.xlane.xlu0 %3060
    %3062 = vadd.xlane.f32.xlu0 %v3015
    %v3063 = vpop.xlane.xlu0 %3062
    %3064 = vadd.xlane.f32.xlu0 %v3016
    %v3065 = vpop.xlane.xlu0 %3064
    %3066 = vadd.xlane.f32.xlu0 %v3017
    %v3067 = vpop.xlane.xlu0 %3066
    %3068 = vadd.xlane.f32.xlu0 %v3018
    %v3069 = vpop.xlane.xlu0 %3068
    %3070 = vadd.xlane.f32.xlu0 %v3019
    %v3071 = vpop.xlane.xlu0 %3070
    %3072 = vadd.xlane.f32.xlu0 %v3020
    %v3073 = vpop.xlane.xlu0 %3072
    %3074 = vadd.xlane.f32.xlu0 %v3021
    %v3075 = vpop.xlane.xlu0 %3074
    %3076 = vadd.xlane.f32.xlu0 %v3022
    %v3077 = vpop.xlane.xlu0 %3076
    %3078 = vadd.xlane.f32.xlu0 %v3023
    %v3079 = vpop.xlane.xlu0 %3078
    %3080 = vadd.xlane.f32.xlu0 %v3024
    %v3081 = vpop.xlane.xlu0 %3080
    %3082 = vadd.xlane.f32.xlu0 %v3025
    %v3083 = vpop.xlane.xlu0 %3082
    %3084 = vadd.xlane.f32.xlu0 %v3026
    %v3085 = vpop.xlane.xlu0 %3084
    %3086 = vadd.xlane.f32.xlu0 %v3027
    %v3087 = vpop.xlane.xlu0 %3086
    %3088 = vadd.xlane.f32.xlu0 %v3028
    %v3089 = vpop.xlane.xlu0 %3088
    %3090 = vadd.xlane.f32.xlu0 %v3029
    %v3091 = vpop.xlane.xlu0 %3090
    %3092 = vadd.xlane.f32.xlu0 %v3030
    %v3093 = vpop.xlane.xlu0 %3092
    %3094 = vadd.xlane.f32.xlu0 %v3031
    %v3095 = vpop.xlane.xlu0 %3094
    %v3096 = vmax.f32 %v3033, %v3041
    %v3097 = vmax.f32 %v3035, %v3043
    %v3098 = vmax.f32 %v3037, %v3045
    %v3099 = vmax.f32 %v3039, %v3047
    %v3100 = vmax.f32 %v3096, %v3049
    %v3101 = vmax.f32 %v3097, %v3051
    %v3102 = vmax.f32 %v3098, %v3053
    %v3103 = vmax.f32 %v3099, %v3055
    %v3104 = vmax.f32 %v3100, %v3057
    %v3105 = vmax.f32 %v3101, %v3059
    %v3106 = vmax.f32 %v3102, %v3061
    %v3107 = vmax.f32 %v3103, %v3063
    %v3108 = vmax.f32 %v3104, %v3065
    %v3109 = vmax.f32 %v3105, %v3067
    %v3110 = vmax.f32 %v3106, %v3069
    %v3111 = vmax.f32 %v3107, %v3071
    %v3112 = vmax.f32 %v3108, %v3073
    %v3113 = vmax.f32 %v3109, %v3075
    %v3114 = vmax.f32 %v3110, %v3077
    %v3115 = vmax.f32 %v3111, %v3079
    %v3116 = vmax.f32 %v3112, %v3081
    %v3117 = vmax.f32 %v3113, %v3083
    %v3118 = vmax.f32 %v3114, %v3085
    %v3119 = vmax.f32 %v3115, %v3087
    %v3120 = vmax.f32 %v3116, %v3089
    %v3121 = vmax.f32 %v3117, %v3091
    %v3122 = vmax.f32 %v3118, %v3093
    %v3123 = vmax.f32 %v3119, %v3095
    %v3124 = vmax.f32 %v3120, %v3121
    %v3125 = vmax.f32 %v3122, %v3123
    %v3126 = vmax.f32 %v3124, %v3125
    %v3127 = vrot.slane %v3126, 4
    %v3128 = vmax.f32 %v3126, %v3127
    %v3129 = vrot.slane %v3128, 2
    %v3130 = vmax.f32 %v3128, %v3129
    %v3131 = vrot.slane %v3130, 1
    %v3132 = vmax.f32 %v3130, %v3131
    %v3133 = vsub.f32 %v3033, %v3132
    %v3134 = vsub.f32 %v3035, %v3132
    %v3135 = vsub.f32 %v3037, %v3132
    %v3136 = vsub.f32 %v3039, %v3132
    %v3137 = vsub.f32 %v3041, %v3132
    %v3138 = vsub.f32 %v3043, %v3132
    %v3139 = vsub.f32 %v3045, %v3132
    %v3140 = vsub.f32 %v3047, %v3132
    %v3141 = vsub.f32 %v3049, %v3132
    %v3142 = vsub.f32 %v3051, %v3132
    %v3143 = vsub.f32 %v3053, %v3132
    %v3144 = vsub.f32 %v3055, %v3132
    %v3145 = vsub.f32 %v3057, %v3132
    %v3146 = vsub.f32 %v3059, %v3132
    %v3147 = vsub.f32 %v3061, %v3132
    %v3148 = vsub.f32 %v3063, %v3132
    %v3149 = vsub.f32 %v3065, %v3132
    %v3150 = vsub.f32 %v3067, %v3132
    %v3151 = vsub.f32 %v3069, %v3132
    %v3152 = vsub.f32 %v3071, %v3132
    %v3153 = vsub.f32 %v3073, %v3132
    %v3154 = vsub.f32 %v3075, %v3132
    %v3155 = vsub.f32 %v3077, %v3132
    %v3156 = vsub.f32 %v3079, %v3132
    %v3157 = vsub.f32 %v3081, %v3132
    %v3158 = vsub.f32 %v3083, %v3132
    %v3159 = vsub.f32 %v3085, %v3132
    %v3160 = vsub.f32 %v3087, %v3132
    %v3161 = vsub.f32 %v3089, %v3132
    %v3162 = vsub.f32 %v3091, %v3132
    %v3163 = vsub.f32 %v3093, %v3132
    %v3164 = vsub.f32 %v3095, %v3132
    %v3165 = vmul.f32 %v3133, 1.442695
    %v3166 = vpow.pop %v3165
    %v3167 = vmul.f32 %v3134, 1.442695
    %v3168 = vpow.pop %v3167
    %v3169 = vmul.f32 %v3135, 1.442695
    %v3170 = vpow.pop %v3169
    %v3171 = vmul.f32 %v3136, 1.442695
    %v3172 = vpow.pop %v3171
    %v3173 = vmul.f32 %v3137, 1.442695
    %v3174 = vpow.pop %v3173
    %v3175 = vmul.f32 %v3138, 1.442695
    %v3176 = vpow.pop %v3175
    %v3177 = vmul.f32 %v3139, 1.442695
    %v3178 = vpow.pop %v3177
    %v3179 = vmul.f32 %v3140, 1.442695
    %v3180 = vpow.pop %v3179
    %v3181 = vmul.f32 %v3141, 1.442695
    %v3182 = vpow.pop %v3181
    %v3183 = vmul.f32 %v3142, 1.442695
    %v3184 = vpow.pop %v3183
    %v3185 = vmul.f32 %v3143, 1.442695
    %v3186 = vpow.pop %v3185
    %v3187 = vmul.f32 %v3144, 1.442695
    %v3188 = vpow.pop %v3187
    %v3189 = vmul.f32 %v3145, 1.442695
    %v3190 = vpow.pop %v3189
    %v3191 = vmul.f32 %v3146, 1.442695
    %v3192 = vpow.pop %v3191
    %v3193 = vmul.f32 %v3147, 1.442695
    %v3194 = vpow.pop %v3193
    %v3195 = vmul.f32 %v3148, 1.442695
    %v3196 = vpow.pop %v3195
    %v3197 = vmul.f32 %v3149, 1.442695
    %v3198 = vpow.pop %v3197
    %v3199 = vmul.f32 %v3150, 1.442695
    %v3200 = vpow.pop %v3199
    %v3201 = vmul.f32 %v3151, 1.442695
    %v3202 = vpow.pop %v3201
    %v3203 = vmul.f32 %v3152, 1.442695
    %v3204 = vpow.pop %v3203
    %v3205 = vmul.f32 %v3153, 1.442695
    %v3206 = vpow.pop %v3205
    %v3207 = vmul.f32 %v3154, 1.442695
    %v3208 = vpow.pop %v3207
    %v3209 = vmul.f32 %v3155, 1.442695
    %v3210 = vpow.pop %v3209
    %v3211 = vmul.f32 %v3156, 1.442695
    %v3212 = vpow.pop %v3211
    %v3213 = vmul.f32 %v3157, 1.442695
    %v3214 = vpow.pop %v3213
    %v3215 = vmul.f32 %v3158, 1.442695
    %v3216 = vpow.pop %v3215
    %v3217 = vmul.f32 %v3159, 1.442695
    %v3218 = vpow.pop %v3217
    %v3219 = vmul.f32 %v3160, 1.442695
    %v3220 = vpow.pop %v3219
    %v3221 = vmul.f32 %v3161, 1.442695
    %v3222 = vpow.pop %v3221
    %v3223 = vmul.f32 %v3162, 1.442695
    %v3224 = vpow.pop %v3223
    %v3225 = vmul.f32 %v3163, 1.442695
    %v3226 = vpow.pop %v3225
    %v3227 = vmul.f32 %v3164, 1.442695
    %v3228 = vpow.pop %v3227
    %v3229 = vld [vmem:[%s8 + $0x2] sm:$0x1]
    %v3230 = vperm.slane %v3229, 0
    %v3231 = vmul.f32 %v1959, %v3230
    %v3232 = vmul.f32 %v1974, %v3230
    %v3233 = vmul.f32 %v1989, %v3230
    %v3234 = vmul.f32 %v2004, %v3230
    %v3235 = vmul.f32 %v2019, %v3230
    %v3236 = vmul.f32 %v2034, %v3230
    %v3237 = vmul.f32 %v2049, %v3230
    %v3238 = vmul.f32 %v2064, %v3230
    %v3239 = vmul.f32 %v2079, %v3230
    %v3240 = vmul.f32 %v2094, %v3230
    %v3241 = vmul.f32 %v2109, %v3230
    %v3242 = vmul.f32 %v2124, %v3230
    %v3243 = vmul.f32 %v2139, %v3230
    %v3244 = vmul.f32 %v2154, %v3230
    %v3245 = vmul.f32 %v2169, %v3230
    %v3246 = vmul.f32 %v2184, %v3230
    %v3247 = vmul.f32 %v2199, %v3230
    %v3248 = vmul.f32 %v2214, %v3230
    %v3249 = vmul.f32 %v2229, %v3230
    %v3250 = vmul.f32 %v2244, %v3230
    %v3251 = vmul.f32 %v2259, %v3230
    %v3252 = vmul.f32 %v2274, %v3230
    %v3253 = vmul.f32 %v2289, %v3230
    %v3254 = vmul.f32 %v2304, %v3230
    %v3255 = vmul.f32 %v2319, %v3230
    %v3256 = vmul.f32 %v2334, %v3230
    %v3257 = vmul.f32 %v2349, %v3230
    %v3258 = vmul.f32 %v2364, %v3230
    %v3259 = vmul.f32 %v2379, %v3230
    %v3260 = vmul.f32 %v2394, %v3230
    %v3261 = vmul.f32 %v2409, %v3230
    %v3262 = vmul.f32 %v2424, %v3230
    %3263 = vadd.xlane.f32.xlu0 %v3231
    %v3264 = vpop.xlane.xlu0 %3263
    %3265 = vadd.xlane.f32.xlu0 %v3232
    %v3266 = vpop.xlane.xlu0 %3265
    %3267 = vadd.xlane.f32.xlu0 %v3233
    %v3268 = vpop.xlane.xlu0 %3267
    %3269 = vadd.xlane.f32.xlu0 %v3234
    %v3270 = vpop.xlane.xlu0 %3269
    %3271 = vadd.xlane.f32.xlu0 %v3235
    %v3272 = vpop.xlane.xlu0 %3271
    %3273 = vadd.xlane.f32.xlu0 %v3236
    %v3274 = vpop.xlane.xlu0 %3273
    %3275 = vadd.xlane.f32.xlu0 %v3237
    %v3276 = vpop.xlane.xlu0 %3275
    %3277 = vadd.xlane.f32.xlu0 %v3238
    %v3278 = vpop.xlane.xlu0 %3277
    %3279 = vadd.xlane.f32.xlu0 %v3239
    %v3280 = vpop.xlane.xlu0 %3279
    %3281 = vadd.xlane.f32.xlu0 %v3240
    %v3282 = vpop.xlane.xlu0 %3281
    %3283 = vadd.xlane.f32.xlu0 %v3241
    %v3284 = vpop.xlane.xlu0 %3283
    %3285 = vadd.xlane.f32.xlu0 %v3242
    %v3286 = vpop.xlane.xlu0 %3285
    %3287 = vadd.xlane.f32.xlu0 %v3243
    %v3288 = vpop.xlane.xlu0 %3287
    %3289 = vadd.xlane.f32.xlu0 %v3244
    %v3290 = vpop.xlane.xlu0 %3289
    %3291 = vadd.xlane.f32.xlu0 %v3245
    %v3292 = vpop.xlane.xlu0 %3291
    %3293 = vadd.xlane.f32.xlu0 %v3246
    %v3294 = vpop.xlane.xlu0 %3293
    %3295 = vadd.xlane.f32.xlu0 %v3247
    %v3296 = vpop.xlane.xlu0 %3295
    %3297 = vadd.xlane.f32.xlu0 %v3248
    %v3298 = vpop.xlane.xlu0 %3297
    %3299 = vadd.xlane.f32.xlu0 %v3249
    %v3300 = vpop.xlane.xlu0 %3299
    %3301 = vadd.xlane.f32.xlu0 %v3250
    %v3302 = vpop.xlane.xlu0 %3301
    %3303 = vadd.xlane.f32.xlu0 %v3251
    %v3304 = vpop.xlane.xlu0 %3303
    %3305 = vadd.xlane.f32.xlu0 %v3252
    %v3306 = vpop.xlane.xlu0 %3305
    %3307 = vadd.xlane.f32.xlu0 %v3253
    %v3308 = vpop.xlane.xlu0 %3307
    %3309 = vadd.xlane.f32.xlu0 %v3254
    %v3310 = vpop.xlane.xlu0 %3309
    %3311 = vadd.xlane.f32.xlu0 %v3255
    %v3312 = vpop.xlane.xlu0 %3311
    %3313 = vadd.xlane.f32.xlu0 %v3256
    %v3314 = vpop.xlane.xlu0 %3313
    %3315 = vadd.xlane.f32.xlu0 %v3257
    %v3316 = vpop.xlane.xlu0 %3315
    %3317 = vadd.xlane.f32.xlu0 %v3258
    %v3318 = vpop.xlane.xlu0 %3317
    %3319 = vadd.xlane.f32.xlu0 %v3259
    %v3320 = vpop.xlane.xlu0 %3319
    %3321 = vadd.xlane.f32.xlu0 %v3260
    %v3322 = vpop.xlane.xlu0 %3321
    %3323 = vadd.xlane.f32.xlu0 %v3261
    %v3324 = vpop.xlane.xlu0 %3323
    %3325 = vadd.xlane.f32.xlu0 %v3262
    %v3326 = vpop.xlane.xlu0 %3325
    %v3327 = vmax.f32 %v3264, %v3272
    %v3328 = vmax.f32 %v3266, %v3274
    %v3329 = vmax.f32 %v3268, %v3276
    %v3330 = vmax.f32 %v3270, %v3278
    %v3331 = vmax.f32 %v3327, %v3280
    %v3332 = vmax.f32 %v3328, %v3282
    %v3333 = vmax.f32 %v3329, %v3284
    %v3334 = vmax.f32 %v3330, %v3286
    %v3335 = vmax.f32 %v3331, %v3288
    %v3336 = vmax.f32 %v3332, %v3290
    %v3337 = vmax.f32 %v3333, %v3292
    %v3338 = vmax.f32 %v3334, %v3294
    %v3339 = vmax.f32 %v3335, %v3296
    %v3340 = vmax.f32 %v3336, %v3298
    %v3341 = vmax.f32 %v3337, %v3300
    %v3342 = vmax.f32 %v3338, %v3302
    %v3343 = vmax.f32 %v3339, %v3304
    %v3344 = vmax.f32 %v3340, %v3306
    %v3345 = vmax.f32 %v3341, %v3308
    %v3346 = vmax.f32 %v3342, %v3310
    %v3347 = vmax.f32 %v3343, %v3312
    %v3348 = vmax.f32 %v3344, %v3314
    %v3349 = vmax.f32 %v3345, %v3316
    %v3350 = vmax.f32 %v3346, %v3318
    %v3351 = vmax.f32 %v3347, %v3320
    %v3352 = vmax.f32 %v3348, %v3322
    %v3353 = vmax.f32 %v3349, %v3324
    %v3354 = vmax.f32 %v3350, %v3326
    %v3355 = vmax.f32 %v3351, %v3352
    %v3356 = vmax.f32 %v3353, %v3354
    %v3357 = vmax.f32 %v3355, %v3356
    %v3358 = vrot.slane %v3357, 4
    %v3359 = vmax.f32 %v3357, %v3358
    %v3360 = vrot.slane %v3359, 2
    %v3361 = vmax.f32 %v3359, %v3360
    %v3362 = vrot.slane %v3361, 1
    %v3363 = vmax.f32 %v3361, %v3362
    %v3364 = vsub.f32 %v3264, %v3363
    %v3365 = vsub.f32 %v3266, %v3363
    %v3366 = vsub.f32 %v3268, %v3363
    %v3367 = vsub.f32 %v3270, %v3363
    %v3368 = vsub.f32 %v3272, %v3363
    %v3369 = vsub.f32 %v3274, %v3363
    %v3370 = vsub.f32 %v3276, %v3363
    %v3371 = vsub.f32 %v3278, %v3363
    %v3372 = vsub.f32 %v3280, %v3363
    %v3373 = vsub.f32 %v3282, %v3363
    %v3374 = vsub.f32 %v3284, %v3363
    %v3375 = vsub.f32 %v3286, %v3363
    %v3376 = vsub.f32 %v3288, %v3363
    %v3377 = vsub.f32 %v3290, %v3363
    %v3378 = vsub.f32 %v3292, %v3363
    %v3379 = vsub.f32 %v3294, %v3363
    %v3380 = vsub.f32 %v3296, %v3363
    %v3381 = vsub.f32 %v3298, %v3363
    %v3382 = vsub.f32 %v3300, %v3363
    %v3383 = vsub.f32 %v3302, %v3363
    %v3384 = vsub.f32 %v3304, %v3363
    %v3385 = vsub.f32 %v3306, %v3363
    %v3386 = vsub.f32 %v3308, %v3363
    %v3387 = vsub.f32 %v3310, %v3363
    %v3388 = vsub.f32 %v3312, %v3363
    %v3389 = vsub.f32 %v3314, %v3363
    %v3390 = vsub.f32 %v3316, %v3363
    %v3391 = vsub.f32 %v3318, %v3363
    %v3392 = vsub.f32 %v3320, %v3363
    %v3393 = vsub.f32 %v3322, %v3363
    %v3394 = vsub.f32 %v3324, %v3363
    %v3395 = vsub.f32 %v3326, %v3363
    %v3396 = vmul.f32 %v3364, 1.442695
    %v3397 = vpow.pop %v3396
    %v3398 = vmul.f32 %v3365, 1.442695
    %v3399 = vpow.pop %v3398
    %v3400 = vmul.f32 %v3366, 1.442695
    %v3401 = vpow.pop %v3400
    %v3402 = vmul.f32 %v3367, 1.442695
    %v3403 = vpow.pop %v3402
    %v3404 = vmul.f32 %v3368, 1.442695
    %v3405 = vpow.pop %v3404
    %v3406 = vmul.f32 %v3369, 1.442695
    %v3407 = vpow.pop %v3406
    %v3408 = vmul.f32 %v3370, 1.442695
    %v3409 = vpow.pop %v3408
    %v3410 = vmul.f32 %v3371, 1.442695
    %v3411 = vpow.pop %v3410
    %v3412 = vmul.f32 %v3372, 1.442695
    %v3413 = vpow.pop %v3412
    %v3414 = vmul.f32 %v3373, 1.442695
    %v3415 = vpow.pop %v3414
    %v3416 = vmul.f32 %v3374, 1.442695
    %v3417 = vpow.pop %v3416
    %v3418 = vmul.f32 %v3375, 1.442695
    %v3419 = vpow.pop %v3418
    %v3420 = vmul.f32 %v3376, 1.442695
    %v3421 = vpow.pop %v3420
    %v3422 = vmul.f32 %v3377, 1.442695
    %v3423 = vpow.pop %v3422
    %v3424 = vmul.f32 %v3378, 1.442695
    %v3425 = vpow.pop %v3424
    %v3426 = vmul.f32 %v3379, 1.442695
    %v3427 = vpow.pop %v3426
    %v3428 = vmul.f32 %v3380, 1.442695
    %v3429 = vpow.pop %v3428
    %v3430 = vmul.f32 %v3381, 1.442695
    %v3431 = vpow.pop %v3430
    %v3432 = vmul.f32 %v3382, 1.442695
    %v3433 = vpow.pop %v3432
    %v3434 = vmul.f32 %v3383, 1.442695
    %v3435 = vpow.pop %v3434
    %v3436 = vmul.f32 %v3384, 1.442695
    %v3437 = vpow.pop %v3436
    %v3438 = vmul.f32 %v3385, 1.442695
    %v3439 = vpow.pop %v3438
    %v3440 = vmul.f32 %v3386, 1.442695
    %v3441 = vpow.pop %v3440
    %v3442 = vmul.f32 %v3387, 1.442695
    %v3443 = vpow.pop %v3442
    %v3444 = vmul.f32 %v3388, 1.442695
    %v3445 = vpow.pop %v3444
    %v3446 = vmul.f32 %v3389, 1.442695
    %v3447 = vpow.pop %v3446
    %v3448 = vmul.f32 %v3390, 1.442695
    %v3449 = vpow.pop %v3448
    %v3450 = vmul.f32 %v3391, 1.442695
    %v3451 = vpow.pop %v3450
    %v3452 = vmul.f32 %v3392, 1.442695
    %v3453 = vpow.pop %v3452
    %v3454 = vmul.f32 %v3393, 1.442695
    %v3455 = vpow.pop %v3454
    %v3456 = vmul.f32 %v3394, 1.442695
    %v3457 = vpow.pop %v3456
    %v3458 = vmul.f32 %v3395, 1.442695
    %v3459 = vpow.pop %v3458
    %v3460 = vld [vmem:[%s8 + $0x3] sm:$0x1]
    %v3461 = vperm.slane %v3460, 0
    %v3462 = vmul.f32 %v1959, %v3461
    %v3463 = vmul.f32 %v1974, %v3461
    %v3464 = vmul.f32 %v1989, %v3461
    %v3465 = vmul.f32 %v2004, %v3461
    %v3466 = vmul.f32 %v2019, %v3461
    %v3467 = vmul.f32 %v2034, %v3461
    %v3468 = vmul.f32 %v2049, %v3461
    %v3469 = vmul.f32 %v2064, %v3461
    %v3470 = vmul.f32 %v2079, %v3461
    %v3471 = vmul.f32 %v2094, %v3461
    %v3472 = vmul.f32 %v2109, %v3461
    %v3473 = vmul.f32 %v2124, %v3461
    %v3474 = vmul.f32 %v2139, %v3461
    %v3475 = vmul.f32 %v2154, %v3461
    %v3476 = vmul.f32 %v2169, %v3461
    %v3477 = vmul.f32 %v2184, %v3461
    %v3478 = vmul.f32 %v2199, %v3461
    %v3479 = vmul.f32 %v2214, %v3461
    %v3480 = vmul.f32 %v2229, %v3461
    %v3481 = vmul.f32 %v2244, %v3461
    %v3482 = vmul.f32 %v2259, %v3461
    %v3483 = vmul.f32 %v2274, %v3461
    %v3484 = vmul.f32 %v2289, %v3461
    %v3485 = vmul.f32 %v2304, %v3461
    %v3486 = vmul.f32 %v2319, %v3461
    %v3487 = vmul.f32 %v2334, %v3461
    %v3488 = vmul.f32 %v2349, %v3461
    %v3489 = vmul.f32 %v2364, %v3461
    %v3490 = vmul.f32 %v2379, %v3461
    %v3491 = vmul.f32 %v2394, %v3461
    %v3492 = vmul.f32 %v2409, %v3461
    %v3493 = vmul.f32 %v2424, %v3461
    %3494 = vadd.xlane.f32.xlu0 %v3462
    %v3495 = vpop.xlane.xlu0 %3494
    %3496 = vadd.xlane.f32.xlu0 %v3463
    %v3497 = vpop.xlane.xlu0 %3496
    %3498 = vadd.xlane.f32.xlu0 %v3464
    %v3499 = vpop.xlane.xlu0 %3498
    %3500 = vadd.xlane.f32.xlu0 %v3465
    %v3501 = vpop.xlane.xlu0 %3500
    %3502 = vadd.xlane.f32.xlu0 %v3466
    %v3503 = vpop.xlane.xlu0 %3502
    %3504 = vadd.xlane.f32.xlu0 %v3467
    %v3505 = vpop.xlane.xlu0 %3504
    %3506 = vadd.xlane.f32.xlu0 %v3468
    %v3507 = vpop.xlane.xlu0 %3506
    %3508 = vadd.xlane.f32.xlu0 %v3469
    %v3509 = vpop.xlane.xlu0 %3508
    %3510 = vadd.xlane.f32.xlu0 %v3470
    %v3511 = vpop.xlane.xlu0 %3510
    %3512 = vadd.xlane.f32.xlu0 %v3471
    %v3513 = vpop.xlane.xlu0 %3512
    %3514 = vadd.xlane.f32.xlu0 %v3472
    %v3515 = vpop.xlane.xlu0 %3514
    %3516 = vadd.xlane.f32.xlu0 %v3473
    %v3517 = vpop.xlane.xlu0 %3516
    %3518 = vadd.xlane.f32.xlu0 %v3474
    %v3519 = vpop.xlane.xlu0 %3518
    %3520 = vadd.xlane.f32.xlu0 %v3475
    %v3521 = vpop.xlane.xlu0 %3520
    %3522 = vadd.xlane.f32.xlu0 %v3476
    %v3523 = vpop.xlane.xlu0 %3522
    %3524 = vadd.xlane.f32.xlu0 %v3477
    %v3525 = vpop.xlane.xlu0 %3524
    %3526 = vadd.xlane.f32.xlu0 %v3478
    %v3527 = vpop.xlane.xlu0 %3526
    %3528 = vadd.xlane.f32.xlu0 %v3479
    %v3529 = vpop.xlane.xlu0 %3528
    %3530 = vadd.xlane.f32.xlu0 %v3480
    %v3531 = vpop.xlane.xlu0 %3530
    %3532 = vadd.xlane.f32.xlu0 %v3481
    %v3533 = vpop.xlane.xlu0 %3532
    %3534 = vadd.xlane.f32.xlu0 %v3482
    %v3535 = vpop.xlane.xlu0 %3534
    %3536 = vadd.xlane.f32.xlu0 %v3483
    %v3537 = vpop.xlane.xlu0 %3536
    %3538 = vadd.xlane.f32.xlu0 %v3484
    %v3539 = vpop.xlane.xlu0 %3538
    %3540 = vadd.xlane.f32.xlu0 %v3485
    %v3541 = vpop.xlane.xlu0 %3540
    %3542 = vadd.xlane.f32.xlu0 %v3486
    %v3543 = vpop.xlane.xlu0 %3542
    %3544 = vadd.xlane.f32.xlu0 %v3487
    %v3545 = vpop.xlane.xlu0 %3544
    %3546 = vadd.xlane.f32.xlu0 %v3488
    %v3547 = vpop.xlane.xlu0 %3546
    %3548 = vadd.xlane.f32.xlu0 %v3489
    %v3549 = vpop.xlane.xlu0 %3548
    %3550 = vadd.xlane.f32.xlu0 %v3490
    %v3551 = vpop.xlane.xlu0 %3550
    %3552 = vadd.xlane.f32.xlu0 %v3491
    %v3553 = vpop.xlane.xlu0 %3552
    %3554 = vadd.xlane.f32.xlu0 %v3492
    %v3555 = vpop.xlane.xlu0 %3554
    %3556 = vadd.xlane.f32.xlu0 %v3493
    %v3557 = vpop.xlane.xlu0 %3556
    %v3558 = vmax.f32 %v3495, %v3503
    %v3559 = vmax.f32 %v3497, %v3505
    %v3560 = vmax.f32 %v3499, %v3507
    %v3561 = vmax.f32 %v3501, %v3509
    %v3562 = vmax.f32 %v3558, %v3511
    %v3563 = vmax.f32 %v3559, %v3513
    %v3564 = vmax.f32 %v3560, %v3515
    %v3565 = vmax.f32 %v3561, %v3517
    %v3566 = vmax.f32 %v3562, %v3519
    %v3567 = vmax.f32 %v3563, %v3521
    %v3568 = vmax.f32 %v3564, %v3523
    %v3569 = vmax.f32 %v3565, %v3525
    %v3570 = vmax.f32 %v3566, %v3527
    %v3571 = vmax.f32 %v3567, %v3529
    %v3572 = vmax.f32 %v3568, %v3531
    %v3573 = vmax.f32 %v3569, %v3533
    %v3574 = vmax.f32 %v3570, %v3535
    %v3575 = vmax.f32 %v3571, %v3537
    %v3576 = vmax.f32 %v3572, %v3539
    %v3577 = vmax.f32 %v3573, %v3541
    %v3578 = vmax.f32 %v3574, %v3543
    %v3579 = vmax.f32 %v3575, %v3545
    %v3580 = vmax.f32 %v3576, %v3547
    %v3581 = vmax.f32 %v3577, %v3549
    %v3582 = vmax.f32 %v3578, %v3551
    %v3583 = vmax.f32 %v3579, %v3553
    %v3584 = vmax.f32 %v3580, %v3555
    %v3585 = vmax.f32 %v3581, %v3557
    %v3586 = vmax.f32 %v3582, %v3583
    %v3587 = vmax.f32 %v3584, %v3585
    %v3588 = vmax.f32 %v3586, %v3587
    %v3589 = vrot.slane %v3588, 4
    %v3590 = vmax.f32 %v3588, %v3589
    %v3591 = vrot.slane %v3590, 2
    %v3592 = vmax.f32 %v3590, %v3591
    %v3593 = vrot.slane %v3592, 1
    %v3594 = vmax.f32 %v3592, %v3593
    %v3595 = vsub.f32 %v3495, %v3594
    %v3596 = vsub.f32 %v3497, %v3594
    %v3597 = vsub.f32 %v3499, %v3594
    %v3598 = vsub.f32 %v3501, %v3594
    %v3599 = vsub.f32 %v3503, %v3594
    %v3600 = vsub.f32 %v3505, %v3594
    %v3601 = vsub.f32 %v3507, %v3594
    %v3602 = vsub.f32 %v3509, %v3594
    %v3603 = vsub.f32 %v3511, %v3594
    %v3604 = vsub.f32 %v3513, %v3594
    %v3605 = vsub.f32 %v3515, %v3594
    %v3606 = vsub.f32 %v3517, %v3594
    %v3607 = vsub.f32 %v3519, %v3594
    %v3608 = vsub.f32 %v3521, %v3594
    %v3609 = vsub.f32 %v3523, %v3594
    %v3610 = vsub.f32 %v3525, %v3594
    %v3611 = vsub.f32 %v3527, %v3594
    %v3612 = vsub.f32 %v3529, %v3594
    %v3613 = vsub.f32 %v3531, %v3594
    %v3614 = vsub.f32 %v3533, %v3594
    %v3615 = vsub.f32 %v3535, %v3594
    %v3616 = vsub.f32 %v3537, %v3594
    %v3617 = vsub.f32 %v3539, %v3594
    %v3618 = vsub.f32 %v3541, %v3594
    %v3619 = vsub.f32 %v3543, %v3594
    %v3620 = vsub.f32 %v3545, %v3594
    %v3621 = vsub.f32 %v3547, %v3594
    %v3622 = vsub.f32 %v3549, %v3594
    %v3623 = vsub.f32 %v3551, %v3594
    %v3624 = vsub.f32 %v3553, %v3594
    %v3625 = vsub.f32 %v3555, %v3594
    %v3626 = vsub.f32 %v3557, %v3594
    %v3627 = vmul.f32 %v3595, 1.442695
    %v3628 = vpow.pop %v3627
    %v3629 = vmul.f32 %v3596, 1.442695
    %v3630 = vpow.pop %v3629
    %v3631 = vmul.f32 %v3597, 1.442695
    %v3632 = vpow.pop %v3631
    %v3633 = vmul.f32 %v3598, 1.442695
    %v3634 = vpow.pop %v3633
    %v3635 = vmul.f32 %v3599, 1.442695
    %v3636 = vpow.pop %v3635
    %v3637 = vmul.f32 %v3600, 1.442695
    %v3638 = vpow.pop %v3637
    %v3639 = vmul.f32 %v3601, 1.442695
    %v3640 = vpow.pop %v3639
    %v3641 = vmul.f32 %v3602, 1.442695
    %v3642 = vpow.pop %v3641
    %v3643 = vmul.f32 %v3603, 1.442695
    %v3644 = vpow.pop %v3643
    %v3645 = vmul.f32 %v3604, 1.442695
    %v3646 = vpow.pop %v3645
    %v3647 = vmul.f32 %v3605, 1.442695
    %v3648 = vpow.pop %v3647
    %v3649 = vmul.f32 %v3606, 1.442695
    %v3650 = vpow.pop %v3649
    %v3651 = vmul.f32 %v3607, 1.442695
    %v3652 = vpow.pop %v3651
    %v3653 = vmul.f32 %v3608, 1.442695
    %v3654 = vpow.pop %v3653
    %v3655 = vmul.f32 %v3609, 1.442695
    %v3656 = vpow.pop %v3655
    %v3657 = vmul.f32 %v3610, 1.442695
    %v3658 = vpow.pop %v3657
    %v3659 = vmul.f32 %v3611, 1.442695
    %v3660 = vpow.pop %v3659
    %v3661 = vmul.f32 %v3612, 1.442695
    %v3662 = vpow.pop %v3661
    %v3663 = vmul.f32 %v3613, 1.442695
    %v3664 = vpow.pop %v3663
    %v3665 = vmul.f32 %v3614, 1.442695
    %v3666 = vpow.pop %v3665
    %v3667 = vmul.f32 %v3615, 1.442695
    %v3668 = vpow.pop %v3667
    %v3669 = vmul.f32 %v3616, 1.442695
    %v3670 = vpow.pop %v3669
    %v3671 = vmul.f32 %v3617, 1.442695
    %v3672 = vpow.pop %v3671
    %v3673 = vmul.f32 %v3618, 1.442695
    %v3674 = vpow.pop %v3673
    %v3675 = vmul.f32 %v3619, 1.442695
    %v3676 = vpow.pop %v3675
    %v3677 = vmul.f32 %v3620, 1.442695
    %v3678 = vpow.pop %v3677
    %v3679 = vmul.f32 %v3621, 1.442695
    %v3680 = vpow.pop %v3679
    %v3681 = vmul.f32 %v3622, 1.442695
    %v3682 = vpow.pop %v3681
    %v3683 = vmul.f32 %v3623, 1.442695
    %v3684 = vpow.pop %v3683
    %v3685 = vmul.f32 %v3624, 1.442695
    %v3686 = vpow.pop %v3685
    %v3687 = vmul.f32 %v3625, 1.442695
    %v3688 = vpow.pop %v3687
    %v3689 = vmul.f32 %v3626, 1.442695
    %v3690 = vpow.pop %v3689
    %vm3691 = vcmp.eq.s32.totalorder %v2574, 0
    %v3692 = vsel %vm3691, %v2935, 0.0
    %v3693 = vsel %vm3691, %v2937, 0.0
    %v3694 = vsel %vm3691, %v2939, 0.0
    %v3695 = vsel %vm3691, %v2941, 0.0
    %v3696 = vsel %vm3691, %v2943, 0.0
    %v3697 = vsel %vm3691, %v2945, 0.0
    %v3698 = vsel %vm3691, %v2947, 0.0
    %v3699 = vsel %vm3691, %v2949, 0.0
    %v3700 = vsel %vm3691, %v2951, 0.0
    %v3701 = vsel %vm3691, %v2953, 0.0
    %v3702 = vsel %vm3691, %v2955, 0.0
    %v3703 = vsel %vm3691, %v2957, 0.0
    %v3704 = vsel %vm3691, %v2959, 0.0
    %v3705 = vsel %vm3691, %v2961, 0.0
    %v3706 = vsel %vm3691, %v2963, 0.0
    %v3707 = vsel %vm3691, %v2965, 0.0
    %v3708 = vsel %vm3691, %v2967, 0.0
    %v3709 = vsel %vm3691, %v2969, 0.0
    %v3710 = vsel %vm3691, %v2971, 0.0
    %v3711 = vsel %vm3691, %v2973, 0.0
    %v3712 = vsel %vm3691, %v2975, 0.0
    %v3713 = vsel %vm3691, %v2977, 0.0
    %v3714 = vsel %vm3691, %v2979, 0.0
    %v3715 = vsel %vm3691, %v2981, 0.0
    %v3716 = vsel %vm3691, %v2983, 0.0
    %v3717 = vsel %vm3691, %v2985, 0.0
    %v3718 = vsel %vm3691, %v2987, 0.0
    %v3719 = vsel %vm3691, %v2989, 0.0
    %v3720 = vsel %vm3691, %v2991, 0.0
    %v3721 = vsel %vm3691, %v2993, 0.0
    %v3722 = vsel %vm3691, %v2995, 0.0
    %v3723 = vsel %vm3691, %v2997, 0.0
    %v3724 = vadd.f32 %v3692, 0.0
    %v3725 = vadd.f32 %v3693, 0.0
    %v3726 = vadd.f32 %v3694, 0.0
    %v3727 = vadd.f32 %v3695, 0.0
    %v3728 = vadd.f32 %v3696, 0.0
    %v3729 = vadd.f32 %v3697, 0.0
    %v3730 = vadd.f32 %v3698, 0.0
    %v3731 = vadd.f32 %v3699, 0.0
    %v3732 = vadd.f32 %v3700, 0.0
    %v3733 = vadd.f32 %v3701, 0.0
    %v3734 = vadd.f32 %v3702, 0.0
    %v3735 = vadd.f32 %v3703, 0.0
    %v3736 = vadd.f32 %v3704, 0.0
    %v3737 = vadd.f32 %v3705, 0.0
    %v3738 = vadd.f32 %v3706, 0.0
    %v3739 = vadd.f32 %v3707, 0.0
    %v3740 = vadd.f32 %v3708, 0.0
    %v3741 = vadd.f32 %v3709, 0.0
    %v3742 = vadd.f32 %v3710, 0.0
    %v3743 = vadd.f32 %v3711, 0.0
    %v3744 = vadd.f32 %v3712, 0.0
    %v3745 = vadd.f32 %v3713, 0.0
    %v3746 = vadd.f32 %v3714, 0.0
    %v3747 = vadd.f32 %v3715, 0.0
    %v3748 = vadd.f32 %v3716, 0.0
    %v3749 = vadd.f32 %v3717, 0.0
    %v3750 = vadd.f32 %v3718, 0.0
    %v3751 = vadd.f32 %v3719, 0.0
    %v3752 = vadd.f32 %v3720, 0.0
    %v3753 = vadd.f32 %v3721, 0.0
    %v3754 = vadd.f32 %v3722, 0.0
    %v3755 = vadd.f32 %v3723, 0.0
    %vm3756 = vcmp.eq.s32.totalorder %v2574, 1
    %v3757 = vsel %vm3756, %v3166, 0.0
    %v3758 = vsel %vm3756, %v3168, 0.0
    %v3759 = vsel %vm3756, %v3170, 0.0
    %v3760 = vsel %vm3756, %v3172, 0.0
    %v3761 = vsel %vm3756, %v3174, 0.0
    %v3762 = vsel %vm3756, %v3176, 0.0
    %v3763 = vsel %vm3756, %v3178, 0.0
    %v3764 = vsel %vm3756, %v3180, 0.0
    %v3765 = vsel %vm3756, %v3182, 0.0
    %v3766 = vsel %vm3756, %v3184, 0.0
    %v3767 = vsel %vm3756, %v3186, 0.0
    %v3768 = vsel %vm3756, %v3188, 0.0
    %v3769 = vsel %vm3756, %v3190, 0.0
    %v3770 = vsel %vm3756, %v3192, 0.0
    %v3771 = vsel %vm3756, %v3194, 0.0
    %v3772 = vsel %vm3756, %v3196, 0.0
    %v3773 = vsel %vm3756, %v3198, 0.0
    %v3774 = vsel %vm3756, %v3200, 0.0
    %v3775 = vsel %vm3756, %v3202, 0.0
    %v3776 = vsel %vm3756, %v3204, 0.0
    %v3777 = vsel %vm3756, %v3206, 0.0
    %v3778 = vsel %vm3756, %v3208, 0.0
    %v3779 = vsel %vm3756, %v3210, 0.0
    %v3780 = vsel %vm3756, %v3212, 0.0
    %v3781 = vsel %vm3756, %v3214, 0.0
    %v3782 = vsel %vm3756, %v3216, 0.0
    %v3783 = vsel %vm3756, %v3218, 0.0
    %v3784 = vsel %vm3756, %v3220, 0.0
    %v3785 = vsel %vm3756, %v3222, 0.0
    %v3786 = vsel %vm3756, %v3224, 0.0
    %v3787 = vsel %vm3756, %v3226, 0.0
    %v3788 = vsel %vm3756, %v3228, 0.0
    %v3789 = vadd.f32 %v3724, %v3757
    %v3790 = vadd.f32 %v3725, %v3758
    %v3791 = vadd.f32 %v3726, %v3759
    %v3792 = vadd.f32 %v3727, %v3760
    %v3793 = vadd.f32 %v3728, %v3761
    %v3794 = vadd.f32 %v3729, %v3762
    %v3795 = vadd.f32 %v3730, %v3763
    %v3796 = vadd.f32 %v3731, %v3764
    %v3797 = vadd.f32 %v3732, %v3765
    %v3798 = vadd.f32 %v3733, %v3766
    %v3799 = vadd.f32 %v3734, %v3767
    %v3800 = vadd.f32 %v3735, %v3768
    %v3801 = vadd.f32 %v3736, %v3769
    %v3802 = vadd.f32 %v3737, %v3770
    %v3803 = vadd.f32 %v3738, %v3771
    %v3804 = vadd.f32 %v3739, %v3772
    %v3805 = vadd.f32 %v3740, %v3773
    %v3806 = vadd.f32 %v3741, %v3774
    %v3807 = vadd.f32 %v3742, %v3775
    %v3808 = vadd.f32 %v3743, %v3776
    %v3809 = vadd.f32 %v3744, %v3777
    %v3810 = vadd.f32 %v3745, %v3778
    %v3811 = vadd.f32 %v3746, %v3779
    %v3812 = vadd.f32 %v3747, %v3780
    %v3813 = vadd.f32 %v3748, %v3781
    %v3814 = vadd.f32 %v3749, %v3782
    %v3815 = vadd.f32 %v3750, %v3783
    %v3816 = vadd.f32 %v3751, %v3784
    %v3817 = vadd.f32 %v3752, %v3785
    %v3818 = vadd.f32 %v3753, %v3786
    %v3819 = vadd.f32 %v3754, %v3787
    %v3820 = vadd.f32 %v3755, %v3788
    %vm3821 = vcmp.eq.s32.totalorder %v2574, 2
    %v3822 = vsel %vm3821, %v3397, 0.0
    %v3823 = vsel %vm3821, %v3399, 0.0
    %v3824 = vsel %vm3821, %v3401, 0.0
    %v3825 = vsel %vm3821, %v3403, 0.0
    %v3826 = vsel %vm3821, %v3405, 0.0
    %v3827 = vsel %vm3821, %v3407, 0.0
    %v3828 = vsel %vm3821, %v3409, 0.0
    %v3829 = vsel %vm3821, %v3411, 0.0
    %v3830 = vsel %vm3821, %v3413, 0.0
    %v3831 = vsel %vm3821, %v3415, 0.0
    %v3832 = vsel %vm3821, %v3417, 0.0
    %v3833 = vsel %vm3821, %v3419, 0.0
    %v3834 = vsel %vm3821, %v3421, 0.0
    %v3835 = vsel %vm3821, %v3423, 0.0
    %v3836 = vsel %vm3821, %v3425, 0.0
    %v3837 = vsel %vm3821, %v3427, 0.0
    %v3838 = vsel %vm3821, %v3429, 0.0
    %v3839 = vsel %vm3821, %v3431, 0.0
    %v3840 = vsel %vm3821, %v3433, 0.0
    %v3841 = vsel %vm3821, %v3435, 0.0
    %v3842 = vsel %vm3821, %v3437, 0.0
    %v3843 = vsel %vm3821, %v3439, 0.0
    %v3844 = vsel %vm3821, %v3441, 0.0
    %v3845 = vsel %vm3821, %v3443, 0.0
    %v3846 = vsel %vm3821, %v3445, 0.0
    %v3847 = vsel %vm3821, %v3447, 0.0
    %v3848 = vsel %vm3821, %v3449, 0.0
    %v3849 = vsel %vm3821, %v3451, 0.0
    %v3850 = vsel %vm3821, %v3453, 0.0
    %v3851 = vsel %vm3821, %v3455, 0.0
    %v3852 = vsel %vm3821, %v3457, 0.0
    %v3853 = vsel %vm3821, %v3459, 0.0
    %v3854 = vadd.f32 %v3789, %v3822
    %v3855 = vadd.f32 %v3790, %v3823
    %v3856 = vadd.f32 %v3791, %v3824
    %v3857 = vadd.f32 %v3792, %v3825
    %v3858 = vadd.f32 %v3793, %v3826
    %v3859 = vadd.f32 %v3794, %v3827
    %v3860 = vadd.f32 %v3795, %v3828
    %v3861 = vadd.f32 %v3796, %v3829
    %v3862 = vadd.f32 %v3797, %v3830
    %v3863 = vadd.f32 %v3798, %v3831
    %v3864 = vadd.f32 %v3799, %v3832
    %v3865 = vadd.f32 %v3800, %v3833
    %v3866 = vadd.f32 %v3801, %v3834
    %v3867 = vadd.f32 %v3802, %v3835
    %v3868 = vadd.f32 %v3803, %v3836
    %v3869 = vadd.f32 %v3804, %v3837
    %v3870 = vadd.f32 %v3805, %v3838
    %v3871 = vadd.f32 %v3806, %v3839
    %v3872 = vadd.f32 %v3807, %v3840
    %v3873 = vadd.f32 %v3808, %v3841
    %v3874 = vadd.f32 %v3809, %v3842
    %v3875 = vadd.f32 %v3810, %v3843
    %v3876 = vadd.f32 %v3811, %v3844
    %v3877 = vadd.f32 %v3812, %v3845
    %v3878 = vadd.f32 %v3813, %v3846
    %v3879 = vadd.f32 %v3814, %v3847
    %v3880 = vadd.f32 %v3815, %v3848
    %v3881 = vadd.f32 %v3816, %v3849
    %v3882 = vadd.f32 %v3817, %v3850
    %v3883 = vadd.f32 %v3818, %v3851
    %v3884 = vadd.f32 %v3819, %v3852
    %v3885 = vadd.f32 %v3820, %v3853
    %vm3886 = vcmp.eq.s32.totalorder %v2574, 3
    %v3887 = vsel %vm3886, %v3628, 0.0
    %v3888 = vsel %vm3886, %v3630, 0.0
    %v3889 = vsel %vm3886, %v3632, 0.0
    %v3890 = vsel %vm3886, %v3634, 0.0
    %v3891 = vsel %vm3886, %v3636, 0.0
    %v3892 = vsel %vm3886, %v3638, 0.0
    %v3893 = vsel %vm3886, %v3640, 0.0
    %v3894 = vsel %vm3886, %v3642, 0.0
    %v3895 = vsel %vm3886, %v3644, 0.0
    %v3896 = vsel %vm3886, %v3646, 0.0
    %v3897 = vsel %vm3886, %v3648, 0.0
    %v3898 = vsel %vm3886, %v3650, 0.0
    %v3899 = vsel %vm3886, %v3652, 0.0
    %v3900 = vsel %vm3886, %v3654, 0.0
    %v3901 = vsel %vm3886, %v3656, 0.0
    %v3902 = vsel %vm3886, %v3658, 0.0
    %v3903 = vsel %vm3886, %v3660, 0.0
    %v3904 = vsel %vm3886, %v3662, 0.0
    %v3905 = vsel %vm3886, %v3664, 0.0
    %v3906 = vsel %vm3886, %v3666, 0.0
    %v3907 = vsel %vm3886, %v3668, 0.0
    %v3908 = vsel %vm3886, %v3670, 0.0
    %v3909 = vsel %vm3886, %v3672, 0.0
    %v3910 = vsel %vm3886, %v3674, 0.0
    %v3911 = vsel %vm3886, %v3676, 0.0
    %v3912 = vsel %vm3886, %v3678, 0.0
    %v3913 = vsel %vm3886, %v3680, 0.0
    %v3914 = vsel %vm3886, %v3682, 0.0
    %v3915 = vsel %vm3886, %v3684, 0.0
    %v3916 = vsel %vm3886, %v3686, 0.0
    %v3917 = vsel %vm3886, %v3688, 0.0
    %v3918 = vsel %vm3886, %v3690, 0.0
    %v3919 = vadd.f32 %v3854, %v3887
    %v3920 = vadd.f32 %v3855, %v3888
    %v3921 = vadd.f32 %v3856, %v3889
    %v3922 = vadd.f32 %v3857, %v3890
    %v3923 = vadd.f32 %v3858, %v3891
    %v3924 = vadd.f32 %v3859, %v3892
    %v3925 = vadd.f32 %v3860, %v3893
    %v3926 = vadd.f32 %v3861, %v3894
    %v3927 = vadd.f32 %v3862, %v3895
    %v3928 = vadd.f32 %v3863, %v3896
    %v3929 = vadd.f32 %v3864, %v3897
    %v3930 = vadd.f32 %v3865, %v3898
    %v3931 = vadd.f32 %v3866, %v3899
    %v3932 = vadd.f32 %v3867, %v3900
    %v3933 = vadd.f32 %v3868, %v3901
    %v3934 = vadd.f32 %v3869, %v3902
    %v3935 = vadd.f32 %v3870, %v3903
    %v3936 = vadd.f32 %v3871, %v3904
    %v3937 = vadd.f32 %v3872, %v3905
    %v3938 = vadd.f32 %v3873, %v3906
    %v3939 = vadd.f32 %v3874, %v3907
    %v3940 = vadd.f32 %v3875, %v3908
    %v3941 = vadd.f32 %v3876, %v3909
    %v3942 = vadd.f32 %v3877, %v3910
    %v3943 = vadd.f32 %v3878, %v3911
    %v3944 = vadd.f32 %v3879, %v3912
    %v3945 = vadd.f32 %v3880, %v3913
    %v3946 = vadd.f32 %v3881, %v3914
    %v3947 = vadd.f32 %v3882, %v3915
    %v3948 = vadd.f32 %v3883, %v3916
    %v3949 = vadd.f32 %v3884, %v3917
    %v3950 = vadd.f32 %v3885, %v3918
    %3951 = vmatpush.msra.mxu0 %v3934
    %3952 = vmatpush.msra.mxu0 %v3933
    %3953 = vmatpush.msra.mxu0 %v3932
    %3954 = vmatpush.msra.mxu0 %v3931
    %3955 = vmatpush.msra.mxu0 %v3930
    %3956 = vmatpush.msra.mxu0 %v3929
    %3957 = vmatpush.msra.mxu0 %v3928
    %3958 = vmatpush.msra.mxu0 %v3927
    %3959 = vmatpush.msra.mxu0 %v3926
    %3960 = vmatpush.msra.mxu0 %v3925
    %3961 = vmatpush.msra.mxu0 %v3924
    %3962 = vmatpush.msra.mxu0 %v3923
    %3963 = vmatpush.msra.mxu0 %v3922
    %3964 = vmatpush.msra.mxu0 %v3921
    %3965 = vmatpush.msra.mxu0 %v3920
    %3966 = vmatpush.msra.mxu0 %v3919
    %3967 = vmatmul.f32.gmra.mxu0 %v2541
    %v3968 = vpop.f32.mrf.mxu0
    %v3969 = vadd.f32 0.0, %v3968
    %3970 = vmatmul.f32.gmra.mxu0 %v2543
    %v3971 = vpop.f32.mrf.mxu0
    %v3972 = vadd.f32 0.0, %v3971
    %3973 = vmatmul.f32.gmra.mxu0 %v2545
    %v3974 = vpop.f32.mrf.mxu0
    %v3975 = vadd.f32 0.0, %v3974
    %3976 = vmatmul.f32.gmra.mxu0 %v2547
    %v3977 = vpop.f32.mrf.mxu0
    %v3978 = vadd.f32 0.0, %v3977
    %3979 = vmatmul.f32.gmra.mxu0 %v2549
    %v3980 = vpop.f32.mrf.mxu0
    %v3981 = vadd.f32 0.0, %v3980
    %3982 = vmatmul.f32.gmra.mxu0 %v2551
    %v3983 = vpop.f32.mrf.mxu0
    %v3984 = vadd.f32 0.0, %v3983
    %3985 = vmatmul.f32.gmra.mxu0 %v2553
    %v3986 = vpop.f32.mrf.mxu0
    %v3987 = vadd.f32 0.0, %v3986
    %3988 = vmatmul.f32.gmra.mxu0 %v2555
    %v3989 = vpop.f32.mrf.mxu0
    %v3990 = vadd.f32 0.0, %v3989
    %3991 = vmatmul.f32.gmra.mxu0 %v2557
    %v3992 = vpop.f32.mrf.mxu0
    %v3993 = vadd.f32 0.0, %v3992
    %3994 = vmatmul.f32.gmra.mxu0 %v2559
    %v3995 = vpop.f32.mrf.mxu0
    %v3996 = vadd.f32 0.0, %v3995
    %3997 = vmatmul.f32.gmra.mxu0 %v2561
    %v3998 = vpop.f32.mrf.mxu0
    %v3999 = vadd.f32 0.0, %v3998
    %4000 = vmatmul.f32.gmra.mxu0 %v2563
    %v4001 = vpop.f32.mrf.mxu0
    %v4002 = vadd.f32 0.0, %v4001
    %4003 = vmatmul.f32.gmra.mxu0 %v2565
    %v4004 = vpop.f32.mrf.mxu0
    %v4005 = vadd.f32 0.0, %v4004
    %4006 = vmatmul.f32.gmra.mxu0 %v2567
    %v4007 = vpop.f32.mrf.mxu0
    %v4008 = vadd.f32 0.0, %v4007
    %4009 = vmatmul.f32.gmra.mxu0 %v2569
    %v4010 = vpop.f32.mrf.mxu0
    %v4011 = vadd.f32 0.0, %v4010
    %4012 = vmatmul.f32.gmra.mxu0 %v2571
    %v4013 = vpop.f32.mrf.mxu0
    %v4014 = vadd.f32 0.0, %v4013
    %4015 = vdwg.mxu0
    %4016 = vmatpush.msra.mxu0 %v3950
    %4017 = vmatpush.msra.mxu0 %v3949
    %4018 = vmatpush.msra.mxu0 %v3948
    %4019 = vmatpush.msra.mxu0 %v3947
    %4020 = vmatpush.msra.mxu0 %v3946
    %4021 = vmatpush.msra.mxu0 %v3945
    %4022 = vmatpush.msra.mxu0 %v3944
    %4023 = vmatpush.msra.mxu0 %v3943
    %4024 = vmatpush.msra.mxu0 %v3942
    %4025 = vmatpush.msra.mxu0 %v3941
    %4026 = vmatpush.msra.mxu0 %v3940
    %4027 = vmatpush.msra.mxu0 %v3939
    %4028 = vmatpush.msra.mxu0 %v3938
    %4029 = vmatpush.msra.mxu0 %v3937
    %4030 = vmatpush.msra.mxu0 %v3936
    %4031 = vmatpush.msra.mxu0 %v3935
    %4032 = vmatmul.f32.gmra.mxu0 %v2542
    %v4033 = vpop.f32.mrf.mxu0
    %v4034 = vadd.f32 %v3969, %v4033
    %4035 = vmatmul.f32.gmra.mxu0 %v2544
    %v4036 = vpop.f32.mrf.mxu0
    %v4037 = vadd.f32 %v3972, %v4036
    %4038 = vmatmul.f32.gmra.mxu0 %v2546
    %v4039 = vpop.f32.mrf.mxu0
    %v4040 = vadd.f32 %v3975, %v4039
    %4041 = vmatmul.f32.gmra.mxu0 %v2548
    %v4042 = vpop.f32.mrf.mxu0
    %v4043 = vadd.f32 %v3978, %v4042
    %4044 = vmatmul.f32.gmra.mxu0 %v2550
    %v4045 = vpop.f32.mrf.mxu0
    %v4046 = vadd.f32 %v3981, %v4045
    %4047 = vmatmul.f32.gmra.mxu0 %v2552
    %v4048 = vpop.f32.mrf.mxu0
    %v4049 = vadd.f32 %v3984, %v4048
    %4050 = vmatmul.f32.gmra.mxu0 %v2554
    %v4051 = vpop.f32.mrf.mxu0
    %v4052 = vadd.f32 %v3987, %v4051
    %4053 = vmatmul.f32.gmra.mxu0 %v2556
    %v4054 = vpop.f32.mrf.mxu0
    %v4055 = vadd.f32 %v3990, %v4054
    %4056 = vmatmul.f32.gmra.mxu0 %v2558
    %v4057 = vpop.f32.mrf.mxu0
    %v4058 = vadd.f32 %v3993, %v4057
    %4059 = vmatmul.f32.gmra.mxu0 %v2560
    %v4060 = vpop.f32.mrf.mxu0
    %v4061 = vadd.f32 %v3996, %v4060
    %4062 = vmatmul.f32.gmra.mxu0 %v2562
    %v4063 = vpop.f32.mrf.mxu0
    %v4064 = vadd.f32 %v3999, %v4063
    %4065 = vmatmul.f32.gmra.mxu0 %v2564
    %v4066 = vpop.f32.mrf.mxu0
    %v4067 = vadd.f32 %v4002, %v4066
    %4068 = vmatmul.f32.gmra.mxu0 %v2566
    %v4069 = vpop.f32.mrf.mxu0
    %v4070 = vadd.f32 %v4005, %v4069
    %4071 = vmatmul.f32.gmra.mxu0 %v2568
    %v4072 = vpop.f32.mrf.mxu0
    %v4073 = vadd.f32 %v4008, %v4072
    %4074 = vmatmul.f32.gmra.mxu0 %v2570
    %v4075 = vpop.f32.mrf.mxu0
    %v4076 = vadd.f32 %v4011, %v4075
    %4077 = vmatmul.f32.gmra.mxu0 %v2572
    %v4078 = vpop.f32.mrf.mxu0
    %v4079 = vadd.f32 %v4014, %v4078
    %4080 = vdwg.mxu0
    %v4081 = vsel %vm3691, %v4034, 0.0
    %v4082 = vsel %vm3691, %v4037, 0.0
    %v4083 = vsel %vm3691, %v4040, 0.0
    %v4084 = vsel %vm3691, %v4043, 0.0
    %v4085 = vsel %vm3691, %v4046, 0.0
    %v4086 = vsel %vm3691, %v4049, 0.0
    %v4087 = vsel %vm3691, %v4052, 0.0
    %v4088 = vsel %vm3691, %v4055, 0.0
    %v4089 = vsel %vm3691, %v4058, 0.0
    %v4090 = vsel %vm3691, %v4061, 0.0
    %v4091 = vsel %vm3691, %v4064, 0.0
    %v4092 = vsel %vm3691, %v4067, 0.0
    %v4093 = vsel %vm3691, %v4070, 0.0
    %v4094 = vsel %vm3691, %v4073, 0.0
    %v4095 = vsel %vm3691, %v4076, 0.0
    %v4096 = vsel %vm3691, %v4079, 0.0
    %4097 = vadd.xlane.f32.xlu0 %v4081
    %v4098 = vpop.xlane.xlu0 %4097
    %4099 = vadd.xlane.f32.xlu0 %v4082
    %v4100 = vpop.xlane.xlu0 %4099
    %4101 = vadd.xlane.f32.xlu0 %v4083
    %v4102 = vpop.xlane.xlu0 %4101
    %4103 = vadd.xlane.f32.xlu0 %v4084
    %v4104 = vpop.xlane.xlu0 %4103
    %4105 = vadd.xlane.f32.xlu0 %v4085
    %v4106 = vpop.xlane.xlu0 %4105
    %4107 = vadd.xlane.f32.xlu0 %v4086
    %v4108 = vpop.xlane.xlu0 %4107
    %4109 = vadd.xlane.f32.xlu0 %v4087
    %v4110 = vpop.xlane.xlu0 %4109
    %4111 = vadd.xlane.f32.xlu0 %v4088
    %v4112 = vpop.xlane.xlu0 %4111
    %4113 = vadd.xlane.f32.xlu0 %v4089
    %v4114 = vpop.xlane.xlu0 %4113
    %4115 = vadd.xlane.f32.xlu0 %v4090
    %v4116 = vpop.xlane.xlu0 %4115
    %4117 = vadd.xlane.f32.xlu0 %v4091
    %v4118 = vpop.xlane.xlu0 %4117
    %4119 = vadd.xlane.f32.xlu0 %v4092
    %v4120 = vpop.xlane.xlu0 %4119
    %4121 = vadd.xlane.f32.xlu0 %v4093
    %v4122 = vpop.xlane.xlu0 %4121
    %4123 = vadd.xlane.f32.xlu0 %v4094
    %v4124 = vpop.xlane.xlu0 %4123
    %4125 = vadd.xlane.f32.xlu0 %v4095
    %v4126 = vpop.xlane.xlu0 %4125
    %4127 = vadd.xlane.f32.xlu0 %v4096
    %v4128 = vpop.xlane.xlu0 %4127
    %v4129 = vmax.f32 %v4098, 1e-30
    %v4130 = vmax.f32 %v4100, 1e-30
    %v4131 = vmax.f32 %v4102, 1e-30
    %v4132 = vmax.f32 %v4104, 1e-30
    %v4133 = vmax.f32 %v4106, 1e-30
    %v4134 = vmax.f32 %v4108, 1e-30
    %v4135 = vmax.f32 %v4110, 1e-30
    %v4136 = vmax.f32 %v4112, 1e-30
    %v4137 = vmax.f32 %v4114, 1e-30
    %v4138 = vmax.f32 %v4116, 1e-30
    %v4139 = vmax.f32 %v4118, 1e-30
    %v4140 = vmax.f32 %v4120, 1e-30
    %v4141 = vmax.f32 %v4122, 1e-30
    %v4142 = vmax.f32 %v4124, 1e-30
    %v4143 = vmax.f32 %v4126, 1e-30
    %v4144 = vmax.f32 %v4128, 1e-30
    %v4145 = vrcp.pop %v4129
    %v4146 = vmul.f32 %v4129, %v4145
    %v4147 = vsub.f32 1.0, %v4146
    %v4148 = vmul.f32 %v4145, %v4147
    %v4149 = vadd.f32 %v4145, %v4148
    %vm4150 = vweird.f32 %v4129
    %vm4151 = vweird.f32 %v4145
    %vm4152 = vmor %vm4150, %vm4151
    %v4153 = vsel %vm4152, %v4145, %v4149
    %v4154 = vand.u32 2147483647, %v4129
    %vm4155 = vcmp.eq.f32.partialorder %v4154, 8.507059e+37
    %v4156 = vand.u32 %v4129, 2147483648
    %v4157 = vor.u32 1.1754944e-38, %v4156
    %v4158 = vsel %vm4155, %v4157, %v4153
    %v4159 = vmul.f32 1.0, %v4158
    %v4160 = vrcp.pop %v4130
    %v4161 = vmul.f32 %v4130, %v4160
    %v4162 = vsub.f32 1.0, %v4161
    %v4163 = vmul.f32 %v4160, %v4162
    %v4164 = vadd.f32 %v4160, %v4163
    %vm4165 = vweird.f32 %v4130
    %vm4166 = vweird.f32 %v4160
    %vm4167 = vmor %vm4165, %vm4166
    %v4168 = vsel %vm4167, %v4160, %v4164
    %v4169 = vand.u32 2147483647, %v4130
    %vm4170 = vcmp.eq.f32.partialorder %v4169, 8.507059e+37
    %v4171 = vand.u32 %v4130, 2147483648
    %v4172 = vor.u32 1.1754944e-38, %v4171
    %v4173 = vsel %vm4170, %v4172, %v4168
    %v4174 = vmul.f32 1.0, %v4173
    %v4175 = vrcp.pop %v4131
    %v4176 = vmul.f32 %v4131, %v4175
    %v4177 = vsub.f32 1.0, %v4176
    %v4178 = vmul.f32 %v4175, %v4177
    %v4179 = vadd.f32 %v4175, %v4178
    %vm4180 = vweird.f32 %v4131
    %vm4181 = vweird.f32 %v4175
    %vm4182 = vmor %vm4180, %vm4181
    %v4183 = vsel %vm4182, %v4175, %v4179
    %v4184 = vand.u32 2147483647, %v4131
    %vm4185 = vcmp.eq.f32.partialorder %v4184, 8.507059e+37
    %v4186 = vand.u32 %v4131, 2147483648
    %v4187 = vor.u32 1.1754944e-38, %v4186
    %v4188 = vsel %vm4185, %v4187, %v4183
    %v4189 = vmul.f32 1.0, %v4188
    %v4190 = vrcp.pop %v4132
    %v4191 = vmul.f32 %v4132, %v4190
    %v4192 = vsub.f32 1.0, %v4191
    %v4193 = vmul.f32 %v4190, %v4192
    %v4194 = vadd.f32 %v4190, %v4193
    %vm4195 = vweird.f32 %v4132
    %vm4196 = vweird.f32 %v4190
    %vm4197 = vmor %vm4195, %vm4196
    %v4198 = vsel %vm4197, %v4190, %v4194
    %v4199 = vand.u32 2147483647, %v4132
    %vm4200 = vcmp.eq.f32.partialorder %v4199, 8.507059e+37
    %v4201 = vand.u32 %v4132, 2147483648
    %v4202 = vor.u32 1.1754944e-38, %v4201
    %v4203 = vsel %vm4200, %v4202, %v4198
    %v4204 = vmul.f32 1.0, %v4203
    %v4205 = vrcp.pop %v4133
    %v4206 = vmul.f32 %v4133, %v4205
    %v4207 = vsub.f32 1.0, %v4206
    %v4208 = vmul.f32 %v4205, %v4207
    %v4209 = vadd.f32 %v4205, %v4208
    %vm4210 = vweird.f32 %v4133
    %vm4211 = vweird.f32 %v4205
    %vm4212 = vmor %vm4210, %vm4211
    %v4213 = vsel %vm4212, %v4205, %v4209
    %v4214 = vand.u32 2147483647, %v4133
    %vm4215 = vcmp.eq.f32.partialorder %v4214, 8.507059e+37
    %v4216 = vand.u32 %v4133, 2147483648
    %v4217 = vor.u32 1.1754944e-38, %v4216
    %v4218 = vsel %vm4215, %v4217, %v4213
    %v4219 = vmul.f32 1.0, %v4218
    %v4220 = vrcp.pop %v4134
    %v4221 = vmul.f32 %v4134, %v4220
    %v4222 = vsub.f32 1.0, %v4221
    %v4223 = vmul.f32 %v4220, %v4222
    %v4224 = vadd.f32 %v4220, %v4223
    %vm4225 = vweird.f32 %v4134
    %vm4226 = vweird.f32 %v4220
    %vm4227 = vmor %vm4225, %vm4226
    %v4228 = vsel %vm4227, %v4220, %v4224
    %v4229 = vand.u32 2147483647, %v4134
    %vm4230 = vcmp.eq.f32.partialorder %v4229, 8.507059e+37
    %v4231 = vand.u32 %v4134, 2147483648
    %v4232 = vor.u32 1.1754944e-38, %v4231
    %v4233 = vsel %vm4230, %v4232, %v4228
    %v4234 = vmul.f32 1.0, %v4233
    %v4235 = vrcp.pop %v4135
    %v4236 = vmul.f32 %v4135, %v4235
    %v4237 = vsub.f32 1.0, %v4236
    %v4238 = vmul.f32 %v4235, %v4237
    %v4239 = vadd.f32 %v4235, %v4238
    %vm4240 = vweird.f32 %v4135
    %vm4241 = vweird.f32 %v4235
    %vm4242 = vmor %vm4240, %vm4241
    %v4243 = vsel %vm4242, %v4235, %v4239
    %v4244 = vand.u32 2147483647, %v4135
    %vm4245 = vcmp.eq.f32.partialorder %v4244, 8.507059e+37
    %v4246 = vand.u32 %v4135, 2147483648
    %v4247 = vor.u32 1.1754944e-38, %v4246
    %v4248 = vsel %vm4245, %v4247, %v4243
    %v4249 = vmul.f32 1.0, %v4248
    %v4250 = vrcp.pop %v4136
    %v4251 = vmul.f32 %v4136, %v4250
    %v4252 = vsub.f32 1.0, %v4251
    %v4253 = vmul.f32 %v4250, %v4252
    %v4254 = vadd.f32 %v4250, %v4253
    %vm4255 = vweird.f32 %v4136
    %vm4256 = vweird.f32 %v4250
    %vm4257 = vmor %vm4255, %vm4256
    %v4258 = vsel %vm4257, %v4250, %v4254
    %v4259 = vand.u32 2147483647, %v4136
    %vm4260 = vcmp.eq.f32.partialorder %v4259, 8.507059e+37
    %v4261 = vand.u32 %v4136, 2147483648
    %v4262 = vor.u32 1.1754944e-38, %v4261
    %v4263 = vsel %vm4260, %v4262, %v4258
    %v4264 = vmul.f32 1.0, %v4263
    %v4265 = vrcp.pop %v4137
    %v4266 = vmul.f32 %v4137, %v4265
    %v4267 = vsub.f32 1.0, %v4266
    %v4268 = vmul.f32 %v4265, %v4267
    %v4269 = vadd.f32 %v4265, %v4268
    %vm4270 = vweird.f32 %v4137
    %vm4271 = vweird.f32 %v4265
    %vm4272 = vmor %vm4270, %vm4271
    %v4273 = vsel %vm4272, %v4265, %v4269
    %v4274 = vand.u32 2147483647, %v4137
    %vm4275 = vcmp.eq.f32.partialorder %v4274, 8.507059e+37
    %v4276 = vand.u32 %v4137, 2147483648
    %v4277 = vor.u32 1.1754944e-38, %v4276
    %v4278 = vsel %vm4275, %v4277, %v4273
    %v4279 = vmul.f32 1.0, %v4278
    %v4280 = vrcp.pop %v4138
    %v4281 = vmul.f32 %v4138, %v4280
    %v4282 = vsub.f32 1.0, %v4281
    %v4283 = vmul.f32 %v4280, %v4282
    %v4284 = vadd.f32 %v4280, %v4283
    %vm4285 = vweird.f32 %v4138
    %vm4286 = vweird.f32 %v4280
    %vm4287 = vmor %vm4285, %vm4286
    %v4288 = vsel %vm4287, %v4280, %v4284
    %v4289 = vand.u32 2147483647, %v4138
    %vm4290 = vcmp.eq.f32.partialorder %v4289, 8.507059e+37
    %v4291 = vand.u32 %v4138, 2147483648
    %v4292 = vor.u32 1.1754944e-38, %v4291
    %v4293 = vsel %vm4290, %v4292, %v4288
    %v4294 = vmul.f32 1.0, %v4293
    %v4295 = vrcp.pop %v4139
    %v4296 = vmul.f32 %v4139, %v4295
    %v4297 = vsub.f32 1.0, %v4296
    %v4298 = vmul.f32 %v4295, %v4297
    %v4299 = vadd.f32 %v4295, %v4298
    %vm4300 = vweird.f32 %v4139
    %vm4301 = vweird.f32 %v4295
    %vm4302 = vmor %vm4300, %vm4301
    %v4303 = vsel %vm4302, %v4295, %v4299
    %v4304 = vand.u32 2147483647, %v4139
    %vm4305 = vcmp.eq.f32.partialorder %v4304, 8.507059e+37
    %v4306 = vand.u32 %v4139, 2147483648
    %v4307 = vor.u32 1.1754944e-38, %v4306
    %v4308 = vsel %vm4305, %v4307, %v4303
    %v4309 = vmul.f32 1.0, %v4308
    %v4310 = vrcp.pop %v4140
    %v4311 = vmul.f32 %v4140, %v4310
    %v4312 = vsub.f32 1.0, %v4311
    %v4313 = vmul.f32 %v4310, %v4312
    %v4314 = vadd.f32 %v4310, %v4313
    %vm4315 = vweird.f32 %v4140
    %vm4316 = vweird.f32 %v4310
    %vm4317 = vmor %vm4315, %vm4316
    %v4318 = vsel %vm4317, %v4310, %v4314
    %v4319 = vand.u32 2147483647, %v4140
    %vm4320 = vcmp.eq.f32.partialorder %v4319, 8.507059e+37
    %v4321 = vand.u32 %v4140, 2147483648
    %v4322 = vor.u32 1.1754944e-38, %v4321
    %v4323 = vsel %vm4320, %v4322, %v4318
    %v4324 = vmul.f32 1.0, %v4323
    %v4325 = vrcp.pop %v4141
    %v4326 = vmul.f32 %v4141, %v4325
    %v4327 = vsub.f32 1.0, %v4326
    %v4328 = vmul.f32 %v4325, %v4327
    %v4329 = vadd.f32 %v4325, %v4328
    %vm4330 = vweird.f32 %v4141
    %vm4331 = vweird.f32 %v4325
    %vm4332 = vmor %vm4330, %vm4331
    %v4333 = vsel %vm4332, %v4325, %v4329
    %v4334 = vand.u32 2147483647, %v4141
    %vm4335 = vcmp.eq.f32.partialorder %v4334, 8.507059e+37
    %v4336 = vand.u32 %v4141, 2147483648
    %v4337 = vor.u32 1.1754944e-38, %v4336
    %v4338 = vsel %vm4335, %v4337, %v4333
    %v4339 = vmul.f32 1.0, %v4338
    %v4340 = vrcp.pop %v4142
    %v4341 = vmul.f32 %v4142, %v4340
    %v4342 = vsub.f32 1.0, %v4341
    %v4343 = vmul.f32 %v4340, %v4342
    %v4344 = vadd.f32 %v4340, %v4343
    %vm4345 = vweird.f32 %v4142
    %vm4346 = vweird.f32 %v4340
    %vm4347 = vmor %vm4345, %vm4346
    %v4348 = vsel %vm4347, %v4340, %v4344
    %v4349 = vand.u32 2147483647, %v4142
    %vm4350 = vcmp.eq.f32.partialorder %v4349, 8.507059e+37
    %v4351 = vand.u32 %v4142, 2147483648
    %v4352 = vor.u32 1.1754944e-38, %v4351
    %v4353 = vsel %vm4350, %v4352, %v4348
    %v4354 = vmul.f32 1.0, %v4353
    %v4355 = vrcp.pop %v4143
    %v4356 = vmul.f32 %v4143, %v4355
    %v4357 = vsub.f32 1.0, %v4356
    %v4358 = vmul.f32 %v4355, %v4357
    %v4359 = vadd.f32 %v4355, %v4358
    %vm4360 = vweird.f32 %v4143
    %vm4361 = vweird.f32 %v4355
    %vm4362 = vmor %vm4360, %vm4361
    %v4363 = vsel %vm4362, %v4355, %v4359
    %v4364 = vand.u32 2147483647, %v4143
    %vm4365 = vcmp.eq.f32.partialorder %v4364, 8.507059e+37
    %v4366 = vand.u32 %v4143, 2147483648
    %v4367 = vor.u32 1.1754944e-38, %v4366
    %v4368 = vsel %vm4365, %v4367, %v4363
    %v4369 = vmul.f32 1.0, %v4368
    %v4370 = vrcp.pop %v4144
    %v4371 = vmul.f32 %v4144, %v4370
    %v4372 = vsub.f32 1.0, %v4371
    %v4373 = vmul.f32 %v4370, %v4372
    %v4374 = vadd.f32 %v4370, %v4373
    %vm4375 = vweird.f32 %v4144
    %vm4376 = vweird.f32 %v4370
    %vm4377 = vmor %vm4375, %vm4376
    %v4378 = vsel %vm4377, %v4370, %v4374
    %v4379 = vand.u32 2147483647, %v4144
    %vm4380 = vcmp.eq.f32.partialorder %v4379, 8.507059e+37
    %v4381 = vand.u32 %v4144, 2147483648
    %v4382 = vor.u32 1.1754944e-38, %v4381
    %v4383 = vsel %vm4380, %v4382, %v4378
    %v4384 = vmul.f32 1.0, %v4383
    %v4385 = vsel %vm3756, %v4034, 0.0
    %v4386 = vsel %vm3756, %v4037, 0.0
    %v4387 = vsel %vm3756, %v4040, 0.0
    %v4388 = vsel %vm3756, %v4043, 0.0
    %v4389 = vsel %vm3756, %v4046, 0.0
    %v4390 = vsel %vm3756, %v4049, 0.0
    %v4391 = vsel %vm3756, %v4052, 0.0
    %v4392 = vsel %vm3756, %v4055, 0.0
    %v4393 = vsel %vm3756, %v4058, 0.0
    %v4394 = vsel %vm3756, %v4061, 0.0
    %v4395 = vsel %vm3756, %v4064, 0.0
    %v4396 = vsel %vm3756, %v4067, 0.0
    %v4397 = vsel %vm3756, %v4070, 0.0
    %v4398 = vsel %vm3756, %v4073, 0.0
    %v4399 = vsel %vm3756, %v4076, 0.0
    %v4400 = vsel %vm3756, %v4079, 0.0
    %4401 = vadd.xlane.f32.xlu0 %v4385
    %v4402 = vpop.xlane.xlu0 %4401
    %4403 = vadd.xlane.f32.xlu0 %v4386
    %v4404 = vpop.xlane.xlu0 %4403
    %4405 = vadd.xlane.f32.xlu0 %v4387
    %v4406 = vpop.xlane.xlu0 %4405
    %4407 = vadd.xlane.f32.xlu0 %v4388
    %v4408 = vpop.xlane.xlu0 %4407
    %4409 = vadd.xlane.f32.xlu0 %v4389
    %v4410 = vpop.xlane.xlu0 %4409
    %4411 = vadd.xlane.f32.xlu0 %v4390
    %v4412 = vpop.xlane.xlu0 %4411
    %4413 = vadd.xlane.f32.xlu0 %v4391
    %v4414 = vpop.xlane.xlu0 %4413
    %4415 = vadd.xlane.f32.xlu0 %v4392
    %v4416 = vpop.xlane.xlu0 %4415
    %4417 = vadd.xlane.f32.xlu0 %v4393
    %v4418 = vpop.xlane.xlu0 %4417
    %4419 = vadd.xlane.f32.xlu0 %v4394
    %v4420 = vpop.xlane.xlu0 %4419
    %4421 = vadd.xlane.f32.xlu0 %v4395
    %v4422 = vpop.xlane.xlu0 %4421
    %4423 = vadd.xlane.f32.xlu0 %v4396
    %v4424 = vpop.xlane.xlu0 %4423
    %4425 = vadd.xlane.f32.xlu0 %v4397
    %v4426 = vpop.xlane.xlu0 %4425
    %4427 = vadd.xlane.f32.xlu0 %v4398
    %v4428 = vpop.xlane.xlu0 %4427
    %4429 = vadd.xlane.f32.xlu0 %v4399
    %v4430 = vpop.xlane.xlu0 %4429
    %4431 = vadd.xlane.f32.xlu0 %v4400
    %v4432 = vpop.xlane.xlu0 %4431
    %v4433 = vmax.f32 %v4402, 1e-30
    %v4434 = vmax.f32 %v4404, 1e-30
    %v4435 = vmax.f32 %v4406, 1e-30
    %v4436 = vmax.f32 %v4408, 1e-30
    %v4437 = vmax.f32 %v4410, 1e-30
    %v4438 = vmax.f32 %v4412, 1e-30
    %v4439 = vmax.f32 %v4414, 1e-30
    %v4440 = vmax.f32 %v4416, 1e-30
    %v4441 = vmax.f32 %v4418, 1e-30
    %v4442 = vmax.f32 %v4420, 1e-30
    %v4443 = vmax.f32 %v4422, 1e-30
    %v4444 = vmax.f32 %v4424, 1e-30
    %v4445 = vmax.f32 %v4426, 1e-30
    %v4446 = vmax.f32 %v4428, 1e-30
    %v4447 = vmax.f32 %v4430, 1e-30
    %v4448 = vmax.f32 %v4432, 1e-30
    %v4449 = vrcp.pop %v4433
    %v4450 = vmul.f32 %v4433, %v4449
    %v4451 = vsub.f32 1.0, %v4450
    %v4452 = vmul.f32 %v4449, %v4451
    %v4453 = vadd.f32 %v4449, %v4452
    %vm4454 = vweird.f32 %v4433
    %vm4455 = vweird.f32 %v4449
    %vm4456 = vmor %vm4454, %vm4455
    %v4457 = vsel %vm4456, %v4449, %v4453
    %v4458 = vand.u32 2147483647, %v4433
    %vm4459 = vcmp.eq.f32.partialorder %v4458, 8.507059e+37
    %v4460 = vand.u32 %v4433, 2147483648
    %v4461 = vor.u32 1.1754944e-38, %v4460
    %v4462 = vsel %vm4459, %v4461, %v4457
    %v4463 = vmul.f32 1.0, %v4462
    %v4464 = vrcp.pop %v4434
    %v4465 = vmul.f32 %v4434, %v4464
    %v4466 = vsub.f32 1.0, %v4465
    %v4467 = vmul.f32 %v4464, %v4466
    %v4468 = vadd.f32 %v4464, %v4467
    %vm4469 = vweird.f32 %v4434
    %vm4470 = vweird.f32 %v4464
    %vm4471 = vmor %vm4469, %vm4470
    %v4472 = vsel %vm4471, %v4464, %v4468
    %v4473 = vand.u32 2147483647, %v4434
    %vm4474 = vcmp.eq.f32.partialorder %v4473, 8.507059e+37
    %v4475 = vand.u32 %v4434, 2147483648
    %v4476 = vor.u32 1.1754944e-38, %v4475
    %v4477 = vsel %vm4474, %v4476, %v4472
    %v4478 = vmul.f32 1.0, %v4477
    %v4479 = vrcp.pop %v4435
    %v4480 = vmul.f32 %v4435, %v4479
    %v4481 = vsub.f32 1.0, %v4480
    %v4482 = vmul.f32 %v4479, %v4481
    %v4483 = vadd.f32 %v4479, %v4482
    %vm4484 = vweird.f32 %v4435
    %vm4485 = vweird.f32 %v4479
    %vm4486 = vmor %vm4484, %vm4485
    %v4487 = vsel %vm4486, %v4479, %v4483
    %v4488 = vand.u32 2147483647, %v4435
    %vm4489 = vcmp.eq.f32.partialorder %v4488, 8.507059e+37
    %v4490 = vand.u32 %v4435, 2147483648
    %v4491 = vor.u32 1.1754944e-38, %v4490
    %v4492 = vsel %vm4489, %v4491, %v4487
    %v4493 = vmul.f32 1.0, %v4492
    %v4494 = vrcp.pop %v4436
    %v4495 = vmul.f32 %v4436, %v4494
    %v4496 = vsub.f32 1.0, %v4495
    %v4497 = vmul.f32 %v4494, %v4496
    %v4498 = vadd.f32 %v4494, %v4497
    %vm4499 = vweird.f32 %v4436
    %vm4500 = vweird.f32 %v4494
    %vm4501 = vmor %vm4499, %vm4500
    %v4502 = vsel %vm4501, %v4494, %v4498
    %v4503 = vand.u32 2147483647, %v4436
    %vm4504 = vcmp.eq.f32.partialorder %v4503, 8.507059e+37
    %v4505 = vand.u32 %v4436, 2147483648
    %v4506 = vor.u32 1.1754944e-38, %v4505
    %v4507 = vsel %vm4504, %v4506, %v4502
    %v4508 = vmul.f32 1.0, %v4507
    %v4509 = vrcp.pop %v4437
    %v4510 = vmul.f32 %v4437, %v4509
    %v4511 = vsub.f32 1.0, %v4510
    %v4512 = vmul.f32 %v4509, %v4511
    %v4513 = vadd.f32 %v4509, %v4512
    %vm4514 = vweird.f32 %v4437
    %vm4515 = vweird.f32 %v4509
    %vm4516 = vmor %vm4514, %vm4515
    %v4517 = vsel %vm4516, %v4509, %v4513
    %v4518 = vand.u32 2147483647, %v4437
    %vm4519 = vcmp.eq.f32.partialorder %v4518, 8.507059e+37
    %v4520 = vand.u32 %v4437, 2147483648
    %v4521 = vor.u32 1.1754944e-38, %v4520
    %v4522 = vsel %vm4519, %v4521, %v4517
    %v4523 = vmul.f32 1.0, %v4522
    %v4524 = vrcp.pop %v4438
    %v4525 = vmul.f32 %v4438, %v4524
    %v4526 = vsub.f32 1.0, %v4525
    %v4527 = vmul.f32 %v4524, %v4526
    %v4528 = vadd.f32 %v4524, %v4527
    %vm4529 = vweird.f32 %v4438
    %vm4530 = vweird.f32 %v4524
    %vm4531 = vmor %vm4529, %vm4530
    %v4532 = vsel %vm4531, %v4524, %v4528
    %v4533 = vand.u32 2147483647, %v4438
    %vm4534 = vcmp.eq.f32.partialorder %v4533, 8.507059e+37
    %v4535 = vand.u32 %v4438, 2147483648
    %v4536 = vor.u32 1.1754944e-38, %v4535
    %v4537 = vsel %vm4534, %v4536, %v4532
    %v4538 = vmul.f32 1.0, %v4537
    %v4539 = vrcp.pop %v4439
    %v4540 = vmul.f32 %v4439, %v4539
    %v4541 = vsub.f32 1.0, %v4540
    %v4542 = vmul.f32 %v4539, %v4541
    %v4543 = vadd.f32 %v4539, %v4542
    %vm4544 = vweird.f32 %v4439
    %vm4545 = vweird.f32 %v4539
    %vm4546 = vmor %vm4544, %vm4545
    %v4547 = vsel %vm4546, %v4539, %v4543
    %v4548 = vand.u32 2147483647, %v4439
    %vm4549 = vcmp.eq.f32.partialorder %v4548, 8.507059e+37
    %v4550 = vand.u32 %v4439, 2147483648
    %v4551 = vor.u32 1.1754944e-38, %v4550
    %v4552 = vsel %vm4549, %v4551, %v4547
    %v4553 = vmul.f32 1.0, %v4552
    %v4554 = vrcp.pop %v4440
    %v4555 = vmul.f32 %v4440, %v4554
    %v4556 = vsub.f32 1.0, %v4555
    %v4557 = vmul.f32 %v4554, %v4556
    %v4558 = vadd.f32 %v4554, %v4557
    %vm4559 = vweird.f32 %v4440
    %vm4560 = vweird.f32 %v4554
    %vm4561 = vmor %vm4559, %vm4560
    %v4562 = vsel %vm4561, %v4554, %v4558
    %v4563 = vand.u32 2147483647, %v4440
    %vm4564 = vcmp.eq.f32.partialorder %v4563, 8.507059e+37
    %v4565 = vand.u32 %v4440, 2147483648
    %v4566 = vor.u32 1.1754944e-38, %v4565
    %v4567 = vsel %vm4564, %v4566, %v4562
    %v4568 = vmul.f32 1.0, %v4567
    %v4569 = vrcp.pop %v4441
    %v4570 = vmul.f32 %v4441, %v4569
    %v4571 = vsub.f32 1.0, %v4570
    %v4572 = vmul.f32 %v4569, %v4571
    %v4573 = vadd.f32 %v4569, %v4572
    %vm4574 = vweird.f32 %v4441
    %vm4575 = vweird.f32 %v4569
    %vm4576 = vmor %vm4574, %vm4575
    %v4577 = vsel %vm4576, %v4569, %v4573
    %v4578 = vand.u32 2147483647, %v4441
    %vm4579 = vcmp.eq.f32.partialorder %v4578, 8.507059e+37
    %v4580 = vand.u32 %v4441, 2147483648
    %v4581 = vor.u32 1.1754944e-38, %v4580
    %v4582 = vsel %vm4579, %v4581, %v4577
    %v4583 = vmul.f32 1.0, %v4582
    %v4584 = vrcp.pop %v4442
    %v4585 = vmul.f32 %v4442, %v4584
    %v4586 = vsub.f32 1.0, %v4585
    %v4587 = vmul.f32 %v4584, %v4586
    %v4588 = vadd.f32 %v4584, %v4587
    %vm4589 = vweird.f32 %v4442
    %vm4590 = vweird.f32 %v4584
    %vm4591 = vmor %vm4589, %vm4590
    %v4592 = vsel %vm4591, %v4584, %v4588
    %v4593 = vand.u32 2147483647, %v4442
    %vm4594 = vcmp.eq.f32.partialorder %v4593, 8.507059e+37
    %v4595 = vand.u32 %v4442, 2147483648
    %v4596 = vor.u32 1.1754944e-38, %v4595
    %v4597 = vsel %vm4594, %v4596, %v4592
    %v4598 = vmul.f32 1.0, %v4597
    %v4599 = vrcp.pop %v4443
    %v4600 = vmul.f32 %v4443, %v4599
    %v4601 = vsub.f32 1.0, %v4600
    %v4602 = vmul.f32 %v4599, %v4601
    %v4603 = vadd.f32 %v4599, %v4602
    %vm4604 = vweird.f32 %v4443
    %vm4605 = vweird.f32 %v4599
    %vm4606 = vmor %vm4604, %vm4605
    %v4607 = vsel %vm4606, %v4599, %v4603
    %v4608 = vand.u32 2147483647, %v4443
    %vm4609 = vcmp.eq.f32.partialorder %v4608, 8.507059e+37
    %v4610 = vand.u32 %v4443, 2147483648
    %v4611 = vor.u32 1.1754944e-38, %v4610
    %v4612 = vsel %vm4609, %v4611, %v4607
    %v4613 = vmul.f32 1.0, %v4612
    %v4614 = vrcp.pop %v4444
    %v4615 = vmul.f32 %v4444, %v4614
    %v4616 = vsub.f32 1.0, %v4615
    %v4617 = vmul.f32 %v4614, %v4616
    %v4618 = vadd.f32 %v4614, %v4617
    %vm4619 = vweird.f32 %v4444
    %vm4620 = vweird.f32 %v4614
    %vm4621 = vmor %vm4619, %vm4620
    %v4622 = vsel %vm4621, %v4614, %v4618
    %v4623 = vand.u32 2147483647, %v4444
    %vm4624 = vcmp.eq.f32.partialorder %v4623, 8.507059e+37
    %v4625 = vand.u32 %v4444, 2147483648
    %v4626 = vor.u32 1.1754944e-38, %v4625
    %v4627 = vsel %vm4624, %v4626, %v4622
    %v4628 = vmul.f32 1.0, %v4627
    %v4629 = vrcp.pop %v4445
    %v4630 = vmul.f32 %v4445, %v4629
    %v4631 = vsub.f32 1.0, %v4630
    %v4632 = vmul.f32 %v4629, %v4631
    %v4633 = vadd.f32 %v4629, %v4632
    %vm4634 = vweird.f32 %v4445
    %vm4635 = vweird.f32 %v4629
    %vm4636 = vmor %vm4634, %vm4635
    %v4637 = vsel %vm4636, %v4629, %v4633
    %v4638 = vand.u32 2147483647, %v4445
    %vm4639 = vcmp.eq.f32.partialorder %v4638, 8.507059e+37
    %v4640 = vand.u32 %v4445, 2147483648
    %v4641 = vor.u32 1.1754944e-38, %v4640
    %v4642 = vsel %vm4639, %v4641, %v4637
    %v4643 = vmul.f32 1.0, %v4642
    %v4644 = vrcp.pop %v4446
    %v4645 = vmul.f32 %v4446, %v4644
    %v4646 = vsub.f32 1.0, %v4645
    %v4647 = vmul.f32 %v4644, %v4646
    %v4648 = vadd.f32 %v4644, %v4647
    %vm4649 = vweird.f32 %v4446
    %vm4650 = vweird.f32 %v4644
    %vm4651 = vmor %vm4649, %vm4650
    %v4652 = vsel %vm4651, %v4644, %v4648
    %v4653 = vand.u32 2147483647, %v4446
    %vm4654 = vcmp.eq.f32.partialorder %v4653, 8.507059e+37
    %v4655 = vand.u32 %v4446, 2147483648
    %v4656 = vor.u32 1.1754944e-38, %v4655
    %v4657 = vsel %vm4654, %v4656, %v4652
    %v4658 = vmul.f32 1.0, %v4657
    %v4659 = vrcp.pop %v4447
    %v4660 = vmul.f32 %v4447, %v4659
    %v4661 = vsub.f32 1.0, %v4660
    %v4662 = vmul.f32 %v4659, %v4661
    %v4663 = vadd.f32 %v4659, %v4662
    %vm4664 = vweird.f32 %v4447
    %vm4665 = vweird.f32 %v4659
    %vm4666 = vmor %vm4664, %vm4665
    %v4667 = vsel %vm4666, %v4659, %v4663
    %v4668 = vand.u32 2147483647, %v4447
    %vm4669 = vcmp.eq.f32.partialorder %v4668, 8.507059e+37
    %v4670 = vand.u32 %v4447, 2147483648
    %v4671 = vor.u32 1.1754944e-38, %v4670
    %v4672 = vsel %vm4669, %v4671, %v4667
    %v4673 = vmul.f32 1.0, %v4672
    %v4674 = vrcp.pop %v4448
    %v4675 = vmul.f32 %v4448, %v4674
    %v4676 = vsub.f32 1.0, %v4675
    %v4677 = vmul.f32 %v4674, %v4676
    %v4678 = vadd.f32 %v4674, %v4677
    %vm4679 = vweird.f32 %v4448
    %vm4680 = vweird.f32 %v4674
    %vm4681 = vmor %vm4679, %vm4680
    %v4682 = vsel %vm4681, %v4674, %v4678
    %v4683 = vand.u32 2147483647, %v4448
    %vm4684 = vcmp.eq.f32.partialorder %v4683, 8.507059e+37
    %v4685 = vand.u32 %v4448, 2147483648
    %v4686 = vor.u32 1.1754944e-38, %v4685
    %v4687 = vsel %vm4684, %v4686, %v4682
    %v4688 = vmul.f32 1.0, %v4687
    %v4689 = vsel %vm3821, %v4034, 0.0
    %v4690 = vsel %vm3821, %v4037, 0.0
    %v4691 = vsel %vm3821, %v4040, 0.0
    %v4692 = vsel %vm3821, %v4043, 0.0
    %v4693 = vsel %vm3821, %v4046, 0.0
    %v4694 = vsel %vm3821, %v4049, 0.0
    %v4695 = vsel %vm3821, %v4052, 0.0
    %v4696 = vsel %vm3821, %v4055, 0.0
    %v4697 = vsel %vm3821, %v4058, 0.0
    %v4698 = vsel %vm3821, %v4061, 0.0
    %v4699 = vsel %vm3821, %v4064, 0.0
    %v4700 = vsel %vm3821, %v4067, 0.0
    %v4701 = vsel %vm3821, %v4070, 0.0
    %v4702 = vsel %vm3821, %v4073, 0.0
    %v4703 = vsel %vm3821, %v4076, 0.0
    %v4704 = vsel %vm3821, %v4079, 0.0
    %4705 = vadd.xlane.f32.xlu0 %v4689
    %v4706 = vpop.xlane.xlu0 %4705
    %4707 = vadd.xlane.f32.xlu0 %v4690
    %v4708 = vpop.xlane.xlu0 %4707
    %4709 = vadd.xlane.f32.xlu0 %v4691
    %v4710 = vpop.xlane.xlu0 %4709
    %4711 = vadd.xlane.f32.xlu0 %v4692
    %v4712 = vpop.xlane.xlu0 %4711
    %4713 = vadd.xlane.f32.xlu0 %v4693
    %v4714 = vpop.xlane.xlu0 %4713
    %4715 = vadd.xlane.f32.xlu0 %v4694
    %v4716 = vpop.xlane.xlu0 %4715
    %4717 = vadd.xlane.f32.xlu0 %v4695
    %v4718 = vpop.xlane.xlu0 %4717
    %4719 = vadd.xlane.f32.xlu0 %v4696
    %v4720 = vpop.xlane.xlu0 %4719
    %4721 = vadd.xlane.f32.xlu0 %v4697
    %v4722 = vpop.xlane.xlu0 %4721
    %4723 = vadd.xlane.f32.xlu0 %v4698
    %v4724 = vpop.xlane.xlu0 %4723
    %4725 = vadd.xlane.f32.xlu0 %v4699
    %v4726 = vpop.xlane.xlu0 %4725
    %4727 = vadd.xlane.f32.xlu0 %v4700
    %v4728 = vpop.xlane.xlu0 %4727
    %4729 = vadd.xlane.f32.xlu0 %v4701
    %v4730 = vpop.xlane.xlu0 %4729
    %4731 = vadd.xlane.f32.xlu0 %v4702
    %v4732 = vpop.xlane.xlu0 %4731
    %4733 = vadd.xlane.f32.xlu0 %v4703
    %v4734 = vpop.xlane.xlu0 %4733
    %4735 = vadd.xlane.f32.xlu0 %v4704
    %v4736 = vpop.xlane.xlu0 %4735
    %v4737 = vmax.f32 %v4706, 1e-30
    %v4738 = vmax.f32 %v4708, 1e-30
    %v4739 = vmax.f32 %v4710, 1e-30
    %v4740 = vmax.f32 %v4712, 1e-30
    %v4741 = vmax.f32 %v4714, 1e-30
    %v4742 = vmax.f32 %v4716, 1e-30
    %v4743 = vmax.f32 %v4718, 1e-30
    %v4744 = vmax.f32 %v4720, 1e-30
    %v4745 = vmax.f32 %v4722, 1e-30
    %v4746 = vmax.f32 %v4724, 1e-30
    %v4747 = vmax.f32 %v4726, 1e-30
    %v4748 = vmax.f32 %v4728, 1e-30
    %v4749 = vmax.f32 %v4730, 1e-30
    %v4750 = vmax.f32 %v4732, 1e-30
    %v4751 = vmax.f32 %v4734, 1e-30
    %v4752 = vmax.f32 %v4736, 1e-30
    %v4753 = vrcp.pop %v4737
    %v4754 = vmul.f32 %v4737, %v4753
    %v4755 = vsub.f32 1.0, %v4754
    %v4756 = vmul.f32 %v4753, %v4755
    %v4757 = vadd.f32 %v4753, %v4756
    %vm4758 = vweird.f32 %v4737
    %vm4759 = vweird.f32 %v4753
    %vm4760 = vmor %vm4758, %vm4759
    %v4761 = vsel %vm4760, %v4753, %v4757
    %v4762 = vand.u32 2147483647, %v4737
    %vm4763 = vcmp.eq.f32.partialorder %v4762, 8.507059e+37
    %v4764 = vand.u32 %v4737, 2147483648
    %v4765 = vor.u32 1.1754944e-38, %v4764
    %v4766 = vsel %vm4763, %v4765, %v4761
    %v4767 = vmul.f32 1.0, %v4766
    %v4768 = vrcp.pop %v4738
    %v4769 = vmul.f32 %v4738, %v4768
    %v4770 = vsub.f32 1.0, %v4769
    %v4771 = vmul.f32 %v4768, %v4770
    %v4772 = vadd.f32 %v4768, %v4771
    %vm4773 = vweird.f32 %v4738
    %vm4774 = vweird.f32 %v4768
    %vm4775 = vmor %vm4773, %vm4774
    %v4776 = vsel %vm4775, %v4768, %v4772
    %v4777 = vand.u32 2147483647, %v4738
    %vm4778 = vcmp.eq.f32.partialorder %v4777, 8.507059e+37
    %v4779 = vand.u32 %v4738, 2147483648
    %v4780 = vor.u32 1.1754944e-38, %v4779
    %v4781 = vsel %vm4778, %v4780, %v4776
    %v4782 = vmul.f32 1.0, %v4781
    %v4783 = vrcp.pop %v4739
    %v4784 = vmul.f32 %v4739, %v4783
    %v4785 = vsub.f32 1.0, %v4784
    %v4786 = vmul.f32 %v4783, %v4785
    %v4787 = vadd.f32 %v4783, %v4786
    %vm4788 = vweird.f32 %v4739
    %vm4789 = vweird.f32 %v4783
    %vm4790 = vmor %vm4788, %vm4789
    %v4791 = vsel %vm4790, %v4783, %v4787
    %v4792 = vand.u32 2147483647, %v4739
    %vm4793 = vcmp.eq.f32.partialorder %v4792, 8.507059e+37
    %v4794 = vand.u32 %v4739, 2147483648
    %v4795 = vor.u32 1.1754944e-38, %v4794
    %v4796 = vsel %vm4793, %v4795, %v4791
    %v4797 = vmul.f32 1.0, %v4796
    %v4798 = vrcp.pop %v4740
    %v4799 = vmul.f32 %v4740, %v4798
    %v4800 = vsub.f32 1.0, %v4799
    %v4801 = vmul.f32 %v4798, %v4800
    %v4802 = vadd.f32 %v4798, %v4801
    %vm4803 = vweird.f32 %v4740
    %vm4804 = vweird.f32 %v4798
    %vm4805 = vmor %vm4803, %vm4804
    %v4806 = vsel %vm4805, %v4798, %v4802
    %v4807 = vand.u32 2147483647, %v4740
    %vm4808 = vcmp.eq.f32.partialorder %v4807, 8.507059e+37
    %v4809 = vand.u32 %v4740, 2147483648
    %v4810 = vor.u32 1.1754944e-38, %v4809
    %v4811 = vsel %vm4808, %v4810, %v4806
    %v4812 = vmul.f32 1.0, %v4811
    %v4813 = vrcp.pop %v4741
    %v4814 = vmul.f32 %v4741, %v4813
    %v4815 = vsub.f32 1.0, %v4814
    %v4816 = vmul.f32 %v4813, %v4815
    %v4817 = vadd.f32 %v4813, %v4816
    %vm4818 = vweird.f32 %v4741
    %vm4819 = vweird.f32 %v4813
    %vm4820 = vmor %vm4818, %vm4819
    %v4821 = vsel %vm4820, %v4813, %v4817
    %v4822 = vand.u32 2147483647, %v4741
    %vm4823 = vcmp.eq.f32.partialorder %v4822, 8.507059e+37
    %v4824 = vand.u32 %v4741, 2147483648
    %v4825 = vor.u32 1.1754944e-38, %v4824
    %v4826 = vsel %vm4823, %v4825, %v4821
    %v4827 = vmul.f32 1.0, %v4826
    %v4828 = vrcp.pop %v4742
    %v4829 = vmul.f32 %v4742, %v4828
    %v4830 = vsub.f32 1.0, %v4829
    %v4831 = vmul.f32 %v4828, %v4830
    %v4832 = vadd.f32 %v4828, %v4831
    %vm4833 = vweird.f32 %v4742
    %vm4834 = vweird.f32 %v4828
    %vm4835 = vmor %vm4833, %vm4834
    %v4836 = vsel %vm4835, %v4828, %v4832
    %v4837 = vand.u32 2147483647, %v4742
    %vm4838 = vcmp.eq.f32.partialorder %v4837, 8.507059e+37
    %v4839 = vand.u32 %v4742, 2147483648
    %v4840 = vor.u32 1.1754944e-38, %v4839
    %v4841 = vsel %vm4838, %v4840, %v4836
    %v4842 = vmul.f32 1.0, %v4841
    %v4843 = vrcp.pop %v4743
    %v4844 = vmul.f32 %v4743, %v4843
    %v4845 = vsub.f32 1.0, %v4844
    %v4846 = vmul.f32 %v4843, %v4845
    %v4847 = vadd.f32 %v4843, %v4846
    %vm4848 = vweird.f32 %v4743
    %vm4849 = vweird.f32 %v4843
    %vm4850 = vmor %vm4848, %vm4849
    %v4851 = vsel %vm4850, %v4843, %v4847
    %v4852 = vand.u32 2147483647, %v4743
    %vm4853 = vcmp.eq.f32.partialorder %v4852, 8.507059e+37
    %v4854 = vand.u32 %v4743, 2147483648
    %v4855 = vor.u32 1.1754944e-38, %v4854
    %v4856 = vsel %vm4853, %v4855, %v4851
    %v4857 = vmul.f32 1.0, %v4856
    %v4858 = vrcp.pop %v4744
    %v4859 = vmul.f32 %v4744, %v4858
    %v4860 = vsub.f32 1.0, %v4859
    %v4861 = vmul.f32 %v4858, %v4860
    %v4862 = vadd.f32 %v4858, %v4861
    %vm4863 = vweird.f32 %v4744
    %vm4864 = vweird.f32 %v4858
    %vm4865 = vmor %vm4863, %vm4864
    %v4866 = vsel %vm4865, %v4858, %v4862
    %v4867 = vand.u32 2147483647, %v4744
    %vm4868 = vcmp.eq.f32.partialorder %v4867, 8.507059e+37
    %v4869 = vand.u32 %v4744, 2147483648
    %v4870 = vor.u32 1.1754944e-38, %v4869
    %v4871 = vsel %vm4868, %v4870, %v4866
    %v4872 = vmul.f32 1.0, %v4871
    %v4873 = vrcp.pop %v4745
    %v4874 = vmul.f32 %v4745, %v4873
    %v4875 = vsub.f32 1.0, %v4874
    %v4876 = vmul.f32 %v4873, %v4875
    %v4877 = vadd.f32 %v4873, %v4876
    %vm4878 = vweird.f32 %v4745
    %vm4879 = vweird.f32 %v4873
    %vm4880 = vmor %vm4878, %vm4879
    %v4881 = vsel %vm4880, %v4873, %v4877
    %v4882 = vand.u32 2147483647, %v4745
    %vm4883 = vcmp.eq.f32.partialorder %v4882, 8.507059e+37
    %v4884 = vand.u32 %v4745, 2147483648
    %v4885 = vor.u32 1.1754944e-38, %v4884
    %v4886 = vsel %vm4883, %v4885, %v4881
    %v4887 = vmul.f32 1.0, %v4886
    %v4888 = vrcp.pop %v4746
    %v4889 = vmul.f32 %v4746, %v4888
    %v4890 = vsub.f32 1.0, %v4889
    %v4891 = vmul.f32 %v4888, %v4890
    %v4892 = vadd.f32 %v4888, %v4891
    %vm4893 = vweird.f32 %v4746
    %vm4894 = vweird.f32 %v4888
    %vm4895 = vmor %vm4893, %vm4894
    %v4896 = vsel %vm4895, %v4888, %v4892
    %v4897 = vand.u32 2147483647, %v4746
    %vm4898 = vcmp.eq.f32.partialorder %v4897, 8.507059e+37
    %v4899 = vand.u32 %v4746, 2147483648
    %v4900 = vor.u32 1.1754944e-38, %v4899
    %v4901 = vsel %vm4898, %v4900, %v4896
    %v4902 = vmul.f32 1.0, %v4901
    %v4903 = vrcp.pop %v4747
    %v4904 = vmul.f32 %v4747, %v4903
    %v4905 = vsub.f32 1.0, %v4904
    %v4906 = vmul.f32 %v4903, %v4905
    %v4907 = vadd.f32 %v4903, %v4906
    %vm4908 = vweird.f32 %v4747
    %vm4909 = vweird.f32 %v4903
    %vm4910 = vmor %vm4908, %vm4909
    %v4911 = vsel %vm4910, %v4903, %v4907
    %v4912 = vand.u32 2147483647, %v4747
    %vm4913 = vcmp.eq.f32.partialorder %v4912, 8.507059e+37
    %v4914 = vand.u32 %v4747, 2147483648
    %v4915 = vor.u32 1.1754944e-38, %v4914
    %v4916 = vsel %vm4913, %v4915, %v4911
    %v4917 = vmul.f32 1.0, %v4916
    %v4918 = vrcp.pop %v4748
    %v4919 = vmul.f32 %v4748, %v4918
    %v4920 = vsub.f32 1.0, %v4919
    %v4921 = vmul.f32 %v4918, %v4920
    %v4922 = vadd.f32 %v4918, %v4921
    %vm4923 = vweird.f32 %v4748
    %vm4924 = vweird.f32 %v4918
    %vm4925 = vmor %vm4923, %vm4924
    %v4926 = vsel %vm4925, %v4918, %v4922
    %v4927 = vand.u32 2147483647, %v4748
    %vm4928 = vcmp.eq.f32.partialorder %v4927, 8.507059e+37
    %v4929 = vand.u32 %v4748, 2147483648
    %v4930 = vor.u32 1.1754944e-38, %v4929
    %v4931 = vsel %vm4928, %v4930, %v4926
    %v4932 = vmul.f32 1.0, %v4931
    %v4933 = vrcp.pop %v4749
    %v4934 = vmul.f32 %v4749, %v4933
    %v4935 = vsub.f32 1.0, %v4934
    %v4936 = vmul.f32 %v4933, %v4935
    %v4937 = vadd.f32 %v4933, %v4936
    %vm4938 = vweird.f32 %v4749
    %vm4939 = vweird.f32 %v4933
    %vm4940 = vmor %vm4938, %vm4939
    %v4941 = vsel %vm4940, %v4933, %v4937
    %v4942 = vand.u32 2147483647, %v4749
    %vm4943 = vcmp.eq.f32.partialorder %v4942, 8.507059e+37
    %v4944 = vand.u32 %v4749, 2147483648
    %v4945 = vor.u32 1.1754944e-38, %v4944
    %v4946 = vsel %vm4943, %v4945, %v4941
    %v4947 = vmul.f32 1.0, %v4946
    %v4948 = vrcp.pop %v4750
    %v4949 = vmul.f32 %v4750, %v4948
    %v4950 = vsub.f32 1.0, %v4949
    %v4951 = vmul.f32 %v4948, %v4950
    %v4952 = vadd.f32 %v4948, %v4951
    %vm4953 = vweird.f32 %v4750
    %vm4954 = vweird.f32 %v4948
    %vm4955 = vmor %vm4953, %vm4954
    %v4956 = vsel %vm4955, %v4948, %v4952
    %v4957 = vand.u32 2147483647, %v4750
    %vm4958 = vcmp.eq.f32.partialorder %v4957, 8.507059e+37
    %v4959 = vand.u32 %v4750, 2147483648
    %v4960 = vor.u32 1.1754944e-38, %v4959
    %v4961 = vsel %vm4958, %v4960, %v4956
    %v4962 = vmul.f32 1.0, %v4961
    %v4963 = vrcp.pop %v4751
    %v4964 = vmul.f32 %v4751, %v4963
    %v4965 = vsub.f32 1.0, %v4964
    %v4966 = vmul.f32 %v4963, %v4965
    %v4967 = vadd.f32 %v4963, %v4966
    %vm4968 = vweird.f32 %v4751
    %vm4969 = vweird.f32 %v4963
    %vm4970 = vmor %vm4968, %vm4969
    %v4971 = vsel %vm4970, %v4963, %v4967
    %v4972 = vand.u32 2147483647, %v4751
    %vm4973 = vcmp.eq.f32.partialorder %v4972, 8.507059e+37
    %v4974 = vand.u32 %v4751, 2147483648
    %v4975 = vor.u32 1.1754944e-38, %v4974
    %v4976 = vsel %vm4973, %v4975, %v4971
    %v4977 = vmul.f32 1.0, %v4976
    %v4978 = vrcp.pop %v4752
    %v4979 = vmul.f32 %v4752, %v4978
    %v4980 = vsub.f32 1.0, %v4979
    %v4981 = vmul.f32 %v4978, %v4980
    %v4982 = vadd.f32 %v4978, %v4981
    %vm4983 = vweird.f32 %v4752
    %vm4984 = vweird.f32 %v4978
    %vm4985 = vmor %vm4983, %vm4984
    %v4986 = vsel %vm4985, %v4978, %v4982
    %v4987 = vand.u32 2147483647, %v4752
    %vm4988 = vcmp.eq.f32.partialorder %v4987, 8.507059e+37
    %v4989 = vand.u32 %v4752, 2147483648
    %v4990 = vor.u32 1.1754944e-38, %v4989
    %v4991 = vsel %vm4988, %v4990, %v4986
    %v4992 = vmul.f32 1.0, %v4991
    %v4993 = vsel %vm3886, %v4034, 0.0
    %v4994 = vsel %vm3886, %v4037, 0.0
    %v4995 = vsel %vm3886, %v4040, 0.0
    %v4996 = vsel %vm3886, %v4043, 0.0
    %v4997 = vsel %vm3886, %v4046, 0.0
    %v4998 = vsel %vm3886, %v4049, 0.0
    %v4999 = vsel %vm3886, %v4052, 0.0
    %v5000 = vsel %vm3886, %v4055, 0.0
    %v5001 = vsel %vm3886, %v4058, 0.0
    %v5002 = vsel %vm3886, %v4061, 0.0
    %v5003 = vsel %vm3886, %v4064, 0.0
    %v5004 = vsel %vm3886, %v4067, 0.0
    %v5005 = vsel %vm3886, %v4070, 0.0
    %v5006 = vsel %vm3886, %v4073, 0.0
    %v5007 = vsel %vm3886, %v4076, 0.0
    %v5008 = vsel %vm3886, %v4079, 0.0
    %5009 = vadd.xlane.f32.xlu0 %v4993
    %v5010 = vpop.xlane.xlu0 %5009
    %5011 = vadd.xlane.f32.xlu0 %v4994
    %v5012 = vpop.xlane.xlu0 %5011
    %5013 = vadd.xlane.f32.xlu0 %v4995
    %v5014 = vpop.xlane.xlu0 %5013
    %5015 = vadd.xlane.f32.xlu0 %v4996
    %v5016 = vpop.xlane.xlu0 %5015
    %5017 = vadd.xlane.f32.xlu0 %v4997
    %v5018 = vpop.xlane.xlu0 %5017
    %5019 = vadd.xlane.f32.xlu0 %v4998
    %v5020 = vpop.xlane.xlu0 %5019
    %5021 = vadd.xlane.f32.xlu0 %v4999
    %v5022 = vpop.xlane.xlu0 %5021
    %5023 = vadd.xlane.f32.xlu0 %v5000
    %v5024 = vpop.xlane.xlu0 %5023
    %5025 = vadd.xlane.f32.xlu0 %v5001
    %v5026 = vpop.xlane.xlu0 %5025
    %5027 = vadd.xlane.f32.xlu0 %v5002
    %v5028 = vpop.xlane.xlu0 %5027
    %5029 = vadd.xlane.f32.xlu0 %v5003
    %v5030 = vpop.xlane.xlu0 %5029
    %5031 = vadd.xlane.f32.xlu0 %v5004
    %v5032 = vpop.xlane.xlu0 %5031
    %5033 = vadd.xlane.f32.xlu0 %v5005
    %v5034 = vpop.xlane.xlu0 %5033
    %5035 = vadd.xlane.f32.xlu0 %v5006
    %v5036 = vpop.xlane.xlu0 %5035
    %5037 = vadd.xlane.f32.xlu0 %v5007
    %v5038 = vpop.xlane.xlu0 %5037
    %5039 = vadd.xlane.f32.xlu0 %v5008
    %v5040 = vpop.xlane.xlu0 %5039
    %v5041 = vmax.f32 %v5010, 1e-30
    %v5042 = vmax.f32 %v5012, 1e-30
    %v5043 = vmax.f32 %v5014, 1e-30
    %v5044 = vmax.f32 %v5016, 1e-30
    %v5045 = vmax.f32 %v5018, 1e-30
    %v5046 = vmax.f32 %v5020, 1e-30
    %v5047 = vmax.f32 %v5022, 1e-30
    %v5048 = vmax.f32 %v5024, 1e-30
    %v5049 = vmax.f32 %v5026, 1e-30
    %v5050 = vmax.f32 %v5028, 1e-30
    %v5051 = vmax.f32 %v5030, 1e-30
    %v5052 = vmax.f32 %v5032, 1e-30
    %v5053 = vmax.f32 %v5034, 1e-30
    %v5054 = vmax.f32 %v5036, 1e-30
    %v5055 = vmax.f32 %v5038, 1e-30
    %v5056 = vmax.f32 %v5040, 1e-30
    %v5057 = vrcp.pop %v5041
    %v5058 = vmul.f32 %v5041, %v5057
    %v5059 = vsub.f32 1.0, %v5058
    %v5060 = vmul.f32 %v5057, %v5059
    %v5061 = vadd.f32 %v5057, %v5060
    %vm5062 = vweird.f32 %v5041
    %vm5063 = vweird.f32 %v5057
    %vm5064 = vmor %vm5062, %vm5063
    %v5065 = vsel %vm5064, %v5057, %v5061
    %v5066 = vand.u32 2147483647, %v5041
    %vm5067 = vcmp.eq.f32.partialorder %v5066, 8.507059e+37
    %v5068 = vand.u32 %v5041, 2147483648
    %v5069 = vor.u32 1.1754944e-38, %v5068
    %v5070 = vsel %vm5067, %v5069, %v5065
    %v5071 = vmul.f32 1.0, %v5070
    %v5072 = vrcp.pop %v5042
    %v5073 = vmul.f32 %v5042, %v5072
    %v5074 = vsub.f32 1.0, %v5073
    %v5075 = vmul.f32 %v5072, %v5074
    %v5076 = vadd.f32 %v5072, %v5075
    %vm5077 = vweird.f32 %v5042
    %vm5078 = vweird.f32 %v5072
    %vm5079 = vmor %vm5077, %vm5078
    %v5080 = vsel %vm5079, %v5072, %v5076
    %v5081 = vand.u32 2147483647, %v5042
    %vm5082 = vcmp.eq.f32.partialorder %v5081, 8.507059e+37
    %v5083 = vand.u32 %v5042, 2147483648
    %v5084 = vor.u32 1.1754944e-38, %v5083
    %v5085 = vsel %vm5082, %v5084, %v5080
    %v5086 = vmul.f32 1.0, %v5085
    %v5087 = vrcp.pop %v5043
    %v5088 = vmul.f32 %v5043, %v5087
    %v5089 = vsub.f32 1.0, %v5088
    %v5090 = vmul.f32 %v5087, %v5089
    %v5091 = vadd.f32 %v5087, %v5090
    %vm5092 = vweird.f32 %v5043
    %vm5093 = vweird.f32 %v5087
    %vm5094 = vmor %vm5092, %vm5093
    %v5095 = vsel %vm5094, %v5087, %v5091
    %v5096 = vand.u32 2147483647, %v5043
    %vm5097 = vcmp.eq.f32.partialorder %v5096, 8.507059e+37
    %v5098 = vand.u32 %v5043, 2147483648
    %v5099 = vor.u32 1.1754944e-38, %v5098
    %v5100 = vsel %vm5097, %v5099, %v5095
    %v5101 = vmul.f32 1.0, %v5100
    %v5102 = vrcp.pop %v5044
    %v5103 = vmul.f32 %v5044, %v5102
    %v5104 = vsub.f32 1.0, %v5103
    %v5105 = vmul.f32 %v5102, %v5104
    %v5106 = vadd.f32 %v5102, %v5105
    %vm5107 = vweird.f32 %v5044
    %vm5108 = vweird.f32 %v5102
    %vm5109 = vmor %vm5107, %vm5108
    %v5110 = vsel %vm5109, %v5102, %v5106
    %v5111 = vand.u32 2147483647, %v5044
    %vm5112 = vcmp.eq.f32.partialorder %v5111, 8.507059e+37
    %v5113 = vand.u32 %v5044, 2147483648
    %v5114 = vor.u32 1.1754944e-38, %v5113
    %v5115 = vsel %vm5112, %v5114, %v5110
    %v5116 = vmul.f32 1.0, %v5115
    %v5117 = vrcp.pop %v5045
    %v5118 = vmul.f32 %v5045, %v5117
    %v5119 = vsub.f32 1.0, %v5118
    %v5120 = vmul.f32 %v5117, %v5119
    %v5121 = vadd.f32 %v5117, %v5120
    %vm5122 = vweird.f32 %v5045
    %vm5123 = vweird.f32 %v5117
    %vm5124 = vmor %vm5122, %vm5123
    %v5125 = vsel %vm5124, %v5117, %v5121
    %v5126 = vand.u32 2147483647, %v5045
    %vm5127 = vcmp.eq.f32.partialorder %v5126, 8.507059e+37
    %v5128 = vand.u32 %v5045, 2147483648
    %v5129 = vor.u32 1.1754944e-38, %v5128
    %v5130 = vsel %vm5127, %v5129, %v5125
    %v5131 = vmul.f32 1.0, %v5130
    %v5132 = vrcp.pop %v5046
    %v5133 = vmul.f32 %v5046, %v5132
    %v5134 = vsub.f32 1.0, %v5133
    %v5135 = vmul.f32 %v5132, %v5134
    %v5136 = vadd.f32 %v5132, %v5135
    %vm5137 = vweird.f32 %v5046
    %vm5138 = vweird.f32 %v5132
    %vm5139 = vmor %vm5137, %vm5138
    %v5140 = vsel %vm5139, %v5132, %v5136
    %v5141 = vand.u32 2147483647, %v5046
    %vm5142 = vcmp.eq.f32.partialorder %v5141, 8.507059e+37
    %v5143 = vand.u32 %v5046, 2147483648
    %v5144 = vor.u32 1.1754944e-38, %v5143
    %v5145 = vsel %vm5142, %v5144, %v5140
    %v5146 = vmul.f32 1.0, %v5145
    %v5147 = vrcp.pop %v5047
    %v5148 = vmul.f32 %v5047, %v5147
    %v5149 = vsub.f32 1.0, %v5148
    %v5150 = vmul.f32 %v5147, %v5149
    %v5151 = vadd.f32 %v5147, %v5150
    %vm5152 = vweird.f32 %v5047
    %vm5153 = vweird.f32 %v5147
    %vm5154 = vmor %vm5152, %vm5153
    %v5155 = vsel %vm5154, %v5147, %v5151
    %v5156 = vand.u32 2147483647, %v5047
    %vm5157 = vcmp.eq.f32.partialorder %v5156, 8.507059e+37
    %v5158 = vand.u32 %v5047, 2147483648
    %v5159 = vor.u32 1.1754944e-38, %v5158
    %v5160 = vsel %vm5157, %v5159, %v5155
    %v5161 = vmul.f32 1.0, %v5160
    %v5162 = vrcp.pop %v5048
    %v5163 = vmul.f32 %v5048, %v5162
    %v5164 = vsub.f32 1.0, %v5163
    %v5165 = vmul.f32 %v5162, %v5164
    %v5166 = vadd.f32 %v5162, %v5165
    %vm5167 = vweird.f32 %v5048
    %vm5168 = vweird.f32 %v5162
    %vm5169 = vmor %vm5167, %vm5168
    %v5170 = vsel %vm5169, %v5162, %v5166
    %v5171 = vand.u32 2147483647, %v5048
    %vm5172 = vcmp.eq.f32.partialorder %v5171, 8.507059e+37
    %v5173 = vand.u32 %v5048, 2147483648
    %v5174 = vor.u32 1.1754944e-38, %v5173
    %v5175 = vsel %vm5172, %v5174, %v5170
    %v5176 = vmul.f32 1.0, %v5175
    %v5177 = vrcp.pop %v5049
    %v5178 = vmul.f32 %v5049, %v5177
    %v5179 = vsub.f32 1.0, %v5178
    %v5180 = vmul.f32 %v5177, %v5179
    %v5181 = vadd.f32 %v5177, %v5180
    %vm5182 = vweird.f32 %v5049
    %vm5183 = vweird.f32 %v5177
    %vm5184 = vmor %vm5182, %vm5183
    %v5185 = vsel %vm5184, %v5177, %v5181
    %v5186 = vand.u32 2147483647, %v5049
    %vm5187 = vcmp.eq.f32.partialorder %v5186, 8.507059e+37
    %v5188 = vand.u32 %v5049, 2147483648
    %v5189 = vor.u32 1.1754944e-38, %v5188
    %v5190 = vsel %vm5187, %v5189, %v5185
    %v5191 = vmul.f32 1.0, %v5190
    %v5192 = vrcp.pop %v5050
    %v5193 = vmul.f32 %v5050, %v5192
    %v5194 = vsub.f32 1.0, %v5193
    %v5195 = vmul.f32 %v5192, %v5194
    %v5196 = vadd.f32 %v5192, %v5195
    %vm5197 = vweird.f32 %v5050
    %vm5198 = vweird.f32 %v5192
    %vm5199 = vmor %vm5197, %vm5198
    %v5200 = vsel %vm5199, %v5192, %v5196
    %v5201 = vand.u32 2147483647, %v5050
    %vm5202 = vcmp.eq.f32.partialorder %v5201, 8.507059e+37
    %v5203 = vand.u32 %v5050, 2147483648
    %v5204 = vor.u32 1.1754944e-38, %v5203
    %v5205 = vsel %vm5202, %v5204, %v5200
    %v5206 = vmul.f32 1.0, %v5205
    %v5207 = vrcp.pop %v5051
    %v5208 = vmul.f32 %v5051, %v5207
    %v5209 = vsub.f32 1.0, %v5208
    %v5210 = vmul.f32 %v5207, %v5209
    %v5211 = vadd.f32 %v5207, %v5210
    %vm5212 = vweird.f32 %v5051
    %vm5213 = vweird.f32 %v5207
    %vm5214 = vmor %vm5212, %vm5213
    %v5215 = vsel %vm5214, %v5207, %v5211
    %v5216 = vand.u32 2147483647, %v5051
    %vm5217 = vcmp.eq.f32.partialorder %v5216, 8.507059e+37
    %v5218 = vand.u32 %v5051, 2147483648
    %v5219 = vor.u32 1.1754944e-38, %v5218
    %v5220 = vsel %vm5217, %v5219, %v5215
    %v5221 = vmul.f32 1.0, %v5220
    %v5222 = vrcp.pop %v5052
    %v5223 = vmul.f32 %v5052, %v5222
    %v5224 = vsub.f32 1.0, %v5223
    %v5225 = vmul.f32 %v5222, %v5224
    %v5226 = vadd.f32 %v5222, %v5225
    %vm5227 = vweird.f32 %v5052
    %vm5228 = vweird.f32 %v5222
    %vm5229 = vmor %vm5227, %vm5228
    %v5230 = vsel %vm5229, %v5222, %v5226
    %v5231 = vand.u32 2147483647, %v5052
    %vm5232 = vcmp.eq.f32.partialorder %v5231, 8.507059e+37
    %v5233 = vand.u32 %v5052, 2147483648
    %v5234 = vor.u32 1.1754944e-38, %v5233
    %v5235 = vsel %vm5232, %v5234, %v5230
    %v5236 = vmul.f32 1.0, %v5235
    %v5237 = vrcp.pop %v5053
    %v5238 = vmul.f32 %v5053, %v5237
    %v5239 = vsub.f32 1.0, %v5238
    %v5240 = vmul.f32 %v5237, %v5239
    %v5241 = vadd.f32 %v5237, %v5240
    %vm5242 = vweird.f32 %v5053
    %vm5243 = vweird.f32 %v5237
    %vm5244 = vmor %vm5242, %vm5243
    %v5245 = vsel %vm5244, %v5237, %v5241
    %v5246 = vand.u32 2147483647, %v5053
    %vm5247 = vcmp.eq.f32.partialorder %v5246, 8.507059e+37
    %v5248 = vand.u32 %v5053, 2147483648
    %v5249 = vor.u32 1.1754944e-38, %v5248
    %v5250 = vsel %vm5247, %v5249, %v5245
    %v5251 = vmul.f32 1.0, %v5250
    %v5252 = vrcp.pop %v5054
    %v5253 = vmul.f32 %v5054, %v5252
    %v5254 = vsub.f32 1.0, %v5253
    %v5255 = vmul.f32 %v5252, %v5254
    %v5256 = vadd.f32 %v5252, %v5255
    %vm5257 = vweird.f32 %v5054
    %vm5258 = vweird.f32 %v5252
    %vm5259 = vmor %vm5257, %vm5258
    %v5260 = vsel %vm5259, %v5252, %v5256
    %v5261 = vand.u32 2147483647, %v5054
    %vm5262 = vcmp.eq.f32.partialorder %v5261, 8.507059e+37
    %v5263 = vand.u32 %v5054, 2147483648
    %v5264 = vor.u32 1.1754944e-38, %v5263
    %v5265 = vsel %vm5262, %v5264, %v5260
    %v5266 = vmul.f32 1.0, %v5265
    %v5267 = vrcp.pop %v5055
    %v5268 = vmul.f32 %v5055, %v5267
    %v5269 = vsub.f32 1.0, %v5268
    %v5270 = vmul.f32 %v5267, %v5269
    %v5271 = vadd.f32 %v5267, %v5270
    %vm5272 = vweird.f32 %v5055
    %vm5273 = vweird.f32 %v5267
    %vm5274 = vmor %vm5272, %vm5273
    %v5275 = vsel %vm5274, %v5267, %v5271
    %v5276 = vand.u32 2147483647, %v5055
    %vm5277 = vcmp.eq.f32.partialorder %v5276, 8.507059e+37
    %v5278 = vand.u32 %v5055, 2147483648
    %v5279 = vor.u32 1.1754944e-38, %v5278
    %v5280 = vsel %vm5277, %v5279, %v5275
    %v5281 = vmul.f32 1.0, %v5280
    %v5282 = vrcp.pop %v5056
    %v5283 = vmul.f32 %v5056, %v5282
    %v5284 = vsub.f32 1.0, %v5283
    %v5285 = vmul.f32 %v5282, %v5284
    %v5286 = vadd.f32 %v5282, %v5285
    %vm5287 = vweird.f32 %v5056
    %vm5288 = vweird.f32 %v5282
    %vm5289 = vmor %vm5287, %vm5288
    %v5290 = vsel %vm5289, %v5282, %v5286
    %v5291 = vand.u32 2147483647, %v5056
    %vm5292 = vcmp.eq.f32.partialorder %v5291, 8.507059e+37
    %v5293 = vand.u32 %v5056, 2147483648
    %v5294 = vor.u32 1.1754944e-38, %v5293
    %v5295 = vsel %vm5292, %v5294, %v5290
    %v5296 = vmul.f32 1.0, %v5295
    %v5297 = vtanh.pop %v531
    %v5298 = vtanh.pop %v534
    %v5299 = vtanh.pop %v537
    %v5300 = vtanh.pop %v540
    %v5301 = vtanh.pop %v543
    %v5302 = vtanh.pop %v546
    %v5303 = vtanh.pop %v549
    %v5304 = vtanh.pop %v552
    %v5305 = vtanh.pop %v555
    %v5306 = vtanh.pop %v558
    %v5307 = vtanh.pop %v561
    %v5308 = vtanh.pop %v564
    %v5309 = vtanh.pop %v567
    %v5310 = vtanh.pop %v570
    %v5311 = vtanh.pop %v573
    %v5312 = vtanh.pop %v576
    %v5313 = vtanh.pop %v1145
    %v5314 = vtanh.pop %v1148
    %v5315 = vtanh.pop %v1151
    %v5316 = vtanh.pop %v1154
    %v5317 = vtanh.pop %v1157
    %v5318 = vtanh.pop %v1160
    %v5319 = vtanh.pop %v1163
    %v5320 = vtanh.pop %v1166
    %v5321 = vtanh.pop %v1169
    %v5322 = vtanh.pop %v1172
    %v5323 = vtanh.pop %v1175
    %v5324 = vtanh.pop %v1178
    %v5325 = vtanh.pop %v1181
    %v5326 = vtanh.pop %v1184
    %v5327 = vtanh.pop %v1187
    %v5328 = vtanh.pop %v1190
    %5329 = vmatpush.msra.mxu0 %v5312
    %5330 = vmatpush.msra.mxu0 %v5311
    %5331 = vmatpush.msra.mxu0 %v5310
    %5332 = vmatpush.msra.mxu0 %v5309
    %5333 = vmatpush.msra.mxu0 %v5308
    %5334 = vmatpush.msra.mxu0 %v5307
    %5335 = vmatpush.msra.mxu0 %v5306
    %5336 = vmatpush.msra.mxu0 %v5305
    %5337 = vmatpush.msra.mxu0 %v5304
    %5338 = vmatpush.msra.mxu0 %v5303
    %5339 = vmatpush.msra.mxu0 %v5302
    %5340 = vmatpush.msra.mxu0 %v5301
    %5341 = vmatpush.msra.mxu0 %v5300
    %5342 = vmatpush.msra.mxu0 %v5299
    %5343 = vmatpush.msra.mxu0 %v5298
    %5344 = vmatpush.msra.mxu0 %v5297
    %5345 = vmatmul.f32.gmra.mxu0 %v2735
    %v5346 = vpop.f32.mrf.mxu0
    %v5347 = vadd.f32 0.0, %v5346
    %5348 = vmatmul.f32.gmra.mxu0 %v2736
    %v5349 = vpop.f32.mrf.mxu0
    %v5350 = vadd.f32 0.0, %v5349
    %5351 = vmatmul.f32.gmra.mxu0 %v2737
    %v5352 = vpop.f32.mrf.mxu0
    %v5353 = vadd.f32 0.0, %v5352
    %5354 = vmatmul.f32.gmra.mxu0 %v2738
    %v5355 = vpop.f32.mrf.mxu0
    %v5356 = vadd.f32 0.0, %v5355
    %5357 = vmatmul.f32.gmra.mxu0 %v2739
    %v5358 = vpop.f32.mrf.mxu0
    %v5359 = vadd.f32 0.0, %v5358
    %5360 = vmatmul.f32.gmra.mxu0 %v2740
    %v5361 = vpop.f32.mrf.mxu0
    %v5362 = vadd.f32 0.0, %v5361
    %5363 = vmatmul.f32.gmra.mxu0 %v2741
    %v5364 = vpop.f32.mrf.mxu0
    %v5365 = vadd.f32 0.0, %v5364
    %5366 = vmatmul.f32.gmra.mxu0 %v2742
    %v5367 = vpop.f32.mrf.mxu0
    %v5368 = vadd.f32 0.0, %v5367
    %5369 = vmatmul.f32.gmra.mxu0 %v2743
    %v5370 = vpop.f32.mrf.mxu0
    %v5371 = vadd.f32 0.0, %v5370
    %5372 = vmatmul.f32.gmra.mxu0 %v2744
    %v5373 = vpop.f32.mrf.mxu0
    %v5374 = vadd.f32 0.0, %v5373
    %5375 = vmatmul.f32.gmra.mxu0 %v2745
    %v5376 = vpop.f32.mrf.mxu0
    %v5377 = vadd.f32 0.0, %v5376
    %5378 = vmatmul.f32.gmra.mxu0 %v2746
    %v5379 = vpop.f32.mrf.mxu0
    %v5380 = vadd.f32 0.0, %v5379
    %5381 = vmatmul.f32.gmra.mxu0 %v2747
    %v5382 = vpop.f32.mrf.mxu0
    %v5383 = vadd.f32 0.0, %v5382
    %5384 = vmatmul.f32.gmra.mxu0 %v2748
    %v5385 = vpop.f32.mrf.mxu0
    %v5386 = vadd.f32 0.0, %v5385
    %5387 = vmatmul.f32.gmra.mxu0 %v2749
    %v5388 = vpop.f32.mrf.mxu0
    %v5389 = vadd.f32 0.0, %v5388
    %5390 = vmatmul.f32.gmra.mxu0 %v2750
    %v5391 = vpop.f32.mrf.mxu0
    %v5392 = vadd.f32 0.0, %v5391
    %5393 = vmatmul.f32.gmra.mxu0 %v2751
    %v5394 = vpop.f32.mrf.mxu0
    %v5395 = vadd.f32 0.0, %v5394
    %5396 = vmatmul.f32.gmra.mxu0 %v2752
    %v5397 = vpop.f32.mrf.mxu0
    %v5398 = vadd.f32 0.0, %v5397
    %5399 = vmatmul.f32.gmra.mxu0 %v2753
    %v5400 = vpop.f32.mrf.mxu0
    %v5401 = vadd.f32 0.0, %v5400
    %5402 = vmatmul.f32.gmra.mxu0 %v2754
    %v5403 = vpop.f32.mrf.mxu0
    %v5404 = vadd.f32 0.0, %v5403
    %5405 = vmatmul.f32.gmra.mxu0 %v2755
    %v5406 = vpop.f32.mrf.mxu0
    %v5407 = vadd.f32 0.0, %v5406
    %5408 = vmatmul.f32.gmra.mxu0 %v2756
    %v5409 = vpop.f32.mrf.mxu0
    %v5410 = vadd.f32 0.0, %v5409
    %5411 = vmatmul.f32.gmra.mxu0 %v2757
    %v5412 = vpop.f32.mrf.mxu0
    %v5413 = vadd.f32 0.0, %v5412
    %5414 = vmatmul.f32.gmra.mxu0 %v2758
    %v5415 = vpop.f32.mrf.mxu0
    %v5416 = vadd.f32 0.0, %v5415
    %5417 = vmatmul.f32.gmra.mxu0 %v2759
    %v5418 = vpop.f32.mrf.mxu0
    %v5419 = vadd.f32 0.0, %v5418
    %5420 = vmatmul.f32.gmra.mxu0 %v2760
    %v5421 = vpop.f32.mrf.mxu0
    %v5422 = vadd.f32 0.0, %v5421
    %5423 = vmatmul.f32.gmra.mxu0 %v2761
    %v5424 = vpop.f32.mrf.mxu0
    %v5425 = vadd.f32 0.0, %v5424
    %5426 = vmatmul.f32.gmra.mxu0 %v2762
    %v5427 = vpop.f32.mrf.mxu0
    %v5428 = vadd.f32 0.0, %v5427
    %5429 = vmatmul.f32.gmra.mxu0 %v2763
    %v5430 = vpop.f32.mrf.mxu0
    %v5431 = vadd.f32 0.0, %v5430
    %5432 = vmatmul.f32.gmra.mxu0 %v2764
    %v5433 = vpop.f32.mrf.mxu0
    %v5434 = vadd.f32 0.0, %v5433
    %5435 = vmatmul.f32.gmra.mxu0 %v2765
    %v5436 = vpop.f32.mrf.mxu0
    %v5437 = vadd.f32 0.0, %v5436
    %5438 = vmatmul.f32.gmra.mxu0 %v2766
    %v5439 = vpop.f32.mrf.mxu0
    %v5440 = vadd.f32 0.0, %v5439
    %5441 = vdwg.mxu0
    %5442 = vmatpush.msra.mxu0 %v5328
    %5443 = vmatpush.msra.mxu0 %v5327
    %5444 = vmatpush.msra.mxu0 %v5326
    %5445 = vmatpush.msra.mxu0 %v5325
    %5446 = vmatpush.msra.mxu0 %v5324
    %5447 = vmatpush.msra.mxu0 %v5323
    %5448 = vmatpush.msra.mxu0 %v5322
    %5449 = vmatpush.msra.mxu0 %v5321
    %5450 = vmatpush.msra.mxu0 %v5320
    %5451 = vmatpush.msra.mxu0 %v5319
    %5452 = vmatpush.msra.mxu0 %v5318
    %5453 = vmatpush.msra.mxu0 %v5317
    %5454 = vmatpush.msra.mxu0 %v5316
    %5455 = vmatpush.msra.mxu0 %v5315
    %5456 = vmatpush.msra.mxu0 %v5314
    %5457 = vmatpush.msra.mxu0 %v5313
    %5458 = vmatmul.f32.gmra.mxu0 %v2735
    %v5459 = vpop.f32.mrf.mxu0
    %v5460 = vadd.f32 0.0, %v5459
    %5461 = vmatmul.f32.gmra.mxu0 %v2736
    %v5462 = vpop.f32.mrf.mxu0
    %v5463 = vadd.f32 0.0, %v5462
    %5464 = vmatmul.f32.gmra.mxu0 %v2737
    %v5465 = vpop.f32.mrf.mxu0
    %v5466 = vadd.f32 0.0, %v5465
    %5467 = vmatmul.f32.gmra.mxu0 %v2738
    %v5468 = vpop.f32.mrf.mxu0
    %v5469 = vadd.f32 0.0, %v5468
    %5470 = vmatmul.f32.gmra.mxu0 %v2739
    %v5471 = vpop.f32.mrf.mxu0
    %v5472 = vadd.f32 0.0, %v5471
    %5473 = vmatmul.f32.gmra.mxu0 %v2740
    %v5474 = vpop.f32.mrf.mxu0
    %v5475 = vadd.f32 0.0, %v5474
    %5476 = vmatmul.f32.gmra.mxu0 %v2741
    %v5477 = vpop.f32.mrf.mxu0
    %v5478 = vadd.f32 0.0, %v5477
    %5479 = vmatmul.f32.gmra.mxu0 %v2742
    %v5480 = vpop.f32.mrf.mxu0
    %v5481 = vadd.f32 0.0, %v5480
    %5482 = vmatmul.f32.gmra.mxu0 %v2743
    %v5483 = vpop.f32.mrf.mxu0
    %v5484 = vadd.f32 0.0, %v5483
    %5485 = vmatmul.f32.gmra.mxu0 %v2744
    %v5486 = vpop.f32.mrf.mxu0
    %v5487 = vadd.f32 0.0, %v5486
    %5488 = vmatmul.f32.gmra.mxu0 %v2745
    %v5489 = vpop.f32.mrf.mxu0
    %v5490 = vadd.f32 0.0, %v5489
    %5491 = vmatmul.f32.gmra.mxu0 %v2746
    %v5492 = vpop.f32.mrf.mxu0
    %v5493 = vadd.f32 0.0, %v5492
    %5494 = vmatmul.f32.gmra.mxu0 %v2747
    %v5495 = vpop.f32.mrf.mxu0
    %v5496 = vadd.f32 0.0, %v5495
    %5497 = vmatmul.f32.gmra.mxu0 %v2748
    %v5498 = vpop.f32.mrf.mxu0
    %v5499 = vadd.f32 0.0, %v5498
    %5500 = vmatmul.f32.gmra.mxu0 %v2749
    %v5501 = vpop.f32.mrf.mxu0
    %v5502 = vadd.f32 0.0, %v5501
    %5503 = vmatmul.f32.gmra.mxu0 %v2750
    %v5504 = vpop.f32.mrf.mxu0
    %v5505 = vadd.f32 0.0, %v5504
    %5506 = vmatmul.f32.gmra.mxu0 %v2751
    %v5507 = vpop.f32.mrf.mxu0
    %v5508 = vadd.f32 0.0, %v5507
    %5509 = vmatmul.f32.gmra.mxu0 %v2752
    %v5510 = vpop.f32.mrf.mxu0
    %v5511 = vadd.f32 0.0, %v5510
    %5512 = vmatmul.f32.gmra.mxu0 %v2753
    %v5513 = vpop.f32.mrf.mxu0
    %v5514 = vadd.f32 0.0, %v5513
    %5515 = vmatmul.f32.gmra.mxu0 %v2754
    %v5516 = vpop.f32.mrf.mxu0
    %v5517 = vadd.f32 0.0, %v5516
    %5518 = vmatmul.f32.gmra.mxu0 %v2755
    %v5519 = vpop.f32.mrf.mxu0
    %v5520 = vadd.f32 0.0, %v5519
    %5521 = vmatmul.f32.gmra.mxu0 %v2756
    %v5522 = vpop.f32.mrf.mxu0
    %v5523 = vadd.f32 0.0, %v5522
    %5524 = vmatmul.f32.gmra.mxu0 %v2757
    %v5525 = vpop.f32.mrf.mxu0
    %v5526 = vadd.f32 0.0, %v5525
    %5527 = vmatmul.f32.gmra.mxu0 %v2758
    %v5528 = vpop.f32.mrf.mxu0
    %v5529 = vadd.f32 0.0, %v5528
    %5530 = vmatmul.f32.gmra.mxu0 %v2759
    %v5531 = vpop.f32.mrf.mxu0
    %v5532 = vadd.f32 0.0, %v5531
    %5533 = vmatmul.f32.gmra.mxu0 %v2760
    %v5534 = vpop.f32.mrf.mxu0
    %v5535 = vadd.f32 0.0, %v5534
    %5536 = vmatmul.f32.gmra.mxu0 %v2761
    %v5537 = vpop.f32.mrf.mxu0
    %v5538 = vadd.f32 0.0, %v5537
    %5539 = vmatmul.f32.gmra.mxu0 %v2762
    %v5540 = vpop.f32.mrf.mxu0
    %v5541 = vadd.f32 0.0, %v5540
    %5542 = vmatmul.f32.gmra.mxu0 %v2763
    %v5543 = vpop.f32.mrf.mxu0
    %v5544 = vadd.f32 0.0, %v5543
    %5545 = vmatmul.f32.gmra.mxu0 %v2764
    %v5546 = vpop.f32.mrf.mxu0
    %v5547 = vadd.f32 0.0, %v5546
    %5548 = vmatmul.f32.gmra.mxu0 %v2765
    %v5549 = vpop.f32.mrf.mxu0
    %v5550 = vadd.f32 0.0, %v5549
    %5551 = vmatmul.f32.gmra.mxu0 %v2766
    %v5552 = vpop.f32.mrf.mxu0
    %v5553 = vadd.f32 0.0, %v5552
    %5554 = vdwg.mxu0
    %v5555 = vmul.f32 %v5347, %v1959
    %v5556 = vmul.f32 %v5350, %v1974
    %v5557 = vmul.f32 %v5353, %v1989
    %v5558 = vmul.f32 %v5356, %v2004
    %v5559 = vmul.f32 %v5359, %v2019
    %v5560 = vmul.f32 %v5362, %v2034
    %v5561 = vmul.f32 %v5365, %v2049
    %v5562 = vmul.f32 %v5368, %v2064
    %v5563 = vmul.f32 %v5371, %v2079
    %v5564 = vmul.f32 %v5374, %v2094
    %v5565 = vmul.f32 %v5377, %v2109
    %v5566 = vmul.f32 %v5380, %v2124
    %v5567 = vmul.f32 %v5383, %v2139
    %v5568 = vmul.f32 %v5386, %v2154
    %v5569 = vmul.f32 %v5389, %v2169
    %v5570 = vmul.f32 %v5392, %v2184
    %v5571 = vmul.f32 %v5395, %v2199
    %v5572 = vmul.f32 %v5398, %v2214
    %v5573 = vmul.f32 %v5401, %v2229
    %v5574 = vmul.f32 %v5404, %v2244
    %v5575 = vmul.f32 %v5407, %v2259
    %v5576 = vmul.f32 %v5410, %v2274
    %v5577 = vmul.f32 %v5413, %v2289
    %v5578 = vmul.f32 %v5416, %v2304
    %v5579 = vmul.f32 %v5419, %v2319
    %v5580 = vmul.f32 %v5422, %v2334
    %v5581 = vmul.f32 %v5425, %v2349
    %v5582 = vmul.f32 %v5428, %v2364
    %v5583 = vmul.f32 %v5431, %v2379
    %v5584 = vmul.f32 %v5434, %v2394
    %v5585 = vmul.f32 %v5437, %v2409
    %v5586 = vmul.f32 %v5440, %v2424
    %5587 = vadd.xlane.f32.xlu0 %v5555
    %v5588 = vpop.xlane.xlu0 %5587
    %5589 = vadd.xlane.f32.xlu0 %v5556
    %v5590 = vpop.xlane.xlu0 %5589
    %5591 = vadd.xlane.f32.xlu0 %v5557
    %v5592 = vpop.xlane.xlu0 %5591
    %5593 = vadd.xlane.f32.xlu0 %v5558
    %v5594 = vpop.xlane.xlu0 %5593
    %5595 = vadd.xlane.f32.xlu0 %v5559
    %v5596 = vpop.xlane.xlu0 %5595
    %5597 = vadd.xlane.f32.xlu0 %v5560
    %v5598 = vpop.xlane.xlu0 %5597
    %5599 = vadd.xlane.f32.xlu0 %v5561
    %v5600 = vpop.xlane.xlu0 %5599
    %5601 = vadd.xlane.f32.xlu0 %v5562
    %v5602 = vpop.xlane.xlu0 %5601
    %5603 = vadd.xlane.f32.xlu0 %v5563
    %v5604 = vpop.xlane.xlu0 %5603
    %5605 = vadd.xlane.f32.xlu0 %v5564
    %v5606 = vpop.xlane.xlu0 %5605
    %5607 = vadd.xlane.f32.xlu0 %v5565
    %v5608 = vpop.xlane.xlu0 %5607
    %5609 = vadd.xlane.f32.xlu0 %v5566
    %v5610 = vpop.xlane.xlu0 %5609
    %5611 = vadd.xlane.f32.xlu0 %v5567
    %v5612 = vpop.xlane.xlu0 %5611
    %5613 = vadd.xlane.f32.xlu0 %v5568
    %v5614 = vpop.xlane.xlu0 %5613
    %5615 = vadd.xlane.f32.xlu0 %v5569
    %v5616 = vpop.xlane.xlu0 %5615
    %5617 = vadd.xlane.f32.xlu0 %v5570
    %v5618 = vpop.xlane.xlu0 %5617
    %5619 = vadd.xlane.f32.xlu0 %v5571
    %v5620 = vpop.xlane.xlu0 %5619
    %5621 = vadd.xlane.f32.xlu0 %v5572
    %v5622 = vpop.xlane.xlu0 %5621
    %5623 = vadd.xlane.f32.xlu0 %v5573
    %v5624 = vpop.xlane.xlu0 %5623
    %5625 = vadd.xlane.f32.xlu0 %v5574
    %v5626 = vpop.xlane.xlu0 %5625
    %5627 = vadd.xlane.f32.xlu0 %v5575
    %v5628 = vpop.xlane.xlu0 %5627
    %5629 = vadd.xlane.f32.xlu0 %v5576
    %v5630 = vpop.xlane.xlu0 %5629
    %5631 = vadd.xlane.f32.xlu0 %v5577
    %v5632 = vpop.xlane.xlu0 %5631
    %5633 = vadd.xlane.f32.xlu0 %v5578
    %v5634 = vpop.xlane.xlu0 %5633
    %5635 = vadd.xlane.f32.xlu0 %v5579
    %v5636 = vpop.xlane.xlu0 %5635
    %5637 = vadd.xlane.f32.xlu0 %v5580
    %v5638 = vpop.xlane.xlu0 %5637
    %5639 = vadd.xlane.f32.xlu0 %v5581
    %v5640 = vpop.xlane.xlu0 %5639
    %5641 = vadd.xlane.f32.xlu0 %v5582
    %v5642 = vpop.xlane.xlu0 %5641
    %5643 = vadd.xlane.f32.xlu0 %v5583
    %v5644 = vpop.xlane.xlu0 %5643
    %5645 = vadd.xlane.f32.xlu0 %v5584
    %v5646 = vpop.xlane.xlu0 %5645
    %5647 = vadd.xlane.f32.xlu0 %v5585
    %v5648 = vpop.xlane.xlu0 %5647
    %5649 = vadd.xlane.f32.xlu0 %v5586
    %v5650 = vpop.xlane.xlu0 %5649
    %v5651 = vmul.f32 %v5460, %v1959
    %v5652 = vmul.f32 %v5463, %v1974
    %v5653 = vmul.f32 %v5466, %v1989
    %v5654 = vmul.f32 %v5469, %v2004
    %v5655 = vmul.f32 %v5472, %v2019
    %v5656 = vmul.f32 %v5475, %v2034
    %v5657 = vmul.f32 %v5478, %v2049
    %v5658 = vmul.f32 %v5481, %v2064
    %v5659 = vmul.f32 %v5484, %v2079
    %v5660 = vmul.f32 %v5487, %v2094
    %v5661 = vmul.f32 %v5490, %v2109
    %v5662 = vmul.f32 %v5493, %v2124
    %v5663 = vmul.f32 %v5496, %v2139
    %v5664 = vmul.f32 %v5499, %v2154
    %v5665 = vmul.f32 %v5502, %v2169
    %v5666 = vmul.f32 %v5505, %v2184
    %v5667 = vmul.f32 %v5508, %v2199
    %v5668 = vmul.f32 %v5511, %v2214
    %v5669 = vmul.f32 %v5514, %v2229
    %v5670 = vmul.f32 %v5517, %v2244
    %v5671 = vmul.f32 %v5520, %v2259
    %v5672 = vmul.f32 %v5523, %v2274
    %v5673 = vmul.f32 %v5526, %v2289
    %v5674 = vmul.f32 %v5529, %v2304
    %v5675 = vmul.f32 %v5532, %v2319
    %v5676 = vmul.f32 %v5535, %v2334
    %v5677 = vmul.f32 %v5538, %v2349
    %v5678 = vmul.f32 %v5541, %v2364
    %v5679 = vmul.f32 %v5544, %v2379
    %v5680 = vmul.f32 %v5547, %v2394
    %v5681 = vmul.f32 %v5550, %v2409
    %v5682 = vmul.f32 %v5553, %v2424
    %5683 = vadd.xlane.f32.xlu0 %v5651
    %v5684 = vpop.xlane.xlu0 %5683
    %5685 = vadd.xlane.f32.xlu0 %v5652
    %v5686 = vpop.xlane.xlu0 %5685
    %5687 = vadd.xlane.f32.xlu0 %v5653
    %v5688 = vpop.xlane.xlu0 %5687
    %5689 = vadd.xlane.f32.xlu0 %v5654
    %v5690 = vpop.xlane.xlu0 %5689
    %5691 = vadd.xlane.f32.xlu0 %v5655
    %v5692 = vpop.xlane.xlu0 %5691
    %5693 = vadd.xlane.f32.xlu0 %v5656
    %v5694 = vpop.xlane.xlu0 %5693
    %5695 = vadd.xlane.f32.xlu0 %v5657
    %v5696 = vpop.xlane.xlu0 %5695
    %5697 = vadd.xlane.f32.xlu0 %v5658
    %v5698 = vpop.xlane.xlu0 %5697
    %5699 = vadd.xlane.f32.xlu0 %v5659
    %v5700 = vpop.xlane.xlu0 %5699
    %5701 = vadd.xlane.f32.xlu0 %v5660
    %v5702 = vpop.xlane.xlu0 %5701
    %5703 = vadd.xlane.f32.xlu0 %v5661
    %v5704 = vpop.xlane.xlu0 %5703
    %5705 = vadd.xlane.f32.xlu0 %v5662
    %v5706 = vpop.xlane.xlu0 %5705
    %5707 = vadd.xlane.f32.xlu0 %v5663
    %v5708 = vpop.xlane.xlu0 %5707
    %5709 = vadd.xlane.f32.xlu0 %v5664
    %v5710 = vpop.xlane.xlu0 %5709
    %5711 = vadd.xlane.f32.xlu0 %v5665
    %v5712 = vpop.xlane.xlu0 %5711
    %5713 = vadd.xlane.f32.xlu0 %v5666
    %v5714 = vpop.xlane.xlu0 %5713
    %5715 = vadd.xlane.f32.xlu0 %v5667
    %v5716 = vpop.xlane.xlu0 %5715
    %5717 = vadd.xlane.f32.xlu0 %v5668
    %v5718 = vpop.xlane.xlu0 %5717
    %5719 = vadd.xlane.f32.xlu0 %v5669
    %v5720 = vpop.xlane.xlu0 %5719
    %5721 = vadd.xlane.f32.xlu0 %v5670
    %v5722 = vpop.xlane.xlu0 %5721
    %5723 = vadd.xlane.f32.xlu0 %v5671
    %v5724 = vpop.xlane.xlu0 %5723
    %5725 = vadd.xlane.f32.xlu0 %v5672
    %v5726 = vpop.xlane.xlu0 %5725
    %5727 = vadd.xlane.f32.xlu0 %v5673
    %v5728 = vpop.xlane.xlu0 %5727
    %5729 = vadd.xlane.f32.xlu0 %v5674
    %v5730 = vpop.xlane.xlu0 %5729
    %5731 = vadd.xlane.f32.xlu0 %v5675
    %v5732 = vpop.xlane.xlu0 %5731
    %5733 = vadd.xlane.f32.xlu0 %v5676
    %v5734 = vpop.xlane.xlu0 %5733
    %5735 = vadd.xlane.f32.xlu0 %v5677
    %v5736 = vpop.xlane.xlu0 %5735
    %5737 = vadd.xlane.f32.xlu0 %v5678
    %v5738 = vpop.xlane.xlu0 %5737
    %5739 = vadd.xlane.f32.xlu0 %v5679
    %v5740 = vpop.xlane.xlu0 %5739
    %5741 = vadd.xlane.f32.xlu0 %v5680
    %v5742 = vpop.xlane.xlu0 %5741
    %5743 = vadd.xlane.f32.xlu0 %v5681
    %v5744 = vpop.xlane.xlu0 %5743
    %5745 = vadd.xlane.f32.xlu0 %v5682
    %v5746 = vpop.xlane.xlu0 %5745
    %v5747 = vmul.f32 %v5588, 2.0
    %v5748 = vmul.f32 %v5590, 2.0
    %v5749 = vmul.f32 %v5592, 2.0
    %v5750 = vmul.f32 %v5594, 2.0
    %v5751 = vmul.f32 %v5596, 2.0
    %v5752 = vmul.f32 %v5598, 2.0
    %v5753 = vmul.f32 %v5600, 2.0
    %v5754 = vmul.f32 %v5602, 2.0
    %v5755 = vmul.f32 %v5604, 2.0
    %v5756 = vmul.f32 %v5606, 2.0
    %v5757 = vmul.f32 %v5608, 2.0
    %v5758 = vmul.f32 %v5610, 2.0
    %v5759 = vmul.f32 %v5612, 2.0
    %v5760 = vmul.f32 %v5614, 2.0
    %v5761 = vmul.f32 %v5616, 2.0
    %v5762 = vmul.f32 %v5618, 2.0
    %v5763 = vmul.f32 %v5620, 2.0
    %v5764 = vmul.f32 %v5622, 2.0
    %v5765 = vmul.f32 %v5624, 2.0
    %v5766 = vmul.f32 %v5626, 2.0
    %v5767 = vmul.f32 %v5628, 2.0
    %v5768 = vmul.f32 %v5630, 2.0
    %v5769 = vmul.f32 %v5632, 2.0
    %v5770 = vmul.f32 %v5634, 2.0
    %v5771 = vmul.f32 %v5636, 2.0
    %v5772 = vmul.f32 %v5638, 2.0
    %v5773 = vmul.f32 %v5640, 2.0
    %v5774 = vmul.f32 %v5642, 2.0
    %v5775 = vmul.f32 %v5644, 2.0
    %v5776 = vmul.f32 %v5646, 2.0
    %v5777 = vmul.f32 %v5648, 2.0
    %v5778 = vmul.f32 %v5650, 2.0
    %v5779 = vmul.f32 %v5747, %v1959
    %v5780 = vmul.f32 %v5748, %v1974
    %v5781 = vmul.f32 %v5749, %v1989
    %v5782 = vmul.f32 %v5750, %v2004
    %v5783 = vmul.f32 %v5751, %v2019
    %v5784 = vmul.f32 %v5752, %v2034
    %v5785 = vmul.f32 %v5753, %v2049
    %v5786 = vmul.f32 %v5754, %v2064
    %v5787 = vmul.f32 %v5755, %v2079
    %v5788 = vmul.f32 %v5756, %v2094
    %v5789 = vmul.f32 %v5757, %v2109
    %v5790 = vmul.f32 %v5758, %v2124
    %v5791 = vmul.f32 %v5759, %v2139
    %v5792 = vmul.f32 %v5760, %v2154
    %v5793 = vmul.f32 %v5761, %v2169
    %v5794 = vmul.f32 %v5762, %v2184
    %v5795 = vmul.f32 %v5763, %v2199
    %v5796 = vmul.f32 %v5764, %v2214
    %v5797 = vmul.f32 %v5765, %v2229
    %v5798 = vmul.f32 %v5766, %v2244
    %v5799 = vmul.f32 %v5767, %v2259
    %v5800 = vmul.f32 %v5768, %v2274
    %v5801 = vmul.f32 %v5769, %v2289
    %v5802 = vmul.f32 %v5770, %v2304
    %v5803 = vmul.f32 %v5771, %v2319
    %v5804 = vmul.f32 %v5772, %v2334
    %v5805 = vmul.f32 %v5773, %v2349
    %v5806 = vmul.f32 %v5774, %v2364
    %v5807 = vmul.f32 %v5775, %v2379
    %v5808 = vmul.f32 %v5776, %v2394
    %v5809 = vmul.f32 %v5777, %v2409
    %v5810 = vmul.f32 %v5778, %v2424
    %v5811 = vsub.f32 %v5347, %v5779
    %v5812 = vsub.f32 %v5350, %v5780
    %v5813 = vsub.f32 %v5353, %v5781
    %v5814 = vsub.f32 %v5356, %v5782
    %v5815 = vsub.f32 %v5359, %v5783
    %v5816 = vsub.f32 %v5362, %v5784
    %v5817 = vsub.f32 %v5365, %v5785
    %v5818 = vsub.f32 %v5368, %v5786
    %v5819 = vsub.f32 %v5371, %v5787
    %v5820 = vsub.f32 %v5374, %v5788
    %v5821 = vsub.f32 %v5377, %v5789
    %v5822 = vsub.f32 %v5380, %v5790
    %v5823 = vsub.f32 %v5383, %v5791
    %v5824 = vsub.f32 %v5386, %v5792
    %v5825 = vsub.f32 %v5389, %v5793
    %v5826 = vsub.f32 %v5392, %v5794
    %v5827 = vsub.f32 %v5395, %v5795
    %v5828 = vsub.f32 %v5398, %v5796
    %v5829 = vsub.f32 %v5401, %v5797
    %v5830 = vsub.f32 %v5404, %v5798
    %v5831 = vsub.f32 %v5407, %v5799
    %v5832 = vsub.f32 %v5410, %v5800
    %v5833 = vsub.f32 %v5413, %v5801
    %v5834 = vsub.f32 %v5416, %v5802
    %v5835 = vsub.f32 %v5419, %v5803
    %v5836 = vsub.f32 %v5422, %v5804
    %v5837 = vsub.f32 %v5425, %v5805
    %v5838 = vsub.f32 %v5428, %v5806
    %v5839 = vsub.f32 %v5431, %v5807
    %v5840 = vsub.f32 %v5434, %v5808
    %v5841 = vsub.f32 %v5437, %v5809
    %v5842 = vsub.f32 %v5440, %v5810
    %v5843 = vmul.f32 %v5684, 2.0
    %v5844 = vmul.f32 %v5686, 2.0
    %v5845 = vmul.f32 %v5688, 2.0
    %v5846 = vmul.f32 %v5690, 2.0
    %v5847 = vmul.f32 %v5692, 2.0
    %v5848 = vmul.f32 %v5694, 2.0
    %v5849 = vmul.f32 %v5696, 2.0
    %v5850 = vmul.f32 %v5698, 2.0
    %v5851 = vmul.f32 %v5700, 2.0
    %v5852 = vmul.f32 %v5702, 2.0
    %v5853 = vmul.f32 %v5704, 2.0
    %v5854 = vmul.f32 %v5706, 2.0
    %v5855 = vmul.f32 %v5708, 2.0
    %v5856 = vmul.f32 %v5710, 2.0
    %v5857 = vmul.f32 %v5712, 2.0
    %v5858 = vmul.f32 %v5714, 2.0
    %v5859 = vmul.f32 %v5716, 2.0
    %v5860 = vmul.f32 %v5718, 2.0
    %v5861 = vmul.f32 %v5720, 2.0
    %v5862 = vmul.f32 %v5722, 2.0
    %v5863 = vmul.f32 %v5724, 2.0
    %v5864 = vmul.f32 %v5726, 2.0
    %v5865 = vmul.f32 %v5728, 2.0
    %v5866 = vmul.f32 %v5730, 2.0
    %v5867 = vmul.f32 %v5732, 2.0
    %v5868 = vmul.f32 %v5734, 2.0
    %v5869 = vmul.f32 %v5736, 2.0
    %v5870 = vmul.f32 %v5738, 2.0
    %v5871 = vmul.f32 %v5740, 2.0
    %v5872 = vmul.f32 %v5742, 2.0
    %v5873 = vmul.f32 %v5744, 2.0
    %v5874 = vmul.f32 %v5746, 2.0
    %v5875 = vmul.f32 %v5843, %v1959
    %v5876 = vmul.f32 %v5844, %v1974
    %v5877 = vmul.f32 %v5845, %v1989
    %v5878 = vmul.f32 %v5846, %v2004
    %v5879 = vmul.f32 %v5847, %v2019
    %v5880 = vmul.f32 %v5848, %v2034
    %v5881 = vmul.f32 %v5849, %v2049
    %v5882 = vmul.f32 %v5850, %v2064
    %v5883 = vmul.f32 %v5851, %v2079
    %v5884 = vmul.f32 %v5852, %v2094
    %v5885 = vmul.f32 %v5853, %v2109
    %v5886 = vmul.f32 %v5854, %v2124
    %v5887 = vmul.f32 %v5855, %v2139
    %v5888 = vmul.f32 %v5856, %v2154
    %v5889 = vmul.f32 %v5857, %v2169
    %v5890 = vmul.f32 %v5858, %v2184
    %v5891 = vmul.f32 %v5859, %v2199
    %v5892 = vmul.f32 %v5860, %v2214
    %v5893 = vmul.f32 %v5861, %v2229
    %v5894 = vmul.f32 %v5862, %v2244
    %v5895 = vmul.f32 %v5863, %v2259
    %v5896 = vmul.f32 %v5864, %v2274
    %v5897 = vmul.f32 %v5865, %v2289
    %v5898 = vmul.f32 %v5866, %v2304
    %v5899 = vmul.f32 %v5867, %v2319
    %v5900 = vmul.f32 %v5868, %v2334
    %v5901 = vmul.f32 %v5869, %v2349
    %v5902 = vmul.f32 %v5870, %v2364
    %v5903 = vmul.f32 %v5871, %v2379
    %v5904 = vmul.f32 %v5872, %v2394
    %v5905 = vmul.f32 %v5873, %v2409
    %v5906 = vmul.f32 %v5874, %v2424
    %v5907 = vsub.f32 %v5460, %v5875
    %v5908 = vsub.f32 %v5463, %v5876
    %v5909 = vsub.f32 %v5466, %v5877
    %v5910 = vsub.f32 %v5469, %v5878
    %v5911 = vsub.f32 %v5472, %v5879
    %v5912 = vsub.f32 %v5475, %v5880
    %v5913 = vsub.f32 %v5478, %v5881
    %v5914 = vsub.f32 %v5481, %v5882
    %v5915 = vsub.f32 %v5484, %v5883
    %v5916 = vsub.f32 %v5487, %v5884
    %v5917 = vsub.f32 %v5490, %v5885
    %v5918 = vsub.f32 %v5493, %v5886
    %v5919 = vsub.f32 %v5496, %v5887
    %v5920 = vsub.f32 %v5499, %v5888
    %v5921 = vsub.f32 %v5502, %v5889
    %v5922 = vsub.f32 %v5505, %v5890
    %v5923 = vsub.f32 %v5508, %v5891
    %v5924 = vsub.f32 %v5511, %v5892
    %v5925 = vsub.f32 %v5514, %v5893
    %v5926 = vsub.f32 %v5517, %v5894
    %v5927 = vsub.f32 %v5520, %v5895
    %v5928 = vsub.f32 %v5523, %v5896
    %v5929 = vsub.f32 %v5526, %v5897
    %v5930 = vsub.f32 %v5529, %v5898
    %v5931 = vsub.f32 %v5532, %v5899
    %v5932 = vsub.f32 %v5535, %v5900
    %v5933 = vsub.f32 %v5538, %v5901
    %v5934 = vsub.f32 %v5541, %v5902
    %v5935 = vsub.f32 %v5544, %v5903
    %v5936 = vsub.f32 %v5547, %v5904
    %v5937 = vsub.f32 %v5550, %v5905
    %v5938 = vsub.f32 %v5553, %v5906
    %v5939 = vmul.f32 %v5811, %v2935
    %v5940 = vmul.f32 %v5812, %v2937
    %v5941 = vmul.f32 %v5813, %v2939
    %v5942 = vmul.f32 %v5814, %v2941
    %v5943 = vmul.f32 %v5815, %v2943
    %v5944 = vmul.f32 %v5816, %v2945
    %v5945 = vmul.f32 %v5817, %v2947
    %v5946 = vmul.f32 %v5818, %v2949
    %v5947 = vmul.f32 %v5819, %v2951
    %v5948 = vmul.f32 %v5820, %v2953
    %v5949 = vmul.f32 %v5821, %v2955
    %v5950 = vmul.f32 %v5822, %v2957
    %v5951 = vmul.f32 %v5823, %v2959
    %v5952 = vmul.f32 %v5824, %v2961
    %v5953 = vmul.f32 %v5825, %v2963
    %v5954 = vmul.f32 %v5826, %v2965
    %v5955 = vmul.f32 %v5827, %v2967
    %v5956 = vmul.f32 %v5828, %v2969
    %v5957 = vmul.f32 %v5829, %v2971
    %v5958 = vmul.f32 %v5830, %v2973
    %v5959 = vmul.f32 %v5831, %v2975
    %v5960 = vmul.f32 %v5832, %v2977
    %v5961 = vmul.f32 %v5833, %v2979
    %v5962 = vmul.f32 %v5834, %v2981
    %v5963 = vmul.f32 %v5835, %v2983
    %v5964 = vmul.f32 %v5836, %v2985
    %v5965 = vmul.f32 %v5837, %v2987
    %v5966 = vmul.f32 %v5838, %v2989
    %v5967 = vmul.f32 %v5839, %v2991
    %v5968 = vmul.f32 %v5840, %v2993
    %v5969 = vmul.f32 %v5841, %v2995
    %v5970 = vmul.f32 %v5842, %v2997
    %v5971 = vmul.f32 %v5907, %v3397
    %v5972 = vmul.f32 %v5908, %v3399
    %v5973 = vmul.f32 %v5909, %v3401
    %v5974 = vmul.f32 %v5910, %v3403
    %v5975 = vmul.f32 %v5911, %v3405
    %v5976 = vmul.f32 %v5912, %v3407
    %v5977 = vmul.f32 %v5913, %v3409
    %v5978 = vmul.f32 %v5914, %v3411
    %v5979 = vmul.f32 %v5915, %v3413
    %v5980 = vmul.f32 %v5916, %v3415
    %v5981 = vmul.f32 %v5917, %v3417
    %v5982 = vmul.f32 %v5918, %v3419
    %v5983 = vmul.f32 %v5919, %v3421
    %v5984 = vmul.f32 %v5920, %v3423
    %v5985 = vmul.f32 %v5921, %v3425
    %v5986 = vmul.f32 %v5922, %v3427
    %v5987 = vmul.f32 %v5923, %v3429
    %v5988 = vmul.f32 %v5924, %v3431
    %v5989 = vmul.f32 %v5925, %v3433
    %v5990 = vmul.f32 %v5926, %v3435
    %v5991 = vmul.f32 %v5927, %v3437
    %v5992 = vmul.f32 %v5928, %v3439
    %v5993 = vmul.f32 %v5929, %v3441
    %v5994 = vmul.f32 %v5930, %v3443
    %v5995 = vmul.f32 %v5931, %v3445
    %v5996 = vmul.f32 %v5932, %v3447
    %v5997 = vmul.f32 %v5933, %v3449
    %v5998 = vmul.f32 %v5934, %v3451
    %v5999 = vmul.f32 %v5935, %v3453
    %v6000 = vmul.f32 %v5936, %v3455
    %v6001 = vmul.f32 %v5937, %v3457
    %v6002 = vmul.f32 %v5938, %v3459
    %6003 = vmatpush.msra.mxu0 %v5954
    %6004 = vmatpush.msra.mxu0 %v5953
    %6005 = vmatpush.msra.mxu0 %v5952
    %6006 = vmatpush.msra.mxu0 %v5951
    %6007 = vmatpush.msra.mxu0 %v5950
    %6008 = vmatpush.msra.mxu0 %v5949
    %6009 = vmatpush.msra.mxu0 %v5948
    %6010 = vmatpush.msra.mxu0 %v5947
    %6011 = vmatpush.msra.mxu0 %v5946
    %6012 = vmatpush.msra.mxu0 %v5945
    %6013 = vmatpush.msra.mxu0 %v5944
    %6014 = vmatpush.msra.mxu0 %v5943
    %6015 = vmatpush.msra.mxu0 %v5942
    %6016 = vmatpush.msra.mxu0 %v5941
    %6017 = vmatpush.msra.mxu0 %v5940
    %6018 = vmatpush.msra.mxu0 %v5939
    %6019 = vmatmul.f32.gmra.mxu0 %v2541
    %v6020 = vpop.f32.mrf.mxu0
    %v6021 = vadd.f32 0.0, %v6020
    %6022 = vmatmul.f32.gmra.mxu0 %v2543
    %v6023 = vpop.f32.mrf.mxu0
    %v6024 = vadd.f32 0.0, %v6023
    %6025 = vmatmul.f32.gmra.mxu0 %v2545
    %v6026 = vpop.f32.mrf.mxu0
    %v6027 = vadd.f32 0.0, %v6026
    %6028 = vmatmul.f32.gmra.mxu0 %v2547
    %v6029 = vpop.f32.mrf.mxu0
    %v6030 = vadd.f32 0.0, %v6029
    %6031 = vmatmul.f32.gmra.mxu0 %v2549
    %v6032 = vpop.f32.mrf.mxu0
    %v6033 = vadd.f32 0.0, %v6032
    %6034 = vmatmul.f32.gmra.mxu0 %v2551
    %v6035 = vpop.f32.mrf.mxu0
    %v6036 = vadd.f32 0.0, %v6035
    %6037 = vmatmul.f32.gmra.mxu0 %v2553
    %v6038 = vpop.f32.mrf.mxu0
    %v6039 = vadd.f32 0.0, %v6038
    %6040 = vmatmul.f32.gmra.mxu0 %v2555
    %v6041 = vpop.f32.mrf.mxu0
    %v6042 = vadd.f32 0.0, %v6041
    %6043 = vmatmul.f32.gmra.mxu0 %v2557
    %v6044 = vpop.f32.mrf.mxu0
    %v6045 = vadd.f32 0.0, %v6044
    %6046 = vmatmul.f32.gmra.mxu0 %v2559
    %v6047 = vpop.f32.mrf.mxu0
    %v6048 = vadd.f32 0.0, %v6047
    %6049 = vmatmul.f32.gmra.mxu0 %v2561
    %v6050 = vpop.f32.mrf.mxu0
    %v6051 = vadd.f32 0.0, %v6050
    %6052 = vmatmul.f32.gmra.mxu0 %v2563
    %v6053 = vpop.f32.mrf.mxu0
    %v6054 = vadd.f32 0.0, %v6053
    %6055 = vmatmul.f32.gmra.mxu0 %v2565
    %v6056 = vpop.f32.mrf.mxu0
    %v6057 = vadd.f32 0.0, %v6056
    %6058 = vmatmul.f32.gmra.mxu0 %v2567
    %v6059 = vpop.f32.mrf.mxu0
    %v6060 = vadd.f32 0.0, %v6059
    %6061 = vmatmul.f32.gmra.mxu0 %v2569
    %v6062 = vpop.f32.mrf.mxu0
    %v6063 = vadd.f32 0.0, %v6062
    %6064 = vmatmul.f32.gmra.mxu0 %v2571
    %v6065 = vpop.f32.mrf.mxu0
    %v6066 = vadd.f32 0.0, %v6065
    %6067 = vdwg.mxu0
    %6068 = vmatpush.msra.mxu0 %v5970
    %6069 = vmatpush.msra.mxu0 %v5969
    %6070 = vmatpush.msra.mxu0 %v5968
    %6071 = vmatpush.msra.mxu0 %v5967
    %6072 = vmatpush.msra.mxu0 %v5966
    %6073 = vmatpush.msra.mxu0 %v5965
    %6074 = vmatpush.msra.mxu0 %v5964
    %6075 = vmatpush.msra.mxu0 %v5963
    %6076 = vmatpush.msra.mxu0 %v5962
    %6077 = vmatpush.msra.mxu0 %v5961
    %6078 = vmatpush.msra.mxu0 %v5960
    %6079 = vmatpush.msra.mxu0 %v5959
    %6080 = vmatpush.msra.mxu0 %v5958
    %6081 = vmatpush.msra.mxu0 %v5957
    %6082 = vmatpush.msra.mxu0 %v5956
    %6083 = vmatpush.msra.mxu0 %v5955
    %6084 = vmatmul.f32.gmra.mxu0 %v2542
    %v6085 = vpop.f32.mrf.mxu0
    %v6086 = vadd.f32 %v6021, %v6085
    %6087 = vmatmul.f32.gmra.mxu0 %v2544
    %v6088 = vpop.f32.mrf.mxu0
    %v6089 = vadd.f32 %v6024, %v6088
    %6090 = vmatmul.f32.gmra.mxu0 %v2546
    %v6091 = vpop.f32.mrf.mxu0
    %v6092 = vadd.f32 %v6027, %v6091
    %6093 = vmatmul.f32.gmra.mxu0 %v2548
    %v6094 = vpop.f32.mrf.mxu0
    %v6095 = vadd.f32 %v6030, %v6094
    %6096 = vmatmul.f32.gmra.mxu0 %v2550
    %v6097 = vpop.f32.mrf.mxu0
    %v6098 = vadd.f32 %v6033, %v6097
    %6099 = vmatmul.f32.gmra.mxu0 %v2552
    %v6100 = vpop.f32.mrf.mxu0
    %v6101 = vadd.f32 %v6036, %v6100
    %6102 = vmatmul.f32.gmra.mxu0 %v2554
    %v6103 = vpop.f32.mrf.mxu0
    %v6104 = vadd.f32 %v6039, %v6103
    %6105 = vmatmul.f32.gmra.mxu0 %v2556
    %v6106 = vpop.f32.mrf.mxu0
    %v6107 = vadd.f32 %v6042, %v6106
    %6108 = vmatmul.f32.gmra.mxu0 %v2558
    %v6109 = vpop.f32.mrf.mxu0
    %v6110 = vadd.f32 %v6045, %v6109
    %6111 = vmatmul.f32.gmra.mxu0 %v2560
    %v6112 = vpop.f32.mrf.mxu0
    %v6113 = vadd.f32 %v6048, %v6112
    %6114 = vmatmul.f32.gmra.mxu0 %v2562
    %v6115 = vpop.f32.mrf.mxu0
    %v6116 = vadd.f32 %v6051, %v6115
    %6117 = vmatmul.f32.gmra.mxu0 %v2564
    %v6118 = vpop.f32.mrf.mxu0
    %v6119 = vadd.f32 %v6054, %v6118
    %6120 = vmatmul.f32.gmra.mxu0 %v2566
    %v6121 = vpop.f32.mrf.mxu0
    %v6122 = vadd.f32 %v6057, %v6121
    %6123 = vmatmul.f32.gmra.mxu0 %v2568
    %v6124 = vpop.f32.mrf.mxu0
    %v6125 = vadd.f32 %v6060, %v6124
    %6126 = vmatmul.f32.gmra.mxu0 %v2570
    %v6127 = vpop.f32.mrf.mxu0
    %v6128 = vadd.f32 %v6063, %v6127
    %6129 = vmatmul.f32.gmra.mxu0 %v2572
    %v6130 = vpop.f32.mrf.mxu0
    %v6131 = vadd.f32 %v6066, %v6130
    %6132 = vdwg.mxu0
    %6133 = vmatpush.msra.mxu0 %v5986
    %6134 = vmatpush.msra.mxu0 %v5985
    %6135 = vmatpush.msra.mxu0 %v5984
    %6136 = vmatpush.msra.mxu0 %v5983
    %6137 = vmatpush.msra.mxu0 %v5982
    %6138 = vmatpush.msra.mxu0 %v5981
    %6139 = vmatpush.msra.mxu0 %v5980
    %6140 = vmatpush.msra.mxu0 %v5979
    %6141 = vmatpush.msra.mxu0 %v5978
    %6142 = vmatpush.msra.mxu0 %v5977
    %6143 = vmatpush.msra.mxu0 %v5976
    %6144 = vmatpush.msra.mxu0 %v5975
    %6145 = vmatpush.msra.mxu0 %v5974
    %6146 = vmatpush.msra.mxu0 %v5973
    %6147 = vmatpush.msra.mxu0 %v5972
    %6148 = vmatpush.msra.mxu0 %v5971
    %6149 = vmatmul.f32.gmra.mxu0 %v2541
    %v6150 = vpop.f32.mrf.mxu0
    %v6151 = vadd.f32 0.0, %v6150
    %6152 = vmatmul.f32.gmra.mxu0 %v2543
    %v6153 = vpop.f32.mrf.mxu0
    %v6154 = vadd.f32 0.0, %v6153
    %6155 = vmatmul.f32.gmra.mxu0 %v2545
    %v6156 = vpop.f32.mrf.mxu0
    %v6157 = vadd.f32 0.0, %v6156
    %6158 = vmatmul.f32.gmra.mxu0 %v2547
    %v6159 = vpop.f32.mrf.mxu0
    %v6160 = vadd.f32 0.0, %v6159
    %6161 = vmatmul.f32.gmra.mxu0 %v2549
    %v6162 = vpop.f32.mrf.mxu0
    %v6163 = vadd.f32 0.0, %v6162
    %6164 = vmatmul.f32.gmra.mxu0 %v2551
    %v6165 = vpop.f32.mrf.mxu0
    %v6166 = vadd.f32 0.0, %v6165
    %6167 = vmatmul.f32.gmra.mxu0 %v2553
    %v6168 = vpop.f32.mrf.mxu0
    %v6169 = vadd.f32 0.0, %v6168
    %6170 = vmatmul.f32.gmra.mxu0 %v2555
    %v6171 = vpop.f32.mrf.mxu0
    %v6172 = vadd.f32 0.0, %v6171
    %6173 = vmatmul.f32.gmra.mxu0 %v2557
    %v6174 = vpop.f32.mrf.mxu0
    %v6175 = vadd.f32 0.0, %v6174
    %6176 = vmatmul.f32.gmra.mxu0 %v2559
    %v6177 = vpop.f32.mrf.mxu0
    %v6178 = vadd.f32 0.0, %v6177
    %6179 = vmatmul.f32.gmra.mxu0 %v2561
    %v6180 = vpop.f32.mrf.mxu0
    %v6181 = vadd.f32 0.0, %v6180
    %6182 = vmatmul.f32.gmra.mxu0 %v2563
    %v6183 = vpop.f32.mrf.mxu0
    %v6184 = vadd.f32 0.0, %v6183
    %6185 = vmatmul.f32.gmra.mxu0 %v2565
    %v6186 = vpop.f32.mrf.mxu0
    %v6187 = vadd.f32 0.0, %v6186
    %6188 = vmatmul.f32.gmra.mxu0 %v2567
    %v6189 = vpop.f32.mrf.mxu0
    %v6190 = vadd.f32 0.0, %v6189
    %6191 = vmatmul.f32.gmra.mxu0 %v2569
    %v6192 = vpop.f32.mrf.mxu0
    %v6193 = vadd.f32 0.0, %v6192
    %6194 = vmatmul.f32.gmra.mxu0 %v2571
    %v6195 = vpop.f32.mrf.mxu0
    %v6196 = vadd.f32 0.0, %v6195
    %6197 = vdwg.mxu0
    %6198 = vmatpush.msra.mxu0 %v6002
    %6199 = vmatpush.msra.mxu0 %v6001
    %6200 = vmatpush.msra.mxu0 %v6000
    %6201 = vmatpush.msra.mxu0 %v5999
    %6202 = vmatpush.msra.mxu0 %v5998
    %6203 = vmatpush.msra.mxu0 %v5997
    %6204 = vmatpush.msra.mxu0 %v5996
    %6205 = vmatpush.msra.mxu0 %v5995
    %6206 = vmatpush.msra.mxu0 %v5994
    %6207 = vmatpush.msra.mxu0 %v5993
    %6208 = vmatpush.msra.mxu0 %v5992
    %6209 = vmatpush.msra.mxu0 %v5991
    %6210 = vmatpush.msra.mxu0 %v5990
    %6211 = vmatpush.msra.mxu0 %v5989
    %6212 = vmatpush.msra.mxu0 %v5988
    %6213 = vmatpush.msra.mxu0 %v5987
    %6214 = vmatmul.f32.gmra.mxu0 %v2542
    %v6215 = vpop.f32.mrf.mxu0
    %v6216 = vadd.f32 %v6151, %v6215
    %6217 = vmatmul.f32.gmra.mxu0 %v2544
    %v6218 = vpop.f32.mrf.mxu0
    %v6219 = vadd.f32 %v6154, %v6218
    %6220 = vmatmul.f32.gmra.mxu0 %v2546
    %v6221 = vpop.f32.mrf.mxu0
    %v6222 = vadd.f32 %v6157, %v6221
    %6223 = vmatmul.f32.gmra.mxu0 %v2548
    %v6224 = vpop.f32.mrf.mxu0
    %v6225 = vadd.f32 %v6160, %v6224
    %6226 = vmatmul.f32.gmra.mxu0 %v2550
    %v6227 = vpop.f32.mrf.mxu0
    %v6228 = vadd.f32 %v6163, %v6227
    %6229 = vmatmul.f32.gmra.mxu0 %v2552
    %v6230 = vpop.f32.mrf.mxu0
    %v6231 = vadd.f32 %v6166, %v6230
    %6232 = vmatmul.f32.gmra.mxu0 %v2554
    %v6233 = vpop.f32.mrf.mxu0
    %v6234 = vadd.f32 %v6169, %v6233
    %6235 = vmatmul.f32.gmra.mxu0 %v2556
    %v6236 = vpop.f32.mrf.mxu0
    %v6237 = vadd.f32 %v6172, %v6236
    %6238 = vmatmul.f32.gmra.mxu0 %v2558
    %v6239 = vpop.f32.mrf.mxu0
    %v6240 = vadd.f32 %v6175, %v6239
    %6241 = vmatmul.f32.gmra.mxu0 %v2560
    %v6242 = vpop.f32.mrf.mxu0
    %v6243 = vadd.f32 %v6178, %v6242
    %6244 = vmatmul.f32.gmra.mxu0 %v2562
    %v6245 = vpop.f32.mrf.mxu0
    %v6246 = vadd.f32 %v6181, %v6245
    %6247 = vmatmul.f32.gmra.mxu0 %v2564
    %v6248 = vpop.f32.mrf.mxu0
    %v6249 = vadd.f32 %v6184, %v6248
    %6250 = vmatmul.f32.gmra.mxu0 %v2566
    %v6251 = vpop.f32.mrf.mxu0
    %v6252 = vadd.f32 %v6187, %v6251
    %6253 = vmatmul.f32.gmra.mxu0 %v2568
    %v6254 = vpop.f32.mrf.mxu0
    %v6255 = vadd.f32 %v6190, %v6254
    %6256 = vmatmul.f32.gmra.mxu0 %v2570
    %v6257 = vpop.f32.mrf.mxu0
    %v6258 = vadd.f32 %v6193, %v6257
    %6259 = vmatmul.f32.gmra.mxu0 %v2572
    %v6260 = vpop.f32.mrf.mxu0
    %v6261 = vadd.f32 %v6196, %v6260
    %6262 = vdwg.mxu0
    %v6263 = vmul.f32 %v6086, %v4159
    %v6264 = vmul.f32 %v6089, %v4174
    %v6265 = vmul.f32 %v6092, %v4189
    %v6266 = vmul.f32 %v6095, %v4204
    %v6267 = vmul.f32 %v6098, %v4219
    %v6268 = vmul.f32 %v6101, %v4234
    %v6269 = vmul.f32 %v6104, %v4249
    %v6270 = vmul.f32 %v6107, %v4264
    %v6271 = vmul.f32 %v6110, %v4279
    %v6272 = vmul.f32 %v6113, %v4294
    %v6273 = vmul.f32 %v6116, %v4309
    %v6274 = vmul.f32 %v6119, %v4324
    %v6275 = vmul.f32 %v6122, %v4339
    %v6276 = vmul.f32 %v6125, %v4354
    %v6277 = vmul.f32 %v6128, %v4369
    %v6278 = vmul.f32 %v6131, %v4384
    %v6279 = vtanh.pop %v6263
    %v6280 = vtanh.pop %v6264
    %v6281 = vtanh.pop %v6265
    %v6282 = vtanh.pop %v6266
    %v6283 = vtanh.pop %v6267
    %v6284 = vtanh.pop %v6268
    %v6285 = vtanh.pop %v6269
    %v6286 = vtanh.pop %v6270
    %v6287 = vtanh.pop %v6271
    %v6288 = vtanh.pop %v6272
    %v6289 = vtanh.pop %v6273
    %v6290 = vtanh.pop %v6274
    %v6291 = vtanh.pop %v6275
    %v6292 = vtanh.pop %v6276
    %v6293 = vtanh.pop %v6277
    %v6294 = vtanh.pop %v6278
    %v6295 = vmul.f32 %v6216, %v4767
    %v6296 = vmul.f32 %v6219, %v4782
    %v6297 = vmul.f32 %v6222, %v4797
    %v6298 = vmul.f32 %v6225, %v4812
    %v6299 = vmul.f32 %v6228, %v4827
    %v6300 = vmul.f32 %v6231, %v4842
    %v6301 = vmul.f32 %v6234, %v4857
    %v6302 = vmul.f32 %v6237, %v4872
    %v6303 = vmul.f32 %v6240, %v4887
    %v6304 = vmul.f32 %v6243, %v4902
    %v6305 = vmul.f32 %v6246, %v4917
    %v6306 = vmul.f32 %v6249, %v4932
    %v6307 = vmul.f32 %v6252, %v4947
    %v6308 = vmul.f32 %v6255, %v4962
    %v6309 = vmul.f32 %v6258, %v4977
    %v6310 = vmul.f32 %v6261, %v4992
    %v6311 = vtanh.pop %v6295
    %v6312 = vtanh.pop %v6296
    %v6313 = vtanh.pop %v6297
    %v6314 = vtanh.pop %v6298
    %v6315 = vtanh.pop %v6299
    %v6316 = vtanh.pop %v6300
    %v6317 = vtanh.pop %v6301
    %v6318 = vtanh.pop %v6302
    %v6319 = vtanh.pop %v6303
    %v6320 = vtanh.pop %v6304
    %v6321 = vtanh.pop %v6305
    %v6322 = vtanh.pop %v6306
    %v6323 = vtanh.pop %v6307
    %v6324 = vtanh.pop %v6308
    %v6325 = vtanh.pop %v6309
    %v6326 = vtanh.pop %v6310
    %6327 = vmatpush.msra.mxu0 %v6294
    %6328 = vmatpush.msra.mxu0 %v6293
    %6329 = vmatpush.msra.mxu0 %v6292
    %6330 = vmatpush.msra.mxu0 %v6291
    %6331 = vmatpush.msra.mxu0 %v6290
    %6332 = vmatpush.msra.mxu0 %v6289
    %6333 = vmatpush.msra.mxu0 %v6288
    %6334 = vmatpush.msra.mxu0 %v6287
    %6335 = vmatpush.msra.mxu0 %v6286
    %6336 = vmatpush.msra.mxu0 %v6285
    %6337 = vmatpush.msra.mxu0 %v6284
    %6338 = vmatpush.msra.mxu0 %v6283
    %6339 = vmatpush.msra.mxu0 %v6282
    %6340 = vmatpush.msra.mxu0 %v6281
    %6341 = vmatpush.msra.mxu0 %v6280
    %6342 = vmatpush.msra.mxu0 %v6279
    %6343 = vmatmul.f32.gmra.mxu0 %v2735
    %v6344 = vpop.f32.mrf.mxu0
    %v6345 = vadd.f32 0.0, %v6344
    %6346 = vmatmul.f32.gmra.mxu0 %v2736
    %v6347 = vpop.f32.mrf.mxu0
    %v6348 = vadd.f32 0.0, %v6347
    %6349 = vmatmul.f32.gmra.mxu0 %v2737
    %v6350 = vpop.f32.mrf.mxu0
    %v6351 = vadd.f32 0.0, %v6350
    %6352 = vmatmul.f32.gmra.mxu0 %v2738
    %v6353 = vpop.f32.mrf.mxu0
    %v6354 = vadd.f32 0.0, %v6353
    %6355 = vmatmul.f32.gmra.mxu0 %v2739
    %v6356 = vpop.f32.mrf.mxu0
    %v6357 = vadd.f32 0.0, %v6356
    %6358 = vmatmul.f32.gmra.mxu0 %v2740
    %v6359 = vpop.f32.mrf.mxu0
    %v6360 = vadd.f32 0.0, %v6359
    %6361 = vmatmul.f32.gmra.mxu0 %v2741
    %v6362 = vpop.f32.mrf.mxu0
    %v6363 = vadd.f32 0.0, %v6362
    %6364 = vmatmul.f32.gmra.mxu0 %v2742
    %v6365 = vpop.f32.mrf.mxu0
    %v6366 = vadd.f32 0.0, %v6365
    %6367 = vmatmul.f32.gmra.mxu0 %v2743
    %v6368 = vpop.f32.mrf.mxu0
    %v6369 = vadd.f32 0.0, %v6368
    %6370 = vmatmul.f32.gmra.mxu0 %v2744
    %v6371 = vpop.f32.mrf.mxu0
    %v6372 = vadd.f32 0.0, %v6371
    %6373 = vmatmul.f32.gmra.mxu0 %v2745
    %v6374 = vpop.f32.mrf.mxu0
    %v6375 = vadd.f32 0.0, %v6374
    %6376 = vmatmul.f32.gmra.mxu0 %v2746
    %v6377 = vpop.f32.mrf.mxu0
    %v6378 = vadd.f32 0.0, %v6377
    %6379 = vmatmul.f32.gmra.mxu0 %v2747
    %v6380 = vpop.f32.mrf.mxu0
    %v6381 = vadd.f32 0.0, %v6380
    %6382 = vmatmul.f32.gmra.mxu0 %v2748
    %v6383 = vpop.f32.mrf.mxu0
    %v6384 = vadd.f32 0.0, %v6383
    %6385 = vmatmul.f32.gmra.mxu0 %v2749
    %v6386 = vpop.f32.mrf.mxu0
    %v6387 = vadd.f32 0.0, %v6386
    %6388 = vmatmul.f32.gmra.mxu0 %v2750
    %v6389 = vpop.f32.mrf.mxu0
    %v6390 = vadd.f32 0.0, %v6389
    %6391 = vmatmul.f32.gmra.mxu0 %v2751
    %v6392 = vpop.f32.mrf.mxu0
    %v6393 = vadd.f32 0.0, %v6392
    %6394 = vmatmul.f32.gmra.mxu0 %v2752
    %v6395 = vpop.f32.mrf.mxu0
    %v6396 = vadd.f32 0.0, %v6395
    %6397 = vmatmul.f32.gmra.mxu0 %v2753
    %v6398 = vpop.f32.mrf.mxu0
    %v6399 = vadd.f32 0.0, %v6398
    %6400 = vmatmul.f32.gmra.mxu0 %v2754
    %v6401 = vpop.f32.mrf.mxu0
    %v6402 = vadd.f32 0.0, %v6401
    %6403 = vmatmul.f32.gmra.mxu0 %v2755
    %v6404 = vpop.f32.mrf.mxu0
    %v6405 = vadd.f32 0.0, %v6404
    %6406 = vmatmul.f32.gmra.mxu0 %v2756
    %v6407 = vpop.f32.mrf.mxu0
    %v6408 = vadd.f32 0.0, %v6407
    %6409 = vmatmul.f32.gmra.mxu0 %v2757
    %v6410 = vpop.f32.mrf.mxu0
    %v6411 = vadd.f32 0.0, %v6410
    %6412 = vmatmul.f32.gmra.mxu0 %v2758
    %v6413 = vpop.f32.mrf.mxu0
    %v6414 = vadd.f32 0.0, %v6413
    %6415 = vmatmul.f32.gmra.mxu0 %v2759
    %v6416 = vpop.f32.mrf.mxu0
    %v6417 = vadd.f32 0.0, %v6416
    %6418 = vmatmul.f32.gmra.mxu0 %v2760
    %v6419 = vpop.f32.mrf.mxu0
    %v6420 = vadd.f32 0.0, %v6419
    %6421 = vmatmul.f32.gmra.mxu0 %v2761
    %v6422 = vpop.f32.mrf.mxu0
    %v6423 = vadd.f32 0.0, %v6422
    %6424 = vmatmul.f32.gmra.mxu0 %v2762
    %v6425 = vpop.f32.mrf.mxu0
    %v6426 = vadd.f32 0.0, %v6425
    %6427 = vmatmul.f32.gmra.mxu0 %v2763
    %v6428 = vpop.f32.mrf.mxu0
    %v6429 = vadd.f32 0.0, %v6428
    %6430 = vmatmul.f32.gmra.mxu0 %v2764
    %v6431 = vpop.f32.mrf.mxu0
    %v6432 = vadd.f32 0.0, %v6431
    %6433 = vmatmul.f32.gmra.mxu0 %v2765
    %v6434 = vpop.f32.mrf.mxu0
    %v6435 = vadd.f32 0.0, %v6434
    %6436 = vmatmul.f32.gmra.mxu0 %v2766
    %v6437 = vpop.f32.mrf.mxu0
    %v6438 = vadd.f32 0.0, %v6437
    %6439 = vdwg.mxu0
    %6440 = vmatpush.msra.mxu0 %v6326
    %6441 = vmatpush.msra.mxu0 %v6325
    %6442 = vmatpush.msra.mxu0 %v6324
    %6443 = vmatpush.msra.mxu0 %v6323
    %6444 = vmatpush.msra.mxu0 %v6322
    %6445 = vmatpush.msra.mxu0 %v6321
    %6446 = vmatpush.msra.mxu0 %v6320
    %6447 = vmatpush.msra.mxu0 %v6319
    %6448 = vmatpush.msra.mxu0 %v6318
    %6449 = vmatpush.msra.mxu0 %v6317
    %6450 = vmatpush.msra.mxu0 %v6316
    %6451 = vmatpush.msra.mxu0 %v6315
    %6452 = vmatpush.msra.mxu0 %v6314
    %6453 = vmatpush.msra.mxu0 %v6313
    %6454 = vmatpush.msra.mxu0 %v6312
    %6455 = vmatpush.msra.mxu0 %v6311
    %6456 = vmatmul.f32.gmra.mxu0 %v2735
    %v6457 = vpop.f32.mrf.mxu0
    %v6458 = vadd.f32 0.0, %v6457
    %6459 = vmatmul.f32.gmra.mxu0 %v2736
    %v6460 = vpop.f32.mrf.mxu0
    %v6461 = vadd.f32 0.0, %v6460
    %6462 = vmatmul.f32.gmra.mxu0 %v2737
    %v6463 = vpop.f32.mrf.mxu0
    %v6464 = vadd.f32 0.0, %v6463
    %6465 = vmatmul.f32.gmra.mxu0 %v2738
    %v6466 = vpop.f32.mrf.mxu0
    %v6467 = vadd.f32 0.0, %v6466
    %6468 = vmatmul.f32.gmra.mxu0 %v2739
    %v6469 = vpop.f32.mrf.mxu0
    %v6470 = vadd.f32 0.0, %v6469
    %6471 = vmatmul.f32.gmra.mxu0 %v2740
    %v6472 = vpop.f32.mrf.mxu0
    %v6473 = vadd.f32 0.0, %v6472
    %6474 = vmatmul.f32.gmra.mxu0 %v2741
    %v6475 = vpop.f32.mrf.mxu0
    %v6476 = vadd.f32 0.0, %v6475
    %6477 = vmatmul.f32.gmra.mxu0 %v2742
    %v6478 = vpop.f32.mrf.mxu0
    %v6479 = vadd.f32 0.0, %v6478
    %6480 = vmatmul.f32.gmra.mxu0 %v2743
    %v6481 = vpop.f32.mrf.mxu0
    %v6482 = vadd.f32 0.0, %v6481
    %6483 = vmatmul.f32.gmra.mxu0 %v2744
    %v6484 = vpop.f32.mrf.mxu0
    %v6485 = vadd.f32 0.0, %v6484
    %6486 = vmatmul.f32.gmra.mxu0 %v2745
    %v6487 = vpop.f32.mrf.mxu0
    %v6488 = vadd.f32 0.0, %v6487
    %6489 = vmatmul.f32.gmra.mxu0 %v2746
    %v6490 = vpop.f32.mrf.mxu0
    %v6491 = vadd.f32 0.0, %v6490
    %6492 = vmatmul.f32.gmra.mxu0 %v2747
    %v6493 = vpop.f32.mrf.mxu0
    %v6494 = vadd.f32 0.0, %v6493
    %6495 = vmatmul.f32.gmra.mxu0 %v2748
    %v6496 = vpop.f32.mrf.mxu0
    %v6497 = vadd.f32 0.0, %v6496
    %6498 = vmatmul.f32.gmra.mxu0 %v2749
    %v6499 = vpop.f32.mrf.mxu0
    %v6500 = vadd.f32 0.0, %v6499
    %6501 = vmatmul.f32.gmra.mxu0 %v2750
    %v6502 = vpop.f32.mrf.mxu0
    %v6503 = vadd.f32 0.0, %v6502
    %6504 = vmatmul.f32.gmra.mxu0 %v2751
    %v6505 = vpop.f32.mrf.mxu0
    %v6506 = vadd.f32 0.0, %v6505
    %6507 = vmatmul.f32.gmra.mxu0 %v2752
    %v6508 = vpop.f32.mrf.mxu0
    %v6509 = vadd.f32 0.0, %v6508
    %6510 = vmatmul.f32.gmra.mxu0 %v2753
    %v6511 = vpop.f32.mrf.mxu0
    %v6512 = vadd.f32 0.0, %v6511
    %6513 = vmatmul.f32.gmra.mxu0 %v2754
    %v6514 = vpop.f32.mrf.mxu0
    %v6515 = vadd.f32 0.0, %v6514
    %6516 = vmatmul.f32.gmra.mxu0 %v2755
    %v6517 = vpop.f32.mrf.mxu0
    %v6518 = vadd.f32 0.0, %v6517
    %6519 = vmatmul.f32.gmra.mxu0 %v2756
    %v6520 = vpop.f32.mrf.mxu0
    %v6521 = vadd.f32 0.0, %v6520
    %6522 = vmatmul.f32.gmra.mxu0 %v2757
    %v6523 = vpop.f32.mrf.mxu0
    %v6524 = vadd.f32 0.0, %v6523
    %6525 = vmatmul.f32.gmra.mxu0 %v2758
    %v6526 = vpop.f32.mrf.mxu0
    %v6527 = vadd.f32 0.0, %v6526
    %6528 = vmatmul.f32.gmra.mxu0 %v2759
    %v6529 = vpop.f32.mrf.mxu0
    %v6530 = vadd.f32 0.0, %v6529
    %6531 = vmatmul.f32.gmra.mxu0 %v2760
    %v6532 = vpop.f32.mrf.mxu0
    %v6533 = vadd.f32 0.0, %v6532
    %6534 = vmatmul.f32.gmra.mxu0 %v2761
    %v6535 = vpop.f32.mrf.mxu0
    %v6536 = vadd.f32 0.0, %v6535
    %6537 = vmatmul.f32.gmra.mxu0 %v2762
    %v6538 = vpop.f32.mrf.mxu0
    %v6539 = vadd.f32 0.0, %v6538
    %6540 = vmatmul.f32.gmra.mxu0 %v2763
    %v6541 = vpop.f32.mrf.mxu0
    %v6542 = vadd.f32 0.0, %v6541
    %6543 = vmatmul.f32.gmra.mxu0 %v2764
    %v6544 = vpop.f32.mrf.mxu0
    %v6545 = vadd.f32 0.0, %v6544
    %6546 = vmatmul.f32.gmra.mxu0 %v2765
    %v6547 = vpop.f32.mrf.mxu0
    %v6548 = vadd.f32 0.0, %v6547
    %6549 = vmatmul.f32.gmra.mxu0 %v2766
    %v6550 = vpop.f32.mrf.mxu0
    %v6551 = vadd.f32 0.0, %v6550
    %6552 = vdwg.mxu0
    %v6553 = vmul.f32 %v6345, %v1959
    %v6554 = vmul.f32 %v6348, %v1974
    %v6555 = vmul.f32 %v6351, %v1989
    %v6556 = vmul.f32 %v6354, %v2004
    %v6557 = vmul.f32 %v6357, %v2019
    %v6558 = vmul.f32 %v6360, %v2034
    %v6559 = vmul.f32 %v6363, %v2049
    %v6560 = vmul.f32 %v6366, %v2064
    %v6561 = vmul.f32 %v6369, %v2079
    %v6562 = vmul.f32 %v6372, %v2094
    %v6563 = vmul.f32 %v6375, %v2109
    %v6564 = vmul.f32 %v6378, %v2124
    %v6565 = vmul.f32 %v6381, %v2139
    %v6566 = vmul.f32 %v6384, %v2154
    %v6567 = vmul.f32 %v6387, %v2169
    %v6568 = vmul.f32 %v6390, %v2184
    %v6569 = vmul.f32 %v6393, %v2199
    %v6570 = vmul.f32 %v6396, %v2214
    %v6571 = vmul.f32 %v6399, %v2229
    %v6572 = vmul.f32 %v6402, %v2244
    %v6573 = vmul.f32 %v6405, %v2259
    %v6574 = vmul.f32 %v6408, %v2274
    %v6575 = vmul.f32 %v6411, %v2289
    %v6576 = vmul.f32 %v6414, %v2304
    %v6577 = vmul.f32 %v6417, %v2319
    %v6578 = vmul.f32 %v6420, %v2334
    %v6579 = vmul.f32 %v6423, %v2349
    %v6580 = vmul.f32 %v6426, %v2364
    %v6581 = vmul.f32 %v6429, %v2379
    %v6582 = vmul.f32 %v6432, %v2394
    %v6583 = vmul.f32 %v6435, %v2409
    %v6584 = vmul.f32 %v6438, %v2424
    %6585 = vadd.xlane.f32.xlu0 %v6553
    %v6586 = vpop.xlane.xlu0 %6585
    %6587 = vadd.xlane.f32.xlu0 %v6554
    %v6588 = vpop.xlane.xlu0 %6587
    %6589 = vadd.xlane.f32.xlu0 %v6555
    %v6590 = vpop.xlane.xlu0 %6589
    %6591 = vadd.xlane.f32.xlu0 %v6556
    %v6592 = vpop.xlane.xlu0 %6591
    %6593 = vadd.xlane.f32.xlu0 %v6557
    %v6594 = vpop.xlane.xlu0 %6593
    %6595 = vadd.xlane.f32.xlu0 %v6558
    %v6596 = vpop.xlane.xlu0 %6595
    %6597 = vadd.xlane.f32.xlu0 %v6559
    %v6598 = vpop.xlane.xlu0 %6597
    %6599 = vadd.xlane.f32.xlu0 %v6560
    %v6600 = vpop.xlane.xlu0 %6599
    %6601 = vadd.xlane.f32.xlu0 %v6561
    %v6602 = vpop.xlane.xlu0 %6601
    %6603 = vadd.xlane.f32.xlu0 %v6562
    %v6604 = vpop.xlane.xlu0 %6603
    %6605 = vadd.xlane.f32.xlu0 %v6563
    %v6606 = vpop.xlane.xlu0 %6605
    %6607 = vadd.xlane.f32.xlu0 %v6564
    %v6608 = vpop.xlane.xlu0 %6607
    %6609 = vadd.xlane.f32.xlu0 %v6565
    %v6610 = vpop.xlane.xlu0 %6609
    %6611 = vadd.xlane.f32.xlu0 %v6566
    %v6612 = vpop.xlane.xlu0 %6611
    %6613 = vadd.xlane.f32.xlu0 %v6567
    %v6614 = vpop.xlane.xlu0 %6613
    %6615 = vadd.xlane.f32.xlu0 %v6568
    %v6616 = vpop.xlane.xlu0 %6615
    %6617 = vadd.xlane.f32.xlu0 %v6569
    %v6618 = vpop.xlane.xlu0 %6617
    %6619 = vadd.xlane.f32.xlu0 %v6570
    %v6620 = vpop.xlane.xlu0 %6619
    %6621 = vadd.xlane.f32.xlu0 %v6571
    %v6622 = vpop.xlane.xlu0 %6621
    %6623 = vadd.xlane.f32.xlu0 %v6572
    %v6624 = vpop.xlane.xlu0 %6623
    %6625 = vadd.xlane.f32.xlu0 %v6573
    %v6626 = vpop.xlane.xlu0 %6625
    %6627 = vadd.xlane.f32.xlu0 %v6574
    %v6628 = vpop.xlane.xlu0 %6627
    %6629 = vadd.xlane.f32.xlu0 %v6575
    %v6630 = vpop.xlane.xlu0 %6629
    %6631 = vadd.xlane.f32.xlu0 %v6576
    %v6632 = vpop.xlane.xlu0 %6631
    %6633 = vadd.xlane.f32.xlu0 %v6577
    %v6634 = vpop.xlane.xlu0 %6633
    %6635 = vadd.xlane.f32.xlu0 %v6578
    %v6636 = vpop.xlane.xlu0 %6635
    %6637 = vadd.xlane.f32.xlu0 %v6579
    %v6638 = vpop.xlane.xlu0 %6637
    %6639 = vadd.xlane.f32.xlu0 %v6580
    %v6640 = vpop.xlane.xlu0 %6639
    %6641 = vadd.xlane.f32.xlu0 %v6581
    %v6642 = vpop.xlane.xlu0 %6641
    %6643 = vadd.xlane.f32.xlu0 %v6582
    %v6644 = vpop.xlane.xlu0 %6643
    %6645 = vadd.xlane.f32.xlu0 %v6583
    %v6646 = vpop.xlane.xlu0 %6645
    %6647 = vadd.xlane.f32.xlu0 %v6584
    %v6648 = vpop.xlane.xlu0 %6647
    %v6649 = vmul.f32 %v6458, %v1959
    %v6650 = vmul.f32 %v6461, %v1974
    %v6651 = vmul.f32 %v6464, %v1989
    %v6652 = vmul.f32 %v6467, %v2004
    %v6653 = vmul.f32 %v6470, %v2019
    %v6654 = vmul.f32 %v6473, %v2034
    %v6655 = vmul.f32 %v6476, %v2049
    %v6656 = vmul.f32 %v6479, %v2064
    %v6657 = vmul.f32 %v6482, %v2079
    %v6658 = vmul.f32 %v6485, %v2094
    %v6659 = vmul.f32 %v6488, %v2109
    %v6660 = vmul.f32 %v6491, %v2124
    %v6661 = vmul.f32 %v6494, %v2139
    %v6662 = vmul.f32 %v6497, %v2154
    %v6663 = vmul.f32 %v6500, %v2169
    %v6664 = vmul.f32 %v6503, %v2184
    %v6665 = vmul.f32 %v6506, %v2199
    %v6666 = vmul.f32 %v6509, %v2214
    %v6667 = vmul.f32 %v6512, %v2229
    %v6668 = vmul.f32 %v6515, %v2244
    %v6669 = vmul.f32 %v6518, %v2259
    %v6670 = vmul.f32 %v6521, %v2274
    %v6671 = vmul.f32 %v6524, %v2289
    %v6672 = vmul.f32 %v6527, %v2304
    %v6673 = vmul.f32 %v6530, %v2319
    %v6674 = vmul.f32 %v6533, %v2334
    %v6675 = vmul.f32 %v6536, %v2349
    %v6676 = vmul.f32 %v6539, %v2364
    %v6677 = vmul.f32 %v6542, %v2379
    %v6678 = vmul.f32 %v6545, %v2394
    %v6679 = vmul.f32 %v6548, %v2409
    %v6680 = vmul.f32 %v6551, %v2424
    %6681 = vadd.xlane.f32.xlu0 %v6649
    %v6682 = vpop.xlane.xlu0 %6681
    %6683 = vadd.xlane.f32.xlu0 %v6650
    %v6684 = vpop.xlane.xlu0 %6683
    %6685 = vadd.xlane.f32.xlu0 %v6651
    %v6686 = vpop.xlane.xlu0 %6685
    %6687 = vadd.xlane.f32.xlu0 %v6652
    %v6688 = vpop.xlane.xlu0 %6687
    %6689 = vadd.xlane.f32.xlu0 %v6653
    %v6690 = vpop.xlane.xlu0 %6689
    %6691 = vadd.xlane.f32.xlu0 %v6654
    %v6692 = vpop.xlane.xlu0 %6691
    %6693 = vadd.xlane.f32.xlu0 %v6655
    %v6694 = vpop.xlane.xlu0 %6693
    %6695 = vadd.xlane.f32.xlu0 %v6656
    %v6696 = vpop.xlane.xlu0 %6695
    %6697 = vadd.xlane.f32.xlu0 %v6657
    %v6698 = vpop.xlane.xlu0 %6697
    %6699 = vadd.xlane.f32.xlu0 %v6658
    %v6700 = vpop.xlane.xlu0 %6699
    %6701 = vadd.xlane.f32.xlu0 %v6659
    %v6702 = vpop.xlane.xlu0 %6701
    %6703 = vadd.xlane.f32.xlu0 %v6660
    %v6704 = vpop.xlane.xlu0 %6703
    %6705 = vadd.xlane.f32.xlu0 %v6661
    %v6706 = vpop.xlane.xlu0 %6705
    %6707 = vadd.xlane.f32.xlu0 %v6662
    %v6708 = vpop.xlane.xlu0 %6707
    %6709 = vadd.xlane.f32.xlu0 %v6663
    %v6710 = vpop.xlane.xlu0 %6709
    %6711 = vadd.xlane.f32.xlu0 %v6664
    %v6712 = vpop.xlane.xlu0 %6711
    %6713 = vadd.xlane.f32.xlu0 %v6665
    %v6714 = vpop.xlane.xlu0 %6713
    %6715 = vadd.xlane.f32.xlu0 %v6666
    %v6716 = vpop.xlane.xlu0 %6715
    %6717 = vadd.xlane.f32.xlu0 %v6667
    %v6718 = vpop.xlane.xlu0 %6717
    %6719 = vadd.xlane.f32.xlu0 %v6668
    %v6720 = vpop.xlane.xlu0 %6719
    %6721 = vadd.xlane.f32.xlu0 %v6669
    %v6722 = vpop.xlane.xlu0 %6721
    %6723 = vadd.xlane.f32.xlu0 %v6670
    %v6724 = vpop.xlane.xlu0 %6723
    %6725 = vadd.xlane.f32.xlu0 %v6671
    %v6726 = vpop.xlane.xlu0 %6725
    %6727 = vadd.xlane.f32.xlu0 %v6672
    %v6728 = vpop.xlane.xlu0 %6727
    %6729 = vadd.xlane.f32.xlu0 %v6673
    %v6730 = vpop.xlane.xlu0 %6729
    %6731 = vadd.xlane.f32.xlu0 %v6674
    %v6732 = vpop.xlane.xlu0 %6731
    %6733 = vadd.xlane.f32.xlu0 %v6675
    %v6734 = vpop.xlane.xlu0 %6733
    %6735 = vadd.xlane.f32.xlu0 %v6676
    %v6736 = vpop.xlane.xlu0 %6735
    %6737 = vadd.xlane.f32.xlu0 %v6677
    %v6738 = vpop.xlane.xlu0 %6737
    %6739 = vadd.xlane.f32.xlu0 %v6678
    %v6740 = vpop.xlane.xlu0 %6739
    %6741 = vadd.xlane.f32.xlu0 %v6679
    %v6742 = vpop.xlane.xlu0 %6741
    %6743 = vadd.xlane.f32.xlu0 %v6680
    %v6744 = vpop.xlane.xlu0 %6743
    %v6745 = vmul.f32 %v6586, 2.0
    %v6746 = vmul.f32 %v6588, 2.0
    %v6747 = vmul.f32 %v6590, 2.0
    %v6748 = vmul.f32 %v6592, 2.0
    %v6749 = vmul.f32 %v6594, 2.0
    %v6750 = vmul.f32 %v6596, 2.0
    %v6751 = vmul.f32 %v6598, 2.0
    %v6752 = vmul.f32 %v6600, 2.0
    %v6753 = vmul.f32 %v6602, 2.0
    %v6754 = vmul.f32 %v6604, 2.0
    %v6755 = vmul.f32 %v6606, 2.0
    %v6756 = vmul.f32 %v6608, 2.0
    %v6757 = vmul.f32 %v6610, 2.0
    %v6758 = vmul.f32 %v6612, 2.0
    %v6759 = vmul.f32 %v6614, 2.0
    %v6760 = vmul.f32 %v6616, 2.0
    %v6761 = vmul.f32 %v6618, 2.0
    %v6762 = vmul.f32 %v6620, 2.0
    %v6763 = vmul.f32 %v6622, 2.0
    %v6764 = vmul.f32 %v6624, 2.0
    %v6765 = vmul.f32 %v6626, 2.0
    %v6766 = vmul.f32 %v6628, 2.0
    %v6767 = vmul.f32 %v6630, 2.0
    %v6768 = vmul.f32 %v6632, 2.0
    %v6769 = vmul.f32 %v6634, 2.0
    %v6770 = vmul.f32 %v6636, 2.0
    %v6771 = vmul.f32 %v6638, 2.0
    %v6772 = vmul.f32 %v6640, 2.0
    %v6773 = vmul.f32 %v6642, 2.0
    %v6774 = vmul.f32 %v6644, 2.0
    %v6775 = vmul.f32 %v6646, 2.0
    %v6776 = vmul.f32 %v6648, 2.0
    %v6777 = vmul.f32 %v6745, %v1959
    %v6778 = vmul.f32 %v6746, %v1974
    %v6779 = vmul.f32 %v6747, %v1989
    %v6780 = vmul.f32 %v6748, %v2004
    %v6781 = vmul.f32 %v6749, %v2019
    %v6782 = vmul.f32 %v6750, %v2034
    %v6783 = vmul.f32 %v6751, %v2049
    %v6784 = vmul.f32 %v6752, %v2064
    %v6785 = vmul.f32 %v6753, %v2079
    %v6786 = vmul.f32 %v6754, %v2094
    %v6787 = vmul.f32 %v6755, %v2109
    %v6788 = vmul.f32 %v6756, %v2124
    %v6789 = vmul.f32 %v6757, %v2139
    %v6790 = vmul.f32 %v6758, %v2154
    %v6791 = vmul.f32 %v6759, %v2169
    %v6792 = vmul.f32 %v6760, %v2184
    %v6793 = vmul.f32 %v6761, %v2199
    %v6794 = vmul.f32 %v6762, %v2214
    %v6795 = vmul.f32 %v6763, %v2229
    %v6796 = vmul.f32 %v6764, %v2244
    %v6797 = vmul.f32 %v6765, %v2259
    %v6798 = vmul.f32 %v6766, %v2274
    %v6799 = vmul.f32 %v6767, %v2289
    %v6800 = vmul.f32 %v6768, %v2304
    %v6801 = vmul.f32 %v6769, %v2319
    %v6802 = vmul.f32 %v6770, %v2334
    %v6803 = vmul.f32 %v6771, %v2349
    %v6804 = vmul.f32 %v6772, %v2364
    %v6805 = vmul.f32 %v6773, %v2379
    %v6806 = vmul.f32 %v6774, %v2394
    %v6807 = vmul.f32 %v6775, %v2409
    %v6808 = vmul.f32 %v6776, %v2424
    %v6809 = vsub.f32 %v6345, %v6777
    %v6810 = vsub.f32 %v6348, %v6778
    %v6811 = vsub.f32 %v6351, %v6779
    %v6812 = vsub.f32 %v6354, %v6780
    %v6813 = vsub.f32 %v6357, %v6781
    %v6814 = vsub.f32 %v6360, %v6782
    %v6815 = vsub.f32 %v6363, %v6783
    %v6816 = vsub.f32 %v6366, %v6784
    %v6817 = vsub.f32 %v6369, %v6785
    %v6818 = vsub.f32 %v6372, %v6786
    %v6819 = vsub.f32 %v6375, %v6787
    %v6820 = vsub.f32 %v6378, %v6788
    %v6821 = vsub.f32 %v6381, %v6789
    %v6822 = vsub.f32 %v6384, %v6790
    %v6823 = vsub.f32 %v6387, %v6791
    %v6824 = vsub.f32 %v6390, %v6792
    %v6825 = vsub.f32 %v6393, %v6793
    %v6826 = vsub.f32 %v6396, %v6794
    %v6827 = vsub.f32 %v6399, %v6795
    %v6828 = vsub.f32 %v6402, %v6796
    %v6829 = vsub.f32 %v6405, %v6797
    %v6830 = vsub.f32 %v6408, %v6798
    %v6831 = vsub.f32 %v6411, %v6799
    %v6832 = vsub.f32 %v6414, %v6800
    %v6833 = vsub.f32 %v6417, %v6801
    %v6834 = vsub.f32 %v6420, %v6802
    %v6835 = vsub.f32 %v6423, %v6803
    %v6836 = vsub.f32 %v6426, %v6804
    %v6837 = vsub.f32 %v6429, %v6805
    %v6838 = vsub.f32 %v6432, %v6806
    %v6839 = vsub.f32 %v6435, %v6807
    %v6840 = vsub.f32 %v6438, %v6808
    %v6841 = vmul.f32 %v6682, 2.0
    %v6842 = vmul.f32 %v6684, 2.0
    %v6843 = vmul.f32 %v6686, 2.0
    %v6844 = vmul.f32 %v6688, 2.0
    %v6845 = vmul.f32 %v6690, 2.0
    %v6846 = vmul.f32 %v6692, 2.0
    %v6847 = vmul.f32 %v6694, 2.0
    %v6848 = vmul.f32 %v6696, 2.0
    %v6849 = vmul.f32 %v6698, 2.0
    %v6850 = vmul.f32 %v6700, 2.0
    %v6851 = vmul.f32 %v6702, 2.0
    %v6852 = vmul.f32 %v6704, 2.0
    %v6853 = vmul.f32 %v6706, 2.0
    %v6854 = vmul.f32 %v6708, 2.0
    %v6855 = vmul.f32 %v6710, 2.0
    %v6856 = vmul.f32 %v6712, 2.0
    %v6857 = vmul.f32 %v6714, 2.0
    %v6858 = vmul.f32 %v6716, 2.0
    %v6859 = vmul.f32 %v6718, 2.0
    %v6860 = vmul.f32 %v6720, 2.0
    %v6861 = vmul.f32 %v6722, 2.0
    %v6862 = vmul.f32 %v6724, 2.0
    %v6863 = vmul.f32 %v6726, 2.0
    %v6864 = vmul.f32 %v6728, 2.0
    %v6865 = vmul.f32 %v6730, 2.0
    %v6866 = vmul.f32 %v6732, 2.0
    %v6867 = vmul.f32 %v6734, 2.0
    %v6868 = vmul.f32 %v6736, 2.0
    %v6869 = vmul.f32 %v6738, 2.0
    %v6870 = vmul.f32 %v6740, 2.0
    %v6871 = vmul.f32 %v6742, 2.0
    %v6872 = vmul.f32 %v6744, 2.0
    %v6873 = vmul.f32 %v6841, %v1959
    %v6874 = vmul.f32 %v6842, %v1974
    %v6875 = vmul.f32 %v6843, %v1989
    %v6876 = vmul.f32 %v6844, %v2004
    %v6877 = vmul.f32 %v6845, %v2019
    %v6878 = vmul.f32 %v6846, %v2034
    %v6879 = vmul.f32 %v6847, %v2049
    %v6880 = vmul.f32 %v6848, %v2064
    %v6881 = vmul.f32 %v6849, %v2079
    %v6882 = vmul.f32 %v6850, %v2094
    %v6883 = vmul.f32 %v6851, %v2109
    %v6884 = vmul.f32 %v6852, %v2124
    %v6885 = vmul.f32 %v6853, %v2139
    %v6886 = vmul.f32 %v6854, %v2154
    %v6887 = vmul.f32 %v6855, %v2169
    %v6888 = vmul.f32 %v6856, %v2184
    %v6889 = vmul.f32 %v6857, %v2199
    %v6890 = vmul.f32 %v6858, %v2214
    %v6891 = vmul.f32 %v6859, %v2229
    %v6892 = vmul.f32 %v6860, %v2244
    %v6893 = vmul.f32 %v6861, %v2259
    %v6894 = vmul.f32 %v6862, %v2274
    %v6895 = vmul.f32 %v6863, %v2289
    %v6896 = vmul.f32 %v6864, %v2304
    %v6897 = vmul.f32 %v6865, %v2319
    %v6898 = vmul.f32 %v6866, %v2334
    %v6899 = vmul.f32 %v6867, %v2349
    %v6900 = vmul.f32 %v6868, %v2364
    %v6901 = vmul.f32 %v6869, %v2379
    %v6902 = vmul.f32 %v6870, %v2394
    %v6903 = vmul.f32 %v6871, %v2409
    %v6904 = vmul.f32 %v6872, %v2424
    %v6905 = vsub.f32 %v6458, %v6873
    %v6906 = vsub.f32 %v6461, %v6874
    %v6907 = vsub.f32 %v6464, %v6875
    %v6908 = vsub.f32 %v6467, %v6876
    %v6909 = vsub.f32 %v6470, %v6877
    %v6910 = vsub.f32 %v6473, %v6878
    %v6911 = vsub.f32 %v6476, %v6879
    %v6912 = vsub.f32 %v6479, %v6880
    %v6913 = vsub.f32 %v6482, %v6881
    %v6914 = vsub.f32 %v6485, %v6882
    %v6915 = vsub.f32 %v6488, %v6883
    %v6916 = vsub.f32 %v6491, %v6884
    %v6917 = vsub.f32 %v6494, %v6885
    %v6918 = vsub.f32 %v6497, %v6886
    %v6919 = vsub.f32 %v6500, %v6887
    %v6920 = vsub.f32 %v6503, %v6888
    %v6921 = vsub.f32 %v6506, %v6889
    %v6922 = vsub.f32 %v6509, %v6890
    %v6923 = vsub.f32 %v6512, %v6891
    %v6924 = vsub.f32 %v6515, %v6892
    %v6925 = vsub.f32 %v6518, %v6893
    %v6926 = vsub.f32 %v6521, %v6894
    %v6927 = vsub.f32 %v6524, %v6895
    %v6928 = vsub.f32 %v6527, %v6896
    %v6929 = vsub.f32 %v6530, %v6897
    %v6930 = vsub.f32 %v6533, %v6898
    %v6931 = vsub.f32 %v6536, %v6899
    %v6932 = vsub.f32 %v6539, %v6900
    %v6933 = vsub.f32 %v6542, %v6901
    %v6934 = vsub.f32 %v6545, %v6902
    %v6935 = vsub.f32 %v6548, %v6903
    %v6936 = vsub.f32 %v6551, %v6904
    %v6937 = vmul.f32 %v6809, %v3166
    %v6938 = vmul.f32 %v6810, %v3168
    %v6939 = vmul.f32 %v6811, %v3170
    %v6940 = vmul.f32 %v6812, %v3172
    %v6941 = vmul.f32 %v6813, %v3174
    %v6942 = vmul.f32 %v6814, %v3176
    %v6943 = vmul.f32 %v6815, %v3178
    %v6944 = vmul.f32 %v6816, %v3180
    %v6945 = vmul.f32 %v6817, %v3182
    %v6946 = vmul.f32 %v6818, %v3184
    %v6947 = vmul.f32 %v6819, %v3186
    %v6948 = vmul.f32 %v6820, %v3188
    %v6949 = vmul.f32 %v6821, %v3190
    %v6950 = vmul.f32 %v6822, %v3192
    %v6951 = vmul.f32 %v6823, %v3194
    %v6952 = vmul.f32 %v6824, %v3196
    %v6953 = vmul.f32 %v6825, %v3198
    %v6954 = vmul.f32 %v6826, %v3200
    %v6955 = vmul.f32 %v6827, %v3202
    %v6956 = vmul.f32 %v6828, %v3204
    %v6957 = vmul.f32 %v6829, %v3206
    %v6958 = vmul.f32 %v6830, %v3208
    %v6959 = vmul.f32 %v6831, %v3210
    %v6960 = vmul.f32 %v6832, %v3212
    %v6961 = vmul.f32 %v6833, %v3214
    %v6962 = vmul.f32 %v6834, %v3216
    %v6963 = vmul.f32 %v6835, %v3218
    %v6964 = vmul.f32 %v6836, %v3220
    %v6965 = vmul.f32 %v6837, %v3222
    %v6966 = vmul.f32 %v6838, %v3224
    %v6967 = vmul.f32 %v6839, %v3226
    %v6968 = vmul.f32 %v6840, %v3228
    %v6969 = vmul.f32 %v6905, %v3628
    %v6970 = vmul.f32 %v6906, %v3630
    %v6971 = vmul.f32 %v6907, %v3632
    %v6972 = vmul.f32 %v6908, %v3634
    %v6973 = vmul.f32 %v6909, %v3636
    %v6974 = vmul.f32 %v6910, %v3638
    %v6975 = vmul.f32 %v6911, %v3640
    %v6976 = vmul.f32 %v6912, %v3642
    %v6977 = vmul.f32 %v6913, %v3644
    %v6978 = vmul.f32 %v6914, %v3646
    %v6979 = vmul.f32 %v6915, %v3648
    %v6980 = vmul.f32 %v6916, %v3650
    %v6981 = vmul.f32 %v6917, %v3652
    %v6982 = vmul.f32 %v6918, %v3654
    %v6983 = vmul.f32 %v6919, %v3656
    %v6984 = vmul.f32 %v6920, %v3658
    %v6985 = vmul.f32 %v6921, %v3660
    %v6986 = vmul.f32 %v6922, %v3662
    %v6987 = vmul.f32 %v6923, %v3664
    %v6988 = vmul.f32 %v6924, %v3666
    %v6989 = vmul.f32 %v6925, %v3668
    %v6990 = vmul.f32 %v6926, %v3670
    %v6991 = vmul.f32 %v6927, %v3672
    %v6992 = vmul.f32 %v6928, %v3674
    %v6993 = vmul.f32 %v6929, %v3676
    %v6994 = vmul.f32 %v6930, %v3678
    %v6995 = vmul.f32 %v6931, %v3680
    %v6996 = vmul.f32 %v6932, %v3682
    %v6997 = vmul.f32 %v6933, %v3684
    %v6998 = vmul.f32 %v6934, %v3686
    %v6999 = vmul.f32 %v6935, %v3688
    %v7000 = vmul.f32 %v6936, %v3690
    %7001 = vmatpush.msra.mxu0 %v6952
    %7002 = vmatpush.msra.mxu0 %v6951
    %7003 = vmatpush.msra.mxu0 %v6950
    %7004 = vmatpush.msra.mxu0 %v6949
    %7005 = vmatpush.msra.mxu0 %v6948
    %7006 = vmatpush.msra.mxu0 %v6947
    %7007 = vmatpush.msra.mxu0 %v6946
    %7008 = vmatpush.msra.mxu0 %v6945
    %7009 = vmatpush.msra.mxu0 %v6944
    %7010 = vmatpush.msra.mxu0 %v6943
    %7011 = vmatpush.msra.mxu0 %v6942
    %7012 = vmatpush.msra.mxu0 %v6941
    %7013 = vmatpush.msra.mxu0 %v6940
    %7014 = vmatpush.msra.mxu0 %v6939
    %7015 = vmatpush.msra.mxu0 %v6938
    %7016 = vmatpush.msra.mxu0 %v6937
    %7017 = vmatmul.f32.gmra.mxu0 %v2541
    %v7018 = vpop.f32.mrf.mxu0
    %v7019 = vadd.f32 0.0, %v7018
    %7020 = vmatmul.f32.gmra.mxu0 %v2543
    %v7021 = vpop.f32.mrf.mxu0
    %v7022 = vadd.f32 0.0, %v7021
    %7023 = vmatmul.f32.gmra.mxu0 %v2545
    %v7024 = vpop.f32.mrf.mxu0
    %v7025 = vadd.f32 0.0, %v7024
    %7026 = vmatmul.f32.gmra.mxu0 %v2547
    %v7027 = vpop.f32.mrf.mxu0
    %v7028 = vadd.f32 0.0, %v7027
    %7029 = vmatmul.f32.gmra.mxu0 %v2549
    %v7030 = vpop.f32.mrf.mxu0
    %v7031 = vadd.f32 0.0, %v7030
    %7032 = vmatmul.f32.gmra.mxu0 %v2551
    %v7033 = vpop.f32.mrf.mxu0
    %v7034 = vadd.f32 0.0, %v7033
    %7035 = vmatmul.f32.gmra.mxu0 %v2553
    %v7036 = vpop.f32.mrf.mxu0
    %v7037 = vadd.f32 0.0, %v7036
    %7038 = vmatmul.f32.gmra.mxu0 %v2555
    %v7039 = vpop.f32.mrf.mxu0
    %v7040 = vadd.f32 0.0, %v7039
    %7041 = vmatmul.f32.gmra.mxu0 %v2557
    %v7042 = vpop.f32.mrf.mxu0
    %v7043 = vadd.f32 0.0, %v7042
    %7044 = vmatmul.f32.gmra.mxu0 %v2559
    %v7045 = vpop.f32.mrf.mxu0
    %v7046 = vadd.f32 0.0, %v7045
    %7047 = vmatmul.f32.gmra.mxu0 %v2561
    %v7048 = vpop.f32.mrf.mxu0
    %v7049 = vadd.f32 0.0, %v7048
    %7050 = vmatmul.f32.gmra.mxu0 %v2563
    %v7051 = vpop.f32.mrf.mxu0
    %v7052 = vadd.f32 0.0, %v7051
    %7053 = vmatmul.f32.gmra.mxu0 %v2565
    %v7054 = vpop.f32.mrf.mxu0
    %v7055 = vadd.f32 0.0, %v7054
    %7056 = vmatmul.f32.gmra.mxu0 %v2567
    %v7057 = vpop.f32.mrf.mxu0
    %v7058 = vadd.f32 0.0, %v7057
    %7059 = vmatmul.f32.gmra.mxu0 %v2569
    %v7060 = vpop.f32.mrf.mxu0
    %v7061 = vadd.f32 0.0, %v7060
    %7062 = vmatmul.f32.gmra.mxu0 %v2571
    %v7063 = vpop.f32.mrf.mxu0
    %v7064 = vadd.f32 0.0, %v7063
    %7065 = vdwg.mxu0
    %7066 = vmatpush.msra.mxu0 %v6968
    %7067 = vmatpush.msra.mxu0 %v6967
    %7068 = vmatpush.msra.mxu0 %v6966
    %7069 = vmatpush.msra.mxu0 %v6965
    %7070 = vmatpush.msra.mxu0 %v6964
    %7071 = vmatpush.msra.mxu0 %v6963
    %7072 = vmatpush.msra.mxu0 %v6962
    %7073 = vmatpush.msra.mxu0 %v6961
    %7074 = vmatpush.msra.mxu0 %v6960
    %7075 = vmatpush.msra.mxu0 %v6959
    %7076 = vmatpush.msra.mxu0 %v6958
    %7077 = vmatpush.msra.mxu0 %v6957
    %7078 = vmatpush.msra.mxu0 %v6956
    %7079 = vmatpush.msra.mxu0 %v6955
    %7080 = vmatpush.msra.mxu0 %v6954
    %7081 = vmatpush.msra.mxu0 %v6953
    %7082 = vmatmul.f32.gmra.mxu0 %v2542
    %v7083 = vpop.f32.mrf.mxu0
    %v7084 = vadd.f32 %v7019, %v7083
    %7085 = vmatmul.f32.gmra.mxu0 %v2544
    %v7086 = vpop.f32.mrf.mxu0
    %v7087 = vadd.f32 %v7022, %v7086
    %7088 = vmatmul.f32.gmra.mxu0 %v2546
    %v7089 = vpop.f32.mrf.mxu0
    %v7090 = vadd.f32 %v7025, %v7089
    %7091 = vmatmul.f32.gmra.mxu0 %v2548
    %v7092 = vpop.f32.mrf.mxu0
    %v7093 = vadd.f32 %v7028, %v7092
    %7094 = vmatmul.f32.gmra.mxu0 %v2550
    %v7095 = vpop.f32.mrf.mxu0
    %v7096 = vadd.f32 %v7031, %v7095
    %7097 = vmatmul.f32.gmra.mxu0 %v2552
    %v7098 = vpop.f32.mrf.mxu0
    %v7099 = vadd.f32 %v7034, %v7098
    %7100 = vmatmul.f32.gmra.mxu0 %v2554
    %v7101 = vpop.f32.mrf.mxu0
    %v7102 = vadd.f32 %v7037, %v7101
    %7103 = vmatmul.f32.gmra.mxu0 %v2556
    %v7104 = vpop.f32.mrf.mxu0
    %v7105 = vadd.f32 %v7040, %v7104
    %7106 = vmatmul.f32.gmra.mxu0 %v2558
    %v7107 = vpop.f32.mrf.mxu0
    %v7108 = vadd.f32 %v7043, %v7107
    %7109 = vmatmul.f32.gmra.mxu0 %v2560
    %v7110 = vpop.f32.mrf.mxu0
    %v7111 = vadd.f32 %v7046, %v7110
    %7112 = vmatmul.f32.gmra.mxu0 %v2562
    %v7113 = vpop.f32.mrf.mxu0
    %v7114 = vadd.f32 %v7049, %v7113
    %7115 = vmatmul.f32.gmra.mxu0 %v2564
    %v7116 = vpop.f32.mrf.mxu0
    %v7117 = vadd.f32 %v7052, %v7116
    %7118 = vmatmul.f32.gmra.mxu0 %v2566
    %v7119 = vpop.f32.mrf.mxu0
    %v7120 = vadd.f32 %v7055, %v7119
    %7121 = vmatmul.f32.gmra.mxu0 %v2568
    %v7122 = vpop.f32.mrf.mxu0
    %v7123 = vadd.f32 %v7058, %v7122
    %7124 = vmatmul.f32.gmra.mxu0 %v2570
    %v7125 = vpop.f32.mrf.mxu0
    %v7126 = vadd.f32 %v7061, %v7125
    %7127 = vmatmul.f32.gmra.mxu0 %v2572
    %v7128 = vpop.f32.mrf.mxu0
    %v7129 = vadd.f32 %v7064, %v7128
    %7130 = vdwg.mxu0
    %7131 = vmatpush.msra.mxu0 %v6984
    %7132 = vmatpush.msra.mxu0 %v6983
    %7133 = vmatpush.msra.mxu0 %v6982
    %7134 = vmatpush.msra.mxu0 %v6981
    %7135 = vmatpush.msra.mxu0 %v6980
    %7136 = vmatpush.msra.mxu0 %v6979
    %7137 = vmatpush.msra.mxu0 %v6978
    %7138 = vmatpush.msra.mxu0 %v6977
    %7139 = vmatpush.msra.mxu0 %v6976
    %7140 = vmatpush.msra.mxu0 %v6975
    %7141 = vmatpush.msra.mxu0 %v6974
    %7142 = vmatpush.msra.mxu0 %v6973
    %7143 = vmatpush.msra.mxu0 %v6972
    %7144 = vmatpush.msra.mxu0 %v6971
    %7145 = vmatpush.msra.mxu0 %v6970
    %7146 = vmatpush.msra.mxu0 %v6969
    %7147 = vmatmul.f32.gmra.mxu0 %v2541
    %v7148 = vpop.f32.mrf.mxu0
    %v7149 = vadd.f32 0.0, %v7148
    %7150 = vmatmul.f32.gmra.mxu0 %v2543
    %v7151 = vpop.f32.mrf.mxu0
    %v7152 = vadd.f32 0.0, %v7151
    %7153 = vmatmul.f32.gmra.mxu0 %v2545
    %v7154 = vpop.f32.mrf.mxu0
    %v7155 = vadd.f32 0.0, %v7154
    %7156 = vmatmul.f32.gmra.mxu0 %v2547
    %v7157 = vpop.f32.mrf.mxu0
    %v7158 = vadd.f32 0.0, %v7157
    %7159 = vmatmul.f32.gmra.mxu0 %v2549
    %v7160 = vpop.f32.mrf.mxu0
    %v7161 = vadd.f32 0.0, %v7160
    %7162 = vmatmul.f32.gmra.mxu0 %v2551
    %v7163 = vpop.f32.mrf.mxu0
    %v7164 = vadd.f32 0.0, %v7163
    %7165 = vmatmul.f32.gmra.mxu0 %v2553
    %v7166 = vpop.f32.mrf.mxu0
    %v7167 = vadd.f32 0.0, %v7166
    %7168 = vmatmul.f32.gmra.mxu0 %v2555
    %v7169 = vpop.f32.mrf.mxu0
    %v7170 = vadd.f32 0.0, %v7169
    %7171 = vmatmul.f32.gmra.mxu0 %v2557
    %v7172 = vpop.f32.mrf.mxu0
    %v7173 = vadd.f32 0.0, %v7172
    %7174 = vmatmul.f32.gmra.mxu0 %v2559
    %v7175 = vpop.f32.mrf.mxu0
    %v7176 = vadd.f32 0.0, %v7175
    %7177 = vmatmul.f32.gmra.mxu0 %v2561
    %v7178 = vpop.f32.mrf.mxu0
    %v7179 = vadd.f32 0.0, %v7178
    %7180 = vmatmul.f32.gmra.mxu0 %v2563
    %v7181 = vpop.f32.mrf.mxu0
    %v7182 = vadd.f32 0.0, %v7181
    %7183 = vmatmul.f32.gmra.mxu0 %v2565
    %v7184 = vpop.f32.mrf.mxu0
    %v7185 = vadd.f32 0.0, %v7184
    %7186 = vmatmul.f32.gmra.mxu0 %v2567
    %v7187 = vpop.f32.mrf.mxu0
    %v7188 = vadd.f32 0.0, %v7187
    %7189 = vmatmul.f32.gmra.mxu0 %v2569
    %v7190 = vpop.f32.mrf.mxu0
    %v7191 = vadd.f32 0.0, %v7190
    %7192 = vmatmul.f32.gmra.mxu0 %v2571
    %v7193 = vpop.f32.mrf.mxu0
    %v7194 = vadd.f32 0.0, %v7193
    %7195 = vdwg.mxu0
    %7196 = vmatpush.msra.mxu0 %v7000
    %7197 = vmatpush.msra.mxu0 %v6999
    %7198 = vmatpush.msra.mxu0 %v6998
    %7199 = vmatpush.msra.mxu0 %v6997
    %7200 = vmatpush.msra.mxu0 %v6996
    %7201 = vmatpush.msra.mxu0 %v6995
    %7202 = vmatpush.msra.mxu0 %v6994
    %7203 = vmatpush.msra.mxu0 %v6993
    %7204 = vmatpush.msra.mxu0 %v6992
    %7205 = vmatpush.msra.mxu0 %v6991
    %7206 = vmatpush.msra.mxu0 %v6990
    %7207 = vmatpush.msra.mxu0 %v6989
    %7208 = vmatpush.msra.mxu0 %v6988
    %7209 = vmatpush.msra.mxu0 %v6987
    %7210 = vmatpush.msra.mxu0 %v6986
    %7211 = vmatpush.msra.mxu0 %v6985
    %7212 = vmatmul.f32.gmra.mxu0 %v2542
    %v7213 = vpop.f32.mrf.mxu0
    %v7214 = vadd.f32 %v7149, %v7213
    %7215 = vmatmul.f32.gmra.mxu0 %v2544
    %v7216 = vpop.f32.mrf.mxu0
    %v7217 = vadd.f32 %v7152, %v7216
    %7218 = vmatmul.f32.gmra.mxu0 %v2546
    %v7219 = vpop.f32.mrf.mxu0
    %v7220 = vadd.f32 %v7155, %v7219
    %7221 = vmatmul.f32.gmra.mxu0 %v2548
    %v7222 = vpop.f32.mrf.mxu0
    %v7223 = vadd.f32 %v7158, %v7222
    %7224 = vmatmul.f32.gmra.mxu0 %v2550
    %v7225 = vpop.f32.mrf.mxu0
    %v7226 = vadd.f32 %v7161, %v7225
    %7227 = vmatmul.f32.gmra.mxu0 %v2552
    %v7228 = vpop.f32.mrf.mxu0
    %v7229 = vadd.f32 %v7164, %v7228
    %7230 = vmatmul.f32.gmra.mxu0 %v2554
    %v7231 = vpop.f32.mrf.mxu0
    %v7232 = vadd.f32 %v7167, %v7231
    %7233 = vmatmul.f32.gmra.mxu0 %v2556
    %v7234 = vpop.f32.mrf.mxu0
    %v7235 = vadd.f32 %v7170, %v7234
    %7236 = vmatmul.f32.gmra.mxu0 %v2558
    %v7237 = vpop.f32.mrf.mxu0
    %v7238 = vadd.f32 %v7173, %v7237
    %7239 = vmatmul.f32.gmra.mxu0 %v2560
    %v7240 = vpop.f32.mrf.mxu0
    %v7241 = vadd.f32 %v7176, %v7240
    %7242 = vmatmul.f32.gmra.mxu0 %v2562
    %v7243 = vpop.f32.mrf.mxu0
    %v7244 = vadd.f32 %v7179, %v7243
    %7245 = vmatmul.f32.gmra.mxu0 %v2564
    %v7246 = vpop.f32.mrf.mxu0
    %v7247 = vadd.f32 %v7182, %v7246
    %7248 = vmatmul.f32.gmra.mxu0 %v2566
    %v7249 = vpop.f32.mrf.mxu0
    %v7250 = vadd.f32 %v7185, %v7249
    %7251 = vmatmul.f32.gmra.mxu0 %v2568
    %v7252 = vpop.f32.mrf.mxu0
    %v7253 = vadd.f32 %v7188, %v7252
    %7254 = vmatmul.f32.gmra.mxu0 %v2570
    %v7255 = vpop.f32.mrf.mxu0
    %v7256 = vadd.f32 %v7191, %v7255
    %7257 = vmatmul.f32.gmra.mxu0 %v2572
    %v7258 = vpop.f32.mrf.mxu0
    %v7259 = vadd.f32 %v7194, %v7258
    %7260 = vdwg.mxu0
    %v7261 = vmul.f32 %v7084, %v4463
    %v7262 = vmul.f32 %v7087, %v4478
    %v7263 = vmul.f32 %v7090, %v4493
    %v7264 = vmul.f32 %v7093, %v4508
    %v7265 = vmul.f32 %v7096, %v4523
    %v7266 = vmul.f32 %v7099, %v4538
    %v7267 = vmul.f32 %v7102, %v4553
    %v7268 = vmul.f32 %v7105, %v4568
    %v7269 = vmul.f32 %v7108, %v4583
    %v7270 = vmul.f32 %v7111, %v4598
    %v7271 = vmul.f32 %v7114, %v4613
    %v7272 = vmul.f32 %v7117, %v4628
    %v7273 = vmul.f32 %v7120, %v4643
    %v7274 = vmul.f32 %v7123, %v4658
    %v7275 = vmul.f32 %v7126, %v4673
    %v7276 = vmul.f32 %v7129, %v4688
    %v7277 = vtanh.pop %v7261
    %v7278 = vtanh.pop %v7262
    %v7279 = vtanh.pop %v7263
    %v7280 = vtanh.pop %v7264
    %v7281 = vtanh.pop %v7265
    %v7282 = vtanh.pop %v7266
    %v7283 = vtanh.pop %v7267
    %v7284 = vtanh.pop %v7268
    %v7285 = vtanh.pop %v7269
    %v7286 = vtanh.pop %v7270
    %v7287 = vtanh.pop %v7271
    %v7288 = vtanh.pop %v7272
    %v7289 = vtanh.pop %v7273
    %v7290 = vtanh.pop %v7274
    %v7291 = vtanh.pop %v7275
    %v7292 = vtanh.pop %v7276
    %v7293 = vmul.f32 %v7214, %v5071
    %v7294 = vmul.f32 %v7217, %v5086
    %v7295 = vmul.f32 %v7220, %v5101
    %v7296 = vmul.f32 %v7223, %v5116
    %v7297 = vmul.f32 %v7226, %v5131
    %v7298 = vmul.f32 %v7229, %v5146
    %v7299 = vmul.f32 %v7232, %v5161
    %v7300 = vmul.f32 %v7235, %v5176
    %v7301 = vmul.f32 %v7238, %v5191
    %v7302 = vmul.f32 %v7241, %v5206
    %v7303 = vmul.f32 %v7244, %v5221
    %v7304 = vmul.f32 %v7247, %v5236
    %v7305 = vmul.f32 %v7250, %v5251
    %v7306 = vmul.f32 %v7253, %v5266
    %v7307 = vmul.f32 %v7256, %v5281
    %v7308 = vmul.f32 %v7259, %v5296
    %v7309 = vtanh.pop %v7293
    %v7310 = vtanh.pop %v7294
    %v7311 = vtanh.pop %v7295
    %v7312 = vtanh.pop %v7296
    %v7313 = vtanh.pop %v7297
    %v7314 = vtanh.pop %v7298
    %v7315 = vtanh.pop %v7299
    %v7316 = vtanh.pop %v7300
    %v7317 = vtanh.pop %v7301
    %v7318 = vtanh.pop %v7302
    %v7319 = vtanh.pop %v7303
    %v7320 = vtanh.pop %v7304
    %v7321 = vtanh.pop %v7305
    %v7322 = vtanh.pop %v7306
    %v7323 = vtanh.pop %v7307
    %v7324 = vtanh.pop %v7308
    %v7325 = vld [vmem:[%s2] sm:$0xff]
    %v7326 = vld [vmem:[%s2 + $0x8] sm:$0xff]
    %v7327 = vld [vmem:[%s2 + $0x10] sm:$0xff]
    %v7328 = vld [vmem:[%s2 + $0x18] sm:$0xff]
    %7329 = vset.pattern.permute.xlu0 0
    %7330 = vperm.xlu0 %7329, %v7325
    %v7331 = vpop.permute.xlu0 %7330
    %7332 = vset.pattern.permute.xlu0 0
    %7333 = vperm.xlu0 %7332, %v7326
    %v7334 = vpop.permute.xlu0 %7333
    %7335 = vset.pattern.permute.xlu0 0
    %7336 = vperm.xlu0 %7335, %v7327
    %v7337 = vpop.permute.xlu0 %7336
    %7338 = vset.pattern.permute.xlu0 0
    %7339 = vperm.xlu0 %7338, %v7328
    %v7340 = vpop.permute.xlu0 %7339
    %vm7341 = vcmp.eq.s32.totalorder %v2574, %v7331
    %vm7342 = vcmp.eq.s32.totalorder %v2574, %v7334
    %vm7343 = vcmp.eq.s32.totalorder %v2574, %v7337
    %vm7344 = vcmp.eq.s32.totalorder %v2574, %v7340
    %v7345 = vsel %vm7341, 1, 0
    %v7346 = vsel %vm7342, 1, 0
    %v7347 = vsel %vm7343, 1, 0
    %v7348 = vsel %vm7344, 1, 0
    %v7349 = vcvt.s32.f32 %v7345
    %v7350 = vcvt.s32.f32 %v7346
    %v7351 = vcvt.s32.f32 %v7347
    %v7352 = vcvt.s32.f32 %v7348
    %7353 = vmatpush.msra.mxu0 %v5312
    %7354 = vmatpush.msra.mxu0 %v5311
    %7355 = vmatpush.msra.mxu0 %v5310
    %7356 = vmatpush.msra.mxu0 %v5309
    %7357 = vmatpush.msra.mxu0 %v5308
    %7358 = vmatpush.msra.mxu0 %v5307
    %7359 = vmatpush.msra.mxu0 %v5306
    %7360 = vmatpush.msra.mxu0 %v5305
    %7361 = vmatpush.msra.mxu0 %v5304
    %7362 = vmatpush.msra.mxu0 %v5303
    %7363 = vmatpush.msra.mxu0 %v5302
    %7364 = vmatpush.msra.mxu0 %v5301
    %7365 = vmatpush.msra.mxu0 %v5300
    %7366 = vmatpush.msra.mxu0 %v5299
    %7367 = vmatpush.msra.mxu0 %v5298
    %7368 = vmatpush.msra.mxu0 %v5297
    %7369 = vmatmul.f32.gmra.mxu0 %v7349
    %v7370 = vpop.f32.mrf.mxu0
    %v7371 = vadd.f32 0.0, %v7370
    %7372 = vmatmul.f32.gmra.mxu0 %v7350
    %v7373 = vpop.f32.mrf.mxu0
    %v7374 = vadd.f32 0.0, %v7373
    %7375 = vmatmul.f32.gmra.mxu0 %v7351
    %v7376 = vpop.f32.mrf.mxu0
    %v7377 = vadd.f32 0.0, %v7376
    %7378 = vmatmul.f32.gmra.mxu0 %v7352
    %v7379 = vpop.f32.mrf.mxu0
    %v7380 = vadd.f32 0.0, %v7379
    %7381 = vdwg.mxu0
    %7382 = vmatpush.msra.mxu0 %v6294
    %7383 = vmatpush.msra.mxu0 %v6293
    %7384 = vmatpush.msra.mxu0 %v6292
    %7385 = vmatpush.msra.mxu0 %v6291
    %7386 = vmatpush.msra.mxu0 %v6290
    %7387 = vmatpush.msra.mxu0 %v6289
    %7388 = vmatpush.msra.mxu0 %v6288
    %7389 = vmatpush.msra.mxu0 %v6287
    %7390 = vmatpush.msra.mxu0 %v6286
    %7391 = vmatpush.msra.mxu0 %v6285
    %7392 = vmatpush.msra.mxu0 %v6284
    %7393 = vmatpush.msra.mxu0 %v6283
    %7394 = vmatpush.msra.mxu0 %v6282
    %7395 = vmatpush.msra.mxu0 %v6281
    %7396 = vmatpush.msra.mxu0 %v6280
    %7397 = vmatpush.msra.mxu0 %v6279
    %7398 = vmatmul.f32.gmra.mxu0 %v7349
    %v7399 = vpop.f32.mrf.mxu0
    %v7400 = vadd.f32 0.0, %v7399
    %7401 = vmatmul.f32.gmra.mxu0 %v7350
    %v7402 = vpop.f32.mrf.mxu0
    %v7403 = vadd.f32 0.0, %v7402
    %7404 = vmatmul.f32.gmra.mxu0 %v7351
    %v7405 = vpop.f32.mrf.mxu0
    %v7406 = vadd.f32 0.0, %v7405
    %7407 = vmatmul.f32.gmra.mxu0 %v7352
    %v7408 = vpop.f32.mrf.mxu0
    %v7409 = vadd.f32 0.0, %v7408
    %7410 = vdwg.mxu0
    %7411 = vmatpush.msra.mxu0 %v7292
    %7412 = vmatpush.msra.mxu0 %v7291
    %7413 = vmatpush.msra.mxu0 %v7290
    %7414 = vmatpush.msra.mxu0 %v7289
    %7415 = vmatpush.msra.mxu0 %v7288
    %7416 = vmatpush.msra.mxu0 %v7287
    %7417 = vmatpush.msra.mxu0 %v7286
    %7418 = vmatpush.msra.mxu0 %v7285
    %7419 = vmatpush.msra.mxu0 %v7284
    %7420 = vmatpush.msra.mxu0 %v7283
    %7421 = vmatpush.msra.mxu0 %v7282
    %7422 = vmatpush.msra.mxu0 %v7281
    %7423 = vmatpush.msra.mxu0 %v7280
    %7424 = vmatpush.msra.mxu0 %v7279
    %7425 = vmatpush.msra.mxu0 %v7278
    %7426 = vmatpush.msra.mxu0 %v7277
    %7427 = vmatmul.f32.gmra.mxu0 %v7349
    %v7428 = vpop.f32.mrf.mxu0
    %v7429 = vadd.f32 0.0, %v7428
    %7430 = vmatmul.f32.gmra.mxu0 %v7350
    %v7431 = vpop.f32.mrf.mxu0
    %v7432 = vadd.f32 0.0, %v7431
    %7433 = vmatmul.f32.gmra.mxu0 %v7351
    %v7434 = vpop.f32.mrf.mxu0
    %v7435 = vadd.f32 0.0, %v7434
    %7436 = vmatmul.f32.gmra.mxu0 %v7352
    %v7437 = vpop.f32.mrf.mxu0
    %v7438 = vadd.f32 0.0, %v7437
    %7439 = vdwg.mxu0
    %7440 = vmatpush.msra.mxu0 %v5328
    %7441 = vmatpush.msra.mxu0 %v5327
    %7442 = vmatpush.msra.mxu0 %v5326
    %7443 = vmatpush.msra.mxu0 %v5325
    %7444 = vmatpush.msra.mxu0 %v5324
    %7445 = vmatpush.msra.mxu0 %v5323
    %7446 = vmatpush.msra.mxu0 %v5322
    %7447 = vmatpush.msra.mxu0 %v5321
    %7448 = vmatpush.msra.mxu0 %v5320
    %7449 = vmatpush.msra.mxu0 %v5319
    %7450 = vmatpush.msra.mxu0 %v5318
    %7451 = vmatpush.msra.mxu0 %v5317
    %7452 = vmatpush.msra.mxu0 %v5316
    %7453 = vmatpush.msra.mxu0 %v5315
    %7454 = vmatpush.msra.mxu0 %v5314
    %7455 = vmatpush.msra.mxu0 %v5313
    %7456 = vmatmul.f32.gmra.mxu0 %v7349
    %v7457 = vpop.f32.mrf.mxu0
    %v7458 = vadd.f32 0.0, %v7457
    %7459 = vmatmul.f32.gmra.mxu0 %v7350
    %v7460 = vpop.f32.mrf.mxu0
    %v7461 = vadd.f32 0.0, %v7460
    %7462 = vmatmul.f32.gmra.mxu0 %v7351
    %v7463 = vpop.f32.mrf.mxu0
    %v7464 = vadd.f32 0.0, %v7463
    %7465 = vmatmul.f32.gmra.mxu0 %v7352
    %v7466 = vpop.f32.mrf.mxu0
    %v7467 = vadd.f32 0.0, %v7466
    %7468 = vdwg.mxu0
    %7469 = vmatpush.msra.mxu0 %v6326
    %7470 = vmatpush.msra.mxu0 %v6325
    %7471 = vmatpush.msra.mxu0 %v6324
    %7472 = vmatpush.msra.mxu0 %v6323
    %7473 = vmatpush.msra.mxu0 %v6322
    %7474 = vmatpush.msra.mxu0 %v6321
    %7475 = vmatpush.msra.mxu0 %v6320
    %7476 = vmatpush.msra.mxu0 %v6319
    %7477 = vmatpush.msra.mxu0 %v6318
    %7478 = vmatpush.msra.mxu0 %v6317
    %7479 = vmatpush.msra.mxu0 %v6316
    %7480 = vmatpush.msra.mxu0 %v6315
    %7481 = vmatpush.msra.mxu0 %v6314
    %7482 = vmatpush.msra.mxu0 %v6313
    %7483 = vmatpush.msra.mxu0 %v6312
    %7484 = vmatpush.msra.mxu0 %v6311
    %7485 = vmatmul.f32.gmra.mxu0 %v7349
    %v7486 = vpop.f32.mrf.mxu0
    %v7487 = vadd.f32 0.0, %v7486
    %7488 = vmatmul.f32.gmra.mxu0 %v7350
    %v7489 = vpop.f32.mrf.mxu0
    %v7490 = vadd.f32 0.0, %v7489
    %7491 = vmatmul.f32.gmra.mxu0 %v7351
    %v7492 = vpop.f32.mrf.mxu0
    %v7493 = vadd.f32 0.0, %v7492
    %7494 = vmatmul.f32.gmra.mxu0 %v7352
    %v7495 = vpop.f32.mrf.mxu0
    %v7496 = vadd.f32 0.0, %v7495
    %7497 = vdwg.mxu0
    %7498 = vmatpush.msra.mxu0 %v7324
    %7499 = vmatpush.msra.mxu0 %v7323
    %7500 = vmatpush.msra.mxu0 %v7322
    %7501 = vmatpush.msra.mxu0 %v7321
    %7502 = vmatpush.msra.mxu0 %v7320
    %7503 = vmatpush.msra.mxu0 %v7319
    %7504 = vmatpush.msra.mxu0 %v7318
    %7505 = vmatpush.msra.mxu0 %v7317
    %7506 = vmatpush.msra.mxu0 %v7316
    %7507 = vmatpush.msra.mxu0 %v7315
    %7508 = vmatpush.msra.mxu0 %v7314
    %7509 = vmatpush.msra.mxu0 %v7313
    %7510 = vmatpush.msra.mxu0 %v7312
    %7511 = vmatpush.msra.mxu0 %v7311
    %7512 = vmatpush.msra.mxu0 %v7310
    %7513 = vmatpush.msra.mxu0 %v7309
    %7514 = vmatmul.f32.gmra.mxu0 %v7349
    %v7515 = vpop.f32.mrf.mxu0
    %v7516 = vadd.f32 0.0, %v7515
    %7517 = vmatmul.f32.gmra.mxu0 %v7350
    %v7518 = vpop.f32.mrf.mxu0
    %v7519 = vadd.f32 0.0, %v7518
    %7520 = vmatmul.f32.gmra.mxu0 %v7351
    %v7521 = vpop.f32.mrf.mxu0
    %v7522 = vadd.f32 0.0, %v7521
    %7523 = vmatmul.f32.gmra.mxu0 %v7352
    %v7524 = vpop.f32.mrf.mxu0
    %v7525 = vadd.f32 0.0, %v7524
    %7526 = vdwg.mxu0
    %v7527 = vsub.f32 %v7371, %v7377
    %v7528 = vsub.f32 %v7400, %v7406
    %v7529 = vsub.f32 %v7429, %v7435
    %v7530 = vsub.f32 %v7458, %v7464
    %v7531 = vsub.f32 %v7487, %v7493
    %v7532 = vsub.f32 %v7516, %v7522
    %v7533 = vsub.f32 %v7374, %v7380
    %v7534 = vsub.f32 %v7403, %v7409
    %v7535 = vsub.f32 %v7432, %v7438
    %v7536 = vsub.f32 %v7461, %v7467
    %v7537 = vsub.f32 %v7490, %v7496
    %v7538 = vsub.f32 %v7519, %v7525
    %v7539 = vmul.f32 %v7527, %v7527
    %v7540 = vmul.f32 %v7528, %v7528
    %v7541 = vmul.f32 %v7529, %v7529
    %v7542 = vmul.f32 %v7530, %v7530
    %v7543 = vmul.f32 %v7531, %v7531
    %v7544 = vmul.f32 %v7532, %v7532
    %v7545 = vmul.f32 %v7533, %v7533
    %v7546 = vmul.f32 %v7534, %v7534
    %v7547 = vmul.f32 %v7535, %v7535
    %v7548 = vmul.f32 %v7536, %v7536
    %v7549 = vmul.f32 %v7537, %v7537
    %v7550 = vmul.f32 %v7538, %v7538
    %v7551 = vadd.f32 %v7539, %v7540
    %v7552 = vadd.f32 %v7551, %v7541
    %v7553 = vadd.f32 %v7552, %v7542
    %v7554 = vadd.f32 %v7553, %v7543
    %v7555 = vadd.f32 %v7554, %v7544
    %7556 = vadd.xlane.f32.xlu0 %v7555
    %v7557 = vpop.xlane.xlu0 %7556
    %v7558 = vadd.f32 %v7545, %v7546
    %v7559 = vadd.f32 %v7558, %v7547
    %v7560 = vadd.f32 %v7559, %v7548
    %v7561 = vadd.f32 %v7560, %v7549
    %v7562 = vadd.f32 %v7561, %v7550
    %7563 = vadd.xlane.f32.xlu0 %v7562
    %v7564 = vpop.xlane.xlu0 %7563
    %v7565 = vsub.f32 1.0, %v7349
    %v7566 = vsub.f32 1.0, %v7350
    %v7567 = vsub.f32 %v7565, %v7351
    %v7568 = vsub.f32 %v7566, %v7352
    %v7569 = vmul.f32 %v7371, %v7371
    %v7570 = vmul.f32 %v7400, %v7400
    %v7571 = vmul.f32 %v7429, %v7429
    %v7572 = vmul.f32 %v7458, %v7458
    %v7573 = vmul.f32 %v7487, %v7487
    %v7574 = vmul.f32 %v7516, %v7516
    %v7575 = vmul.f32 %v7374, %v7374
    %v7576 = vmul.f32 %v7403, %v7403
    %v7577 = vmul.f32 %v7432, %v7432
    %v7578 = vmul.f32 %v7461, %v7461
    %v7579 = vmul.f32 %v7490, %v7490
    %v7580 = vmul.f32 %v7519, %v7519
    %v7581 = vmul.f32 %v7377, %v7377
    %v7582 = vmul.f32 %v7406, %v7406
    %v7583 = vmul.f32 %v7435, %v7435
    %v7584 = vmul.f32 %v7464, %v7464
    %v7585 = vmul.f32 %v7493, %v7493
    %v7586 = vmul.f32 %v7522, %v7522
    %v7587 = vmul.f32 %v7380, %v7380
    %v7588 = vmul.f32 %v7409, %v7409
    %v7589 = vmul.f32 %v7438, %v7438
    %v7590 = vmul.f32 %v7467, %v7467
    %v7591 = vmul.f32 %v7496, %v7496
    %v7592 = vmul.f32 %v7525, %v7525
    %v7593 = vadd.f32 %v7569, %v7570
    %v7594 = vadd.f32 %v7593, %v7571
    %v7595 = vadd.f32 %v7594, %v7572
    %v7596 = vadd.f32 %v7595, %v7573
    %v7597 = vadd.f32 %v7596, %v7574
    %7598 = vadd.xlane.f32.xlu0 %v7597
    %v7599 = vpop.xlane.xlu0 %7598
    %v7600 = vadd.f32 %v7575, %v7576
    %v7601 = vadd.f32 %v7600, %v7577
    %v7602 = vadd.f32 %v7601, %v7578
    %v7603 = vadd.f32 %v7602, %v7579
    %v7604 = vadd.f32 %v7603, %v7580
    %7605 = vadd.xlane.f32.xlu0 %v7604
    %v7606 = vpop.xlane.xlu0 %7605
    %v7607 = vadd.f32 %v7581, %v7582
    %v7608 = vadd.f32 %v7607, %v7583
    %v7609 = vadd.f32 %v7608, %v7584
    %v7610 = vadd.f32 %v7609, %v7585
    %v7611 = vadd.f32 %v7610, %v7586
    %7612 = vadd.xlane.f32.xlu0 %v7611
    %v7613 = vpop.xlane.xlu0 %7612
    %v7614 = vadd.f32 %v7587, %v7588
    %v7615 = vadd.f32 %v7614, %v7589
    %v7616 = vadd.f32 %v7615, %v7590
    %v7617 = vadd.f32 %v7616, %v7591
    %v7618 = vadd.f32 %v7617, %v7592
    %7619 = vadd.xlane.f32.xlu0 %v7618
    %v7620 = vpop.xlane.xlu0 %7619
    %v7621 = vmul.f32 %v5297, %v5297
    %v7622 = vmul.f32 %v6279, %v6279
    %v7623 = vmul.f32 %v7277, %v7277
    %v7624 = vmul.f32 %v5313, %v5313
    %v7625 = vmul.f32 %v6311, %v6311
    %v7626 = vmul.f32 %v7309, %v7309
    %v7627 = vmul.f32 %v5298, %v5298
    %v7628 = vmul.f32 %v6280, %v6280
    %v7629 = vmul.f32 %v7278, %v7278
    %v7630 = vmul.f32 %v5314, %v5314
    %v7631 = vmul.f32 %v6312, %v6312
    %v7632 = vmul.f32 %v7310, %v7310
    %v7633 = vmul.f32 %v5299, %v5299
    %v7634 = vmul.f32 %v6281, %v6281
    %v7635 = vmul.f32 %v7279, %v7279
    %v7636 = vmul.f32 %v5315, %v5315
    %v7637 = vmul.f32 %v6313, %v6313
    %v7638 = vmul.f32 %v7311, %v7311
    %v7639 = vmul.f32 %v5300, %v5300
    %v7640 = vmul.f32 %v6282, %v6282
    %v7641 = vmul.f32 %v7280, %v7280
    %v7642 = vmul.f32 %v5316, %v5316
    %v7643 = vmul.f32 %v6314, %v6314
    %v7644 = vmul.f32 %v7312, %v7312
    %v7645 = vmul.f32 %v5301, %v5301
    %v7646 = vmul.f32 %v6283, %v6283
    %v7647 = vmul.f32 %v7281, %v7281
    %v7648 = vmul.f32 %v5317, %v5317
    %v7649 = vmul.f32 %v6315, %v6315
    %v7650 = vmul.f32 %v7313, %v7313
    %v7651 = vmul.f32 %v5302, %v5302
    %v7652 = vmul.f32 %v6284, %v6284
    %v7653 = vmul.f32 %v7282, %v7282
    %v7654 = vmul.f32 %v5318, %v5318
    %v7655 = vmul.f32 %v6316, %v6316
    %v7656 = vmul.f32 %v7314, %v7314
    %v7657 = vmul.f32 %v5303, %v5303
    %v7658 = vmul.f32 %v6285, %v6285
    %v7659 = vmul.f32 %v7283, %v7283
    %v7660 = vmul.f32 %v5319, %v5319
    %v7661 = vmul.f32 %v6317, %v6317
    %v7662 = vmul.f32 %v7315, %v7315
    %v7663 = vmul.f32 %v5304, %v5304
    %v7664 = vmul.f32 %v6286, %v6286
    %v7665 = vmul.f32 %v7284, %v7284
    %v7666 = vmul.f32 %v5320, %v5320
    %v7667 = vmul.f32 %v6318, %v6318
    %v7668 = vmul.f32 %v7316, %v7316
    %v7669 = vmul.f32 %v5305, %v5305
    %v7670 = vmul.f32 %v6287, %v6287
    %v7671 = vmul.f32 %v7285, %v7285
    %v7672 = vmul.f32 %v5321, %v5321
    %v7673 = vmul.f32 %v6319, %v6319
    %v7674 = vmul.f32 %v7317, %v7317
    %v7675 = vmul.f32 %v5306, %v5306
    %v7676 = vmul.f32 %v6288, %v6288
    %v7677 = vmul.f32 %v7286, %v7286
    %v7678 = vmul.f32 %v5322, %v5322
    %v7679 = vmul.f32 %v6320, %v6320
    %v7680 = vmul.f32 %v7318, %v7318
    %v7681 = vmul.f32 %v5307, %v5307
    %v7682 = vmul.f32 %v6289, %v6289
    %v7683 = vmul.f32 %v7287, %v7287
    %v7684 = vmul.f32 %v5323, %v5323
    %v7685 = vmul.f32 %v6321, %v6321
    %v7686 = vmul.f32 %v7319, %v7319
    %v7687 = vmul.f32 %v5308, %v5308
    %v7688 = vmul.f32 %v6290, %v6290
    %v7689 = vmul.f32 %v7288, %v7288
    %v7690 = vmul.f32 %v5324, %v5324
    %v7691 = vmul.f32 %v6322, %v6322
    %v7692 = vmul.f32 %v7320, %v7320
    %v7693 = vmul.f32 %v5309, %v5309
    %v7694 = vmul.f32 %v6291, %v6291
    %v7695 = vmul.f32 %v7289, %v7289
    %v7696 = vmul.f32 %v5325, %v5325
    %v7697 = vmul.f32 %v6323, %v6323
    %v7698 = vmul.f32 %v7321, %v7321
    %v7699 = vmul.f32 %v5310, %v5310
    %v7700 = vmul.f32 %v6292, %v6292
    %v7701 = vmul.f32 %v7290, %v7290
    %v7702 = vmul.f32 %v5326, %v5326
    %v7703 = vmul.f32 %v6324, %v6324
    %v7704 = vmul.f32 %v7322, %v7322
    %v7705 = vmul.f32 %v5311, %v5311
    %v7706 = vmul.f32 %v6293, %v6293
    %v7707 = vmul.f32 %v7291, %v7291
    %v7708 = vmul.f32 %v5327, %v5327
    %v7709 = vmul.f32 %v6325, %v6325
    %v7710 = vmul.f32 %v7323, %v7323
    %v7711 = vmul.f32 %v5312, %v5312
    %v7712 = vmul.f32 %v6294, %v6294
    %v7713 = vmul.f32 %v7292, %v7292
    %v7714 = vmul.f32 %v5328, %v5328
    %v7715 = vmul.f32 %v6326, %v6326
    %v7716 = vmul.f32 %v7324, %v7324
    %v7717 = vadd.f32 %v7621, %v7622
    %v7718 = vadd.f32 %v7717, %v7623
    %v7719 = vadd.f32 %v7718, %v7624
    %v7720 = vadd.f32 %v7719, %v7625
    %v7721 = vadd.f32 %v7720, %v7626
    %7722 = vadd.xlane.f32.xlu0 %v7721
    %v7723 = vpop.xlane.xlu0 %7722
    %v7724 = vadd.f32 %v7627, %v7628
    %v7725 = vadd.f32 %v7724, %v7629
    %v7726 = vadd.f32 %v7725, %v7630
    %v7727 = vadd.f32 %v7726, %v7631
    %v7728 = vadd.f32 %v7727, %v7632
    %7729 = vadd.xlane.f32.xlu0 %v7728
    %v7730 = vpop.xlane.xlu0 %7729
    %v7731 = vadd.f32 %v7633, %v7634
    %v7732 = vadd.f32 %v7731, %v7635
    %v7733 = vadd.f32 %v7732, %v7636
    %v7734 = vadd.f32 %v7733, %v7637
    %v7735 = vadd.f32 %v7734, %v7638
    %7736 = vadd.xlane.f32.xlu0 %v7735
    %v7737 = vpop.xlane.xlu0 %7736
    %v7738 = vadd.f32 %v7639, %v7640
    %v7739 = vadd.f32 %v7738, %v7641
    %v7740 = vadd.f32 %v7739, %v7642
    %v7741 = vadd.f32 %v7740, %v7643
    %v7742 = vadd.f32 %v7741, %v7644
    %7743 = vadd.xlane.f32.xlu0 %v7742
    %v7744 = vpop.xlane.xlu0 %7743
    %v7745 = vadd.f32 %v7645, %v7646
    %v7746 = vadd.f32 %v7745, %v7647
    %v7747 = vadd.f32 %v7746, %v7648
    %v7748 = vadd.f32 %v7747, %v7649
    %v7749 = vadd.f32 %v7748, %v7650
    %7750 = vadd.xlane.f32.xlu0 %v7749
    %v7751 = vpop.xlane.xlu0 %7750
    %v7752 = vadd.f32 %v7651, %v7652
    %v7753 = vadd.f32 %v7752, %v7653
    %v7754 = vadd.f32 %v7753, %v7654
    %v7755 = vadd.f32 %v7754, %v7655
    %v7756 = vadd.f32 %v7755, %v7656
    %7757 = vadd.xlane.f32.xlu0 %v7756
    %v7758 = vpop.xlane.xlu0 %7757
    %v7759 = vadd.f32 %v7657, %v7658
    %v7760 = vadd.f32 %v7759, %v7659
    %v7761 = vadd.f32 %v7760, %v7660
    %v7762 = vadd.f32 %v7761, %v7661
    %v7763 = vadd.f32 %v7762, %v7662
    %7764 = vadd.xlane.f32.xlu0 %v7763
    %v7765 = vpop.xlane.xlu0 %7764
    %v7766 = vadd.f32 %v7663, %v7664
    %v7767 = vadd.f32 %v7766, %v7665
    %v7768 = vadd.f32 %v7767, %v7666
    %v7769 = vadd.f32 %v7768, %v7667
    %v7770 = vadd.f32 %v7769, %v7668
    %7771 = vadd.xlane.f32.xlu0 %v7770
    %v7772 = vpop.xlane.xlu0 %7771
    %v7773 = vadd.f32 %v7669, %v7670
    %v7774 = vadd.f32 %v7773, %v7671
    %v7775 = vadd.f32 %v7774, %v7672
    %v7776 = vadd.f32 %v7775, %v7673
    %v7777 = vadd.f32 %v7776, %v7674
    %7778 = vadd.xlane.f32.xlu0 %v7777
    %v7779 = vpop.xlane.xlu0 %7778
    %v7780 = vadd.f32 %v7675, %v7676
    %v7781 = vadd.f32 %v7780, %v7677
    %v7782 = vadd.f32 %v7781, %v7678
    %v7783 = vadd.f32 %v7782, %v7679
    %v7784 = vadd.f32 %v7783, %v7680
    %7785 = vadd.xlane.f32.xlu0 %v7784
    %v7786 = vpop.xlane.xlu0 %7785
    %v7787 = vadd.f32 %v7681, %v7682
    %v7788 = vadd.f32 %v7787, %v7683
    %v7789 = vadd.f32 %v7788, %v7684
    %v7790 = vadd.f32 %v7789, %v7685
    %v7791 = vadd.f32 %v7790, %v7686
    %7792 = vadd.xlane.f32.xlu0 %v7791
    %v7793 = vpop.xlane.xlu0 %7792
    %v7794 = vadd.f32 %v7687, %v7688
    %v7795 = vadd.f32 %v7794, %v7689
    %v7796 = vadd.f32 %v7795, %v7690
    %v7797 = vadd.f32 %v7796, %v7691
    %v7798 = vadd.f32 %v7797, %v7692
    %7799 = vadd.xlane.f32.xlu0 %v7798
    %v7800 = vpop.xlane.xlu0 %7799
    %v7801 = vadd.f32 %v7693, %v7694
    %v7802 = vadd.f32 %v7801, %v7695
    %v7803 = vadd.f32 %v7802, %v7696
    %v7804 = vadd.f32 %v7803, %v7697
    %v7805 = vadd.f32 %v7804, %v7698
    %7806 = vadd.xlane.f32.xlu0 %v7805
    %v7807 = vpop.xlane.xlu0 %7806
    %v7808 = vadd.f32 %v7699, %v7700
    %v7809 = vadd.f32 %v7808, %v7701
    %v7810 = vadd.f32 %v7809, %v7702
    %v7811 = vadd.f32 %v7810, %v7703
    %v7812 = vadd.f32 %v7811, %v7704
    %7813 = vadd.xlane.f32.xlu0 %v7812
    %v7814 = vpop.xlane.xlu0 %7813
    %v7815 = vadd.f32 %v7705, %v7706
    %v7816 = vadd.f32 %v7815, %v7707
    %v7817 = vadd.f32 %v7816, %v7708
    %v7818 = vadd.f32 %v7817, %v7709
    %v7819 = vadd.f32 %v7818, %v7710
    %7820 = vadd.xlane.f32.xlu0 %v7819
    %v7821 = vpop.xlane.xlu0 %7820
    %v7822 = vadd.f32 %v7711, %v7712
    %v7823 = vadd.f32 %v7822, %v7713
    %v7824 = vadd.f32 %v7823, %v7714
    %v7825 = vadd.f32 %v7824, %v7715
    %v7826 = vadd.f32 %v7825, %v7716
    %7827 = vadd.xlane.f32.xlu0 %v7826
    %v7828 = vpop.xlane.xlu0 %7827
    %v7845 = vperm.slane %v7723, %v2574
    %v7846 = vadd.s32 %v2574, 4294967288
    %v7847 = vperm.slane %v7730, %v7846
    %vm7848 = vcmask 130112
    %v7849 = vsel %vm7848, %v7847, %v7845
    %v7850 = vadd.s32 %v2574, 4294967280
    %v7851 = vperm.slane %v7737, %v7850
    %vm7852 = vcmask 195712
    %v7853 = vsel %vm7852, %v7851, %v7849
    %v7854 = vadd.s32 %v2574, 4294967272
    %v7855 = vperm.slane %v7744, %v7854
    %vm7856 = vcmask 261312
    %v7857 = vsel %vm7856, %v7855, %v7853
    %v7858 = vadd.s32 %v2574, 4294967264
    %v7859 = vperm.slane %v7751, %v7858
    %vm7860 = vcmask 326912
    %v7861 = vsel %vm7860, %v7859, %v7857
    %v7862 = vadd.s32 %v2574, 4294967256
    %v7863 = vperm.slane %v7758, %v7862
    %vm7864 = vcmask 392512
    %v7865 = vsel %vm7864, %v7863, %v7861
    %v7866 = vadd.s32 %v2574, 4294967248
    %v7867 = vperm.slane %v7765, %v7866
    %vm7868 = vcmask 458112
    %v7869 = vsel %vm7868, %v7867, %v7865
    %v7870 = vadd.s32 %v2574, 4294967240
    %v7871 = vperm.slane %v7772, %v7870
    %vm7872 = vcmask 523712
    %v7873 = vsel %vm7872, %v7871, %v7869
    %v7874 = vadd.s32 %v2574, 4294967232
    %v7875 = vperm.slane %v7779, %v7874
    %vm7876 = vcmask 589312
    %v7877 = vsel %vm7876, %v7875, %v7873
    %v7878 = vadd.s32 %v2574, 4294967224
    %v7879 = vperm.slane %v7786, %v7878
    %vm7880 = vcmask 654912
    %v7881 = vsel %vm7880, %v7879, %v7877
    %v7882 = vadd.s32 %v2574, 4294967216
    %v7883 = vperm.slane %v7793, %v7882
    %vm7884 = vcmask 720512
    %v7885 = vsel %vm7884, %v7883, %v7881
    %v7886 = vadd.s32 %v2574, 4294967208
    %v7887 = vperm.slane %v7800, %v7886
    %vm7888 = vcmask 786112
    %v7889 = vsel %vm7888, %v7887, %v7885
    %v7890 = vadd.s32 %v2574, 4294967200
    %v7891 = vperm.slane %v7807, %v7890
    %vm7892 = vcmask 851712
    %v7893 = vsel %vm7892, %v7891, %v7889
    %v7894 = vadd.s32 %v2574, 4294967192
    %v7895 = vperm.slane %v7814, %v7894
    %vm7896 = vcmask 917312
    %v7897 = vsel %vm7896, %v7895, %v7893
    %v7898 = vadd.s32 %v2574, 4294967184
    %v7899 = vperm.slane %v7821, %v7898
    %vm7900 = vcmask 982912
    %v7901 = vsel %vm7900, %v7899, %v7897
    %v7902 = vadd.s32 %v2574, 4294967176
    %v7903 = vperm.slane %v7828, %v7902
    %vm7904 = vcmask 1048512
    %v7905 = vsel %vm7904, %v7903, %v7901
    %vm7906 = vcmask 1042434
    %v7907 = vsel %vm7906, %v7905, %v7905
    %vm7908 = vcmask 1043459
    %v7909 = vsel %vm7908, %v7905, %v7907
    %vm7910 = vcmask 1044484
    %v7911 = vsel %vm7910, %v7905, %v7909
    %vm7912 = vcmask 1045509
    %v7913 = vsel %vm7912, %v7905, %v7911
    %vm7914 = vcmask 1046534
    %v7915 = vsel %vm7914, %v7905, %v7913
    %vm7916 = vcmask 1047559
    %v7917 = vsel %vm7916, %v7905, %v7915
    %v7919 = vadd.f32 %v7599, %v7917
    %v7920 = vadd.f32 %v7606, %v7917
    %v7921 = vadd.f32 %v7613, %v7917
    %v7922 = vadd.f32 %v7620, %v7917
    %7923 = vmatpush.xpose.msra.mxu0 %v5312
    %7924 = vmatpush.xpose.msra.mxu0 %v5311
    %7925 = vmatpush.xpose.msra.mxu0 %v5310
    %7926 = vmatpush.xpose.msra.mxu0 %v5309
    %7927 = vmatpush.xpose.msra.mxu0 %v5308
    %7928 = vmatpush.xpose.msra.mxu0 %v5307
    %7929 = vmatpush.xpose.msra.mxu0 %v5306
    %7930 = vmatpush.xpose.msra.mxu0 %v5305
    %7931 = vmatpush.xpose.msra.mxu0 %v5304
    %7932 = vmatpush.xpose.msra.mxu0 %v5303
    %7933 = vmatpush.xpose.msra.mxu0 %v5302
    %7934 = vmatpush.xpose.msra.mxu0 %v5301
    %7935 = vmatpush.xpose.msra.mxu0 %v5300
    %7936 = vmatpush.xpose.msra.mxu0 %v5299
    %7937 = vmatpush.xpose.msra.mxu0 %v5298
    %7938 = vmatpush.xpose.msra.mxu0 %v5297
    %7939 = vmatmul.f32.gmra.mxu0 %v7371
    %v7940 = vpop.f32.mrf.mxu0
    %v7941 = vadd.f32 0.0, %v7940
    %7942 = vmatmul.f32.gmra.mxu0 %v7374
    %v7943 = vpop.f32.mrf.mxu0
    %v7944 = vadd.f32 0.0, %v7943
    %7945 = vmatmul.f32.gmra.mxu0 %v7377
    %v7946 = vpop.f32.mrf.mxu0
    %v7947 = vadd.f32 0.0, %v7946
    %7948 = vmatmul.f32.gmra.mxu0 %v7380
    %v7949 = vpop.f32.mrf.mxu0
    %v7950 = vadd.f32 0.0, %v7949
    %7951 = vdwg.mxu0
    %7952 = vmatpush.xpose.msra.mxu0 %v6294
    %7953 = vmatpush.xpose.msra.mxu0 %v6293
    %7954 = vmatpush.xpose.msra.mxu0 %v6292
    %7955 = vmatpush.xpose.msra.mxu0 %v6291
    %7956 = vmatpush.xpose.msra.mxu0 %v6290
    %7957 = vmatpush.xpose.msra.mxu0 %v6289
    %7958 = vmatpush.xpose.msra.mxu0 %v6288
    %7959 = vmatpush.xpose.msra.mxu0 %v6287
    %7960 = vmatpush.xpose.msra.mxu0 %v6286
    %7961 = vmatpush.xpose.msra.mxu0 %v6285
    %7962 = vmatpush.xpose.msra.mxu0 %v6284
    %7963 = vmatpush.xpose.msra.mxu0 %v6283
    %7964 = vmatpush.xpose.msra.mxu0 %v6282
    %7965 = vmatpush.xpose.msra.mxu0 %v6281
    %7966 = vmatpush.xpose.msra.mxu0 %v6280
    %7967 = vmatpush.xpose.msra.mxu0 %v6279
    %7968 = vmatmul.f32.gmra.mxu0 %v7400
    %v7969 = vpop.f32.mrf.mxu0
    %v7970 = vadd.f32 %v7941, %v7969
    %7971 = vmatmul.f32.gmra.mxu0 %v7403
    %v7972 = vpop.f32.mrf.mxu0
    %v7973 = vadd.f32 %v7944, %v7972
    %7974 = vmatmul.f32.gmra.mxu0 %v7406
    %v7975 = vpop.f32.mrf.mxu0
    %v7976 = vadd.f32 %v7947, %v7975
    %7977 = vmatmul.f32.gmra.mxu0 %v7409
    %v7978 = vpop.f32.mrf.mxu0
    %v7979 = vadd.f32 %v7950, %v7978
    %7980 = vdwg.mxu0
    %7981 = vmatpush.xpose.msra.mxu0 %v7292
    %7982 = vmatpush.xpose.msra.mxu0 %v7291
    %7983 = vmatpush.xpose.msra.mxu0 %v7290
    %7984 = vmatpush.xpose.msra.mxu0 %v7289
    %7985 = vmatpush.xpose.msra.mxu0 %v7288
    %7986 = vmatpush.xpose.msra.mxu0 %v7287
    %7987 = vmatpush.xpose.msra.mxu0 %v7286
    %7988 = vmatpush.xpose.msra.mxu0 %v7285
    %7989 = vmatpush.xpose.msra.mxu0 %v7284
    %7990 = vmatpush.xpose.msra.mxu0 %v7283
    %7991 = vmatpush.xpose.msra.mxu0 %v7282
    %7992 = vmatpush.xpose.msra.mxu0 %v7281
    %7993 = vmatpush.xpose.msra.mxu0 %v7280
    %7994 = vmatpush.xpose.msra.mxu0 %v7279
    %7995 = vmatpush.xpose.msra.mxu0 %v7278
    %7996 = vmatpush.xpose.msra.mxu0 %v7277
    %7997 = vmatmul.f32.gmra.mxu0 %v7429
    %v7998 = vpop.f32.mrf.mxu0
    %v7999 = vadd.f32 %v7970, %v7998
    %8000 = vmatmul.f32.gmra.mxu0 %v7432
    %v8001 = vpop.f32.mrf.mxu0
    %v8002 = vadd.f32 %v7973, %v8001
    %8003 = vmatmul.f32.gmra.mxu0 %v7435
    %v8004 = vpop.f32.mrf.mxu0
    %v8005 = vadd.f32 %v7976, %v8004
    %8006 = vmatmul.f32.gmra.mxu0 %v7438
    %v8007 = vpop.f32.mrf.mxu0
    %v8008 = vadd.f32 %v7979, %v8007
    %8009 = vdwg.mxu0
    %8010 = vmatpush.xpose.msra.mxu0 %v5328
    %8011 = vmatpush.xpose.msra.mxu0 %v5327
    %8012 = vmatpush.xpose.msra.mxu0 %v5326
    %8013 = vmatpush.xpose.msra.mxu0 %v5325
    %8014 = vmatpush.xpose.msra.mxu0 %v5324
    %8015 = vmatpush.xpose.msra.mxu0 %v5323
    %8016 = vmatpush.xpose.msra.mxu0 %v5322
    %8017 = vmatpush.xpose.msra.mxu0 %v5321
    %8018 = vmatpush.xpose.msra.mxu0 %v5320
    %8019 = vmatpush.xpose.msra.mxu0 %v5319
    %8020 = vmatpush.xpose.msra.mxu0 %v5318
    %8021 = vmatpush.xpose.msra.mxu0 %v5317
    %8022 = vmatpush.xpose.msra.mxu0 %v5316
    %8023 = vmatpush.xpose.msra.mxu0 %v5315
    %8024 = vmatpush.xpose.msra.mxu0 %v5314
    %8025 = vmatpush.xpose.msra.mxu0 %v5313
    %8026 = vmatmul.f32.gmra.mxu0 %v7458
    %v8027 = vpop.f32.mrf.mxu0
    %v8028 = vadd.f32 %v7999, %v8027
    %8029 = vmatmul.f32.gmra.mxu0 %v7461
    %v8030 = vpop.f32.mrf.mxu0
    %v8031 = vadd.f32 %v8002, %v8030
    %8032 = vmatmul.f32.gmra.mxu0 %v7464
    %v8033 = vpop.f32.mrf.mxu0
    %v8034 = vadd.f32 %v8005, %v8033
    %8035 = vmatmul.f32.gmra.mxu0 %v7467
    %v8036 = vpop.f32.mrf.mxu0
    %v8037 = vadd.f32 %v8008, %v8036
    %8038 = vdwg.mxu0
    %8039 = vmatpush.xpose.msra.mxu0 %v6326
    %8040 = vmatpush.xpose.msra.mxu0 %v6325
    %8041 = vmatpush.xpose.msra.mxu0 %v6324
    %8042 = vmatpush.xpose.msra.mxu0 %v6323
    %8043 = vmatpush.xpose.msra.mxu0 %v6322
    %8044 = vmatpush.xpose.msra.mxu0 %v6321
    %8045 = vmatpush.xpose.msra.mxu0 %v6320
    %8046 = vmatpush.xpose.msra.mxu0 %v6319
    %8047 = vmatpush.xpose.msra.mxu0 %v6318
    %8048 = vmatpush.xpose.msra.mxu0 %v6317
    %8049 = vmatpush.xpose.msra.mxu0 %v6316
    %8050 = vmatpush.xpose.msra.mxu0 %v6315
    %8051 = vmatpush.xpose.msra.mxu0 %v6314
    %8052 = vmatpush.xpose.msra.mxu0 %v6313
    %8053 = vmatpush.xpose.msra.mxu0 %v6312
    %8054 = vmatpush.xpose.msra.mxu0 %v6311
    %8055 = vmatmul.f32.gmra.mxu0 %v7487
    %v8056 = vpop.f32.mrf.mxu0
    %v8057 = vadd.f32 %v8028, %v8056
    %8058 = vmatmul.f32.gmra.mxu0 %v7490
    %v8059 = vpop.f32.mrf.mxu0
    %v8060 = vadd.f32 %v8031, %v8059
    %8061 = vmatmul.f32.gmra.mxu0 %v7493
    %v8062 = vpop.f32.mrf.mxu0
    %v8063 = vadd.f32 %v8034, %v8062
    %8064 = vmatmul.f32.gmra.mxu0 %v7496
    %v8065 = vpop.f32.mrf.mxu0
    %v8066 = vadd.f32 %v8037, %v8065
    %8067 = vdwg.mxu0
    %8068 = vmatpush.xpose.msra.mxu0 %v7324
    %8069 = vmatpush.xpose.msra.mxu0 %v7323
    %8070 = vmatpush.xpose.msra.mxu0 %v7322
    %8071 = vmatpush.xpose.msra.mxu0 %v7321
    %8072 = vmatpush.xpose.msra.mxu0 %v7320
    %8073 = vmatpush.xpose.msra.mxu0 %v7319
    %8074 = vmatpush.xpose.msra.mxu0 %v7318
    %8075 = vmatpush.xpose.msra.mxu0 %v7317
    %8076 = vmatpush.xpose.msra.mxu0 %v7316
    %8077 = vmatpush.xpose.msra.mxu0 %v7315
    %8078 = vmatpush.xpose.msra.mxu0 %v7314
    %8079 = vmatpush.xpose.msra.mxu0 %v7313
    %8080 = vmatpush.xpose.msra.mxu0 %v7312
    %8081 = vmatpush.xpose.msra.mxu0 %v7311
    %8082 = vmatpush.xpose.msra.mxu0 %v7310
    %8083 = vmatpush.xpose.msra.mxu0 %v7309
    %8084 = vmatmul.f32.gmra.mxu0 %v7516
    %v8085 = vpop.f32.mrf.mxu0
    %v8086 = vadd.f32 %v8057, %v8085
    %8087 = vmatmul.f32.gmra.mxu0 %v7519
    %v8088 = vpop.f32.mrf.mxu0
    %v8089 = vadd.f32 %v8060, %v8088
    %8090 = vmatmul.f32.gmra.mxu0 %v7522
    %v8091 = vpop.f32.mrf.mxu0
    %v8092 = vadd.f32 %v8063, %v8091
    %8093 = vmatmul.f32.gmra.mxu0 %v7525
    %v8094 = vpop.f32.mrf.mxu0
    %v8095 = vadd.f32 %v8066, %v8094
    %8096 = vdwg.mxu0
    %v8097 = vmul.f32 %v8086, 2.0
    %v8098 = vmul.f32 %v8089, 2.0
    %v8099 = vmul.f32 %v8092, 2.0
    %v8100 = vmul.f32 %v8095, 2.0
    %v8101 = vsub.f32 %v7919, %v8097
    %v8102 = vsub.f32 %v7920, %v8098
    %v8103 = vsub.f32 %v7921, %v8099
    %v8104 = vsub.f32 %v7922, %v8100
    %8106 = vset.pattern.permute.xlu0 0
    %8107 = vperm.xlu0 %8106, %v7557
    %v8108 = vpop.permute.xlu0 %8107
    %8111 = vset.pattern.permute.xlu0 0
    %8112 = vperm.xlu0 %8111, %v7564
    %v8113 = vpop.permute.xlu0 %8112
    %v8115 = vsub.f32 %v8108, %v8101
    %v8116 = vsub.f32 %v8113, %v8102
    %v8117 = vsub.f32 %v8108, %v8103
    %v8118 = vsub.f32 %v8113, %v8104
    %v8119 = vadd.f32 %v8115, 3.0
    %v8120 = vadd.f32 %v8116, 3.0
    %v8121 = vadd.f32 %v8117, 3.0
    %v8122 = vadd.f32 %v8118, 3.0
    %v8123 = vmul.f32 %v8119, %v7567
    %v8124 = vmul.f32 %v8120, %v7568
    %v8125 = vmul.f32 %v8121, %v7567
    %v8126 = vmul.f32 %v8122, %v7568
    %8127 = vadd.xlane.f32.xlu0 %v8123
    %v8128 = vpop.xlane.xlu0 %8127
    %8129 = vadd.xlane.f32.xlu0 %v8124
    %v8130 = vpop.xlane.xlu0 %8129
    %8131 = vadd.xlane.f32.xlu0 %v8125
    %v8132 = vpop.xlane.xlu0 %8131
    %8133 = vadd.xlane.f32.xlu0 %v8126
    %v8134 = vpop.xlane.xlu0 %8133
    %v8135 = vrcp.pop 128.0
    %v8136 = vmul.f32 128.0, %v8135
    %v8137 = vsub.f32 1.0, %v8136
    %v8138 = vmul.f32 %v8135, %v8137
    %v8139 = vadd.f32 %v8135, %v8138
    %vm8140 = vweird.f32 %v8135
    %v8141 = vsel %vm8140, %v8135, %v8139
    %v8142 = vmul.f32 %v8128, %v8141
    %v8143 = vmul.f32 %v8130, %v8141
    %v8144 = vmul.f32 %v8132, %v8141
    %v8145 = vmul.f32 %v8134, %v8141
    %v8146 = vsub.f32 %v8123, %v8142
    %v8147 = vsub.f32 %v8124, %v8143
    %v8148 = vsub.f32 %v8125, %v8144
    %v8149 = vsub.f32 %v8126, %v8145
    %v8150 = vmul.f32 %v8146, %v8146
    %v8151 = vmul.f32 %v8147, %v8147
    %v8152 = vmul.f32 %v8148, %v8148
    %v8153 = vmul.f32 %v8149, %v8149
    %8154 = vadd.xlane.f32.xlu0 %v8150
    %v8155 = vpop.xlane.xlu0 %8154
    %8156 = vadd.xlane.f32.xlu0 %v8151
    %v8157 = vpop.xlane.xlu0 %8156
    %8158 = vadd.xlane.f32.xlu0 %v8152
    %v8159 = vpop.xlane.xlu0 %8158
    %8160 = vadd.xlane.f32.xlu0 %v8153
    %v8161 = vpop.xlane.xlu0 %8160
    %v8162 = vmul.f32 %v8155, %v8141
    %v8163 = vmul.f32 %v8157, %v8141
    %v8164 = vmul.f32 %v8159, %v8141
    %v8165 = vmul.f32 %v8161, %v8141
    %v8166 = vrsqrt.pop %v8162
    %v8167 = vmul.f32 %v8166, %v8162
    %v8168 = vmul.f32 %v8167, %v8166
    %v8169 = vmul.f32 0.5, %v8168
    %v8170 = vsub.f32 1.5, %v8169
    %v8171 = vmul.f32 %v8166, %v8170
    %v8172 = vmul.f32 %v8162, %v8171
    %vm8173 = vcmp.eq.f32.partialorder %v8162, inf
    %v8174 = vsel %vm8173, %v8162, %v8172
    %vm8175 = vcmp.eq.f32.partialorder %v8162, 0.0
    %v8176 = vand.u32 %v8162, 2147483648
    %v8177 = vsel %vm8175, %v8176, %v8174
    %v8178 = vrsqrt.pop %v8163
    %v8179 = vmul.f32 %v8178, %v8163
    %v8180 = vmul.f32 %v8179, %v8178
    %v8181 = vmul.f32 0.5, %v8180
    %v8182 = vsub.f32 1.5, %v8181
    %v8183 = vmul.f32 %v8178, %v8182
    %v8184 = vmul.f32 %v8163, %v8183
    %vm8185 = vcmp.eq.f32.partialorder %v8163, inf
    %v8186 = vsel %vm8185, %v8163, %v8184
    %vm8187 = vcmp.eq.f32.partialorder %v8163, 0.0
    %v8188 = vand.u32 %v8163, 2147483648
    %v8189 = vsel %vm8187, %v8188, %v8186
    %v8190 = vrsqrt.pop %v8164
    %v8191 = vmul.f32 %v8190, %v8164
    %v8192 = vmul.f32 %v8191, %v8190
    %v8193 = vmul.f32 0.5, %v8192
    %v8194 = vsub.f32 1.5, %v8193
    %v8195 = vmul.f32 %v8190, %v8194
    %v8196 = vmul.f32 %v8164, %v8195
    %vm8197 = vcmp.eq.f32.partialorder %v8164, inf
    %v8198 = vsel %vm8197, %v8164, %v8196
    %vm8199 = vcmp.eq.f32.partialorder %v8164, 0.0
    %v8200 = vand.u32 %v8164, 2147483648
    %v8201 = vsel %vm8199, %v8200, %v8198
    %v8202 = vrsqrt.pop %v8165
    %v8203 = vmul.f32 %v8202, %v8165
    %v8204 = vmul.f32 %v8203, %v8202
    %v8205 = vmul.f32 0.5, %v8204
    %v8206 = vsub.f32 1.5, %v8205
    %v8207 = vmul.f32 %v8202, %v8206
    %v8208 = vmul.f32 %v8165, %v8207
    %vm8209 = vcmp.eq.f32.partialorder %v8165, inf
    %v8210 = vsel %vm8209, %v8165, %v8208
    %vm8211 = vcmp.eq.f32.partialorder %v8165, 0.0
    %v8212 = vand.u32 %v8165, 2147483648
    %v8213 = vsel %vm8211, %v8212, %v8210
    %v8214 = vmax.f32 %v8177, 1e-12
    %v8215 = vmax.f32 %v8189, 1e-12
    %v8216 = vmax.f32 %v8201, 1e-12
    %v8217 = vmax.f32 %v8213, 1e-12
    %v8218 = vrcp.pop %v8214
    %v8219 = vmul.f32 %v8214, %v8218
    %v8220 = vsub.f32 1.0, %v8219
    %v8221 = vmul.f32 %v8218, %v8220
    %v8222 = vadd.f32 %v8218, %v8221
    %vm8223 = vweird.f32 %v8214
    %vm8224 = vweird.f32 %v8218
    %vm8225 = vmor %vm8223, %vm8224
    %v8226 = vsel %vm8225, %v8218, %v8222
    %v8227 = vand.u32 2147483647, %v8214
    %vm8228 = vcmp.eq.f32.partialorder %v8227, 8.507059e+37
    %v8229 = vand.u32 %v8214, 2147483648
    %v8230 = vor.u32 1.1754944e-38, %v8229
    %v8231 = vsel %vm8228, %v8230, %v8226
    %v8232 = vmul.f32 %v8146, %v8231
    %v8233 = vrcp.pop %v8215
    %v8234 = vmul.f32 %v8215, %v8233
    %v8235 = vsub.f32 1.0, %v8234
    %v8236 = vmul.f32 %v8233, %v8235
    %v8237 = vadd.f32 %v8233, %v8236
    %vm8238 = vweird.f32 %v8215
    %vm8239 = vweird.f32 %v8233
    %vm8240 = vmor %vm8238, %vm8239
    %v8241 = vsel %vm8240, %v8233, %v8237
    %v8242 = vand.u32 2147483647, %v8215
    %vm8243 = vcmp.eq.f32.partialorder %v8242, 8.507059e+37
    %v8244 = vand.u32 %v8215, 2147483648
    %v8245 = vor.u32 1.1754944e-38, %v8244
    %v8246 = vsel %vm8243, %v8245, %v8241
    %v8247 = vmul.f32 %v8147, %v8246
    %v8248 = vrcp.pop %v8216
    %v8249 = vmul.f32 %v8216, %v8248
    %v8250 = vsub.f32 1.0, %v8249
    %v8251 = vmul.f32 %v8248, %v8250
    %v8252 = vadd.f32 %v8248, %v8251
    %vm8253 = vweird.f32 %v8216
    %vm8254 = vweird.f32 %v8248
    %vm8255 = vmor %vm8253, %vm8254
    %v8256 = vsel %vm8255, %v8248, %v8252
    %v8257 = vand.u32 2147483647, %v8216
    %vm8258 = vcmp.eq.f32.partialorder %v8257, 8.507059e+37
    %v8259 = vand.u32 %v8216, 2147483648
    %v8260 = vor.u32 1.1754944e-38, %v8259
    %v8261 = vsel %vm8258, %v8260, %v8256
    %v8262 = vmul.f32 %v8148, %v8261
    %v8263 = vrcp.pop %v8217
    %v8264 = vmul.f32 %v8217, %v8263
    %v8265 = vsub.f32 1.0, %v8264
    %v8266 = vmul.f32 %v8263, %v8265
    %v8267 = vadd.f32 %v8263, %v8266
    %vm8268 = vweird.f32 %v8217
    %vm8269 = vweird.f32 %v8263
    %vm8270 = vmor %vm8268, %vm8269
    %v8271 = vsel %vm8270, %v8263, %v8267
    %v8272 = vand.u32 2147483647, %v8217
    %vm8273 = vcmp.eq.f32.partialorder %v8272, 8.507059e+37
    %v8274 = vand.u32 %v8217, 2147483648
    %v8275 = vor.u32 1.1754944e-38, %v8274
    %v8276 = vsel %vm8273, %v8275, %v8271
    %v8277 = vmul.f32 %v8149, %v8276
    %v8278 = vmul.f32 %v8232, 20.0
    %v8279 = vmul.f32 %v8247, 20.0
    %v8280 = vmul.f32 %v8262, 20.0
    %v8281 = vmul.f32 %v8277, 20.0
    %v8282 = vadd.f32 %v8278, 8.0
    %v8283 = vadd.f32 %v8279, 8.0
    %v8284 = vadd.f32 %v8280, 8.0
    %v8285 = vadd.f32 %v8281, 8.0
    %8286 = vmax.xlane.f32.xlu0 %v8282
    %v8287 = vpop.xlane.xlu0 %8286
    %8288 = vmax.xlane.f32.xlu0 %v8283
    %v8289 = vpop.xlane.xlu0 %8288
    %8290 = vmax.xlane.f32.xlu0 %v8284
    %v8291 = vpop.xlane.xlu0 %8290
    %8292 = vmax.xlane.f32.xlu0 %v8285
    %v8293 = vpop.xlane.xlu0 %8292
    %v8294 = vsub.f32 %v8282, %v8287
    %v8295 = vsub.f32 %v8283, %v8289
    %v8296 = vsub.f32 %v8284, %v8291
    %v8297 = vsub.f32 %v8285, %v8293
    %v8298 = vmul.f32 %v8294, 1.442695
    %v8299 = vpow.pop %v8298
    %v8300 = vmul.f32 %v8295, 1.442695
    %v8301 = vpow.pop %v8300
    %v8302 = vmul.f32 %v8296, 1.442695
    %v8303 = vpow.pop %v8302
    %v8304 = vmul.f32 %v8297, 1.442695
    %v8305 = vpow.pop %v8304
    %8306 = vadd.xlane.f32.xlu0 %v8299
    %v8307 = vpop.xlane.xlu0 %8306
    %8308 = vadd.xlane.f32.xlu0 %v8301
    %v8309 = vpop.xlane.xlu0 %8308
    %8310 = vadd.xlane.f32.xlu0 %v8303
    %v8311 = vpop.xlane.xlu0 %8310
    %8312 = vadd.xlane.f32.xlu0 %v8305
    %v8313 = vpop.xlane.xlu0 %8312
    %v8314 = vlog2.pop %v8307
    %v8315 = vmul.f32 %v8314, 0.6931472
    %v8316 = vlog2.pop %v8309
    %v8317 = vmul.f32 %v8316, 0.6931472
    %v8318 = vlog2.pop %v8311
    %v8319 = vmul.f32 %v8318, 0.6931472
    %v8320 = vlog2.pop %v8313
    %v8321 = vmul.f32 %v8320, 0.6931472
    %v8322 = vadd.f32 %v8287, %v8315
    %v8323 = vadd.f32 %v8289, %v8317
    %v8324 = vadd.f32 %v8291, %v8319
    %v8325 = vadd.f32 %v8293, %v8321
    %v8326 = vadd.f32 %v8322, %v8323
    %v8327 = vadd.f32 %v8326, %v8324
    %v8328 = vadd.f32 %v8327, %v8325
    %v8329 = vrot.slane %v8328, 4
    %v8330 = vadd.f32 %v8328, %v8329
    %v8331 = vrot.slane %v8330, 2
    %v8332 = vadd.f32 %v8330, %v8331
    %v8333 = vrot.slane %v8332, 1
    %v8334 = vadd.f32 %v8332, %v8333
    %v8335 = vrcp.pop 16.0
    %v8336 = vmul.f32 16.0, %v8335
    %v8337 = vsub.f32 1.0, %v8336
    %v8338 = vmul.f32 %v8335, %v8337
    %v8339 = vadd.f32 %v8335, %v8338
    %vm8340 = vweird.f32 %v8335
    %v8341 = vsel %vm8340, %v8335, %v8339
    %v8342 = vmul.f32 %v8334, %v8341
    %vm8343 = vcmask 0
    %8344 = vst.msk [vmem:[#allocation2] sm:$0x1] %vm8343, %v8342
    // Predicated region
    $region38: #{tpu_custom_call.1} parent=1 // pred_check
      _
    $region39: #{tpu_custom_call.1} parent=1 // pred_check_branch
      %8346 = sbr.rel (0) target = $region41
    $region40: #{tpu_custom_call.1} parent=1 // pred_region
      %8348 = vsyncadd [#allocation3], 0
      %s8350 = sshll.u32 [#allocation2], 4
      %s8351 = int_to_ptr.vmem [resolvable:$true] %s8350
      %s8352 = sshll.u32 %s9, 4
      %s8353 = int_to_ptr.hbm [resolvable:$true] %s8352
      %8355 = dma.vmem_to_hbm [thread:$0]  %s8351, 16, %s8353, [#allocation3]
    $region41: #{tpu_custom_call.1} parent=1 // pred_fallthru
      _
    // Predicated region
    $region42: #{tpu_custom_call.1} parent=1 // pred_check
      _
    $region43: #{tpu_custom_call.1} parent=1 // pred_check_branch
      %8357 = sbr.rel (0) target = $region45
    $region44: #{tpu_custom_call.1} parent=1 // pred_region
      %8359 = dma.done [#allocation3], 16
    $region45: #{tpu_custom_call.1} parent=1 // pred_fallthru
      _
    %8360 = vsyncpa [#allocation3], 1

</llo_original>
